<compile_context>
chip_gen: v6e
topology: v6e:2x2x1
jax: 0.10.0
libtpu: 0.0.40
codegen_flags: <defaults>
</compile_context>

<pallas_src>
import jax
import jax.numpy as jnp
from jax import lax
from jax.experimental import pallas as pl
from jax.experimental.pallas import tpu as pltpu

F32 = jnp.float32


# ----------------------------------------------------------------------------
# Single fused kernel: convs -> LSTM -> head, whole forward pass.
# ----------------------------------------------------------------------------
def fused_lstm3_kernel(x_ref, w11_ref, b11_ref, w12_ref, b12_ref,
                       w21_ref, b21_ref, w22a_ref, w22b_ref, b22_ref,
                       wih_ref, whh_ref, bg_ref,
                       wl1_ref, bl1_ref, wl2_ref, bl2_ref, o_ref):
    B, L, C = x_ref.shape          # B = LSTM time axis, L = LSTM "batch"
    H = whh_ref.shape[0]           # 64

    def mm(a, b):
        return jnp.dot(a, b, preferred_element_type=F32)

    # Exact 0/1 row-shift matrices for the padding=1, k=3 convolutions:
    #   (sd @ y)[l] = y[l-1]  (row 0   -> 0)
    #   (su @ y)[l] = y[l+1]  (row L-1 -> 0)
    rows = lax.broadcasted_iota(jnp.int32, (L, L), 0)
    cols = lax.broadcasted_iota(jnp.int32, (L, L), 1)
    sd = (rows == cols + 1).astype(F32)
    su = (rows == cols - 1).astype(F32)

    h = jnp.zeros((L, H), F32)
    c = jnp.zeros((L, H), F32)

    for t in range(B):                                   # fully unrolled time loop
        x_t = x_ref[t]                                   # (L, C), para pre-folded
        xd = mm(sd, x_t)
        xu = mm(su, x_t)

        # ---- stage-1 convs (out channels padded 120 -> 128, zeros) ----
        o1 = mm(x_t, w11_ref[...]) + b11_ref[...]                       # k=1
        o2 = (mm(xd, w12_ref[0]) + mm(x_t, w12_ref[1])                  # k=3
              + mm(xu, w12_ref[2]) + b12_ref[...])

        # ---- stage-2 convs on h1 = [o1 | o2] (weights pre-split) ----
        o1d, o1u = mm(sd, o1), mm(su, o1)
        o2d, o2u = mm(sd, o2), mm(su, o2)
        q1 = mm(o1, w21_ref[0]) + mm(o2, w21_ref[1]) + b21_ref[...]     # k=1
        q2 = (mm(o1d, w22a_ref[0]) + mm(o2d, w22b_ref[0])               # k=3
              + mm(o1, w22a_ref[1]) + mm(o2, w22b_ref[1])
              + mm(o1u, w22a_ref[2]) + mm(o2u, w22b_ref[2]) + b22_ref[...])

        # ---- LSTM cell: 4 gates fused into one 256-wide matmul pair ----
        gates = (mm(q1, wih_ref[0]) + mm(q2, wih_ref[1])
                 + mm(h, whh_ref[...]) + bg_ref[...])                   # (L, 4H)
        i_g = jax.nn.sigmoid(gates[:, 0:H])
        f_g = jax.nn.sigmoid(gates[:, H:2 * H])
        g_g = jnp.tanh(gates[:, 2 * H:3 * H])
        o_g = jax.nn.sigmoid(gates[:, 3 * H:4 * H])
        c = f_g * c + i_g * g_g
        h = o_g * jnp.tanh(c)

        # ---- head: lay1 -> lay2 -> softmax(dim=1); row t depends on h only ----
        z = bl1_ref[...]                                                # (1, 32)
        for l in range(L):
            z = z + mm(h[l:l + 1, :], wl1_ref[l])
        z = mm(z, wl2_ref[...]) + bl2_ref[...]                          # (1, 2)
        z = z - jnp.max(z, axis=-1, keepdims=True)
        e = jnp.exp(z)
        o_ref[pl.ds(t, 1), :] = e / jnp.sum(e, axis=-1, keepdims=True)


def _full_spec(arr):
    if arr.ndim == 2:
        return pl.BlockSpec(arr.shape, lambda i: (0, 0))
    return pl.BlockSpec(arr.shape, lambda i: (0, 0, 0))


def forward_pallas(x, p):
    B, C, L = x.shape
    H = p["w_hh"].shape[1]                                             # 64
    para = p["para"]

    # stage-1 conv weights: fold 'para' in, pad 120 -> 128 output channels.
    w11 = jnp.pad((p["w11"] * para[None, :]).T, ((0, 0), (0, 8)))      # (C,128)
    b11 = jnp.pad(p["b11"], (0, 8))[None, :]                           # (1,128)
    w12 = jnp.stack([jnp.pad((p["w12"][:, :, k] * para[None, :]).T,
                             ((0, 0), (0, 8))) for k in range(3)])     # (3,C,128)
    b12 = jnp.pad(p["b12"], (0, 8))[None, :]                           # (1,128)

    # stage-2 conv weights: split 240 input channels into o1/o2 halves
    # (kernel never concatenates) and zero-pad rows 120 -> 128 to match.
    w21t = p["w21"].T                                                  # (240,64)
    w21 = jnp.stack([jnp.pad(w21t[:120], ((0, 8), (0, 0))),
                     jnp.pad(w21t[120:], ((0, 8), (0, 0)))])           # (2,128,64)
    b21 = p["b21"][None, :]
    w22a = jnp.stack([jnp.pad(p["w22"][:, :120, k].T, ((0, 8), (0, 0)))
                      for k in range(3)])                              # (3,128,64)
    w22b = jnp.stack([jnp.pad(p["w22"][:, 120:, k].T, ((0, 8), (0, 0)))
                      for k in range(3)])                              # (3,128,64)
    b22 = p["b22"][None, :]

    # LSTM: fuse the 4 gates -> (in, 256); split the 128 inputs into q1/q2.
    wih_t = p["w_ih"].T                                                # (128,256)
    wih = jnp.stack([wih_t[:H], wih_t[H:]])                            # (2,64,256)
    whh = p["w_hh"].T                                                  # (64,256)
    bg = (p["b_ih"] + p["b_hh"])[None, :]                              # (1,256)

    # head
    wl1 = p["wl1"].T.reshape(L, H, 32)                                 # (L,64,32)
    bl1 = p["bl1"][None, :]
    wl2 = p["wl2"].T                                                   # (32,2)
    bl2 = p["bl2"][None, :]

    x_nlc = jnp.transpose(x, (0, 2, 1))                                # (B,L,C)

    operands = (x_nlc, w11, b11, w12, b12, w21, b21, w22a, w22b, b22,
                wih, whh, bg, wl1, bl1, wl2, bl2)

    return pl.pallas_call(
        fused_lstm3_kernel,
        out_shape=jax.ShapeDtypeStruct((B, 2), F32),
        grid=(1,),
        in_specs=[_full_spec(a) for a in operands],
        out_specs=pl.BlockSpec((B, 2), lambda i: (0, 0)),
        compiler_params=pltpu.CompilerParams(
            dimension_semantics=("arbitrary",)),
    )(*operands)


# ----------------------------------------------------------------------------
# Parameters (deterministic, PyTorch-default-like uniform init).
# ----------------------------------------------------------------------------
def init_params(key, channel, seq_len):
    ks = jax.random.split(key, 17)

    def u(k, shape, bound):
        return jax.random.uniform(k, shape, F32, -bound, bound)

    H = 64
    p = {}
    p["para"] = jax.random.uniform(ks[0], (channel,), F32)      # torch.rand
    b = 1.0 / (channel ** 0.5)
    p["w11"], p["b11"] = u(ks[1], (120, channel), b), u(ks[2], (120,), b)
    b = 1.0 / ((channel * 3) ** 0.5)
    p["w12"], p["b12"] = u(ks[3], (120, channel, 3), b), u(ks[4], (120,), b)
    b = 1.0 / (240.0 ** 0.5)
    p["w21"], p["b21"] = u(ks[5], (64, 240), b), u(ks[6], (64,), b)
    b = 1.0 / ((240 * 3) ** 0.5)
    p["w22"], p["b22"] = u(ks[7], (64, 240, 3), b), u(ks[8], (64,), b)
    b = 1.0 / (H ** 0.5)
    p["w_ih"], p["w_hh"] = u(ks[9], (4 * H, 128), b), u(ks[10], (4 * H, H), b)
    p["b_ih"], p["b_hh"] = u(ks[11], (4 * H,), b), u(ks[12], (4 * H,), b)
    b = 1.0 / ((64 * seq_len) ** 0.5)
    p["wl1"], p["bl1"] = u(ks[13], (32, 64 * seq_len), b), u(ks[14], (32,), b)
    b = 1.0 / (32.0 ** 0.5)
    p["wl2"], p["bl2"] = u(ks[15], (2, 32), b), u(ks[16], (2,), b)
    return p


# ----------------------------------------------------------------------------
# Pure-JAX reference (for correctness check only).
# ----------------------------------------------------------------------------
def forward_ref(x, p):
    B, C, L = x.shape
    hi = lax.Precision.HIGHEST
    H = 64
    xs = x * p["para"][None, :, None]
    xp = jnp.pad(xs, ((0, 0), (0, 0), (1, 1)))
    h11 = jnp.einsum("oc,bcl->bol", p["w11"], xs, precision=hi) \
        + p["b11"][None, :, None]
    h12 = sum(jnp.einsum("oc,bcl->bol", p["w12"][:, :, k], xp[:, :, k:k + L],
                         precision=hi) for k in range(3)) \
        + p["b12"][None, :, None]
    h1 = jnp.concatenate([h11, h12], axis=1)
    h1p = jnp.pad(h1, ((0, 0), (0, 0), (1, 1)))
    h21 = jnp.einsum("oc,bcl->bol", p["w21"], h1, precision=hi) \
        + p["b21"][None, :, None]
    h22 = sum(jnp.einsum("oc,bcl->bol", p["w22"][:, :, k], h1p[:, :, k:k + L],
                         precision=hi) for k in range(3)) \
        + p["b22"][None, :, None]
    h2 = jnp.concatenate([h21, h22], axis=1)                  # (B, 128, L)
    seq = jnp.transpose(h2, (0, 2, 1))                        # (B, L, 128)

    def step(carry, x_t):
        h, c = carry
        gates = (jnp.dot(x_t, p["w_ih"].T, precision=hi)
                 + jnp.dot(h, p["w_hh"].T, precision=hi)
                 + p["b_ih"][None, :] + p["b_hh"][None, :])
        i = jax.nn.sigmoid(gates[:, 0:H])
        f = jax.nn.sigmoid(gates[:, H:2 * H])
        g = jnp.tanh(gates[:, 2 * H:3 * H])
        o = jax.nn.sigmoid(gates[:, 3 * H:4 * H])
        c = f * c + i * g
        h = o * jnp.tanh(c)
        return (h, c), h

    init = (jnp.zeros((L, H), F32), jnp.zeros((L, H), F32))
    _, hs = lax.scan(step, init, seq)                         # (B, L, 64)
    flat = hs.reshape(B, L * H)
    z = jnp.dot(flat, p["wl1"].T, precision=hi) + p["bl1"]
    z = jnp.dot(z, p["wl2"].T, precision=hi) + p["bl2"]
    return jax.nn.softmax(z, axis=1)


if __name__ == "__main__":
    B, C, L = 4, 24, 5          # batch, channel, seq_len (lay1 expects 64*L)
    key = jax.random.PRNGKey(0)
    kx, kp = jax.random.split(key)
    x = jax.random.normal(kx, (B, C, L), F32)
    params = init_params(kp, C, L)

    out = jax.block_until_ready(jax.jit(forward_pallas)(x, params))
    ref = jax.block_until_ready(jax.jit(forward_ref)(x, params))

    assert out.shape == (B, 2)
    assert bool(jnp.all(jnp.isfinite(out)))
    assert bool(jnp.allclose(out, ref, atol=1e-3, rtol=1e-3)), (out, ref)
    print("KERNEL_OK")
</pallas_src>

<mosaic_0001>
module attributes {stable_mosaic.version = 11 : i64} {
  func.func @fused_lstm3_kernel(%arg0: i32, %arg1: memref<4x5x24xf32, #tpu.memory_space<vmem>>, %arg2: memref<24x128xf32, #tpu.memory_space<vmem>>, %arg3: memref<1x128xf32, #tpu.memory_space<vmem>>, %arg4: memref<3x24x128xf32, #tpu.memory_space<vmem>>, %arg5: memref<1x128xf32, #tpu.memory_space<vmem>>, %arg6: memref<2x128x64xf32, #tpu.memory_space<vmem>>, %arg7: memref<1x64xf32, #tpu.memory_space<vmem>>, %arg8: memref<3x128x64xf32, #tpu.memory_space<vmem>>, %arg9: memref<3x128x64xf32, #tpu.memory_space<vmem>>, %arg10: memref<1x64xf32, #tpu.memory_space<vmem>>, %arg11: memref<2x64x256xf32, #tpu.memory_space<vmem>>, %arg12: memref<64x256xf32, #tpu.memory_space<vmem>>, %arg13: memref<1x256xf32, #tpu.memory_space<vmem>>, %arg14: memref<5x64x32xf32, #tpu.memory_space<vmem>>, %arg15: memref<1x32xf32, #tpu.memory_space<vmem>>, %arg16: memref<32x2xf32, #tpu.memory_space<vmem>>, %arg17: memref<1x2xf32, #tpu.memory_space<vmem>>, %arg18: memref<4x2xf32, #tpu.memory_space<vmem>>) attributes {dimension_semantics = [#tpu.dimension_semantics<arbitrary>], iteration_bounds = array<i64: 1>, scalar_prefetch = 0 : i64, scratch_operands = 0 : i64, tpu.core_type = #tpu.core_type<tc>, window_params = [{pipeline_mode = #tpu.pipeline_mode<synchronous>, transform_indices = @transform_0, window_bounds = array<i64: 4, 5, 24>}, {pipeline_mode = #tpu.pipeline_mode<synchronous>, transform_indices = @transform_1, window_bounds = array<i64: 24, 128>}, {pipeline_mode = #tpu.pipeline_mode<synchronous>, transform_indices = @transform_2, window_bounds = array<i64: 1, 128>}, {pipeline_mode = #tpu.pipeline_mode<synchronous>, transform_indices = @transform_3, window_bounds = array<i64: 3, 24, 128>}, {pipeline_mode = #tpu.pipeline_mode<synchronous>, transform_indices = @transform_4, window_bounds = array<i64: 1, 128>}, {pipeline_mode = #tpu.pipeline_mode<synchronous>, transform_indices = @transform_5, window_bounds = array<i64: 2, 128, 64>}, {pipeline_mode = #tpu.pipeline_mode<synchronous>, transform_indices = @transform_6, window_bounds = array<i64: 1, 64>}, {pipeline_mode = #tpu.pipeline_mode<synchronous>, transform_indices = @transform_7, window_bounds = array<i64: 3, 128, 64>}, {pipeline_mode = #tpu.pipeline_mode<synchronous>, transform_indices = @transform_8, window_bounds = array<i64: 3, 128, 64>}, {pipeline_mode = #tpu.pipeline_mode<synchronous>, transform_indices = @transform_9, window_bounds = array<i64: 1, 64>}, {pipeline_mode = #tpu.pipeline_mode<synchronous>, transform_indices = @transform_10, window_bounds = array<i64: 2, 64, 256>}, {pipeline_mode = #tpu.pipeline_mode<synchronous>, transform_indices = @transform_11, window_bounds = array<i64: 64, 256>}, {pipeline_mode = #tpu.pipeline_mode<synchronous>, transform_indices = @transform_12, window_bounds = array<i64: 1, 256>}, {pipeline_mode = #tpu.pipeline_mode<synchronous>, transform_indices = @transform_13, window_bounds = array<i64: 5, 64, 32>}, {pipeline_mode = #tpu.pipeline_mode<synchronous>, transform_indices = @transform_14, window_bounds = array<i64: 1, 32>}, {pipeline_mode = #tpu.pipeline_mode<synchronous>, transform_indices = @transform_15, window_bounds = array<i64: 32, 2>}, {pipeline_mode = #tpu.pipeline_mode<synchronous>, transform_indices = @transform_16, window_bounds = array<i64: 1, 2>}, {pipeline_mode = #tpu.pipeline_mode<synchronous>, transform_indices = @transform_17, window_bounds = array<i64: 4, 2>}]} {
    %0 = tpu.iota {dimensions = array<i32: 0>} : vector<5x5xi32>
    %1 = tpu.iota {dimensions = array<i32: 1>} : vector<5x5xi32>
    %c1_i32 = arith.constant 1 : i32
    %2 = vector.broadcast %c1_i32 : i32 to vector<5x5xi32>
    %3 = arith.addi %1, %2 : vector<5x5xi32>
    %4 = arith.cmpi eq, %0, %3 : vector<5x5xi32>
    %5 = arith.extui %4 : vector<5x5xi1> to vector<5x5xi32>
    %6 = arith.sitofp %5 : vector<5x5xi32> to vector<5x5xf32>
    %c1_i32_0 = arith.constant 1 : i32
    %7 = vector.broadcast %c1_i32_0 : i32 to vector<5x5xi32>
    %8 = arith.subi %1, %7 : vector<5x5xi32>
    %9 = arith.cmpi eq, %0, %8 : vector<5x5xi32>
    %10 = arith.extui %9 : vector<5x5xi1> to vector<5x5xi32>
    %11 = arith.sitofp %10 : vector<5x5xi32> to vector<5x5xf32>
    %cst = arith.constant 0.000000e+00 : f32
    %12 = vector.broadcast %cst : f32 to vector<5x64xf32>
    %cst_1 = arith.constant 0.000000e+00 : f32
    %13 = vector.broadcast %cst_1 : f32 to vector<5x64xf32>
    %c0 = arith.constant 0 : index
    %c0_2 = arith.constant 0 : index
    %c0_3 = arith.constant 0 : index
    %14 = vector.load %arg1[%c0, %c0_2, %c0_3] : memref<4x5x24xf32, #tpu.memory_space<vmem>>, vector<1x5x24xf32>
    %15 = vector.shape_cast %14 : vector<1x5x24xf32> to vector<5x24xf32>
    %cst_4 = arith.constant dense<0.000000e+00> : vector<5x24xf32>
    %16 = tpu.matmul %6, %15, %cst_4 {dimension_numbers = #tpu.dot_dimension_numbers<[1], [0], [0], [1], [0, 0, 1, 1], [], []>} : vector<5x5xf32>, vector<5x24xf32>, vector<5x24xf32> -> vector<5x24xf32>
    %cst_5 = arith.constant dense<0.000000e+00> : vector<5x24xf32>
    %17 = tpu.matmul %11, %15, %cst_5 {dimension_numbers = #tpu.dot_dimension_numbers<[1], [0], [0], [1], [0, 0, 1, 1], [], []>} : vector<5x5xf32>, vector<5x24xf32>, vector<5x24xf32> -> vector<5x24xf32>
    %c0_6 = arith.constant 0 : index
    %c0_7 = arith.constant 0 : index
    %18 = vector.load %arg2[%c0_6, %c0_7] : memref<24x128xf32, #tpu.memory_space<vmem>>, vector<24x128xf32>
    %cst_8 = arith.constant dense<0.000000e+00> : vector<5x128xf32>
    %19 = tpu.matmul %15, %18, %cst_8 {dimension_numbers = #tpu.dot_dimension_numbers<[1], [0], [0], [1], [0, 0, 1, 1], [], []>} : vector<5x24xf32>, vector<24x128xf32>, vector<5x128xf32> -> vector<5x128xf32>
    %c0_9 = arith.constant 0 : index
    %c0_10 = arith.constant 0 : index
    %20 = vector.load %arg3[%c0_9, %c0_10] : memref<1x128xf32, #tpu.memory_space<vmem>>, vector<1x128xf32>
    %21 = vector.broadcast %20 : vector<1x128xf32> to vector<5x128xf32>
    %22 = arith.addf %19, %21 : vector<5x128xf32>
    %c0_11 = arith.constant 0 : index
    %c0_12 = arith.constant 0 : index
    %c0_13 = arith.constant 0 : index
    %23 = vector.load %arg4[%c0_11, %c0_12, %c0_13] : memref<3x24x128xf32, #tpu.memory_space<vmem>>, vector<1x24x128xf32>
    %24 = vector.shape_cast %23 : vector<1x24x128xf32> to vector<24x128xf32>
    %cst_14 = arith.constant dense<0.000000e+00> : vector<5x128xf32>
    %25 = tpu.matmul %16, %24, %cst_14 {dimension_numbers = #tpu.dot_dimension_numbers<[1], [0], [0], [1], [0, 0, 1, 1], [], []>} : vector<5x24xf32>, vector<24x128xf32>, vector<5x128xf32> -> vector<5x128xf32>
    %c1 = arith.constant 1 : index
    %c0_15 = arith.constant 0 : index
    %c0_16 = arith.constant 0 : index
    %26 = vector.load %arg4[%c1, %c0_15, %c0_16] : memref<3x24x128xf32, #tpu.memory_space<vmem>>, vector<1x24x128xf32>
    %27 = vector.shape_cast %26 : vector<1x24x128xf32> to vector<24x128xf32>
    %cst_17 = arith.constant dense<0.000000e+00> : vector<5x128xf32>
    %28 = tpu.matmul %15, %27, %cst_17 {dimension_numbers = #tpu.dot_dimension_numbers<[1], [0], [0], [1], [0, 0, 1, 1], [], []>} : vector<5x24xf32>, vector<24x128xf32>, vector<5x128xf32> -> vector<5x128xf32>
    %29 = arith.addf %25, %28 : vector<5x128xf32>
    %c2 = arith.constant 2 : index
    %c0_18 = arith.constant 0 : index
    %c0_19 = arith.constant 0 : index
    %30 = vector.load %arg4[%c2, %c0_18, %c0_19] : memref<3x24x128xf32, #tpu.memory_space<vmem>>, vector<1x24x128xf32>
    %31 = vector.shape_cast %30 : vector<1x24x128xf32> to vector<24x128xf32>
    %cst_20 = arith.constant dense<0.000000e+00> : vector<5x128xf32>
    %32 = tpu.matmul %17, %31, %cst_20 {dimension_numbers = #tpu.dot_dimension_numbers<[1], [0], [0], [1], [0, 0, 1, 1], [], []>} : vector<5x24xf32>, vector<24x128xf32>, vector<5x128xf32> -> vector<5x128xf32>
    %33 = arith.addf %29, %32 : vector<5x128xf32>
    %c0_21 = arith.constant 0 : index
    %c0_22 = arith.constant 0 : index
    %34 = vector.load %arg5[%c0_21, %c0_22] : memref<1x128xf32, #tpu.memory_space<vmem>>, vector<1x128xf32>
    %35 = vector.broadcast %34 : vector<1x128xf32> to vector<5x128xf32>
    %36 = arith.addf %33, %35 : vector<5x128xf32>
    %cst_23 = arith.constant dense<0.000000e+00> : vector<5x128xf32>
    %37 = tpu.matmul %6, %22, %cst_23 {dimension_numbers = #tpu.dot_dimension_numbers<[1], [0], [0], [1], [0, 0, 1, 1], [], []>} : vector<5x5xf32>, vector<5x128xf32>, vector<5x128xf32> -> vector<5x128xf32>
    %cst_24 = arith.constant dense<0.000000e+00> : vector<5x128xf32>
    %38 = tpu.matmul %11, %22, %cst_24 {dimension_numbers = #tpu.dot_dimension_numbers<[1], [0], [0], [1], [0, 0, 1, 1], [], []>} : vector<5x5xf32>, vector<5x128xf32>, vector<5x128xf32> -> vector<5x128xf32>
    %cst_25 = arith.constant dense<0.000000e+00> : vector<5x128xf32>
    %39 = tpu.matmul %6, %36, %cst_25 {dimension_numbers = #tpu.dot_dimension_numbers<[1], [0], [0], [1], [0, 0, 1, 1], [], []>} : vector<5x5xf32>, vector<5x128xf32>, vector<5x128xf32> -> vector<5x128xf32>
    %cst_26 = arith.constant dense<0.000000e+00> : vector<5x128xf32>
    %40 = tpu.matmul %11, %36, %cst_26 {dimension_numbers = #tpu.dot_dimension_numbers<[1], [0], [0], [1], [0, 0, 1, 1], [], []>} : vector<5x5xf32>, vector<5x128xf32>, vector<5x128xf32> -> vector<5x128xf32>
    %c0_27 = arith.constant 0 : index
    %c0_28 = arith.constant 0 : index
    %c0_29 = arith.constant 0 : index
    %41 = vector.load %arg6[%c0_27, %c0_28, %c0_29] : memref<2x128x64xf32, #tpu.memory_space<vmem>>, vector<1x128x64xf32>
    %42 = vector.shape_cast %41 : vector<1x128x64xf32> to vector<128x64xf32>
    %cst_30 = arith.constant dense<0.000000e+00> : vector<5x64xf32>
    %43 = tpu.matmul %22, %42, %cst_30 {dimension_numbers = #tpu.dot_dimension_numbers<[1], [0], [0], [1], [0, 0, 1, 1], [], []>} : vector<5x128xf32>, vector<128x64xf32>, vector<5x64xf32> -> vector<5x64xf32>
    %c1_31 = arith.constant 1 : index
    %c0_32 = arith.constant 0 : index
    %c0_33 = arith.constant 0 : index
    %44 = vector.load %arg6[%c1_31, %c0_32, %c0_33] : memref<2x128x64xf32, #tpu.memory_space<vmem>>, vector<1x128x64xf32>
    %45 = vector.shape_cast %44 : vector<1x128x64xf32> to vector<128x64xf32>
    %cst_34 = arith.constant dense<0.000000e+00> : vector<5x64xf32>
    %46 = tpu.matmul %36, %45, %cst_34 {dimension_numbers = #tpu.dot_dimension_numbers<[1], [0], [0], [1], [0, 0, 1, 1], [], []>} : vector<5x128xf32>, vector<128x64xf32>, vector<5x64xf32> -> vector<5x64xf32>
    %47 = arith.addf %43, %46 : vector<5x64xf32>
    %c0_35 = arith.constant 0 : index
    %c0_36 = arith.constant 0 : index
    %48 = vector.load %arg7[%c0_35, %c0_36] : memref<1x64xf32, #tpu.memory_space<vmem>>, vector<1x64xf32>
    %49 = vector.broadcast %48 : vector<1x64xf32> to vector<5x64xf32>
    %50 = arith.addf %47, %49 : vector<5x64xf32>
    %c0_37 = arith.constant 0 : index
    %c0_38 = arith.constant 0 : index
    %c0_39 = arith.constant 0 : index
    %51 = vector.load %arg8[%c0_37, %c0_38, %c0_39] : memref<3x128x64xf32, #tpu.memory_space<vmem>>, vector<1x128x64xf32>
    %52 = vector.shape_cast %51 : vector<1x128x64xf32> to vector<128x64xf32>
    %cst_40 = arith.constant dense<0.000000e+00> : vector<5x64xf32>
    %53 = tpu.matmul %37, %52, %cst_40 {dimension_numbers = #tpu.dot_dimension_numbers<[1], [0], [0], [1], [0, 0, 1, 1], [], []>} : vector<5x128xf32>, vector<128x64xf32>, vector<5x64xf32> -> vector<5x64xf32>
    %c0_41 = arith.constant 0 : index
    %c0_42 = arith.constant 0 : index
    %c0_43 = arith.constant 0 : index
    %54 = vector.load %arg9[%c0_41, %c0_42, %c0_43] : memref<3x128x64xf32, #tpu.memory_space<vmem>>, vector<1x128x64xf32>
    %55 = vector.shape_cast %54 : vector<1x128x64xf32> to vector<128x64xf32>
    %cst_44 = arith.constant dense<0.000000e+00> : vector<5x64xf32>
    %56 = tpu.matmul %39, %55, %cst_44 {dimension_numbers = #tpu.dot_dimension_numbers<[1], [0], [0], [1], [0, 0, 1, 1], [], []>} : vector<5x128xf32>, vector<128x64xf32>, vector<5x64xf32> -> vector<5x64xf32>
    %57 = arith.addf %53, %56 : vector<5x64xf32>
    %c1_45 = arith.constant 1 : index
    %c0_46 = arith.constant 0 : index
    %c0_47 = arith.constant 0 : index
    %58 = vector.load %arg8[%c1_45, %c0_46, %c0_47] : memref<3x128x64xf32, #tpu.memory_space<vmem>>, vector<1x128x64xf32>
    %59 = vector.shape_cast %58 : vector<1x128x64xf32> to vector<128x64xf32>
    %cst_48 = arith.constant dense<0.000000e+00> : vector<5x64xf32>
    %60 = tpu.matmul %22, %59, %cst_48 {dimension_numbers = #tpu.dot_dimension_numbers<[1], [0], [0], [1], [0, 0, 1, 1], [], []>} : vector<5x128xf32>, vector<128x64xf32>, vector<5x64xf32> -> vector<5x64xf32>
    %61 = arith.addf %57, %60 : vector<5x64xf32>
    %c1_49 = arith.constant 1 : index
    %c0_50 = arith.constant 0 : index
    %c0_51 = arith.constant 0 : index
    %62 = vector.load %arg9[%c1_49, %c0_50, %c0_51] : memref<3x128x64xf32, #tpu.memory_space<vmem>>, vector<1x128x64xf32>
    %63 = vector.shape_cast %62 : vector<1x128x64xf32> to vector<128x64xf32>
    %cst_52 = arith.constant dense<0.000000e+00> : vector<5x64xf32>
    %64 = tpu.matmul %36, %63, %cst_52 {dimension_numbers = #tpu.dot_dimension_numbers<[1], [0], [0], [1], [0, 0, 1, 1], [], []>} : vector<5x128xf32>, vector<128x64xf32>, vector<5x64xf32> -> vector<5x64xf32>
    %65 = arith.addf %61, %64 : vector<5x64xf32>
    %c2_53 = arith.constant 2 : index
    %c0_54 = arith.constant 0 : index
    %c0_55 = arith.constant 0 : index
    %66 = vector.load %arg8[%c2_53, %c0_54, %c0_55] : memref<3x128x64xf32, #tpu.memory_space<vmem>>, vector<1x128x64xf32>
    %67 = vector.shape_cast %66 : vector<1x128x64xf32> to vector<128x64xf32>
    %cst_56 = arith.constant dense<0.000000e+00> : vector<5x64xf32>
    %68 = tpu.matmul %38, %67, %cst_56 {dimension_numbers = #tpu.dot_dimension_numbers<[1], [0], [0], [1], [0, 0, 1, 1], [], []>} : vector<5x128xf32>, vector<128x64xf32>, vector<5x64xf32> -> vector<5x64xf32>
    %69 = arith.addf %65, %68 : vector<5x64xf32>
    %c2_57 = arith.constant 2 : index
    %c0_58 = arith.constant 0 : index
    %c0_59 = arith.constant 0 : index
    %70 = vector.load %arg9[%c2_57, %c0_58, %c0_59] : memref<3x128x64xf32, #tpu.memory_space<vmem>>, vector<1x128x64xf32>
    %71 = vector.shape_cast %70 : vector<1x128x64xf32> to vector<128x64xf32>
    %cst_60 = arith.constant dense<0.000000e+00> : vector<5x64xf32>
    %72 = tpu.matmul %40, %71, %cst_60 {dimension_numbers = #tpu.dot_dimension_numbers<[1], [0], [0], [1], [0, 0, 1, 1], [], []>} : vector<5x128xf32>, vector<128x64xf32>, vector<5x64xf32> -> vector<5x64xf32>
    %73 = arith.addf %69, %72 : vector<5x64xf32>
    %c0_61 = arith.constant 0 : index
    %c0_62 = arith.constant 0 : index
    %74 = vector.load %arg10[%c0_61, %c0_62] : memref<1x64xf32, #tpu.memory_space<vmem>>, vector<1x64xf32>
    %75 = vector.broadcast %74 : vector<1x64xf32> to vector<5x64xf32>
    %76 = arith.addf %73, %75 : vector<5x64xf32>
    %c0_63 = arith.constant 0 : index
    %c0_64 = arith.constant 0 : index
    %c0_65 = arith.constant 0 : index
    %77 = vector.load %arg11[%c0_63, %c0_64, %c0_65] : memref<2x64x256xf32, #tpu.memory_space<vmem>>, vector<1x64x256xf32>
    %78 = vector.shape_cast %77 : vector<1x64x256xf32> to vector<64x256xf32>
    %cst_66 = arith.constant dense<0.000000e+00> : vector<5x256xf32>
    %79 = tpu.matmul %50, %78, %cst_66 {dimension_numbers = #tpu.dot_dimension_numbers<[1], [0], [0], [1], [0, 0, 1, 1], [], []>} : vector<5x64xf32>, vector<64x256xf32>, vector<5x256xf32> -> vector<5x256xf32>
    %c1_67 = arith.constant 1 : index
    %c0_68 = arith.constant 0 : index
    %c0_69 = arith.constant 0 : index
    %80 = vector.load %arg11[%c1_67, %c0_68, %c0_69] : memref<2x64x256xf32, #tpu.memory_space<vmem>>, vector<1x64x256xf32>
    %81 = vector.shape_cast %80 : vector<1x64x256xf32> to vector<64x256xf32>
    %cst_70 = arith.constant dense<0.000000e+00> : vector<5x256xf32>
    %82 = tpu.matmul %76, %81, %cst_70 {dimension_numbers = #tpu.dot_dimension_numbers<[1], [0], [0], [1], [0, 0, 1, 1], [], []>} : vector<5x64xf32>, vector<64x256xf32>, vector<5x256xf32> -> vector<5x256xf32>
    %83 = arith.addf %79, %82 : vector<5x256xf32>
    %c0_71 = arith.constant 0 : index
    %c0_72 = arith.constant 0 : index
    %84 = vector.load %arg12[%c0_71, %c0_72] : memref<64x256xf32, #tpu.memory_space<vmem>>, vector<64x256xf32>
    %cst_73 = arith.constant dense<0.000000e+00> : vector<5x256xf32>
    %85 = tpu.matmul %12, %84, %cst_73 {dimension_numbers = #tpu.dot_dimension_numbers<[1], [0], [0], [1], [0, 0, 1, 1], [], []>} : vector<5x64xf32>, vector<64x256xf32>, vector<5x256xf32> -> vector<5x256xf32>
    %86 = arith.addf %83, %85 : vector<5x256xf32>
    %c0_74 = arith.constant 0 : index
    %c0_75 = arith.constant 0 : index
    %87 = vector.load %arg13[%c0_74, %c0_75] : memref<1x256xf32, #tpu.memory_space<vmem>>, vector<1x256xf32>
    %88 = vector.broadcast %87 : vector<1x256xf32> to vector<5x256xf32>
    %89 = arith.addf %86, %88 : vector<5x256xf32>
    %90 = vector.extract_strided_slice %89 {offsets = [0, 0], sizes = [5, 64], strides = [1, 1]} : vector<5x256xf32> to vector<5x64xf32>
    %91 = arith.negf %90 : vector<5x64xf32>
    %92 = math.exp %91 : vector<5x64xf32>
    %cst_76 = arith.constant 1.000000e+00 : f32
    %93 = vector.broadcast %cst_76 : f32 to vector<5x64xf32>
    %94 = arith.addf %93, %92 : vector<5x64xf32>
    %95 = arith.divf %93, %94 : vector<5x64xf32>
    %96 = vector.extract_strided_slice %89 {offsets = [0, 64], sizes = [5, 64], strides = [1, 1]} : vector<5x256xf32> to vector<5x64xf32>
    %97 = arith.negf %96 : vector<5x64xf32>
    %98 = math.exp %97 : vector<5x64xf32>
    %cst_77 = arith.constant 1.000000e+00 : f32
    %99 = vector.broadcast %cst_77 : f32 to vector<5x64xf32>
    %100 = arith.addf %99, %98 : vector<5x64xf32>
    %101 = arith.divf %99, %100 : vector<5x64xf32>
    %102 = vector.extract_strided_slice %89 {offsets = [0, 128], sizes = [5, 64], strides = [1, 1]} : vector<5x256xf32> to vector<5x64xf32>
    %103 = math.tanh %102 : vector<5x64xf32>
    %104 = vector.extract_strided_slice %89 {offsets = [0, 192], sizes = [5, 64], strides = [1, 1]} : vector<5x256xf32> to vector<5x64xf32>
    %105 = arith.negf %104 : vector<5x64xf32>
    %106 = math.exp %105 : vector<5x64xf32>
    %cst_78 = arith.constant 1.000000e+00 : f32
    %107 = vector.broadcast %cst_78 : f32 to vector<5x64xf32>
    %108 = arith.addf %107, %106 : vector<5x64xf32>
    %109 = arith.divf %107, %108 : vector<5x64xf32>
    %110 = arith.mulf %101, %13 : vector<5x64xf32>
    %111 = arith.mulf %95, %103 : vector<5x64xf32>
    %112 = arith.addf %110, %111 : vector<5x64xf32>
    %113 = math.tanh %112 : vector<5x64xf32>
    %114 = arith.mulf %109, %113 : vector<5x64xf32>
    %c0_79 = arith.constant 0 : index
    %c0_80 = arith.constant 0 : index
    %115 = vector.load %arg15[%c0_79, %c0_80] : memref<1x32xf32, #tpu.memory_space<vmem>>, vector<1x32xf32>
    %116 = vector.extract_strided_slice %114 {offsets = [0, 0], sizes = [1, 64], strides = [1, 1]} : vector<5x64xf32> to vector<1x64xf32>
    %c0_81 = arith.constant 0 : index
    %c0_82 = arith.constant 0 : index
    %c0_83 = arith.constant 0 : index
    %117 = vector.load %arg14[%c0_81, %c0_82, %c0_83] : memref<5x64x32xf32, #tpu.memory_space<vmem>>, vector<1x64x32xf32>
    %118 = vector.shape_cast %117 : vector<1x64x32xf32> to vector<64x32xf32>
    %cst_84 = arith.constant dense<0.000000e+00> : vector<1x32xf32>
    %119 = tpu.matmul %116, %118, %cst_84 {dimension_numbers = #tpu.dot_dimension_numbers<[1], [0], [0], [1], [0, 0, 1, 1], [], []>} : vector<1x64xf32>, vector<64x32xf32>, vector<1x32xf32> -> vector<1x32xf32>
    %120 = arith.addf %115, %119 : vector<1x32xf32>
    %121 = vector.extract_strided_slice %114 {offsets = [1, 0], sizes = [1, 64], strides = [1, 1]} : vector<5x64xf32> to vector<1x64xf32>
    %c1_85 = arith.constant 1 : index
    %c0_86 = arith.constant 0 : index
    %c0_87 = arith.constant 0 : index
    %122 = vector.load %arg14[%c1_85, %c0_86, %c0_87] : memref<5x64x32xf32, #tpu.memory_space<vmem>>, vector<1x64x32xf32>
    %123 = vector.shape_cast %122 : vector<1x64x32xf32> to vector<64x32xf32>
    %cst_88 = arith.constant dense<0.000000e+00> : vector<1x32xf32>
    %124 = tpu.matmul %121, %123, %cst_88 {dimension_numbers = #tpu.dot_dimension_numbers<[1], [0], [0], [1], [0, 0, 1, 1], [], []>} : vector<1x64xf32>, vector<64x32xf32>, vector<1x32xf32> -> vector<1x32xf32>
    %125 = arith.addf %120, %124 : vector<1x32xf32>
    %126 = vector.extract_strided_slice %114 {offsets = [2, 0], sizes = [1, 64], strides = [1, 1]} : vector<5x64xf32> to vector<1x64xf32>
    %c2_89 = arith.constant 2 : index
    %c0_90 = arith.constant 0 : index
    %c0_91 = arith.constant 0 : index
    %127 = vector.load %arg14[%c2_89, %c0_90, %c0_91] : memref<5x64x32xf32, #tpu.memory_space<vmem>>, vector<1x64x32xf32>
    %128 = vector.shape_cast %127 : vector<1x64x32xf32> to vector<64x32xf32>
    %cst_92 = arith.constant dense<0.000000e+00> : vector<1x32xf32>
    %129 = tpu.matmul %126, %128, %cst_92 {dimension_numbers = #tpu.dot_dimension_numbers<[1], [0], [0], [1], [0, 0, 1, 1], [], []>} : vector<1x64xf32>, vector<64x32xf32>, vector<1x32xf32> -> vector<1x32xf32>
    %130 = arith.addf %125, %129 : vector<1x32xf32>
    %131 = vector.extract_strided_slice %114 {offsets = [3, 0], sizes = [1, 64], strides = [1, 1]} : vector<5x64xf32> to vector<1x64xf32>
    %c3 = arith.constant 3 : index
    %c0_93 = arith.constant 0 : index
    %c0_94 = arith.constant 0 : index
    %132 = vector.load %arg14[%c3, %c0_93, %c0_94] : memref<5x64x32xf32, #tpu.memory_space<vmem>>, vector<1x64x32xf32>
    %133 = vector.shape_cast %132 : vector<1x64x32xf32> to vector<64x32xf32>
    %cst_95 = arith.constant dense<0.000000e+00> : vector<1x32xf32>
    %134 = tpu.matmul %131, %133, %cst_95 {dimension_numbers = #tpu.dot_dimension_numbers<[1], [0], [0], [1], [0, 0, 1, 1], [], []>} : vector<1x64xf32>, vector<64x32xf32>, vector<1x32xf32> -> vector<1x32xf32>
    %135 = arith.addf %130, %134 : vector<1x32xf32>
    %136 = vector.extract_strided_slice %114 {offsets = [4, 0], sizes = [1, 64], strides = [1, 1]} : vector<5x64xf32> to vector<1x64xf32>
    %c4 = arith.constant 4 : index
    %c0_96 = arith.constant 0 : index
    %c0_97 = arith.constant 0 : index
    %137 = vector.load %arg14[%c4, %c0_96, %c0_97] : memref<5x64x32xf32, #tpu.memory_space<vmem>>, vector<1x64x32xf32>
    %138 = vector.shape_cast %137 : vector<1x64x32xf32> to vector<64x32xf32>
    %cst_98 = arith.constant dense<0.000000e+00> : vector<1x32xf32>
    %139 = tpu.matmul %136, %138, %cst_98 {dimension_numbers = #tpu.dot_dimension_numbers<[1], [0], [0], [1], [0, 0, 1, 1], [], []>} : vector<1x64xf32>, vector<64x32xf32>, vector<1x32xf32> -> vector<1x32xf32>
    %140 = arith.addf %135, %139 : vector<1x32xf32>
    %c0_99 = arith.constant 0 : index
    %c0_100 = arith.constant 0 : index
    %141 = vector.load %arg16[%c0_99, %c0_100] : memref<32x2xf32, #tpu.memory_space<vmem>>, vector<32x2xf32>
    %cst_101 = arith.constant dense<0.000000e+00> : vector<1x2xf32>
    %142 = tpu.matmul %140, %141, %cst_101 {dimension_numbers = #tpu.dot_dimension_numbers<[1], [0], [0], [1], [0, 0, 1, 1], [], []>} : vector<1x32xf32>, vector<32x2xf32>, vector<1x2xf32> -> vector<1x2xf32>
    %c0_102 = arith.constant 0 : index
    %c0_103 = arith.constant 0 : index
    %143 = vector.load %arg17[%c0_102, %c0_103] : memref<1x2xf32, #tpu.memory_space<vmem>>, vector<1x2xf32>
    %144 = arith.addf %142, %143 : vector<1x2xf32>
    %cst_104 = arith.constant dense<0xFF800000> : vector<1xf32>
    %145 = vector.multi_reduction <maximumf>, %144, %cst_104 [1] : vector<1x2xf32> to vector<1xf32>
    %146 = vector.shape_cast %145 : vector<1xf32> to vector<1x1xf32>
    %147 = vector.broadcast %146 : vector<1x1xf32> to vector<1x2xf32>
    %148 = arith.subf %144, %147 : vector<1x2xf32>
    %149 = math.exp %148 : vector<1x2xf32>
    %cst_105 = arith.constant dense<0.000000e+00> : vector<1xf32>
    %150 = vector.multi_reduction <add>, %149, %cst_105 [1] : vector<1x2xf32> to vector<1xf32>
    %151 = vector.shape_cast %150 : vector<1xf32> to vector<1x1xf32>
    %152 = vector.broadcast %151 : vector<1x1xf32> to vector<1x2xf32>
    %153 = arith.divf %149, %152 : vector<1x2xf32>
    %c0_106 = arith.constant 0 : index
    %c0_107 = arith.constant 0 : index
    %154 = vector.load %arg18[%c0_106, %c0_107] : memref<4x2xf32, #tpu.memory_space<vmem>>, vector<1x2xf32>
    tpu.vector_store %arg18[%c0_106, %c0_107], %153 {strides = array<i32>} : memref<4x2xf32, #tpu.memory_space<vmem>>, vector<1x2xf32>,
    %c1_108 = arith.constant 1 : index
    %c0_109 = arith.constant 0 : index
    %c0_110 = arith.constant 0 : index
    %155 = vector.load %arg1[%c1_108, %c0_109, %c0_110] : memref<4x5x24xf32, #tpu.memory_space<vmem>>, vector<1x5x24xf32>
    %156 = vector.shape_cast %155 : vector<1x5x24xf32> to vector<5x24xf32>
    %cst_111 = arith.constant dense<0.000000e+00> : vector<5x24xf32>
    %157 = tpu.matmul %6, %156, %cst_111 {dimension_numbers = #tpu.dot_dimension_numbers<[1], [0], [0], [1], [0, 0, 1, 1], [], []>} : vector<5x5xf32>, vector<5x24xf32>, vector<5x24xf32> -> vector<5x24xf32>
    %cst_112 = arith.constant dense<0.000000e+00> : vector<5x24xf32>
    %158 = tpu.matmul %11, %156, %cst_112 {dimension_numbers = #tpu.dot_dimension_numbers<[1], [0], [0], [1], [0, 0, 1, 1], [], []>} : vector<5x5xf32>, vector<5x24xf32>, vector<5x24xf32> -> vector<5x24xf32>
    %c0_113 = arith.constant 0 : index
    %c0_114 = arith.constant 0 : index
    %159 = vector.load %arg2[%c0_113, %c0_114] : memref<24x128xf32, #tpu.memory_space<vmem>>, vector<24x128xf32>
    %cst_115 = arith.constant dense<0.000000e+00> : vector<5x128xf32>
    %160 = tpu.matmul %156, %159, %cst_115 {dimension_numbers = #tpu.dot_dimension_numbers<[1], [0], [0], [1], [0, 0, 1, 1], [], []>} : vector<5x24xf32>, vector<24x128xf32>, vector<5x128xf32> -> vector<5x128xf32>
    %c0_116 = arith.constant 0 : index
    %c0_117 = arith.constant 0 : index
    %161 = vector.load %arg3[%c0_116, %c0_117] : memref<1x128xf32, #tpu.memory_space<vmem>>, vector<1x128xf32>
    %162 = vector.broadcast %161 : vector<1x128xf32> to vector<5x128xf32>
    %163 = arith.addf %160, %162 : vector<5x128xf32>
    %c0_118 = arith.constant 0 : index
    %c0_119 = arith.constant 0 : index
    %c0_120 = arith.constant 0 : index
    %164 = vector.load %arg4[%c0_118, %c0_119, %c0_120] : memref<3x24x128xf32, #tpu.memory_space<vmem>>, vector<1x24x128xf32>
    %165 = vector.shape_cast %164 : vector<1x24x128xf32> to vector<24x128xf32>
    %cst_121 = arith.constant dense<0.000000e+00> : vector<5x128xf32>
    %166 = tpu.matmul %157, %165, %cst_121 {dimension_numbers = #tpu.dot_dimension_numbers<[1], [0], [0], [1], [0, 0, 1, 1], [], []>} : vector<5x24xf32>, vector<24x128xf32>, vector<5x128xf32> -> vector<5x128xf32>
    %c1_122 = arith.constant 1 : index
    %c0_123 = arith.constant 0 : index
    %c0_124 = arith.constant 0 : index
    %167 = vector.load %arg4[%c1_122, %c0_123, %c0_124] : memref<3x24x128xf32, #tpu.memory_space<vmem>>, vector<1x24x128xf32>
    %168 = vector.shape_cast %167 : vector<1x24x128xf32> to vector<24x128xf32>
    %cst_125 = arith.constant dense<0.000000e+00> : vector<5x128xf32>
    %169 = tpu.matmul %156, %168, %cst_125 {dimension_numbers = #tpu.dot_dimension_numbers<[1], [0], [0], [1], [0, 0, 1, 1], [], []>} : vector<5x24xf32>, vector<24x128xf32>, vector<5x128xf32> -> vector<5x128xf32>
    %170 = arith.addf %166, %169 : vector<5x128xf32>
    %c2_126 = arith.constant 2 : index
    %c0_127 = arith.constant 0 : index
    %c0_128 = arith.constant 0 : index
    %171 = vector.load %arg4[%c2_126, %c0_127, %c0_128] : memref<3x24x128xf32, #tpu.memory_space<vmem>>, vector<1x24x128xf32>
    %172 = vector.shape_cast %171 : vector<1x24x128xf32> to vector<24x128xf32>
    %cst_129 = arith.constant dense<0.000000e+00> : vector<5x128xf32>
    %173 = tpu.matmul %158, %172, %cst_129 {dimension_numbers = #tpu.dot_dimension_numbers<[1], [0], [0], [1], [0, 0, 1, 1], [], []>} : vector<5x24xf32>, vector<24x128xf32>, vector<5x128xf32> -> vector<5x128xf32>
    %174 = arith.addf %170, %173 : vector<5x128xf32>
    %c0_130 = arith.constant 0 : index
    %c0_131 = arith.constant 0 : index
    %175 = vector.load %arg5[%c0_130, %c0_131] : memref<1x128xf32, #tpu.memory_space<vmem>>, vector<1x128xf32>
    %176 = vector.broadcast %175 : vector<1x128xf32> to vector<5x128xf32>
    %177 = arith.addf %174, %176 : vector<5x128xf32>
    %cst_132 = arith.constant dense<0.000000e+00> : vector<5x128xf32>
    %178 = tpu.matmul %6, %163, %cst_132 {dimension_numbers = #tpu.dot_dimension_numbers<[1], [0], [0], [1], [0, 0, 1, 1], [], []>} : vector<5x5xf32>, vector<5x128xf32>, vector<5x128xf32> -> vector<5x128xf32>
    %cst_133 = arith.constant dense<0.000000e+00> : vector<5x128xf32>
    %179 = tpu.matmul %11, %163, %cst_133 {dimension_numbers = #tpu.dot_dimension_numbers<[1], [0], [0], [1], [0, 0, 1, 1], [], []>} : vector<5x5xf32>, vector<5x128xf32>, vector<5x128xf32> -> vector<5x128xf32>
    %cst_134 = arith.constant dense<0.000000e+00> : vector<5x128xf32>
    %180 = tpu.matmul %6, %177, %cst_134 {dimension_numbers = #tpu.dot_dimension_numbers<[1], [0], [0], [1], [0, 0, 1, 1], [], []>} : vector<5x5xf32>, vector<5x128xf32>, vector<5x128xf32> -> vector<5x128xf32>
    %cst_135 = arith.constant dense<0.000000e+00> : vector<5x128xf32>
    %181 = tpu.matmul %11, %177, %cst_135 {dimension_numbers = #tpu.dot_dimension_numbers<[1], [0], [0], [1], [0, 0, 1, 1], [], []>} : vector<5x5xf32>, vector<5x128xf32>, vector<5x128xf32> -> vector<5x128xf32>
    %c0_136 = arith.constant 0 : index
    %c0_137 = arith.constant 0 : index
    %c0_138 = arith.constant 0 : index
    %182 = vector.load %arg6[%c0_136, %c0_137, %c0_138] : memref<2x128x64xf32, #tpu.memory_space<vmem>>, vector<1x128x64xf32>
    %183 = vector.shape_cast %182 : vector<1x128x64xf32> to vector<128x64xf32>
    %cst_139 = arith.constant dense<0.000000e+00> : vector<5x64xf32>
    %184 = tpu.matmul %163, %183, %cst_139 {dimension_numbers = #tpu.dot_dimension_numbers<[1], [0], [0], [1], [0, 0, 1, 1], [], []>} : vector<5x128xf32>, vector<128x64xf32>, vector<5x64xf32> -> vector<5x64xf32>
    %c1_140 = arith.constant 1 : index
    %c0_141 = arith.constant 0 : index
    %c0_142 = arith.constant 0 : index
    %185 = vector.load %arg6[%c1_140, %c0_141, %c0_142] : memref<2x128x64xf32, #tpu.memory_space<vmem>>, vector<1x128x64xf32>
    %186 = vector.shape_cast %185 : vector<1x128x64xf32> to vector<128x64xf32>
    %cst_143 = arith.constant dense<0.000000e+00> : vector<5x64xf32>
    %187 = tpu.matmul %177, %186, %cst_143 {dimension_numbers = #tpu.dot_dimension_numbers<[1], [0], [0], [1], [0, 0, 1, 1], [], []>} : vector<5x128xf32>, vector<128x64xf32>, vector<5x64xf32> -> vector<5x64xf32>
    %188 = arith.addf %184, %187 : vector<5x64xf32>
    %c0_144 = arith.constant 0 : index
    %c0_145 = arith.constant 0 : index
    %189 = vector.load %arg7[%c0_144, %c0_145] : memref<1x64xf32, #tpu.memory_space<vmem>>, vector<1x64xf32>
    %190 = vector.broadcast %189 : vector<1x64xf32> to vector<5x64xf32>
    %191 = arith.addf %188, %190 : vector<5x64xf32>
    %c0_146 = arith.constant 0 : index
    %c0_147 = arith.constant 0 : index
    %c0_148 = arith.constant 0 : index
    %192 = vector.load %arg8[%c0_146, %c0_147, %c0_148] : memref<3x128x64xf32, #tpu.memory_space<vmem>>, vector<1x128x64xf32>
    %193 = vector.shape_cast %192 : vector<1x128x64xf32> to vector<128x64xf32>
    %cst_149 = arith.constant dense<0.000000e+00> : vector<5x64xf32>
    %194 = tpu.matmul %178, %193, %cst_149 {dimension_numbers = #tpu.dot_dimension_numbers<[1], [0], [0], [1], [0, 0, 1, 1], [], []>} : vector<5x128xf32>, vector<128x64xf32>, vector<5x64xf32> -> vector<5x64xf32>
    %c0_150 = arith.constant 0 : index
    %c0_151 = arith.constant 0 : index
    %c0_152 = arith.constant 0 : index
    %195 = vector.load %arg9[%c0_150, %c0_151, %c0_152] : memref<3x128x64xf32, #tpu.memory_space<vmem>>, vector<1x128x64xf32>
    %196 = vector.shape_cast %195 : vector<1x128x64xf32> to vector<128x64xf32>
    %cst_153 = arith.constant dense<0.000000e+00> : vector<5x64xf32>
    %197 = tpu.matmul %180, %196, %cst_153 {dimension_numbers = #tpu.dot_dimension_numbers<[1], [0], [0], [1], [0, 0, 1, 1], [], []>} : vector<5x128xf32>, vector<128x64xf32>, vector<5x64xf32> -> vector<5x64xf32>
    %198 = arith.addf %194, %197 : vector<5x64xf32>
    %c1_154 = arith.constant 1 : index
    %c0_155 = arith.constant 0 : index
    %c0_156 = arith.constant 0 : index
    %199 = vector.load %arg8[%c1_154, %c0_155, %c0_156] : memref<3x128x64xf32, #tpu.memory_space<vmem>>, vector<1x128x64xf32>
    %200 = vector.shape_cast %199 : vector<1x128x64xf32> to vector<128x64xf32>
    %cst_157 = arith.constant dense<0.000000e+00> : vector<5x64xf32>
    %201 = tpu.matmul %163, %200, %cst_157 {dimension_numbers = #tpu.dot_dimension_numbers<[1], [0], [0], [1], [0, 0, 1, 1], [], []>} : vector<5x128xf32>, vector<128x64xf32>, vector<5x64xf32> -> vector<5x64xf32>
    %202 = arith.addf %198, %201 : vector<5x64xf32>
    %c1_158 = arith.constant 1 : index
    %c0_159 = arith.constant 0 : index
    %c0_160 = arith.constant 0 : index
    %203 = vector.load %arg9[%c1_158, %c0_159, %c0_160] : memref<3x128x64xf32, #tpu.memory_space<vmem>>, vector<1x128x64xf32>
    %204 = vector.shape_cast %203 : vector<1x128x64xf32> to vector<128x64xf32>
    %cst_161 = arith.constant dense<0.000000e+00> : vector<5x64xf32>
    %205 = tpu.matmul %177, %204, %cst_161 {dimension_numbers = #tpu.dot_dimension_numbers<[1], [0], [0], [1], [0, 0, 1, 1], [], []>} : vector<5x128xf32>, vector<128x64xf32>, vector<5x64xf32> -> vector<5x64xf32>
    %206 = arith.addf %202, %205 : vector<5x64xf32>
    %c2_162 = arith.constant 2 : index
    %c0_163 = arith.constant 0 : index
    %c0_164 = arith.constant 0 : index
    %207 = vector.load %arg8[%c2_162, %c0_163, %c0_164] : memref<3x128x64xf32, #tpu.memory_space<vmem>>, vector<1x128x64xf32>
    %208 = vector.shape_cast %207 : vector<1x128x64xf32> to vector<128x64xf32>
    %cst_165 = arith.constant dense<0.000000e+00> : vector<5x64xf32>
    %209 = tpu.matmul %179, %208, %cst_165 {dimension_numbers = #tpu.dot_dimension_numbers<[1], [0], [0], [1], [0, 0, 1, 1], [], []>} : vector<5x128xf32>, vector<128x64xf32>, vector<5x64xf32> -> vector<5x64xf32>
    %210 = arith.addf %206, %209 : vector<5x64xf32>
    %c2_166 = arith.constant 2 : index
    %c0_167 = arith.constant 0 : index
    %c0_168 = arith.constant 0 : index
    %211 = vector.load %arg9[%c2_166, %c0_167, %c0_168] : memref<3x128x64xf32, #tpu.memory_space<vmem>>, vector<1x128x64xf32>
    %212 = vector.shape_cast %211 : vector<1x128x64xf32> to vector<128x64xf32>
    %cst_169 = arith.constant dense<0.000000e+00> : vector<5x64xf32>
    %213 = tpu.matmul %181, %212, %cst_169 {dimension_numbers = #tpu.dot_dimension_numbers<[1], [0], [0], [1], [0, 0, 1, 1], [], []>} : vector<5x128xf32>, vector<128x64xf32>, vector<5x64xf32> -> vector<5x64xf32>
    %214 = arith.addf %210, %213 : vector<5x64xf32>
    %c0_170 = arith.constant 0 : index
    %c0_171 = arith.constant 0 : index
    %215 = vector.load %arg10[%c0_170, %c0_171] : memref<1x64xf32, #tpu.memory_space<vmem>>, vector<1x64xf32>
    %216 = vector.broadcast %215 : vector<1x64xf32> to vector<5x64xf32>
    %217 = arith.addf %214, %216 : vector<5x64xf32>
    %c0_172 = arith.constant 0 : index
    %c0_173 = arith.constant 0 : index
    %c0_174 = arith.constant 0 : index
    %218 = vector.load %arg11[%c0_172, %c0_173, %c0_174] : memref<2x64x256xf32, #tpu.memory_space<vmem>>, vector<1x64x256xf32>
    %219 = vector.shape_cast %218 : vector<1x64x256xf32> to vector<64x256xf32>
    %cst_175 = arith.constant dense<0.000000e+00> : vector<5x256xf32>
    %220 = tpu.matmul %191, %219, %cst_175 {dimension_numbers = #tpu.dot_dimension_numbers<[1], [0], [0], [1], [0, 0, 1, 1], [], []>} : vector<5x64xf32>, vector<64x256xf32>, vector<5x256xf32> -> vector<5x256xf32>
    %c1_176 = arith.constant 1 : index
    %c0_177 = arith.constant 0 : index
    %c0_178 = arith.constant 0 : index
    %221 = vector.load %arg11[%c1_176, %c0_177, %c0_178] : memref<2x64x256xf32, #tpu.memory_space<vmem>>, vector<1x64x256xf32>
    %222 = vector.shape_cast %221 : vector<1x64x256xf32> to vector<64x256xf32>
    %cst_179 = arith.constant dense<0.000000e+00> : vector<5x256xf32>
    %223 = tpu.matmul %217, %222, %cst_179 {dimension_numbers = #tpu.dot_dimension_numbers<[1], [0], [0], [1], [0, 0, 1, 1], [], []>} : vector<5x64xf32>, vector<64x256xf32>, vector<5x256xf32> -> vector<5x256xf32>
    %224 = arith.addf %220, %223 : vector<5x256xf32>
    %c0_180 = arith.constant 0 : index
    %c0_181 = arith.constant 0 : index
    %225 = vector.load %arg12[%c0_180, %c0_181] : memref<64x256xf32, #tpu.memory_space<vmem>>, vector<64x256xf32>
    %cst_182 = arith.constant dense<0.000000e+00> : vector<5x256xf32>
    %226 = tpu.matmul %114, %225, %cst_182 {dimension_numbers = #tpu.dot_dimension_numbers<[1], [0], [0], [1], [0, 0, 1, 1], [], []>} : vector<5x64xf32>, vector<64x256xf32>, vector<5x256xf32> -> vector<5x256xf32>
    %227 = arith.addf %224, %226 : vector<5x256xf32>
    %c0_183 = arith.constant 0 : index
    %c0_184 = arith.constant 0 : index
    %228 = vector.load %arg13[%c0_183, %c0_184] : memref<1x256xf32, #tpu.memory_space<vmem>>, vector<1x256xf32>
    %229 = vector.broadcast %228 : vector<1x256xf32> to vector<5x256xf32>
    %230 = arith.addf %227, %229 : vector<5x256xf32>
    %231 = vector.extract_strided_slice %230 {offsets = [0, 0], sizes = [5, 64], strides = [1, 1]} : vector<5x256xf32> to vector<5x64xf32>
    %232 = arith.negf %231 : vector<5x64xf32>
    %233 = math.exp %232 : vector<5x64xf32>
    %cst_185 = arith.constant 1.000000e+00 : f32
    %234 = vector.broadcast %cst_185 : f32 to vector<5x64xf32>
    %235 = arith.addf %234, %233 : vector<5x64xf32>
    %236 = arith.divf %234, %235 : vector<5x64xf32>
    %237 = vector.extract_strided_slice %230 {offsets = [0, 64], sizes = [5, 64], strides = [1, 1]} : vector<5x256xf32> to vector<5x64xf32>
    %238 = arith.negf %237 : vector<5x64xf32>
    %239 = math.exp %238 : vector<5x64xf32>
    %cst_186 = arith.constant 1.000000e+00 : f32
    %240 = vector.broadcast %cst_186 : f32 to vector<5x64xf32>
    %241 = arith.addf %240, %239 : vector<5x64xf32>
    %242 = arith.divf %240, %241 : vector<5x64xf32>
    %243 = vector.extract_strided_slice %230 {offsets = [0, 128], sizes = [5, 64], strides = [1, 1]} : vector<5x256xf32> to vector<5x64xf32>
    %244 = math.tanh %243 : vector<5x64xf32>
    %245 = vector.extract_strided_slice %230 {offsets = [0, 192], sizes = [5, 64], strides = [1, 1]} : vector<5x256xf32> to vector<5x64xf32>
    %246 = arith.negf %245 : vector<5x64xf32>
    %247 = math.exp %246 : vector<5x64xf32>
    %cst_187 = arith.constant 1.000000e+00 : f32
    %248 = vector.broadcast %cst_187 : f32 to vector<5x64xf32>
    %249 = arith.addf %248, %247 : vector<5x64xf32>
    %250 = arith.divf %248, %249 : vector<5x64xf32>
    %251 = arith.mulf %242, %112 : vector<5x64xf32>
    %252 = arith.mulf %236, %244 : vector<5x64xf32>
    %253 = arith.addf %251, %252 : vector<5x64xf32>
    %254 = math.tanh %253 : vector<5x64xf32>
    %255 = arith.mulf %250, %254 : vector<5x64xf32>
    %c0_188 = arith.constant 0 : index
    %c0_189 = arith.constant 0 : index
    %256 = vector.load %arg15[%c0_188, %c0_189] : memref<1x32xf32, #tpu.memory_space<vmem>>, vector<1x32xf32>
    %257 = vector.extract_strided_slice %255 {offsets = [0, 0], sizes = [1, 64], strides = [1, 1]} : vector<5x64xf32> to vector<1x64xf32>
    %c0_190 = arith.constant 0 : index
    %c0_191 = arith.constant 0 : index
    %c0_192 = arith.constant 0 : index
    %258 = vector.load %arg14[%c0_190, %c0_191, %c0_192] : memref<5x64x32xf32, #tpu.memory_space<vmem>>, vector<1x64x32xf32>
    %259 = vector.shape_cast %258 : vector<1x64x32xf32> to vector<64x32xf32>
    %cst_193 = arith.constant dense<0.000000e+00> : vector<1x32xf32>
    %260 = tpu.matmul %257, %259, %cst_193 {dimension_numbers = #tpu.dot_dimension_numbers<[1], [0], [0], [1], [0, 0, 1, 1], [], []>} : vector<1x64xf32>, vector<64x32xf32>, vector<1x32xf32> -> vector<1x32xf32>
    %261 = arith.addf %256, %260 : vector<1x32xf32>
    %262 = vector.extract_strided_slice %255 {offsets = [1, 0], sizes = [1, 64], strides = [1, 1]} : vector<5x64xf32> to vector<1x64xf32>
    %c1_194 = arith.constant 1 : index
    %c0_195 = arith.constant 0 : index
    %c0_196 = arith.constant 0 : index
    %263 = vector.load %arg14[%c1_194, %c0_195, %c0_196] : memref<5x64x32xf32, #tpu.memory_space<vmem>>, vector<1x64x32xf32>
    %264 = vector.shape_cast %263 : vector<1x64x32xf32> to vector<64x32xf32>
    %cst_197 = arith.constant dense<0.000000e+00> : vector<1x32xf32>
    %265 = tpu.matmul %262, %264, %cst_197 {dimension_numbers = #tpu.dot_dimension_numbers<[1], [0], [0], [1], [0, 0, 1, 1], [], []>} : vector<1x64xf32>, vector<64x32xf32>, vector<1x32xf32> -> vector<1x32xf32>
    %266 = arith.addf %261, %265 : vector<1x32xf32>
    %267 = vector.extract_strided_slice %255 {offsets = [2, 0], sizes = [1, 64], strides = [1, 1]} : vector<5x64xf32> to vector<1x64xf32>
    %c2_198 = arith.constant 2 : index
    %c0_199 = arith.constant 0 : index
    %c0_200 = arith.constant 0 : index
    %268 = vector.load %arg14[%c2_198, %c0_199, %c0_200] : memref<5x64x32xf32, #tpu.memory_space<vmem>>, vector<1x64x32xf32>
    %269 = vector.shape_cast %268 : vector<1x64x32xf32> to vector<64x32xf32>
    %cst_201 = arith.constant dense<0.000000e+00> : vector<1x32xf32>
    %270 = tpu.matmul %267, %269, %cst_201 {dimension_numbers = #tpu.dot_dimension_numbers<[1], [0], [0], [1], [0, 0, 1, 1], [], []>} : vector<1x64xf32>, vector<64x32xf32>, vector<1x32xf32> -> vector<1x32xf32>
    %271 = arith.addf %266, %270 : vector<1x32xf32>
    %272 = vector.extract_strided_slice %255 {offsets = [3, 0], sizes = [1, 64], strides = [1, 1]} : vector<5x64xf32> to vector<1x64xf32>
    %c3_202 = arith.constant 3 : index
    %c0_203 = arith.constant 0 : index
    %c0_204 = arith.constant 0 : index
    %273 = vector.load %arg14[%c3_202, %c0_203, %c0_204] : memref<5x64x32xf32, #tpu.memory_space<vmem>>, vector<1x64x32xf32>
    %274 = vector.shape_cast %273 : vector<1x64x32xf32> to vector<64x32xf32>
    %cst_205 = arith.constant dense<0.000000e+00> : vector<1x32xf32>
    %275 = tpu.matmul %272, %274, %cst_205 {dimension_numbers = #tpu.dot_dimension_numbers<[1], [0], [0], [1], [0, 0, 1, 1], [], []>} : vector<1x64xf32>, vector<64x32xf32>, vector<1x32xf32> -> vector<1x32xf32>
    %276 = arith.addf %271, %275 : vector<1x32xf32>
    %277 = vector.extract_strided_slice %255 {offsets = [4, 0], sizes = [1, 64], strides = [1, 1]} : vector<5x64xf32> to vector<1x64xf32>
    %c4_206 = arith.constant 4 : index
    %c0_207 = arith.constant 0 : index
    %c0_208 = arith.constant 0 : index
    %278 = vector.load %arg14[%c4_206, %c0_207, %c0_208] : memref<5x64x32xf32, #tpu.memory_space<vmem>>, vector<1x64x32xf32>
    %279 = vector.shape_cast %278 : vector<1x64x32xf32> to vector<64x32xf32>
    %cst_209 = arith.constant dense<0.000000e+00> : vector<1x32xf32>
    %280 = tpu.matmul %277, %279, %cst_209 {dimension_numbers = #tpu.dot_dimension_numbers<[1], [0], [0], [1], [0, 0, 1, 1], [], []>} : vector<1x64xf32>, vector<64x32xf32>, vector<1x32xf32> -> vector<1x32xf32>
    %281 = arith.addf %276, %280 : vector<1x32xf32>
    %c0_210 = arith.constant 0 : index
    %c0_211 = arith.constant 0 : index
    %282 = vector.load %arg16[%c0_210, %c0_211] : memref<32x2xf32, #tpu.memory_space<vmem>>, vector<32x2xf32>
    %cst_212 = arith.constant dense<0.000000e+00> : vector<1x2xf32>
    %283 = tpu.matmul %281, %282, %cst_212 {dimension_numbers = #tpu.dot_dimension_numbers<[1], [0], [0], [1], [0, 0, 1, 1], [], []>} : vector<1x32xf32>, vector<32x2xf32>, vector<1x2xf32> -> vector<1x2xf32>
    %c0_213 = arith.constant 0 : index
    %c0_214 = arith.constant 0 : index
    %284 = vector.load %arg17[%c0_213, %c0_214] : memref<1x2xf32, #tpu.memory_space<vmem>>, vector<1x2xf32>
    %285 = arith.addf %283, %284 : vector<1x2xf32>
    %cst_215 = arith.constant dense<0xFF800000> : vector<1xf32>
    %286 = vector.multi_reduction <maximumf>, %285, %cst_215 [1] : vector<1x2xf32> to vector<1xf32>
    %287 = vector.shape_cast %286 : vector<1xf32> to vector<1x1xf32>
    %288 = vector.broadcast %287 : vector<1x1xf32> to vector<1x2xf32>
    %289 = arith.subf %285, %288 : vector<1x2xf32>
    %290 = math.exp %289 : vector<1x2xf32>
    %cst_216 = arith.constant dense<0.000000e+00> : vector<1xf32>
    %291 = vector.multi_reduction <add>, %290, %cst_216 [1] : vector<1x2xf32> to vector<1xf32>
    %292 = vector.shape_cast %291 : vector<1xf32> to vector<1x1xf32>
    %293 = vector.broadcast %292 : vector<1x1xf32> to vector<1x2xf32>
    %294 = arith.divf %290, %293 : vector<1x2xf32>
    %c1_217 = arith.constant 1 : index
    %c0_218 = arith.constant 0 : index
    %295 = vector.load %arg18[%c1_217, %c0_218] : memref<4x2xf32, #tpu.memory_space<vmem>>, vector<1x2xf32>
    tpu.vector_store %arg18[%c1_217, %c0_218], %294 {strides = array<i32>} : memref<4x2xf32, #tpu.memory_space<vmem>>, vector<1x2xf32>,
    %c2_219 = arith.constant 2 : index
    %c0_220 = arith.constant 0 : index
    %c0_221 = arith.constant 0 : index
    %296 = vector.load %arg1[%c2_219, %c0_220, %c0_221] : memref<4x5x24xf32, #tpu.memory_space<vmem>>, vector<1x5x24xf32>
    %297 = vector.shape_cast %296 : vector<1x5x24xf32> to vector<5x24xf32>
    %cst_222 = arith.constant dense<0.000000e+00> : vector<5x24xf32>
    %298 = tpu.matmul %6, %297, %cst_222 {dimension_numbers = #tpu.dot_dimension_numbers<[1], [0], [0], [1], [0, 0, 1, 1], [], []>} : vector<5x5xf32>, vector<5x24xf32>, vector<5x24xf32> -> vector<5x24xf32>
    %cst_223 = arith.constant dense<0.000000e+00> : vector<5x24xf32>
    %299 = tpu.matmul %11, %297, %cst_223 {dimension_numbers = #tpu.dot_dimension_numbers<[1], [0], [0], [1], [0, 0, 1, 1], [], []>} : vector<5x5xf32>, vector<5x24xf32>, vector<5x24xf32> -> vector<5x24xf32>
    %c0_224 = arith.constant 0 : index
    %c0_225 = arith.constant 0 : index
    %300 = vector.load %arg2[%c0_224, %c0_225] : memref<24x128xf32, #tpu.memory_space<vmem>>, vector<24x128xf32>
    %cst_226 = arith.constant dense<0.000000e+00> : vector<5x128xf32>
    %301 = tpu.matmul %297, %300, %cst_226 {dimension_numbers = #tpu.dot_dimension_numbers<[1], [0], [0], [1], [0, 0, 1, 1], [], []>} : vector<5x24xf32>, vector<24x128xf32>, vector<5x128xf32> -> vector<5x128xf32>
    %c0_227 = arith.constant 0 : index
    %c0_228 = arith.constant 0 : index
    %302 = vector.load %arg3[%c0_227, %c0_228] : memref<1x128xf32, #tpu.memory_space<vmem>>, vector<1x128xf32>
    %303 = vector.broadcast %302 : vector<1x128xf32> to vector<5x128xf32>
    %304 = arith.addf %301, %303 : vector<5x128xf32>
    %c0_229 = arith.constant 0 : index
    %c0_230 = arith.constant 0 : index
    %c0_231 = arith.constant 0 : index
    %305 = vector.load %arg4[%c0_229, %c0_230, %c0_231] : memref<3x24x128xf32, #tpu.memory_space<vmem>>, vector<1x24x128xf32>
    %306 = vector.shape_cast %305 : vector<1x24x128xf32> to vector<24x128xf32>
    %cst_232 = arith.constant dense<0.000000e+00> : vector<5x128xf32>
    %307 = tpu.matmul %298, %306, %cst_232 {dimension_numbers = #tpu.dot_dimension_numbers<[1], [0], [0], [1], [0, 0, 1, 1], [], []>} : vector<5x24xf32>, vector<24x128xf32>, vector<5x128xf32> -> vector<5x128xf32>
    %c1_233 = arith.constant 1 : index
    %c0_234 = arith.constant 0 : index
    %c0_235 = arith.constant 0 : index
    %308 = vector.load %arg4[%c1_233, %c0_234, %c0_235] : memref<3x24x128xf32, #tpu.memory_space<vmem>>, vector<1x24x128xf32>
    %309 = vector.shape_cast %308 : vector<1x24x128xf32> to vector<24x128xf32>
    %cst_236 = arith.constant dense<0.000000e+00> : vector<5x128xf32>
    %310 = tpu.matmul %297, %309, %cst_236 {dimension_numbers = #tpu.dot_dimension_numbers<[1], [0], [0], [1], [0, 0, 1, 1], [], []>} : vector<5x24xf32>, vector<24x128xf32>, vector<5x128xf32> -> vector<5x128xf32>
    %311 = arith.addf %307, %310 : vector<5x128xf32>
    %c2_237 = arith.constant 2 : index
    %c0_238 = arith.constant 0 : index
    %c0_239 = arith.constant 0 : index
    %312 = vector.load %arg4[%c2_237, %c0_238, %c0_239] : memref<3x24x128xf32, #tpu.memory_space<vmem>>, vector<1x24x128xf32>
    %313 = vector.shape_cast %312 : vector<1x24x128xf32> to vector<24x128xf32>
    %cst_240 = arith.constant dense<0.000000e+00> : vector<5x128xf32>
    %314 = tpu.matmul %299, %313, %cst_240 {dimension_numbers = #tpu.dot_dimension_numbers<[1], [0], [0], [1], [0, 0, 1, 1], [], []>} : vector<5x24xf32>, vector<24x128xf32>, vector<5x128xf32> -> vector<5x128xf32>
    %315 = arith.addf %311, %314 : vector<5x128xf32>
    %c0_241 = arith.constant 0 : index
    %c0_242 = arith.constant 0 : index
    %316 = vector.load %arg5[%c0_241, %c0_242] : memref<1x128xf32, #tpu.memory_space<vmem>>, vector<1x128xf32>
    %317 = vector.broadcast %316 : vector<1x128xf32> to vector<5x128xf32>
    %318 = arith.addf %315, %317 : vector<5x128xf32>
    %cst_243 = arith.constant dense<0.000000e+00> : vector<5x128xf32>
    %319 = tpu.matmul %6, %304, %cst_243 {dimension_numbers = #tpu.dot_dimension_numbers<[1], [0], [0], [1], [0, 0, 1, 1], [], []>} : vector<5x5xf32>, vector<5x128xf32>, vector<5x128xf32> -> vector<5x128xf32>
    %cst_244 = arith.constant dense<0.000000e+00> : vector<5x128xf32>
    %320 = tpu.matmul %11, %304, %cst_244 {dimension_numbers = #tpu.dot_dimension_numbers<[1], [0], [0], [1], [0, 0, 1, 1], [], []>} : vector<5x5xf32>, vector<5x128xf32>, vector<5x128xf32> -> vector<5x128xf32>
    %cst_245 = arith.constant dense<0.000000e+00> : vector<5x128xf32>
    %321 = tpu.matmul %6, %318, %cst_245 {dimension_numbers = #tpu.dot_dimension_numbers<[1], [0], [0], [1], [0, 0, 1, 1], [], []>} : vector<5x5xf32>, vector<5x128xf32>, vector<5x128xf32> -> vector<5x128xf32>
    %cst_246 = arith.constant dense<0.000000e+00> : vector<5x128xf32>
    %322 = tpu.matmul %11, %318, %cst_246 {dimension_numbers = #tpu.dot_dimension_numbers<[1], [0], [0], [1], [0, 0, 1, 1], [], []>} : vector<5x5xf32>, vector<5x128xf32>, vector<5x128xf32> -> vector<5x128xf32>
    %c0_247 = arith.constant 0 : index
    %c0_248 = arith.constant 0 : index
    %c0_249 = arith.constant 0 : index
    %323 = vector.load %arg6[%c0_247, %c0_248, %c0_249] : memref<2x128x64xf32, #tpu.memory_space<vmem>>, vector<1x128x64xf32>
    %324 = vector.shape_cast %323 : vector<1x128x64xf32> to vector<128x64xf32>
    %cst_250 = arith.constant dense<0.000000e+00> : vector<5x64xf32>
    %325 = tpu.matmul %304, %324, %cst_250 {dimension_numbers = #tpu.dot_dimension_numbers<[1], [0], [0], [1], [0, 0, 1, 1], [], []>} : vector<5x128xf32>, vector<128x64xf32>, vector<5x64xf32> -> vector<5x64xf32>
    %c1_251 = arith.constant 1 : index
    %c0_252 = arith.constant 0 : index
    %c0_253 = arith.constant 0 : index
    %326 = vector.load %arg6[%c1_251, %c0_252, %c0_253] : memref<2x128x64xf32, #tpu.memory_space<vmem>>, vector<1x128x64xf32>
    %327 = vector.shape_cast %326 : vector<1x128x64xf32> to vector<128x64xf32>
    %cst_254 = arith.constant dense<0.000000e+00> : vector<5x64xf32>
    %328 = tpu.matmul %318, %327, %cst_254 {dimension_numbers = #tpu.dot_dimension_numbers<[1], [0], [0], [1], [0, 0, 1, 1], [], []>} : vector<5x128xf32>, vector<128x64xf32>, vector<5x64xf32> -> vector<5x64xf32>
    %329 = arith.addf %325, %328 : vector<5x64xf32>
    %c0_255 = arith.constant 0 : index
    %c0_256 = arith.constant 0 : index
    %330 = vector.load %arg7[%c0_255, %c0_256] : memref<1x64xf32, #tpu.memory_space<vmem>>, vector<1x64xf32>
    %331 = vector.broadcast %330 : vector<1x64xf32> to vector<5x64xf32>
    %332 = arith.addf %329, %331 : vector<5x64xf32>
    %c0_257 = arith.constant 0 : index
    %c0_258 = arith.constant 0 : index
    %c0_259 = arith.constant 0 : index
    %333 = vector.load %arg8[%c0_257, %c0_258, %c0_259] : memref<3x128x64xf32, #tpu.memory_space<vmem>>, vector<1x128x64xf32>
    %334 = vector.shape_cast %333 : vector<1x128x64xf32> to vector<128x64xf32>
    %cst_260 = arith.constant dense<0.000000e+00> : vector<5x64xf32>
    %335 = tpu.matmul %319, %334, %cst_260 {dimension_numbers = #tpu.dot_dimension_numbers<[1], [0], [0], [1], [0, 0, 1, 1], [], []>} : vector<5x128xf32>, vector<128x64xf32>, vector<5x64xf32> -> vector<5x64xf32>
    %c0_261 = arith.constant 0 : index
    %c0_262 = arith.constant 0 : index
    %c0_263 = arith.constant 0 : index
    %336 = vector.load %arg9[%c0_261, %c0_262, %c0_263] : memref<3x128x64xf32, #tpu.memory_space<vmem>>, vector<1x128x64xf32>
    %337 = vector.shape_cast %336 : vector<1x128x64xf32> to vector<128x64xf32>
    %cst_264 = arith.constant dense<0.000000e+00> : vector<5x64xf32>
    %338 = tpu.matmul %321, %337, %cst_264 {dimension_numbers = #tpu.dot_dimension_numbers<[1], [0], [0], [1], [0, 0, 1, 1], [], []>} : vector<5x128xf32>, vector<128x64xf32>, vector<5x64xf32> -> vector<5x64xf32>
    %339 = arith.addf %335, %338 : vector<5x64xf32>
    %c1_265 = arith.constant 1 : index
    %c0_266 = arith.constant 0 : index
    %c0_267 = arith.constant 0 : index
    %340 = vector.load %arg8[%c1_265, %c0_266, %c0_267] : memref<3x128x64xf32, #tpu.memory_space<vmem>>, vector<1x128x64xf32>
    %341 = vector.shape_cast %340 : vector<1x128x64xf32> to vector<128x64xf32>
    %cst_268 = arith.constant dense<0.000000e+00> : vector<5x64xf32>
    %342 = tpu.matmul %304, %341, %cst_268 {dimension_numbers = #tpu.dot_dimension_numbers<[1], [0], [0], [1], [0, 0, 1, 1], [], []>} : vector<5x128xf32>, vector<128x64xf32>, vector<5x64xf32> -> vector<5x64xf32>
    %343 = arith.addf %339, %342 : vector<5x64xf32>
    %c1_269 = arith.constant 1 : index
    %c0_270 = arith.constant 0 : index
    %c0_271 = arith.constant 0 : index
    %344 = vector.load %arg9[%c1_269, %c0_270, %c0_271] : memref<3x128x64xf32, #tpu.memory_space<vmem>>, vector<1x128x64xf32>
    %345 = vector.shape_cast %344 : vector<1x128x64xf32> to vector<128x64xf32>
    %cst_272 = arith.constant dense<0.000000e+00> : vector<5x64xf32>
    %346 = tpu.matmul %318, %345, %cst_272 {dimension_numbers = #tpu.dot_dimension_numbers<[1], [0], [0], [1], [0, 0, 1, 1], [], []>} : vector<5x128xf32>, vector<128x64xf32>, vector<5x64xf32> -> vector<5x64xf32>
    %347 = arith.addf %343, %346 : vector<5x64xf32>
    %c2_273 = arith.constant 2 : index
    %c0_274 = arith.constant 0 : index
    %c0_275 = arith.constant 0 : index
    %348 = vector.load %arg8[%c2_273, %c0_274, %c0_275] : memref<3x128x64xf32, #tpu.memory_space<vmem>>, vector<1x128x64xf32>
    %349 = vector.shape_cast %348 : vector<1x128x64xf32> to vector<128x64xf32>
    %cst_276 = arith.constant dense<0.000000e+00> : vector<5x64xf32>
    %350 = tpu.matmul %320, %349, %cst_276 {dimension_numbers = #tpu.dot_dimension_numbers<[1], [0], [0], [1], [0, 0, 1, 1], [], []>} : vector<5x128xf32>, vector<128x64xf32>, vector<5x64xf32> -> vector<5x64xf32>
    %351 = arith.addf %347, %350 : vector<5x64xf32>
    %c2_277 = arith.constant 2 : index
    %c0_278 = arith.constant 0 : index
    %c0_279 = arith.constant 0 : index
    %352 = vector.load %arg9[%c2_277, %c0_278, %c0_279] : memref<3x128x64xf32, #tpu.memory_space<vmem>>, vector<1x128x64xf32>
    %353 = vector.shape_cast %352 : vector<1x128x64xf32> to vector<128x64xf32>
    %cst_280 = arith.constant dense<0.000000e+00> : vector<5x64xf32>
    %354 = tpu.matmul %322, %353, %cst_280 {dimension_numbers = #tpu.dot_dimension_numbers<[1], [0], [0], [1], [0, 0, 1, 1], [], []>} : vector<5x128xf32>, vector<128x64xf32>, vector<5x64xf32> -> vector<5x64xf32>
    %355 = arith.addf %351, %354 : vector<5x64xf32>
    %c0_281 = arith.constant 0 : index
    %c0_282 = arith.constant 0 : index
    %356 = vector.load %arg10[%c0_281, %c0_282] : memref<1x64xf32, #tpu.memory_space<vmem>>, vector<1x64xf32>
    %357 = vector.broadcast %356 : vector<1x64xf32> to vector<5x64xf32>
    %358 = arith.addf %355, %357 : vector<5x64xf32>
    %c0_283 = arith.constant 0 : index
    %c0_284 = arith.constant 0 : index
    %c0_285 = arith.constant 0 : index
    %359 = vector.load %arg11[%c0_283, %c0_284, %c0_285] : memref<2x64x256xf32, #tpu.memory_space<vmem>>, vector<1x64x256xf32>
    %360 = vector.shape_cast %359 : vector<1x64x256xf32> to vector<64x256xf32>
    %cst_286 = arith.constant dense<0.000000e+00> : vector<5x256xf32>
    %361 = tpu.matmul %332, %360, %cst_286 {dimension_numbers = #tpu.dot_dimension_numbers<[1], [0], [0], [1], [0, 0, 1, 1], [], []>} : vector<5x64xf32>, vector<64x256xf32>, vector<5x256xf32> -> vector<5x256xf32>
    %c1_287 = arith.constant 1 : index
    %c0_288 = arith.constant 0 : index
    %c0_289 = arith.constant 0 : index
    %362 = vector.load %arg11[%c1_287, %c0_288, %c0_289] : memref<2x64x256xf32, #tpu.memory_space<vmem>>, vector<1x64x256xf32>
    %363 = vector.shape_cast %362 : vector<1x64x256xf32> to vector<64x256xf32>
    %cst_290 = arith.constant dense<0.000000e+00> : vector<5x256xf32>
    %364 = tpu.matmul %358, %363, %cst_290 {dimension_numbers = #tpu.dot_dimension_numbers<[1], [0], [0], [1], [0, 0, 1, 1], [], []>} : vector<5x64xf32>, vector<64x256xf32>, vector<5x256xf32> -> vector<5x256xf32>
    %365 = arith.addf %361, %364 : vector<5x256xf32>
    %c0_291 = arith.constant 0 : index
    %c0_292 = arith.constant 0 : index
    %366 = vector.load %arg12[%c0_291, %c0_292] : memref<64x256xf32, #tpu.memory_space<vmem>>, vector<64x256xf32>
    %cst_293 = arith.constant dense<0.000000e+00> : vector<5x256xf32>
    %367 = tpu.matmul %255, %366, %cst_293 {dimension_numbers = #tpu.dot_dimension_numbers<[1], [0], [0], [1], [0, 0, 1, 1], [], []>} : vector<5x64xf32>, vector<64x256xf32>, vector<5x256xf32> -> vector<5x256xf32>
    %368 = arith.addf %365, %367 : vector<5x256xf32>
    %c0_294 = arith.constant 0 : index
    %c0_295 = arith.constant 0 : index
    %369 = vector.load %arg13[%c0_294, %c0_295] : memref<1x256xf32, #tpu.memory_space<vmem>>, vector<1x256xf32>
    %370 = vector.broadcast %369 : vector<1x256xf32> to vector<5x256xf32>
    %371 = arith.addf %368, %370 : vector<5x256xf32>
    %372 = vector.extract_strided_slice %371 {offsets = [0, 0], sizes = [5, 64], strides = [1, 1]} : vector<5x256xf32> to vector<5x64xf32>
    %373 = arith.negf %372 : vector<5x64xf32>
    %374 = math.exp %373 : vector<5x64xf32>
    %cst_296 = arith.constant 1.000000e+00 : f32
    %375 = vector.broadcast %cst_296 : f32 to vector<5x64xf32>
    %376 = arith.addf %375, %374 : vector<5x64xf32>
    %377 = arith.divf %375, %376 : vector<5x64xf32>
    %378 = vector.extract_strided_slice %371 {offsets = [0, 64], sizes = [5, 64], strides = [1, 1]} : vector<5x256xf32> to vector<5x64xf32>
    %379 = arith.negf %378 : vector<5x64xf32>
    %380 = math.exp %379 : vector<5x64xf32>
    %cst_297 = arith.constant 1.000000e+00 : f32
    %381 = vector.broadcast %cst_297 : f32 to vector<5x64xf32>
    %382 = arith.addf %381, %380 : vector<5x64xf32>
    %383 = arith.divf %381, %382 : vector<5x64xf32>
    %384 = vector.extract_strided_slice %371 {offsets = [0, 128], sizes = [5, 64], strides = [1, 1]} : vector<5x256xf32> to vector<5x64xf32>
    %385 = math.tanh %384 : vector<5x64xf32>
    %386 = vector.extract_strided_slice %371 {offsets = [0, 192], sizes = [5, 64], strides = [1, 1]} : vector<5x256xf32> to vector<5x64xf32>
    %387 = arith.negf %386 : vector<5x64xf32>
    %388 = math.exp %387 : vector<5x64xf32>
    %cst_298 = arith.constant 1.000000e+00 : f32
    %389 = vector.broadcast %cst_298 : f32 to vector<5x64xf32>
    %390 = arith.addf %389, %388 : vector<5x64xf32>
    %391 = arith.divf %389, %390 : vector<5x64xf32>
    %392 = arith.mulf %383, %253 : vector<5x64xf32>
    %393 = arith.mulf %377, %385 : vector<5x64xf32>
    %394 = arith.addf %392, %393 : vector<5x64xf32>
    %395 = math.tanh %394 : vector<5x64xf32>
    %396 = arith.mulf %391, %395 : vector<5x64xf32>
    %c0_299 = arith.constant 0 : index
    %c0_300 = arith.constant 0 : index
    %397 = vector.load %arg15[%c0_299, %c0_300] : memref<1x32xf32, #tpu.memory_space<vmem>>, vector<1x32xf32>
    %398 = vector.extract_strided_slice %396 {offsets = [0, 0], sizes = [1, 64], strides = [1, 1]} : vector<5x64xf32> to vector<1x64xf32>
    %c0_301 = arith.constant 0 : index
    %c0_302 = arith.constant 0 : index
    %c0_303 = arith.constant 0 : index
    %399 = vector.load %arg14[%c0_301, %c0_302, %c0_303] : memref<5x64x32xf32, #tpu.memory_space<vmem>>, vector<1x64x32xf32>
    %400 = vector.shape_cast %399 : vector<1x64x32xf32> to vector<64x32xf32>
    %cst_304 = arith.constant dense<0.000000e+00> : vector<1x32xf32>
    %401 = tpu.matmul %398, %400, %cst_304 {dimension_numbers = #tpu.dot_dimension_numbers<[1], [0], [0], [1], [0, 0, 1, 1], [], []>} : vector<1x64xf32>, vector<64x32xf32>, vector<1x32xf32> -> vector<1x32xf32>
    %402 = arith.addf %397, %401 : vector<1x32xf32>
    %403 = vector.extract_strided_slice %396 {offsets = [1, 0], sizes = [1, 64], strides = [1, 1]} : vector<5x64xf32> to vector<1x64xf32>
    %c1_305 = arith.constant 1 : index
    %c0_306 = arith.constant 0 : index
    %c0_307 = arith.constant 0 : index
    %404 = vector.load %arg14[%c1_305, %c0_306, %c0_307] : memref<5x64x32xf32, #tpu.memory_space<vmem>>, vector<1x64x32xf32>
    %405 = vector.shape_cast %404 : vector<1x64x32xf32> to vector<64x32xf32>
    %cst_308 = arith.constant dense<0.000000e+00> : vector<1x32xf32>
    %406 = tpu.matmul %403, %405, %cst_308 {dimension_numbers = #tpu.dot_dimension_numbers<[1], [0], [0], [1], [0, 0, 1, 1], [], []>} : vector<1x64xf32>, vector<64x32xf32>, vector<1x32xf32> -> vector<1x32xf32>
    %407 = arith.addf %402, %406 : vector<1x32xf32>
    %408 = vector.extract_strided_slice %396 {offsets = [2, 0], sizes = [1, 64], strides = [1, 1]} : vector<5x64xf32> to vector<1x64xf32>
    %c2_309 = arith.constant 2 : index
    %c0_310 = arith.constant 0 : index
    %c0_311 = arith.constant 0 : index
    %409 = vector.load %arg14[%c2_309, %c0_310, %c0_311] : memref<5x64x32xf32, #tpu.memory_space<vmem>>, vector<1x64x32xf32>
    %410 = vector.shape_cast %409 : vector<1x64x32xf32> to vector<64x32xf32>
    %cst_312 = arith.constant dense<0.000000e+00> : vector<1x32xf32>
    %411 = tpu.matmul %408, %410, %cst_312 {dimension_numbers = #tpu.dot_dimension_numbers<[1], [0], [0], [1], [0, 0, 1, 1], [], []>} : vector<1x64xf32>, vector<64x32xf32>, vector<1x32xf32> -> vector<1x32xf32>
    %412 = arith.addf %407, %411 : vector<1x32xf32>
    %413 = vector.extract_strided_slice %396 {offsets = [3, 0], sizes = [1, 64], strides = [1, 1]} : vector<5x64xf32> to vector<1x64xf32>
    %c3_313 = arith.constant 3 : index
    %c0_314 = arith.constant 0 : index
    %c0_315 = arith.constant 0 : index
    %414 = vector.load %arg14[%c3_313, %c0_314, %c0_315] : memref<5x64x32xf32, #tpu.memory_space<vmem>>, vector<1x64x32xf32>
    %415 = vector.shape_cast %414 : vector<1x64x32xf32> to vector<64x32xf32>
    %cst_316 = arith.constant dense<0.000000e+00> : vector<1x32xf32>
    %416 = tpu.matmul %413, %415, %cst_316 {dimension_numbers = #tpu.dot_dimension_numbers<[1], [0], [0], [1], [0, 0, 1, 1], [], []>} : vector<1x64xf32>, vector<64x32xf32>, vector<1x32xf32> -> vector<1x32xf32>
    %417 = arith.addf %412, %416 : vector<1x32xf32>
    %418 = vector.extract_strided_slice %396 {offsets = [4, 0], sizes = [1, 64], strides = [1, 1]} : vector<5x64xf32> to vector<1x64xf32>
    %c4_317 = arith.constant 4 : index
    %c0_318 = arith.constant 0 : index
    %c0_319 = arith.constant 0 : index
    %419 = vector.load %arg14[%c4_317, %c0_318, %c0_319] : memref<5x64x32xf32, #tpu.memory_space<vmem>>, vector<1x64x32xf32>
    %420 = vector.shape_cast %419 : vector<1x64x32xf32> to vector<64x32xf32>
    %cst_320 = arith.constant dense<0.000000e+00> : vector<1x32xf32>
    %421 = tpu.matmul %418, %420, %cst_320 {dimension_numbers = #tpu.dot_dimension_numbers<[1], [0], [0], [1], [0, 0, 1, 1], [], []>} : vector<1x64xf32>, vector<64x32xf32>, vector<1x32xf32> -> vector<1x32xf32>
    %422 = arith.addf %417, %421 : vector<1x32xf32>
    %c0_321 = arith.constant 0 : index
    %c0_322 = arith.constant 0 : index
    %423 = vector.load %arg16[%c0_321, %c0_322] : memref<32x2xf32, #tpu.memory_space<vmem>>, vector<32x2xf32>
    %cst_323 = arith.constant dense<0.000000e+00> : vector<1x2xf32>
    %424 = tpu.matmul %422, %423, %cst_323 {dimension_numbers = #tpu.dot_dimension_numbers<[1], [0], [0], [1], [0, 0, 1, 1], [], []>} : vector<1x32xf32>, vector<32x2xf32>, vector<1x2xf32> -> vector<1x2xf32>
    %c0_324 = arith.constant 0 : index
    %c0_325 = arith.constant 0 : index
    %425 = vector.load %arg17[%c0_324, %c0_325] : memref<1x2xf32, #tpu.memory_space<vmem>>, vector<1x2xf32>
    %426 = arith.addf %424, %425 : vector<1x2xf32>
    %cst_326 = arith.constant dense<0xFF800000> : vector<1xf32>
    %427 = vector.multi_reduction <maximumf>, %426, %cst_326 [1] : vector<1x2xf32> to vector<1xf32>
    %428 = vector.shape_cast %427 : vector<1xf32> to vector<1x1xf32>
    %429 = vector.broadcast %428 : vector<1x1xf32> to vector<1x2xf32>
    %430 = arith.subf %426, %429 : vector<1x2xf32>
    %431 = math.exp %430 : vector<1x2xf32>
    %cst_327 = arith.constant dense<0.000000e+00> : vector<1xf32>
    %432 = vector.multi_reduction <add>, %431, %cst_327 [1] : vector<1x2xf32> to vector<1xf32>
    %433 = vector.shape_cast %432 : vector<1xf32> to vector<1x1xf32>
    %434 = vector.broadcast %433 : vector<1x1xf32> to vector<1x2xf32>
    %435 = arith.divf %431, %434 : vector<1x2xf32>
    %c2_328 = arith.constant 2 : index
    %c0_329 = arith.constant 0 : index
    %436 = vector.load %arg18[%c2_328, %c0_329] : memref<4x2xf32, #tpu.memory_space<vmem>>, vector<1x2xf32>
    tpu.vector_store %arg18[%c2_328, %c0_329], %435 {strides = array<i32>} : memref<4x2xf32, #tpu.memory_space<vmem>>, vector<1x2xf32>,
    %c3_330 = arith.constant 3 : index
    %c0_331 = arith.constant 0 : index
    %c0_332 = arith.constant 0 : index
    %437 = vector.load %arg1[%c3_330, %c0_331, %c0_332] : memref<4x5x24xf32, #tpu.memory_space<vmem>>, vector<1x5x24xf32>
    %438 = vector.shape_cast %437 : vector<1x5x24xf32> to vector<5x24xf32>
    %cst_333 = arith.constant dense<0.000000e+00> : vector<5x24xf32>
    %439 = tpu.matmul %6, %438, %cst_333 {dimension_numbers = #tpu.dot_dimension_numbers<[1], [0], [0], [1], [0, 0, 1, 1], [], []>} : vector<5x5xf32>, vector<5x24xf32>, vector<5x24xf32> -> vector<5x24xf32>
    %cst_334 = arith.constant dense<0.000000e+00> : vector<5x24xf32>
    %440 = tpu.matmul %11, %438, %cst_334 {dimension_numbers = #tpu.dot_dimension_numbers<[1], [0], [0], [1], [0, 0, 1, 1], [], []>} : vector<5x5xf32>, vector<5x24xf32>, vector<5x24xf32> -> vector<5x24xf32>
    %c0_335 = arith.constant 0 : index
    %c0_336 = arith.constant 0 : index
    %441 = vector.load %arg2[%c0_335, %c0_336] : memref<24x128xf32, #tpu.memory_space<vmem>>, vector<24x128xf32>
    %cst_337 = arith.constant dense<0.000000e+00> : vector<5x128xf32>
    %442 = tpu.matmul %438, %441, %cst_337 {dimension_numbers = #tpu.dot_dimension_numbers<[1], [0], [0], [1], [0, 0, 1, 1], [], []>} : vector<5x24xf32>, vector<24x128xf32>, vector<5x128xf32> -> vector<5x128xf32>
    %c0_338 = arith.constant 0 : index
    %c0_339 = arith.constant 0 : index
    %443 = vector.load %arg3[%c0_338, %c0_339] : memref<1x128xf32, #tpu.memory_space<vmem>>, vector<1x128xf32>
    %444 = vector.broadcast %443 : vector<1x128xf32> to vector<5x128xf32>
    %445 = arith.addf %442, %444 : vector<5x128xf32>
    %c0_340 = arith.constant 0 : index
    %c0_341 = arith.constant 0 : index
    %c0_342 = arith.constant 0 : index
    %446 = vector.load %arg4[%c0_340, %c0_341, %c0_342] : memref<3x24x128xf32, #tpu.memory_space<vmem>>, vector<1x24x128xf32>
    %447 = vector.shape_cast %446 : vector<1x24x128xf32> to vector<24x128xf32>
    %cst_343 = arith.constant dense<0.000000e+00> : vector<5x128xf32>
    %448 = tpu.matmul %439, %447, %cst_343 {dimension_numbers = #tpu.dot_dimension_numbers<[1], [0], [0], [1], [0, 0, 1, 1], [], []>} : vector<5x24xf32>, vector<24x128xf32>, vector<5x128xf32> -> vector<5x128xf32>
    %c1_344 = arith.constant 1 : index
    %c0_345 = arith.constant 0 : index
    %c0_346 = arith.constant 0 : index
    %449 = vector.load %arg4[%c1_344, %c0_345, %c0_346] : memref<3x24x128xf32, #tpu.memory_space<vmem>>, vector<1x24x128xf32>
    %450 = vector.shape_cast %449 : vector<1x24x128xf32> to vector<24x128xf32>
    %cst_347 = arith.constant dense<0.000000e+00> : vector<5x128xf32>
    %451 = tpu.matmul %438, %450, %cst_347 {dimension_numbers = #tpu.dot_dimension_numbers<[1], [0], [0], [1], [0, 0, 1, 1], [], []>} : vector<5x24xf32>, vector<24x128xf32>, vector<5x128xf32> -> vector<5x128xf32>
    %452 = arith.addf %448, %451 : vector<5x128xf32>
    %c2_348 = arith.constant 2 : index
    %c0_349 = arith.constant 0 : index
    %c0_350 = arith.constant 0 : index
    %453 = vector.load %arg4[%c2_348, %c0_349, %c0_350] : memref<3x24x128xf32, #tpu.memory_space<vmem>>, vector<1x24x128xf32>
    %454 = vector.shape_cast %453 : vector<1x24x128xf32> to vector<24x128xf32>
    %cst_351 = arith.constant dense<0.000000e+00> : vector<5x128xf32>
    %455 = tpu.matmul %440, %454, %cst_351 {dimension_numbers = #tpu.dot_dimension_numbers<[1], [0], [0], [1], [0, 0, 1, 1], [], []>} : vector<5x24xf32>, vector<24x128xf32>, vector<5x128xf32> -> vector<5x128xf32>
    %456 = arith.addf %452, %455 : vector<5x128xf32>
    %c0_352 = arith.constant 0 : index
    %c0_353 = arith.constant 0 : index
    %457 = vector.load %arg5[%c0_352, %c0_353] : memref<1x128xf32, #tpu.memory_space<vmem>>, vector<1x128xf32>
    %458 = vector.broadcast %457 : vector<1x128xf32> to vector<5x128xf32>
    %459 = arith.addf %456, %458 : vector<5x128xf32>
    %cst_354 = arith.constant dense<0.000000e+00> : vector<5x128xf32>
    %460 = tpu.matmul %6, %445, %cst_354 {dimension_numbers = #tpu.dot_dimension_numbers<[1], [0], [0], [1], [0, 0, 1, 1], [], []>} : vector<5x5xf32>, vector<5x128xf32>, vector<5x128xf32> -> vector<5x128xf32>
    %cst_355 = arith.constant dense<0.000000e+00> : vector<5x128xf32>
    %461 = tpu.matmul %11, %445, %cst_355 {dimension_numbers = #tpu.dot_dimension_numbers<[1], [0], [0], [1], [0, 0, 1, 1], [], []>} : vector<5x5xf32>, vector<5x128xf32>, vector<5x128xf32> -> vector<5x128xf32>
    %cst_356 = arith.constant dense<0.000000e+00> : vector<5x128xf32>
    %462 = tpu.matmul %6, %459, %cst_356 {dimension_numbers = #tpu.dot_dimension_numbers<[1], [0], [0], [1], [0, 0, 1, 1], [], []>} : vector<5x5xf32>, vector<5x128xf32>, vector<5x128xf32> -> vector<5x128xf32>
    %cst_357 = arith.constant dense<0.000000e+00> : vector<5x128xf32>
    %463 = tpu.matmul %11, %459, %cst_357 {dimension_numbers = #tpu.dot_dimension_numbers<[1], [0], [0], [1], [0, 0, 1, 1], [], []>} : vector<5x5xf32>, vector<5x128xf32>, vector<5x128xf32> -> vector<5x128xf32>
    %c0_358 = arith.constant 0 : index
    %c0_359 = arith.constant 0 : index
    %c0_360 = arith.constant 0 : index
    %464 = vector.load %arg6[%c0_358, %c0_359, %c0_360] : memref<2x128x64xf32, #tpu.memory_space<vmem>>, vector<1x128x64xf32>
    %465 = vector.shape_cast %464 : vector<1x128x64xf32> to vector<128x64xf32>
    %cst_361 = arith.constant dense<0.000000e+00> : vector<5x64xf32>
    %466 = tpu.matmul %445, %465, %cst_361 {dimension_numbers = #tpu.dot_dimension_numbers<[1], [0], [0], [1], [0, 0, 1, 1], [], []>} : vector<5x128xf32>, vector<128x64xf32>, vector<5x64xf32> -> vector<5x64xf32>
    %c1_362 = arith.constant 1 : index
    %c0_363 = arith.constant 0 : index
    %c0_364 = arith.constant 0 : index
    %467 = vector.load %arg6[%c1_362, %c0_363, %c0_364] : memref<2x128x64xf32, #tpu.memory_space<vmem>>, vector<1x128x64xf32>
    %468 = vector.shape_cast %467 : vector<1x128x64xf32> to vector<128x64xf32>
    %cst_365 = arith.constant dense<0.000000e+00> : vector<5x64xf32>
    %469 = tpu.matmul %459, %468, %cst_365 {dimension_numbers = #tpu.dot_dimension_numbers<[1], [0], [0], [1], [0, 0, 1, 1], [], []>} : vector<5x128xf32>, vector<128x64xf32>, vector<5x64xf32> -> vector<5x64xf32>
    %470 = arith.addf %466, %469 : vector<5x64xf32>
    %c0_366 = arith.constant 0 : index
    %c0_367 = arith.constant 0 : index
    %471 = vector.load %arg7[%c0_366, %c0_367] : memref<1x64xf32, #tpu.memory_space<vmem>>, vector<1x64xf32>
    %472 = vector.broadcast %471 : vector<1x64xf32> to vector<5x64xf32>
    %473 = arith.addf %470, %472 : vector<5x64xf32>
    %c0_368 = arith.constant 0 : index
    %c0_369 = arith.constant 0 : index
    %c0_370 = arith.constant 0 : index
    %474 = vector.load %arg8[%c0_368, %c0_369, %c0_370] : memref<3x128x64xf32, #tpu.memory_space<vmem>>, vector<1x128x64xf32>
    %475 = vector.shape_cast %474 : vector<1x128x64xf32> to vector<128x64xf32>
    %cst_371 = arith.constant dense<0.000000e+00> : vector<5x64xf32>
    %476 = tpu.matmul %460, %475, %cst_371 {dimension_numbers = #tpu.dot_dimension_numbers<[1], [0], [0], [1], [0, 0, 1, 1], [], []>} : vector<5x128xf32>, vector<128x64xf32>, vector<5x64xf32> -> vector<5x64xf32>
    %c0_372 = arith.constant 0 : index
    %c0_373 = arith.constant 0 : index
    %c0_374 = arith.constant 0 : index
    %477 = vector.load %arg9[%c0_372, %c0_373, %c0_374] : memref<3x128x64xf32, #tpu.memory_space<vmem>>, vector<1x128x64xf32>
    %478 = vector.shape_cast %477 : vector<1x128x64xf32> to vector<128x64xf32>
    %cst_375 = arith.constant dense<0.000000e+00> : vector<5x64xf32>
    %479 = tpu.matmul %462, %478, %cst_375 {dimension_numbers = #tpu.dot_dimension_numbers<[1], [0], [0], [1], [0, 0, 1, 1], [], []>} : vector<5x128xf32>, vector<128x64xf32>, vector<5x64xf32> -> vector<5x64xf32>
    %480 = arith.addf %476, %479 : vector<5x64xf32>
    %c1_376 = arith.constant 1 : index
    %c0_377 = arith.constant 0 : index
    %c0_378 = arith.constant 0 : index
    %481 = vector.load %arg8[%c1_376, %c0_377, %c0_378] : memref<3x128x64xf32, #tpu.memory_space<vmem>>, vector<1x128x64xf32>
    %482 = vector.shape_cast %481 : vector<1x128x64xf32> to vector<128x64xf32>
    %cst_379 = arith.constant dense<0.000000e+00> : vector<5x64xf32>
    %483 = tpu.matmul %445, %482, %cst_379 {dimension_numbers = #tpu.dot_dimension_numbers<[1], [0], [0], [1], [0, 0, 1, 1], [], []>} : vector<5x128xf32>, vector<128x64xf32>, vector<5x64xf32> -> vector<5x64xf32>
    %484 = arith.addf %480, %483 : vector<5x64xf32>
    %c1_380 = arith.constant 1 : index
    %c0_381 = arith.constant 0 : index
    %c0_382 = arith.constant 0 : index
    %485 = vector.load %arg9[%c1_380, %c0_381, %c0_382] : memref<3x128x64xf32, #tpu.memory_space<vmem>>, vector<1x128x64xf32>
    %486 = vector.shape_cast %485 : vector<1x128x64xf32> to vector<128x64xf32>
    %cst_383 = arith.constant dense<0.000000e+00> : vector<5x64xf32>
    %487 = tpu.matmul %459, %486, %cst_383 {dimension_numbers = #tpu.dot_dimension_numbers<[1], [0], [0], [1], [0, 0, 1, 1], [], []>} : vector<5x128xf32>, vector<128x64xf32>, vector<5x64xf32> -> vector<5x64xf32>
    %488 = arith.addf %484, %487 : vector<5x64xf32>
    %c2_384 = arith.constant 2 : index
    %c0_385 = arith.constant 0 : index
    %c0_386 = arith.constant 0 : index
    %489 = vector.load %arg8[%c2_384, %c0_385, %c0_386] : memref<3x128x64xf32, #tpu.memory_space<vmem>>, vector<1x128x64xf32>
    %490 = vector.shape_cast %489 : vector<1x128x64xf32> to vector<128x64xf32>
    %cst_387 = arith.constant dense<0.000000e+00> : vector<5x64xf32>
    %491 = tpu.matmul %461, %490, %cst_387 {dimension_numbers = #tpu.dot_dimension_numbers<[1], [0], [0], [1], [0, 0, 1, 1], [], []>} : vector<5x128xf32>, vector<128x64xf32>, vector<5x64xf32> -> vector<5x64xf32>
    %492 = arith.addf %488, %491 : vector<5x64xf32>
    %c2_388 = arith.constant 2 : index
    %c0_389 = arith.constant 0 : index
    %c0_390 = arith.constant 0 : index
    %493 = vector.load %arg9[%c2_388, %c0_389, %c0_390] : memref<3x128x64xf32, #tpu.memory_space<vmem>>, vector<1x128x64xf32>
    %494 = vector.shape_cast %493 : vector<1x128x64xf32> to vector<128x64xf32>
    %cst_391 = arith.constant dense<0.000000e+00> : vector<5x64xf32>
    %495 = tpu.matmul %463, %494, %cst_391 {dimension_numbers = #tpu.dot_dimension_numbers<[1], [0], [0], [1], [0, 0, 1, 1], [], []>} : vector<5x128xf32>, vector<128x64xf32>, vector<5x64xf32> -> vector<5x64xf32>
    %496 = arith.addf %492, %495 : vector<5x64xf32>
    %c0_392 = arith.constant 0 : index
    %c0_393 = arith.constant 0 : index
    %497 = vector.load %arg10[%c0_392, %c0_393] : memref<1x64xf32, #tpu.memory_space<vmem>>, vector<1x64xf32>
    %498 = vector.broadcast %497 : vector<1x64xf32> to vector<5x64xf32>
    %499 = arith.addf %496, %498 : vector<5x64xf32>
    %c0_394 = arith.constant 0 : index
    %c0_395 = arith.constant 0 : index
    %c0_396 = arith.constant 0 : index
    %500 = vector.load %arg11[%c0_394, %c0_395, %c0_396] : memref<2x64x256xf32, #tpu.memory_space<vmem>>, vector<1x64x256xf32>
    %501 = vector.shape_cast %500 : vector<1x64x256xf32> to vector<64x256xf32>
    %cst_397 = arith.constant dense<0.000000e+00> : vector<5x256xf32>
    %502 = tpu.matmul %473, %501, %cst_397 {dimension_numbers = #tpu.dot_dimension_numbers<[1], [0], [0], [1], [0, 0, 1, 1], [], []>} : vector<5x64xf32>, vector<64x256xf32>, vector<5x256xf32> -> vector<5x256xf32>
    %c1_398 = arith.constant 1 : index
    %c0_399 = arith.constant 0 : index
    %c0_400 = arith.constant 0 : index
    %503 = vector.load %arg11[%c1_398, %c0_399, %c0_400] : memref<2x64x256xf32, #tpu.memory_space<vmem>>, vector<1x64x256xf32>
    %504 = vector.shape_cast %503 : vector<1x64x256xf32> to vector<64x256xf32>
    %cst_401 = arith.constant dense<0.000000e+00> : vector<5x256xf32>
    %505 = tpu.matmul %499, %504, %cst_401 {dimension_numbers = #tpu.dot_dimension_numbers<[1], [0], [0], [1], [0, 0, 1, 1], [], []>} : vector<5x64xf32>, vector<64x256xf32>, vector<5x256xf32> -> vector<5x256xf32>
    %506 = arith.addf %502, %505 : vector<5x256xf32>
    %c0_402 = arith.constant 0 : index
    %c0_403 = arith.constant 0 : index
    %507 = vector.load %arg12[%c0_402, %c0_403] : memref<64x256xf32, #tpu.memory_space<vmem>>, vector<64x256xf32>
    %cst_404 = arith.constant dense<0.000000e+00> : vector<5x256xf32>
    %508 = tpu.matmul %396, %507, %cst_404 {dimension_numbers = #tpu.dot_dimension_numbers<[1], [0], [0], [1], [0, 0, 1, 1], [], []>} : vector<5x64xf32>, vector<64x256xf32>, vector<5x256xf32> -> vector<5x256xf32>
    %509 = arith.addf %506, %508 : vector<5x256xf32>
    %c0_405 = arith.constant 0 : index
    %c0_406 = arith.constant 0 : index
    %510 = vector.load %arg13[%c0_405, %c0_406] : memref<1x256xf32, #tpu.memory_space<vmem>>, vector<1x256xf32>
    %511 = vector.broadcast %510 : vector<1x256xf32> to vector<5x256xf32>
    %512 = arith.addf %509, %511 : vector<5x256xf32>
    %513 = vector.extract_strided_slice %512 {offsets = [0, 0], sizes = [5, 64], strides = [1, 1]} : vector<5x256xf32> to vector<5x64xf32>
    %514 = arith.negf %513 : vector<5x64xf32>
    %515 = math.exp %514 : vector<5x64xf32>
    %cst_407 = arith.constant 1.000000e+00 : f32
    %516 = vector.broadcast %cst_407 : f32 to vector<5x64xf32>
    %517 = arith.addf %516, %515 : vector<5x64xf32>
    %518 = arith.divf %516, %517 : vector<5x64xf32>
    %519 = vector.extract_strided_slice %512 {offsets = [0, 64], sizes = [5, 64], strides = [1, 1]} : vector<5x256xf32> to vector<5x64xf32>
    %520 = arith.negf %519 : vector<5x64xf32>
    %521 = math.exp %520 : vector<5x64xf32>
    %cst_408 = arith.constant 1.000000e+00 : f32
    %522 = vector.broadcast %cst_408 : f32 to vector<5x64xf32>
    %523 = arith.addf %522, %521 : vector<5x64xf32>
    %524 = arith.divf %522, %523 : vector<5x64xf32>
    %525 = vector.extract_strided_slice %512 {offsets = [0, 128], sizes = [5, 64], strides = [1, 1]} : vector<5x256xf32> to vector<5x64xf32>
    %526 = math.tanh %525 : vector<5x64xf32>
    %527 = vector.extract_strided_slice %512 {offsets = [0, 192], sizes = [5, 64], strides = [1, 1]} : vector<5x256xf32> to vector<5x64xf32>
    %528 = arith.negf %527 : vector<5x64xf32>
    %529 = math.exp %528 : vector<5x64xf32>
    %cst_409 = arith.constant 1.000000e+00 : f32
    %530 = vector.broadcast %cst_409 : f32 to vector<5x64xf32>
    %531 = arith.addf %530, %529 : vector<5x64xf32>
    %532 = arith.divf %530, %531 : vector<5x64xf32>
    %533 = arith.mulf %524, %394 : vector<5x64xf32>
    %534 = arith.mulf %518, %526 : vector<5x64xf32>
    %535 = arith.addf %533, %534 : vector<5x64xf32>
    %536 = math.tanh %535 : vector<5x64xf32>
    %537 = arith.mulf %532, %536 : vector<5x64xf32>
    %c0_410 = arith.constant 0 : index
    %c0_411 = arith.constant 0 : index
    %538 = vector.load %arg15[%c0_410, %c0_411] : memref<1x32xf32, #tpu.memory_space<vmem>>, vector<1x32xf32>
    %539 = vector.extract_strided_slice %537 {offsets = [0, 0], sizes = [1, 64], strides = [1, 1]} : vector<5x64xf32> to vector<1x64xf32>
    %c0_412 = arith.constant 0 : index
    %c0_413 = arith.constant 0 : index
    %c0_414 = arith.constant 0 : index
    %540 = vector.load %arg14[%c0_412, %c0_413, %c0_414] : memref<5x64x32xf32, #tpu.memory_space<vmem>>, vector<1x64x32xf32>
    %541 = vector.shape_cast %540 : vector<1x64x32xf32> to vector<64x32xf32>
    %cst_415 = arith.constant dense<0.000000e+00> : vector<1x32xf32>
    %542 = tpu.matmul %539, %541, %cst_415 {dimension_numbers = #tpu.dot_dimension_numbers<[1], [0], [0], [1], [0, 0, 1, 1], [], []>} : vector<1x64xf32>, vector<64x32xf32>, vector<1x32xf32> -> vector<1x32xf32>
    %543 = arith.addf %538, %542 : vector<1x32xf32>
    %544 = vector.extract_strided_slice %537 {offsets = [1, 0], sizes = [1, 64], strides = [1, 1]} : vector<5x64xf32> to vector<1x64xf32>
    %c1_416 = arith.constant 1 : index
    %c0_417 = arith.constant 0 : index
    %c0_418 = arith.constant 0 : index
    %545 = vector.load %arg14[%c1_416, %c0_417, %c0_418] : memref<5x64x32xf32, #tpu.memory_space<vmem>>, vector<1x64x32xf32>
    %546 = vector.shape_cast %545 : vector<1x64x32xf32> to vector<64x32xf32>
    %cst_419 = arith.constant dense<0.000000e+00> : vector<1x32xf32>
    %547 = tpu.matmul %544, %546, %cst_419 {dimension_numbers = #tpu.dot_dimension_numbers<[1], [0], [0], [1], [0, 0, 1, 1], [], []>} : vector<1x64xf32>, vector<64x32xf32>, vector<1x32xf32> -> vector<1x32xf32>
    %548 = arith.addf %543, %547 : vector<1x32xf32>
    %549 = vector.extract_strided_slice %537 {offsets = [2, 0], sizes = [1, 64], strides = [1, 1]} : vector<5x64xf32> to vector<1x64xf32>
    %c2_420 = arith.constant 2 : index
    %c0_421 = arith.constant 0 : index
    %c0_422 = arith.constant 0 : index
    %550 = vector.load %arg14[%c2_420, %c0_421, %c0_422] : memref<5x64x32xf32, #tpu.memory_space<vmem>>, vector<1x64x32xf32>
    %551 = vector.shape_cast %550 : vector<1x64x32xf32> to vector<64x32xf32>
    %cst_423 = arith.constant dense<0.000000e+00> : vector<1x32xf32>
    %552 = tpu.matmul %549, %551, %cst_423 {dimension_numbers = #tpu.dot_dimension_numbers<[1], [0], [0], [1], [0, 0, 1, 1], [], []>} : vector<1x64xf32>, vector<64x32xf32>, vector<1x32xf32> -> vector<1x32xf32>
    %553 = arith.addf %548, %552 : vector<1x32xf32>
    %554 = vector.extract_strided_slice %537 {offsets = [3, 0], sizes = [1, 64], strides = [1, 1]} : vector<5x64xf32> to vector<1x64xf32>
    %c3_424 = arith.constant 3 : index
    %c0_425 = arith.constant 0 : index
    %c0_426 = arith.constant 0 : index
    %555 = vector.load %arg14[%c3_424, %c0_425, %c0_426] : memref<5x64x32xf32, #tpu.memory_space<vmem>>, vector<1x64x32xf32>
    %556 = vector.shape_cast %555 : vector<1x64x32xf32> to vector<64x32xf32>
    %cst_427 = arith.constant dense<0.000000e+00> : vector<1x32xf32>
    %557 = tpu.matmul %554, %556, %cst_427 {dimension_numbers = #tpu.dot_dimension_numbers<[1], [0], [0], [1], [0, 0, 1, 1], [], []>} : vector<1x64xf32>, vector<64x32xf32>, vector<1x32xf32> -> vector<1x32xf32>
    %558 = arith.addf %553, %557 : vector<1x32xf32>
    %559 = vector.extract_strided_slice %537 {offsets = [4, 0], sizes = [1, 64], strides = [1, 1]} : vector<5x64xf32> to vector<1x64xf32>
    %c4_428 = arith.constant 4 : index
    %c0_429 = arith.constant 0 : index
    %c0_430 = arith.constant 0 : index
    %560 = vector.load %arg14[%c4_428, %c0_429, %c0_430] : memref<5x64x32xf32, #tpu.memory_space<vmem>>, vector<1x64x32xf32>
    %561 = vector.shape_cast %560 : vector<1x64x32xf32> to vector<64x32xf32>
    %cst_431 = arith.constant dense<0.000000e+00> : vector<1x32xf32>
    %562 = tpu.matmul %559, %561, %cst_431 {dimension_numbers = #tpu.dot_dimension_numbers<[1], [0], [0], [1], [0, 0, 1, 1], [], []>} : vector<1x64xf32>, vector<64x32xf32>, vector<1x32xf32> -> vector<1x32xf32>
    %563 = arith.addf %558, %562 : vector<1x32xf32>
    %c0_432 = arith.constant 0 : index
    %c0_433 = arith.constant 0 : index
    %564 = vector.load %arg16[%c0_432, %c0_433] : memref<32x2xf32, #tpu.memory_space<vmem>>, vector<32x2xf32>
    %cst_434 = arith.constant dense<0.000000e+00> : vector<1x2xf32>
    %565 = tpu.matmul %563, %564, %cst_434 {dimension_numbers = #tpu.dot_dimension_numbers<[1], [0], [0], [1], [0, 0, 1, 1], [], []>} : vector<1x32xf32>, vector<32x2xf32>, vector<1x2xf32> -> vector<1x2xf32>
    %c0_435 = arith.constant 0 : index
    %c0_436 = arith.constant 0 : index
    %566 = vector.load %arg17[%c0_435, %c0_436] : memref<1x2xf32, #tpu.memory_space<vmem>>, vector<1x2xf32>
    %567 = arith.addf %565, %566 : vector<1x2xf32>
    %cst_437 = arith.constant dense<0xFF800000> : vector<1xf32>
    %568 = vector.multi_reduction <maximumf>, %567, %cst_437 [1] : vector<1x2xf32> to vector<1xf32>
    %569 = vector.shape_cast %568 : vector<1xf32> to vector<1x1xf32>
    %570 = vector.broadcast %569 : vector<1x1xf32> to vector<1x2xf32>
    %571 = arith.subf %567, %570 : vector<1x2xf32>
    %572 = math.exp %571 : vector<1x2xf32>
    %cst_438 = arith.constant dense<0.000000e+00> : vector<1xf32>
    %573 = vector.multi_reduction <add>, %572, %cst_438 [1] : vector<1x2xf32> to vector<1xf32>
    %574 = vector.shape_cast %573 : vector<1xf32> to vector<1x1xf32>
    %575 = vector.broadcast %574 : vector<1x1xf32> to vector<1x2xf32>
    %576 = arith.divf %572, %575 : vector<1x2xf32>
    %c3_439 = arith.constant 3 : index
    %c0_440 = arith.constant 0 : index
    %577 = vector.load %arg18[%c3_439, %c0_440] : memref<4x2xf32, #tpu.memory_space<vmem>>, vector<1x2xf32>
    tpu.vector_store %arg18[%c3_439, %c0_440], %576 {strides = array<i32>} : memref<4x2xf32, #tpu.memory_space<vmem>>, vector<1x2xf32>,
    return
  }
  func.func @transform_0(%arg0: i32) -> (i32, i32, i32) {
    %c0_i32 = arith.constant 0 : i32
    %c0_i32_0 = arith.constant 0 : i32
    %c0_i32_1 = arith.constant 0 : i32
    %c0_i32_2 = arith.constant 0 : i32
    return %c0_i32, %c0_i32_0, %c0_i32_1 : i32, i32, i32
  }
  func.func @transform_1(%arg0: i32) -> (i32, i32) {
    %c0_i32 = arith.constant 0 : i32
    %c0_i32_0 = arith.constant 0 : i32
    %c0_i32_1 = arith.constant 0 : i32
    return %c0_i32, %c0_i32_0 : i32, i32
  }
  func.func @transform_2(%arg0: i32) -> (i32, i32) {
    %c0_i32 = arith.constant 0 : i32
    %c0_i32_0 = arith.constant 0 : i32
    %c0_i32_1 = arith.constant 0 : i32
    return %c0_i32, %c0_i32_0 : i32, i32
  }
  func.func @transform_3(%arg0: i32) -> (i32, i32, i32) {
    %c0_i32 = arith.constant 0 : i32
    %c0_i32_0 = arith.constant 0 : i32
    %c0_i32_1 = arith.constant 0 : i32
    %c0_i32_2 = arith.constant 0 : i32
    return %c0_i32, %c0_i32_0, %c0_i32_1 : i32, i32, i32
  }
  func.func @transform_4(%arg0: i32) -> (i32, i32) {
    %c0_i32 = arith.constant 0 : i32
    %c0_i32_0 = arith.constant 0 : i32
    %c0_i32_1 = arith.constant 0 : i32
    return %c0_i32, %c0_i32_0 : i32, i32
  }
  func.func @transform_5(%arg0: i32) -> (i32, i32, i32) {
    %c0_i32 = arith.constant 0 : i32
    %c0_i32_0 = arith.constant 0 : i32
    %c0_i32_1 = arith.constant 0 : i32
    %c0_i32_2 = arith.constant 0 : i32
    return %c0_i32, %c0_i32_0, %c0_i32_1 : i32, i32, i32
  }
  func.func @transform_6(%arg0: i32) -> (i32, i32) {
    %c0_i32 = arith.constant 0 : i32
    %c0_i32_0 = arith.constant 0 : i32
    %c0_i32_1 = arith.constant 0 : i32
    return %c0_i32, %c0_i32_0 : i32, i32
  }
  func.func @transform_7(%arg0: i32) -> (i32, i32, i32) {
    %c0_i32 = arith.constant 0 : i32
    %c0_i32_0 = arith.constant 0 : i32
    %c0_i32_1 = arith.constant 0 : i32
    %c0_i32_2 = arith.constant 0 : i32
    return %c0_i32, %c0_i32_0, %c0_i32_1 : i32, i32, i32
  }
  func.func @transform_8(%arg0: i32) -> (i32, i32, i32) {
    %c0_i32 = arith.constant 0 : i32
    %c0_i32_0 = arith.constant 0 : i32
    %c0_i32_1 = arith.constant 0 : i32
    %c0_i32_2 = arith.constant 0 : i32
    return %c0_i32, %c0_i32_0, %c0_i32_1 : i32, i32, i32
  }
  func.func @transform_9(%arg0: i32) -> (i32, i32) {
    %c0_i32 = arith.constant 0 : i32
    %c0_i32_0 = arith.constant 0 : i32
    %c0_i32_1 = arith.constant 0 : i32
    return %c0_i32, %c0_i32_0 : i32, i32
  }
  func.func @transform_10(%arg0: i32) -> (i32, i32, i32) {
    %c0_i32 = arith.constant 0 : i32
    %c0_i32_0 = arith.constant 0 : i32
    %c0_i32_1 = arith.constant 0 : i32
    %c0_i32_2 = arith.constant 0 : i32
    return %c0_i32, %c0_i32_0, %c0_i32_1 : i32, i32, i32
  }
  func.func @transform_11(%arg0: i32) -> (i32, i32) {
    %c0_i32 = arith.constant 0 : i32
    %c0_i32_0 = arith.constant 0 : i32
    %c0_i32_1 = arith.constant 0 : i32
    return %c0_i32, %c0_i32_0 : i32, i32
  }
  func.func @transform_12(%arg0: i32) -> (i32, i32) {
    %c0_i32 = arith.constant 0 : i32
    %c0_i32_0 = arith.constant 0 : i32
    %c0_i32_1 = arith.constant 0 : i32
    return %c0_i32, %c0_i32_0 : i32, i32
  }
  func.func @transform_13(%arg0: i32) -> (i32, i32, i32) {
    %c0_i32 = arith.constant 0 : i32
    %c0_i32_0 = arith.constant 0 : i32
    %c0_i32_1 = arith.constant 0 : i32
    %c0_i32_2 = arith.constant 0 : i32
    return %c0_i32, %c0_i32_0, %c0_i32_1 : i32, i32, i32
  }
  func.func @transform_14(%arg0: i32) -> (i32, i32) {
    %c0_i32 = arith.constant 0 : i32
    %c0_i32_0 = arith.constant 0 : i32
    %c0_i32_1 = arith.constant 0 : i32
    return %c0_i32, %c0_i32_0 : i32, i32
  }
  func.func @transform_15(%arg0: i32) -> (i32, i32) {
    %c0_i32 = arith.constant 0 : i32
    %c0_i32_0 = arith.constant 0 : i32
    %c0_i32_1 = arith.constant 0 : i32
    return %c0_i32, %c0_i32_0 : i32, i32
  }
  func.func @transform_16(%arg0: i32) -> (i32, i32) {
    %c0_i32 = arith.constant 0 : i32
    %c0_i32_0 = arith.constant 0 : i32
    %c0_i32_1 = arith.constant 0 : i32
    return %c0_i32, %c0_i32_0 : i32, i32
  }
  func.func @transform_17(%arg0: i32) -> (i32, i32) {
    %c0_i32 = arith.constant 0 : i32
    %c0_i32_0 = arith.constant 0 : i32
    %c0_i32_1 = arith.constant 0 : i32
    return %c0_i32, %c0_i32_0 : i32, i32
  }
}

</mosaic_0001>

<llo_original>
// kernel: forward_pallas.1
$region0: #{forward_pallas.1}
  #allocation0 [shape = 'u32[]', space=smem, size = 0x4, offset = 0x4, fixed_abs, tag = 'smem constant byte address 0x4 - core index']
  #allocation1 [shape = 'u32[144,128]{1,0:T(1,128)}', space=vmem, size = 0x12000, scoped, tag = 'internal scratch']
  %s0 = inlined_call_operand.vmem [shape: f32[4,5,24], index: 0, kind: input, shape index: {}]
  %s1 = inlined_call_operand.vmem [shape: f32[24,128], index: 1, kind: input, shape index: {}]
  %s2 = inlined_call_operand.vmem [shape: f32[1,128], index: 2, kind: input, shape index: {}]
  %s3 = inlined_call_operand.vmem [shape: f32[3,24,128], index: 3, kind: input, shape index: {}]
  %s4 = inlined_call_operand.vmem [shape: f32[1,128], index: 4, kind: input, shape index: {}]
  %s5 = inlined_call_operand.vmem [shape: f32[2,128,64], index: 5, kind: input, shape index: {}]
  %s6 = inlined_call_operand.vmem [shape: f32[1,64], index: 6, kind: input, shape index: {}]
  %s7 = inlined_call_operand.vmem [shape: f32[3,128,64], index: 7, kind: input, shape index: {}]
  %s8 = inlined_call_operand.vmem [shape: f32[3,128,64], index: 8, kind: input, shape index: {}]
  %s9 = inlined_call_operand.vmem [shape: f32[1,64], index: 9, kind: input, shape index: {}]
  %s10 = inlined_call_operand.vmem [shape: f32[2,64,256], index: 10, kind: input, shape index: {}]
  %s11 = inlined_call_operand.vmem [shape: f32[64,256], index: 11, kind: input, shape index: {}]
  %s12 = inlined_call_operand.vmem [shape: f32[1,256], index: 12, kind: input, shape index: {}]
  %s13 = inlined_call_operand.vmem [shape: f32[5,64,32], index: 13, kind: input, shape index: {}]
  %s14 = inlined_call_operand.vmem [shape: f32[1,32], index: 14, kind: input, shape index: {}]
  %s15 = inlined_call_operand.vmem [shape: f32[32,2], index: 15, kind: input, shape index: {}]
  %s16 = inlined_call_operand.vmem [shape: f32[1,2], index: 16, kind: input, shape index: {}]
  %s17 = inlined_call_operand.vmem [shape: f32[4,2], index: 17, kind: output, shape index: {}]
  %s18 = sld [smem:[#allocation0]]
  $region78: #{forward_pallas.1} parent=0
    _
  %s20 = ssub.s32 1, %s18
  %s21 = scalar_select 0, %s20, %s18
  // Predicated region
  $region2: #{forward_pallas.1} parent=0 // pred_check
    _
  $region3: #{forward_pallas.1} parent=0 // pred_check_branch
    %23 = sbr.rel (0) target = $region5
  $region4: #{forward_pallas.1} parent=0 // pred_region
    _
  $region5: #{forward_pallas.1} parent=0 // pred_fallthru
    _
  // Predicated region
  $region6: #{forward_pallas.1} parent=0 // pred_check
    _
  $region7: #{forward_pallas.1} parent=0 // pred_check_branch
    %25 = sbr.rel (0) target = $region9
  $region8: #{forward_pallas.1} parent=0 // pred_region
    _
  $region9: #{forward_pallas.1} parent=0 // pred_fallthru
    _
  // Predicated region
  $region10: #{forward_pallas.1} parent=0 // pred_check
    _
  $region11: #{forward_pallas.1} parent=0 // pred_check_branch
    %27 = sbr.rel (0) target = $region13
  $region12: #{forward_pallas.1} parent=0 // pred_region
    _
  $region13: #{forward_pallas.1} parent=0 // pred_fallthru
    _
  // Predicated region
  $region14: #{forward_pallas.1} parent=0 // pred_check
    _
  $region15: #{forward_pallas.1} parent=0 // pred_check_branch
    %29 = sbr.rel (0) target = $region17
  $region16: #{forward_pallas.1} parent=0 // pred_region
    _
  $region17: #{forward_pallas.1} parent=0 // pred_fallthru
    _
  // Predicated region
  $region18: #{forward_pallas.1} parent=0 // pred_check
    _
  $region19: #{forward_pallas.1} parent=0 // pred_check_branch
    %31 = sbr.rel (0) target = $region21
  $region20: #{forward_pallas.1} parent=0 // pred_region
    _
  $region21: #{forward_pallas.1} parent=0 // pred_fallthru
    _
  // Predicated region
  $region22: #{forward_pallas.1} parent=0 // pred_check
    _
  $region23: #{forward_pallas.1} parent=0 // pred_check_branch
    %33 = sbr.rel (0) target = $region25
  $region24: #{forward_pallas.1} parent=0 // pred_region
    _
  $region25: #{forward_pallas.1} parent=0 // pred_fallthru
    _
  // Predicated region
  $region26: #{forward_pallas.1} parent=0 // pred_check
    _
  $region27: #{forward_pallas.1} parent=0 // pred_check_branch
    %35 = sbr.rel (0) target = $region29
  $region28: #{forward_pallas.1} parent=0 // pred_region
    _
  $region29: #{forward_pallas.1} parent=0 // pred_fallthru
    _
  // Predicated region
  $region30: #{forward_pallas.1} parent=0 // pred_check
    _
  $region31: #{forward_pallas.1} parent=0 // pred_check_branch
    %37 = sbr.rel (0) target = $region33
  $region32: #{forward_pallas.1} parent=0 // pred_region
    _
  $region33: #{forward_pallas.1} parent=0 // pred_fallthru
    _
  // Predicated region
  $region34: #{forward_pallas.1} parent=0 // pred_check
    _
  $region35: #{forward_pallas.1} parent=0 // pred_check_branch
    %39 = sbr.rel (0) target = $region37
  $region36: #{forward_pallas.1} parent=0 // pred_region
    _
  $region37: #{forward_pallas.1} parent=0 // pred_fallthru
    _
  // Predicated region
  $region38: #{forward_pallas.1} parent=0 // pred_check
    _
  $region39: #{forward_pallas.1} parent=0 // pred_check_branch
    %41 = sbr.rel (0) target = $region41
  $region40: #{forward_pallas.1} parent=0 // pred_region
    _
  $region41: #{forward_pallas.1} parent=0 // pred_fallthru
    _
  // Predicated region
  $region42: #{forward_pallas.1} parent=0 // pred_check
    _
  $region43: #{forward_pallas.1} parent=0 // pred_check_branch
    %43 = sbr.rel (0) target = $region45
  $region44: #{forward_pallas.1} parent=0 // pred_region
    _
  $region45: #{forward_pallas.1} parent=0 // pred_fallthru
    _
  // Predicated region
  $region46: #{forward_pallas.1} parent=0 // pred_check
    _
  $region47: #{forward_pallas.1} parent=0 // pred_check_branch
    %45 = sbr.rel (0) target = $region49
  $region48: #{forward_pallas.1} parent=0 // pred_region
    _
  $region49: #{forward_pallas.1} parent=0 // pred_fallthru
    _
  // Predicated region
  $region50: #{forward_pallas.1} parent=0 // pred_check
    _
  $region51: #{forward_pallas.1} parent=0 // pred_check_branch
    %47 = sbr.rel (0) target = $region53
  $region52: #{forward_pallas.1} parent=0 // pred_region
    _
  $region53: #{forward_pallas.1} parent=0 // pred_fallthru
    _
  // Predicated region
  $region54: #{forward_pallas.1} parent=0 // pred_check
    _
  $region55: #{forward_pallas.1} parent=0 // pred_check_branch
    %49 = sbr.rel (0) target = $region57
  $region56: #{forward_pallas.1} parent=0 // pred_region
    _
  $region57: #{forward_pallas.1} parent=0 // pred_fallthru
    _
  // Predicated region
  $region58: #{forward_pallas.1} parent=0 // pred_check
    _
  $region59: #{forward_pallas.1} parent=0 // pred_check_branch
    %51 = sbr.rel (0) target = $region61
  $region60: #{forward_pallas.1} parent=0 // pred_region
    _
  $region61: #{forward_pallas.1} parent=0 // pred_fallthru
    _
  // Predicated region
  $region62: #{forward_pallas.1} parent=0 // pred_check
    _
  $region63: #{forward_pallas.1} parent=0 // pred_check_branch
    %53 = sbr.rel (0) target = $region65
  $region64: #{forward_pallas.1} parent=0 // pred_region
    _
  $region65: #{forward_pallas.1} parent=0 // pred_fallthru
    _
  // Predicated region
  $region66: #{forward_pallas.1} parent=0 // pred_check
    _
  $region67: #{forward_pallas.1} parent=0 // pred_check_branch
    %55 = sbr.rel (0) target = $region69
  $region68: #{forward_pallas.1} parent=0 // pred_region
    _
  $region69: #{forward_pallas.1} parent=0 // pred_fallthru
    _
  %v56 = vlaneseq
  %v57 = vshrl.u32 %v56, 7
  %v58 = vlaneseq
  %v59 = vand.u32 %v58, 127
  %v60 = vadd.s32 %v59, 1
  %vm61 = vcmp.eq.s32.totalorder %v57, %v60
  %v62 = vsel %vm61, 1, 0
  %v63 = vcvt.s32.f32 %v62
  %v64 = vsub.s32 %v59, 1
  %vm65 = vcmp.eq.s32.totalorder %v57, %v64
  %v66 = vsel %vm65, 1, 0
  %v67 = vcvt.s32.f32 %v66
  %v68 = vld [vmem:[%s0] sm:$0x1f]
  %vm69 = vcmask 39936
  %v71 = vsel %vm69, %v63, 0
  %vm73 = vcmask 1044480
  %v75 = vsel %vm73, %v68, 0
  %77 = vmatprep.subr.mxu0 0.0
  %78 = vmatpush1.msra.mxu0 0.0
  %79 = vmatprep.subr.mxu0 0.0
  %80 = vmatpush1.msra.mxu0 0.0
  %81 = vmatprep.subr.mxu0 0.0
  %82 = vmatpush1.msra.mxu0 0.0
  %83 = vmatprep.subr.mxu0 0.0
  %84 = vmatpush1.msra.mxu0 0.0
  %85 = vmatprep.subr.mxu0 0.0
  %86 = vmatpush1.msra.mxu0 0.0
  %87 = vmatprep.subr.mxu0 0.0
  %88 = vmatpush1.msra.mxu0 0.0
  %89 = vmatprep.subr.mxu0 0.0
  %90 = vmatpush1.msra.mxu0 0.0
  %91 = vmatprep.subr.mxu0 0.0
  %92 = vmatpush1.msra.mxu0 0.0
  %93 = vmatprep.subr.mxu0 0.0
  %94 = vmatpush1.msra.mxu0 0.0
  %95 = vmatprep.subr.mxu0 0.0
  %96 = vmatpush1.msra.mxu0 0.0
  %97 = vmatprep.subr.mxu0 0.0
  %98 = vmatpush1.msra.mxu0 0.0
  %99 = vmatprep.subr.mxu0 0.0
  %100 = vmatpush1.msra.mxu0 0.0
  %101 = vmatprep.subr.mxu0 0.0
  %102 = vmatpush1.msra.mxu0 0.0
  %103 = vmatprep.subr.mxu0 0.0
  %104 = vmatpush1.msra.mxu0 0.0
  %105 = vmatprep.subr.mxu0 0.0
  %106 = vmatpush1.msra.mxu0 0.0
  %107 = vmatprep.subr.mxu0 0.0
  %108 = vmatpush1.msra.mxu0 %v75
  %109 = vmatprep.subr.mxu0 0.0
  %110 = vmatpush2.msra.mxu0 0.0
  %111 = vmatprep.subr.mxu0 0.0
  %112 = vmatpush2.msra.mxu0 0.0
  %113 = vmatprep.subr.mxu0 0.0
  %114 = vmatpush2.msra.mxu0 0.0
  %115 = vmatprep.subr.mxu0 0.0
  %116 = vmatpush2.msra.mxu0 0.0
  %117 = vmatprep.subr.mxu0 0.0
  %118 = vmatpush2.msra.mxu0 0.0
  %119 = vmatprep.subr.mxu0 0.0
  %120 = vmatpush2.msra.mxu0 0.0
  %121 = vmatprep.subr.mxu0 0.0
  %122 = vmatpush2.msra.mxu0 0.0
  %123 = vmatprep.subr.mxu0 0.0
  %124 = vmatpush2.msra.mxu0 0.0
  %125 = vmatprep.subr.mxu0 0.0
  %126 = vmatpush2.msra.mxu0 0.0
  %127 = vmatprep.subr.mxu0 0.0
  %128 = vmatpush2.msra.mxu0 0.0
  %129 = vmatprep.subr.mxu0 0.0
  %130 = vmatpush2.msra.mxu0 0.0
  %131 = vmatprep.subr.mxu0 0.0
  %132 = vmatpush2.msra.mxu0 0.0
  %133 = vmatprep.subr.mxu0 0.0
  %134 = vmatpush2.msra.mxu0 0.0
  %135 = vmatprep.subr.mxu0 0.0
  %136 = vmatpush2.msra.mxu0 0.0
  %137 = vmatprep.subr.mxu0 0.0
  %138 = vmatpush2.msra.mxu0 0.0
  %139 = vmatprep.subr.mxu0 0.0
  %140 = vmatpush2.msra.mxu0 0.0
  %141 = vmatprep.mubr.f32.mxu0 0.0
  %142 = vmatmul.mubr.f32.gmra.mxu0 %v71
  %v143 = vpop.f32.mrf.mxu0
  %v144 = vadd.f32 0.0, %v143
  %v145 = vpop.f32.mrf.mxu0
  %146 = vdwg.mxu0
  %v148 = vsel %vm69, %v67, 0
  %150 = vmatprep.subr.mxu0 0.0
  %151 = vmatpush1.msra.mxu0 0.0
  %152 = vmatprep.subr.mxu0 0.0
  %153 = vmatpush1.msra.mxu0 0.0
  %154 = vmatprep.subr.mxu0 0.0
  %155 = vmatpush1.msra.mxu0 0.0
  %156 = vmatprep.subr.mxu0 0.0
  %157 = vmatpush1.msra.mxu0 0.0
  %158 = vmatprep.subr.mxu0 0.0
  %159 = vmatpush1.msra.mxu0 0.0
  %160 = vmatprep.subr.mxu0 0.0
  %161 = vmatpush1.msra.mxu0 0.0
  %162 = vmatprep.subr.mxu0 0.0
  %163 = vmatpush1.msra.mxu0 0.0
  %164 = vmatprep.subr.mxu0 0.0
  %165 = vmatpush1.msra.mxu0 0.0
  %166 = vmatprep.subr.mxu0 0.0
  %167 = vmatpush1.msra.mxu0 0.0
  %168 = vmatprep.subr.mxu0 0.0
  %169 = vmatpush1.msra.mxu0 0.0
  %170 = vmatprep.subr.mxu0 0.0
  %171 = vmatpush1.msra.mxu0 0.0
  %172 = vmatprep.subr.mxu0 0.0
  %173 = vmatpush1.msra.mxu0 0.0
  %174 = vmatprep.subr.mxu0 0.0
  %175 = vmatpush1.msra.mxu0 0.0
  %176 = vmatprep.subr.mxu0 0.0
  %177 = vmatpush1.msra.mxu0 0.0
  %178 = vmatprep.subr.mxu0 0.0
  %179 = vmatpush1.msra.mxu0 0.0
  %180 = vmatprep.subr.mxu0 0.0
  %181 = vmatpush1.msra.mxu0 %v75
  %182 = vmatprep.subr.mxu0 0.0
  %183 = vmatpush2.msra.mxu0 0.0
  %184 = vmatprep.subr.mxu0 0.0
  %185 = vmatpush2.msra.mxu0 0.0
  %186 = vmatprep.subr.mxu0 0.0
  %187 = vmatpush2.msra.mxu0 0.0
  %188 = vmatprep.subr.mxu0 0.0
  %189 = vmatpush2.msra.mxu0 0.0
  %190 = vmatprep.subr.mxu0 0.0
  %191 = vmatpush2.msra.mxu0 0.0
  %192 = vmatprep.subr.mxu0 0.0
  %193 = vmatpush2.msra.mxu0 0.0
  %194 = vmatprep.subr.mxu0 0.0
  %195 = vmatpush2.msra.mxu0 0.0
  %196 = vmatprep.subr.mxu0 0.0
  %197 = vmatpush2.msra.mxu0 0.0
  %198 = vmatprep.subr.mxu0 0.0
  %199 = vmatpush2.msra.mxu0 0.0
  %200 = vmatprep.subr.mxu0 0.0
  %201 = vmatpush2.msra.mxu0 0.0
  %202 = vmatprep.subr.mxu0 0.0
  %203 = vmatpush2.msra.mxu0 0.0
  %204 = vmatprep.subr.mxu0 0.0
  %205 = vmatpush2.msra.mxu0 0.0
  %206 = vmatprep.subr.mxu0 0.0
  %207 = vmatpush2.msra.mxu0 0.0
  %208 = vmatprep.subr.mxu0 0.0
  %209 = vmatpush2.msra.mxu0 0.0
  %210 = vmatprep.subr.mxu0 0.0
  %211 = vmatpush2.msra.mxu0 0.0
  %212 = vmatprep.subr.mxu0 0.0
  %213 = vmatpush2.msra.mxu0 0.0
  %214 = vmatprep.mubr.f32.mxu0 0.0
  %215 = vmatmul.mubr.f32.gmra.mxu0 %v148
  %v216 = vpop.f32.mrf.mxu0
  %v217 = vadd.f32 0.0, %v216
  %v218 = vpop.f32.mrf.mxu0
  %219 = vdwg.mxu0
  %v220 = vld [vmem:[%s1] sm:$0xff]
  %v221 = vld [vmem:[%s1 + $0x8] sm:$0xff]
  %v222 = vld [vmem:[%s1 + $0x10] sm:$0xff]
  %v223 = vld [vmem:[%s2] sm:$0x1]
  %v225 = vlaneseq
  %v226 = vshrl.u32 %v225, 7
  %v227 = vsub.s32 0, %v226
  %v228 = vrot.slane %v223, %v227
  %vm230 = vcmask 195584
  %v231 = vsel %vm230, %v68, 0
  %233 = vmatprep.subr.mxu0 0.0
  %234 = vmatpush1.msra.mxu0 0.0
  %235 = vmatprep.subr.mxu0 0.0
  %236 = vmatpush1.msra.mxu0 0.0
  %237 = vmatprep.subr.mxu0 0.0
  %238 = vmatpush1.msra.mxu0 0.0
  %239 = vmatprep.subr.mxu0 0.0
  %240 = vmatpush1.msra.mxu0 0.0
  %241 = vmatprep.subr.mxu0 0.0
  %242 = vmatpush1.msra.mxu0 0.0
  %243 = vmatprep.subr.mxu0 0.0
  %244 = vmatpush1.msra.mxu0 0.0
  %245 = vmatprep.subr.mxu0 0.0
  %246 = vmatpush1.msra.mxu0 0.0
  %247 = vmatprep.subr.mxu0 0.0
  %248 = vmatpush1.msra.mxu0 0.0
  %249 = vmatprep.subr.mxu0 0.0
  %250 = vmatpush1.msra.mxu0 0.0
  %251 = vmatprep.subr.mxu0 0.0
  %252 = vmatpush1.msra.mxu0 0.0
  %253 = vmatprep.subr.mxu0 0.0
  %254 = vmatpush1.msra.mxu0 0.0
  %255 = vmatprep.subr.mxu0 0.0
  %256 = vmatpush1.msra.mxu0 0.0
  %257 = vmatprep.subr.mxu0 0.0
  %258 = vmatpush1.msra.mxu0 0.0
  %259 = vmatprep.subr.mxu0 0.0
  %260 = vmatpush1.msra.mxu0 %v222
  %261 = vmatprep.subr.mxu0 0.0
  %262 = vmatpush1.msra.mxu0 %v221
  %263 = vmatprep.subr.mxu0 0.0
  %264 = vmatpush1.msra.mxu0 %v220
  %265 = vmatprep.subr.mxu0 0.0
  %266 = vmatpush2.msra.mxu0 0.0
  %267 = vmatprep.subr.mxu0 0.0
  %268 = vmatpush2.msra.mxu0 0.0
  %269 = vmatprep.subr.mxu0 0.0
  %270 = vmatpush2.msra.mxu0 0.0
  %271 = vmatprep.subr.mxu0 0.0
  %272 = vmatpush2.msra.mxu0 0.0
  %273 = vmatprep.subr.mxu0 0.0
  %274 = vmatpush2.msra.mxu0 0.0
  %275 = vmatprep.subr.mxu0 0.0
  %276 = vmatpush2.msra.mxu0 0.0
  %277 = vmatprep.subr.mxu0 0.0
  %278 = vmatpush2.msra.mxu0 0.0
  %279 = vmatprep.subr.mxu0 0.0
  %280 = vmatpush2.msra.mxu0 0.0
  %281 = vmatprep.subr.mxu0 0.0
  %282 = vmatpush2.msra.mxu0 0.0
  %283 = vmatprep.subr.mxu0 0.0
  %284 = vmatpush2.msra.mxu0 0.0
  %285 = vmatprep.subr.mxu0 0.0
  %286 = vmatpush2.msra.mxu0 0.0
  %287 = vmatprep.subr.mxu0 0.0
  %288 = vmatpush2.msra.mxu0 0.0
  %289 = vmatprep.subr.mxu0 0.0
  %290 = vmatpush2.msra.mxu0 0.0
  %291 = vmatprep.subr.mxu0 0.0
  %292 = vmatpush2.msra.mxu0 0.0
  %293 = vmatprep.subr.mxu0 0.0
  %294 = vmatpush2.msra.mxu0 0.0
  %295 = vmatprep.subr.mxu0 0.0
  %296 = vmatpush2.msra.mxu0 0.0
  %297 = vmatprep.mubr.f32.mxu0 0.0
  %298 = vmatmul.mubr.f32.gmra.mxu0 %v231
  %v299 = vpop.f32.mrf.mxu0
  %v300 = vadd.f32 %v228, %v299
  %v301 = vpop.f32.mrf.mxu0
  %302 = vdwg.mxu0
  %v303 = vld [vmem:[%s3] sm:$0xff]
  %v304 = vld [vmem:[%s3 + $0x8] sm:$0xff]
  %v305 = vld [vmem:[%s3 + $0x10] sm:$0xff]
  %s306 = scalar_lea.vmem %s3, 24
  %v307 = vld [vmem:[%s306] sm:$0xff]
  %v308 = vld [vmem:[%s306 + $0x8] sm:$0xff]
  %v309 = vld [vmem:[%s306 + $0x10] sm:$0xff]
  %310 = vmatprep.subr.mxu0 0.0
  %311 = vmatpush1.msra.mxu0 0.0
  %312 = vmatprep.subr.mxu0 0.0
  %313 = vmatpush1.msra.mxu0 0.0
  %314 = vmatprep.subr.mxu0 0.0
  %315 = vmatpush1.msra.mxu0 0.0
  %316 = vmatprep.subr.mxu0 0.0
  %317 = vmatpush1.msra.mxu0 0.0
  %318 = vmatprep.subr.mxu0 0.0
  %319 = vmatpush1.msra.mxu0 0.0
  %320 = vmatprep.subr.mxu0 0.0
  %321 = vmatpush1.msra.mxu0 0.0
  %322 = vmatprep.subr.mxu0 0.0
  %323 = vmatpush1.msra.mxu0 0.0
  %324 = vmatprep.subr.mxu0 0.0
  %325 = vmatpush1.msra.mxu0 0.0
  %326 = vmatprep.subr.mxu0 0.0
  %327 = vmatpush1.msra.mxu0 0.0
  %328 = vmatprep.subr.mxu0 0.0
  %329 = vmatpush1.msra.mxu0 0.0
  %330 = vmatprep.subr.mxu0 0.0
  %331 = vmatpush1.msra.mxu0 0.0
  %332 = vmatprep.subr.mxu0 0.0
  %333 = vmatpush1.msra.mxu0 0.0
  %334 = vmatprep.subr.mxu0 0.0
  %335 = vmatpush1.msra.mxu0 0.0
  %336 = vmatprep.subr.mxu0 0.0
  %337 = vmatpush1.msra.mxu0 %v309
  %338 = vmatprep.subr.mxu0 0.0
  %339 = vmatpush1.msra.mxu0 %v308
  %340 = vmatprep.subr.mxu0 0.0
  %341 = vmatpush1.msra.mxu0 %v307
  %342 = vmatprep.subr.mxu0 0.0
  %343 = vmatpush2.msra.mxu0 0.0
  %344 = vmatprep.subr.mxu0 0.0
  %345 = vmatpush2.msra.mxu0 0.0
  %346 = vmatprep.subr.mxu0 0.0
  %347 = vmatpush2.msra.mxu0 0.0
  %348 = vmatprep.subr.mxu0 0.0
  %349 = vmatpush2.msra.mxu0 0.0
  %350 = vmatprep.subr.mxu0 0.0
  %351 = vmatpush2.msra.mxu0 0.0
  %352 = vmatprep.subr.mxu0 0.0
  %353 = vmatpush2.msra.mxu0 0.0
  %354 = vmatprep.subr.mxu0 0.0
  %355 = vmatpush2.msra.mxu0 0.0
  %356 = vmatprep.subr.mxu0 0.0
  %357 = vmatpush2.msra.mxu0 0.0
  %358 = vmatprep.subr.mxu0 0.0
  %359 = vmatpush2.msra.mxu0 0.0
  %360 = vmatprep.subr.mxu0 0.0
  %361 = vmatpush2.msra.mxu0 0.0
  %362 = vmatprep.subr.mxu0 0.0
  %363 = vmatpush2.msra.mxu0 0.0
  %364 = vmatprep.subr.mxu0 0.0
  %365 = vmatpush2.msra.mxu0 0.0
  %366 = vmatprep.subr.mxu0 0.0
  %367 = vmatpush2.msra.mxu0 0.0
  %368 = vmatprep.subr.mxu0 0.0
  %369 = vmatpush2.msra.mxu0 0.0
  %370 = vmatprep.subr.mxu0 0.0
  %371 = vmatpush2.msra.mxu0 0.0
  %372 = vmatprep.subr.mxu0 0.0
  %373 = vmatpush2.msra.mxu0 0.0
  %374 = vmatprep.mubr.f32.mxu0 0.0
  %375 = vmatmul.mubr.f32.gmra.mxu0 %v231
  %v376 = vpop.f32.mrf.mxu0
  %v377 = vadd.f32 0.0, %v376
  %v378 = vpop.f32.mrf.mxu0
  %379 = vdwg.mxu0
  %v381 = vsel %vm230, %v144, 0
  %383 = vmatprep.subr.mxu0 0.0
  %384 = vmatpush1.msra.mxu0 0.0
  %385 = vmatprep.subr.mxu0 0.0
  %386 = vmatpush1.msra.mxu0 0.0
  %387 = vmatprep.subr.mxu0 0.0
  %388 = vmatpush1.msra.mxu0 0.0
  %389 = vmatprep.subr.mxu0 0.0
  %390 = vmatpush1.msra.mxu0 0.0
  %391 = vmatprep.subr.mxu0 0.0
  %392 = vmatpush1.msra.mxu0 0.0
  %393 = vmatprep.subr.mxu0 0.0
  %394 = vmatpush1.msra.mxu0 0.0
  %395 = vmatprep.subr.mxu0 0.0
  %396 = vmatpush1.msra.mxu0 0.0
  %397 = vmatprep.subr.mxu0 0.0
  %398 = vmatpush1.msra.mxu0 0.0
  %399 = vmatprep.subr.mxu0 0.0
  %400 = vmatpush1.msra.mxu0 0.0
  %401 = vmatprep.subr.mxu0 0.0
  %402 = vmatpush1.msra.mxu0 0.0
  %403 = vmatprep.subr.mxu0 0.0
  %404 = vmatpush1.msra.mxu0 0.0
  %405 = vmatprep.subr.mxu0 0.0
  %406 = vmatpush1.msra.mxu0 0.0
  %407 = vmatprep.subr.mxu0 0.0
  %408 = vmatpush1.msra.mxu0 0.0
  %409 = vmatprep.subr.mxu0 0.0
  %410 = vmatpush1.msra.mxu0 %v305
  %411 = vmatprep.subr.mxu0 0.0
  %412 = vmatpush1.msra.mxu0 %v304
  %413 = vmatprep.subr.mxu0 0.0
  %414 = vmatpush1.msra.mxu0 %v303
  %415 = vmatprep.subr.mxu0 0.0
  %416 = vmatpush2.msra.mxu0 0.0
  %417 = vmatprep.subr.mxu0 0.0
  %418 = vmatpush2.msra.mxu0 0.0
  %419 = vmatprep.subr.mxu0 0.0
  %420 = vmatpush2.msra.mxu0 0.0
  %421 = vmatprep.subr.mxu0 0.0
  %422 = vmatpush2.msra.mxu0 0.0
  %423 = vmatprep.subr.mxu0 0.0
  %424 = vmatpush2.msra.mxu0 0.0
  %425 = vmatprep.subr.mxu0 0.0
  %426 = vmatpush2.msra.mxu0 0.0
  %427 = vmatprep.subr.mxu0 0.0
  %428 = vmatpush2.msra.mxu0 0.0
  %429 = vmatprep.subr.mxu0 0.0
  %430 = vmatpush2.msra.mxu0 0.0
  %431 = vmatprep.subr.mxu0 0.0
  %432 = vmatpush2.msra.mxu0 0.0
  %433 = vmatprep.subr.mxu0 0.0
  %434 = vmatpush2.msra.mxu0 0.0
  %435 = vmatprep.subr.mxu0 0.0
  %436 = vmatpush2.msra.mxu0 0.0
  %437 = vmatprep.subr.mxu0 0.0
  %438 = vmatpush2.msra.mxu0 0.0
  %439 = vmatprep.subr.mxu0 0.0
  %440 = vmatpush2.msra.mxu0 0.0
  %441 = vmatprep.subr.mxu0 0.0
  %442 = vmatpush2.msra.mxu0 0.0
  %443 = vmatprep.subr.mxu0 0.0
  %444 = vmatpush2.msra.mxu0 0.0
  %445 = vmatprep.subr.mxu0 0.0
  %446 = vmatpush2.msra.mxu0 0.0
  %447 = vmatprep.mubr.f32.mxu0 0.0
  %448 = vmatmul.mubr.f32.gmra.mxu0 %v381
  %v449 = vpop.f32.mrf.mxu0
  %v450 = vadd.f32 %v377, %v449
  %v451 = vpop.f32.mrf.mxu0
  %452 = vdwg.mxu0
  %s453 = scalar_lea.vmem %s3, 48
  %v454 = vld [vmem:[%s453] sm:$0xff]
  %v455 = vld [vmem:[%s453 + $0x8] sm:$0xff]
  %v456 = vld [vmem:[%s453 + $0x10] sm:$0xff]
  %v458 = vsel %vm230, %v217, 0
  %460 = vmatprep.subr.mxu0 0.0
  %461 = vmatpush1.msra.mxu0 0.0
  %462 = vmatprep.subr.mxu0 0.0
  %463 = vmatpush1.msra.mxu0 0.0
  %464 = vmatprep.subr.mxu0 0.0
  %465 = vmatpush1.msra.mxu0 0.0
  %466 = vmatprep.subr.mxu0 0.0
  %467 = vmatpush1.msra.mxu0 0.0
  %468 = vmatprep.subr.mxu0 0.0
  %469 = vmatpush1.msra.mxu0 0.0
  %470 = vmatprep.subr.mxu0 0.0
  %471 = vmatpush1.msra.mxu0 0.0
  %472 = vmatprep.subr.mxu0 0.0
  %473 = vmatpush1.msra.mxu0 0.0
  %474 = vmatprep.subr.mxu0 0.0
  %475 = vmatpush1.msra.mxu0 0.0
  %476 = vmatprep.subr.mxu0 0.0
  %477 = vmatpush1.msra.mxu0 0.0
  %478 = vmatprep.subr.mxu0 0.0
  %479 = vmatpush1.msra.mxu0 0.0
  %480 = vmatprep.subr.mxu0 0.0
  %481 = vmatpush1.msra.mxu0 0.0
  %482 = vmatprep.subr.mxu0 0.0
  %483 = vmatpush1.msra.mxu0 0.0
  %484 = vmatprep.subr.mxu0 0.0
  %485 = vmatpush1.msra.mxu0 0.0
  %486 = vmatprep.subr.mxu0 0.0
  %487 = vmatpush1.msra.mxu0 %v456
  %488 = vmatprep.subr.mxu0 0.0
  %489 = vmatpush1.msra.mxu0 %v455
  %490 = vmatprep.subr.mxu0 0.0
  %491 = vmatpush1.msra.mxu0 %v454
  %492 = vmatprep.subr.mxu0 0.0
  %493 = vmatpush2.msra.mxu0 0.0
  %494 = vmatprep.subr.mxu0 0.0
  %495 = vmatpush2.msra.mxu0 0.0
  %496 = vmatprep.subr.mxu0 0.0
  %497 = vmatpush2.msra.mxu0 0.0
  %498 = vmatprep.subr.mxu0 0.0
  %499 = vmatpush2.msra.mxu0 0.0
  %500 = vmatprep.subr.mxu0 0.0
  %501 = vmatpush2.msra.mxu0 0.0
  %502 = vmatprep.subr.mxu0 0.0
  %503 = vmatpush2.msra.mxu0 0.0
  %504 = vmatprep.subr.mxu0 0.0
  %505 = vmatpush2.msra.mxu0 0.0
  %506 = vmatprep.subr.mxu0 0.0
  %507 = vmatpush2.msra.mxu0 0.0
  %508 = vmatprep.subr.mxu0 0.0
  %509 = vmatpush2.msra.mxu0 0.0
  %510 = vmatprep.subr.mxu0 0.0
  %511 = vmatpush2.msra.mxu0 0.0
  %512 = vmatprep.subr.mxu0 0.0
  %513 = vmatpush2.msra.mxu0 0.0
  %514 = vmatprep.subr.mxu0 0.0
  %515 = vmatpush2.msra.mxu0 0.0
  %516 = vmatprep.subr.mxu0 0.0
  %517 = vmatpush2.msra.mxu0 0.0
  %518 = vmatprep.subr.mxu0 0.0
  %519 = vmatpush2.msra.mxu0 0.0
  %520 = vmatprep.subr.mxu0 0.0
  %521 = vmatpush2.msra.mxu0 0.0
  %522 = vmatprep.subr.mxu0 0.0
  %523 = vmatpush2.msra.mxu0 0.0
  %524 = vmatprep.mubr.f32.mxu0 0.0
  %525 = vmatmul.mubr.f32.gmra.mxu0 %v458
  %v526 = vpop.f32.mrf.mxu0
  %v527 = vadd.f32 0.0, %v526
  %v528 = vpop.f32.mrf.mxu0
  %529 = vdwg.mxu0
  %v530 = vadd.f32 %v450, %v527
  %v531 = vld [vmem:[%s4] sm:$0x1]
  %v533 = vlaneseq
  %v534 = vshrl.u32 %v533, 7
  %v535 = vsub.s32 0, %v534
  %v536 = vrot.slane %v531, %v535
  %v538 = vadd.f32 %v530, %v536
  %v540 = vsel %vm73, %v300, 0
  %542 = vmatprep.subr.mxu0 0.0
  %543 = vmatpush1.msra.mxu0 0.0
  %544 = vmatprep.subr.mxu0 0.0
  %545 = vmatpush1.msra.mxu0 0.0
  %546 = vmatprep.subr.mxu0 0.0
  %547 = vmatpush1.msra.mxu0 0.0
  %548 = vmatprep.subr.mxu0 0.0
  %549 = vmatpush1.msra.mxu0 0.0
  %550 = vmatprep.subr.mxu0 0.0
  %551 = vmatpush1.msra.mxu0 0.0
  %552 = vmatprep.subr.mxu0 0.0
  %553 = vmatpush1.msra.mxu0 0.0
  %554 = vmatprep.subr.mxu0 0.0
  %555 = vmatpush1.msra.mxu0 0.0
  %556 = vmatprep.subr.mxu0 0.0
  %557 = vmatpush1.msra.mxu0 0.0
  %558 = vmatprep.subr.mxu0 0.0
  %559 = vmatpush1.msra.mxu0 0.0
  %560 = vmatprep.subr.mxu0 0.0
  %561 = vmatpush1.msra.mxu0 0.0
  %562 = vmatprep.subr.mxu0 0.0
  %563 = vmatpush1.msra.mxu0 0.0
  %564 = vmatprep.subr.mxu0 0.0
  %565 = vmatpush1.msra.mxu0 0.0
  %566 = vmatprep.subr.mxu0 0.0
  %567 = vmatpush1.msra.mxu0 0.0
  %568 = vmatprep.subr.mxu0 0.0
  %569 = vmatpush1.msra.mxu0 0.0
  %570 = vmatprep.subr.mxu0 0.0
  %571 = vmatpush1.msra.mxu0 0.0
  %572 = vmatprep.subr.mxu0 0.0
  %573 = vmatpush1.msra.mxu0 %v540
  %574 = vmatprep.subr.mxu0 0.0
  %575 = vmatpush2.msra.mxu0 0.0
  %576 = vmatprep.subr.mxu0 0.0
  %577 = vmatpush2.msra.mxu0 0.0
  %578 = vmatprep.subr.mxu0 0.0
  %579 = vmatpush2.msra.mxu0 0.0
  %580 = vmatprep.subr.mxu0 0.0
  %581 = vmatpush2.msra.mxu0 0.0
  %582 = vmatprep.subr.mxu0 0.0
  %583 = vmatpush2.msra.mxu0 0.0
  %584 = vmatprep.subr.mxu0 0.0
  %585 = vmatpush2.msra.mxu0 0.0
  %586 = vmatprep.subr.mxu0 0.0
  %587 = vmatpush2.msra.mxu0 0.0
  %588 = vmatprep.subr.mxu0 0.0
  %589 = vmatpush2.msra.mxu0 0.0
  %590 = vmatprep.subr.mxu0 0.0
  %591 = vmatpush2.msra.mxu0 0.0
  %592 = vmatprep.subr.mxu0 0.0
  %593 = vmatpush2.msra.mxu0 0.0
  %594 = vmatprep.subr.mxu0 0.0
  %595 = vmatpush2.msra.mxu0 0.0
  %596 = vmatprep.subr.mxu0 0.0
  %597 = vmatpush2.msra.mxu0 0.0
  %598 = vmatprep.subr.mxu0 0.0
  %599 = vmatpush2.msra.mxu0 0.0
  %600 = vmatprep.subr.mxu0 0.0
  %601 = vmatpush2.msra.mxu0 0.0
  %602 = vmatprep.subr.mxu0 0.0
  %603 = vmatpush2.msra.mxu0 0.0
  %604 = vmatprep.subr.mxu0 0.0
  %605 = vmatpush2.msra.mxu0 0.0
  %606 = vmatprep.mubr.f32.mxu0 0.0
  %607 = vmatmul.mubr.f32.gmra.mxu0 %v71
  %v608 = vpop.f32.mrf.mxu0
  %v609 = vadd.f32 0.0, %v608
  %v610 = vpop.f32.mrf.mxu0
  %611 = vdwg.mxu0
  %612 = vmatprep.subr.mxu0 0.0
  %613 = vmatpush1.msra.mxu0 0.0
  %614 = vmatprep.subr.mxu0 0.0
  %615 = vmatpush1.msra.mxu0 0.0
  %616 = vmatprep.subr.mxu0 0.0
  %617 = vmatpush1.msra.mxu0 0.0
  %618 = vmatprep.subr.mxu0 0.0
  %619 = vmatpush1.msra.mxu0 0.0
  %620 = vmatprep.subr.mxu0 0.0
  %621 = vmatpush1.msra.mxu0 0.0
  %622 = vmatprep.subr.mxu0 0.0
  %623 = vmatpush1.msra.mxu0 0.0
  %624 = vmatprep.subr.mxu0 0.0
  %625 = vmatpush1.msra.mxu0 0.0
  %626 = vmatprep.subr.mxu0 0.0
  %627 = vmatpush1.msra.mxu0 0.0
  %628 = vmatprep.subr.mxu0 0.0
  %629 = vmatpush1.msra.mxu0 0.0
  %630 = vmatprep.subr.mxu0 0.0
  %631 = vmatpush1.msra.mxu0 0.0
  %632 = vmatprep.subr.mxu0 0.0
  %633 = vmatpush1.msra.mxu0 0.0
  %634 = vmatprep.subr.mxu0 0.0
  %635 = vmatpush1.msra.mxu0 0.0
  %636 = vmatprep.subr.mxu0 0.0
  %637 = vmatpush1.msra.mxu0 0.0
  %638 = vmatprep.subr.mxu0 0.0
  %639 = vmatpush1.msra.mxu0 0.0
  %640 = vmatprep.subr.mxu0 0.0
  %641 = vmatpush1.msra.mxu0 0.0
  %642 = vmatprep.subr.mxu0 0.0
  %643 = vmatpush1.msra.mxu0 %v540
  %644 = vmatprep.subr.mxu0 0.0
  %645 = vmatpush2.msra.mxu0 0.0
  %646 = vmatprep.subr.mxu0 0.0
  %647 = vmatpush2.msra.mxu0 0.0
  %648 = vmatprep.subr.mxu0 0.0
  %649 = vmatpush2.msra.mxu0 0.0
  %650 = vmatprep.subr.mxu0 0.0
  %651 = vmatpush2.msra.mxu0 0.0
  %652 = vmatprep.subr.mxu0 0.0
  %653 = vmatpush2.msra.mxu0 0.0
  %654 = vmatprep.subr.mxu0 0.0
  %655 = vmatpush2.msra.mxu0 0.0
  %656 = vmatprep.subr.mxu0 0.0
  %657 = vmatpush2.msra.mxu0 0.0
  %658 = vmatprep.subr.mxu0 0.0
  %659 = vmatpush2.msra.mxu0 0.0
  %660 = vmatprep.subr.mxu0 0.0
  %661 = vmatpush2.msra.mxu0 0.0
  %662 = vmatprep.subr.mxu0 0.0
  %663 = vmatpush2.msra.mxu0 0.0
  %664 = vmatprep.subr.mxu0 0.0
  %665 = vmatpush2.msra.mxu0 0.0
  %666 = vmatprep.subr.mxu0 0.0
  %667 = vmatpush2.msra.mxu0 0.0
  %668 = vmatprep.subr.mxu0 0.0
  %669 = vmatpush2.msra.mxu0 0.0
  %670 = vmatprep.subr.mxu0 0.0
  %671 = vmatpush2.msra.mxu0 0.0
  %672 = vmatprep.subr.mxu0 0.0
  %673 = vmatpush2.msra.mxu0 0.0
  %674 = vmatprep.subr.mxu0 0.0
  %675 = vmatpush2.msra.mxu0 0.0
  %676 = vmatprep.mubr.f32.mxu0 0.0
  %677 = vmatmul.mubr.f32.gmra.mxu0 %v148
  %v678 = vpop.f32.mrf.mxu0
  %v679 = vadd.f32 0.0, %v678
  %v680 = vpop.f32.mrf.mxu0
  %681 = vdwg.mxu0
  %v683 = vsel %vm73, %v538, 0
  %685 = vmatprep.subr.mxu0 0.0
  %686 = vmatpush1.msra.mxu0 0.0
  %687 = vmatprep.subr.mxu0 0.0
  %688 = vmatpush1.msra.mxu0 0.0
  %689 = vmatprep.subr.mxu0 0.0
  %690 = vmatpush1.msra.mxu0 0.0
  %691 = vmatprep.subr.mxu0 0.0
  %692 = vmatpush1.msra.mxu0 0.0
  %693 = vmatprep.subr.mxu0 0.0
  %694 = vmatpush1.msra.mxu0 0.0
  %695 = vmatprep.subr.mxu0 0.0
  %696 = vmatpush1.msra.mxu0 0.0
  %697 = vmatprep.subr.mxu0 0.0
  %698 = vmatpush1.msra.mxu0 0.0
  %699 = vmatprep.subr.mxu0 0.0
  %700 = vmatpush1.msra.mxu0 0.0
  %701 = vmatprep.subr.mxu0 0.0
  %702 = vmatpush1.msra.mxu0 0.0
  %703 = vmatprep.subr.mxu0 0.0
  %704 = vmatpush1.msra.mxu0 0.0
  %705 = vmatprep.subr.mxu0 0.0
  %706 = vmatpush1.msra.mxu0 0.0
  %707 = vmatprep.subr.mxu0 0.0
  %708 = vmatpush1.msra.mxu0 0.0
  %709 = vmatprep.subr.mxu0 0.0
  %710 = vmatpush1.msra.mxu0 0.0
  %711 = vmatprep.subr.mxu0 0.0
  %712 = vmatpush1.msra.mxu0 0.0
  %713 = vmatprep.subr.mxu0 0.0
  %714 = vmatpush1.msra.mxu0 0.0
  %715 = vmatprep.subr.mxu0 0.0
  %716 = vmatpush1.msra.mxu0 %v683
  %717 = vmatprep.subr.mxu0 0.0
  %718 = vmatpush2.msra.mxu0 0.0
  %719 = vmatprep.subr.mxu0 0.0
  %720 = vmatpush2.msra.mxu0 0.0
  %721 = vmatprep.subr.mxu0 0.0
  %722 = vmatpush2.msra.mxu0 0.0
  %723 = vmatprep.subr.mxu0 0.0
  %724 = vmatpush2.msra.mxu0 0.0
  %725 = vmatprep.subr.mxu0 0.0
  %726 = vmatpush2.msra.mxu0 0.0
  %727 = vmatprep.subr.mxu0 0.0
  %728 = vmatpush2.msra.mxu0 0.0
  %729 = vmatprep.subr.mxu0 0.0
  %730 = vmatpush2.msra.mxu0 0.0
  %731 = vmatprep.subr.mxu0 0.0
  %732 = vmatpush2.msra.mxu0 0.0
  %733 = vmatprep.subr.mxu0 0.0
  %734 = vmatpush2.msra.mxu0 0.0
  %735 = vmatprep.subr.mxu0 0.0
  %736 = vmatpush2.msra.mxu0 0.0
  %737 = vmatprep.subr.mxu0 0.0
  %738 = vmatpush2.msra.mxu0 0.0
  %739 = vmatprep.subr.mxu0 0.0
  %740 = vmatpush2.msra.mxu0 0.0
  %741 = vmatprep.subr.mxu0 0.0
  %742 = vmatpush2.msra.mxu0 0.0
  %743 = vmatprep.subr.mxu0 0.0
  %744 = vmatpush2.msra.mxu0 0.0
  %745 = vmatprep.subr.mxu0 0.0
  %746 = vmatpush2.msra.mxu0 0.0
  %747 = vmatprep.subr.mxu0 0.0
  %748 = vmatpush2.msra.mxu0 0.0
  %749 = vmatprep.mubr.f32.mxu0 0.0
  %750 = vmatmul.mubr.f32.gmra.mxu0 %v71
  %v751 = vpop.f32.mrf.mxu0
  %v752 = vadd.f32 0.0, %v751
  %v753 = vpop.f32.mrf.mxu0
  %754 = vdwg.mxu0
  %755 = vmatprep.subr.mxu0 0.0
  %756 = vmatpush1.msra.mxu0 0.0
  %757 = vmatprep.subr.mxu0 0.0
  %758 = vmatpush1.msra.mxu0 0.0
  %759 = vmatprep.subr.mxu0 0.0
  %760 = vmatpush1.msra.mxu0 0.0
  %761 = vmatprep.subr.mxu0 0.0
  %762 = vmatpush1.msra.mxu0 0.0
  %763 = vmatprep.subr.mxu0 0.0
  %764 = vmatpush1.msra.mxu0 0.0
  %765 = vmatprep.subr.mxu0 0.0
  %766 = vmatpush1.msra.mxu0 0.0
  %767 = vmatprep.subr.mxu0 0.0
  %768 = vmatpush1.msra.mxu0 0.0
  %769 = vmatprep.subr.mxu0 0.0
  %770 = vmatpush1.msra.mxu0 0.0
  %771 = vmatprep.subr.mxu0 0.0
  %772 = vmatpush1.msra.mxu0 0.0
  %773 = vmatprep.subr.mxu0 0.0
  %774 = vmatpush1.msra.mxu0 0.0
  %775 = vmatprep.subr.mxu0 0.0
  %776 = vmatpush1.msra.mxu0 0.0
  %777 = vmatprep.subr.mxu0 0.0
  %778 = vmatpush1.msra.mxu0 0.0
  %779 = vmatprep.subr.mxu0 0.0
  %780 = vmatpush1.msra.mxu0 0.0
  %781 = vmatprep.subr.mxu0 0.0
  %782 = vmatpush1.msra.mxu0 0.0
  %783 = vmatprep.subr.mxu0 0.0
  %784 = vmatpush1.msra.mxu0 0.0
  %785 = vmatprep.subr.mxu0 0.0
  %786 = vmatpush1.msra.mxu0 %v683
  %787 = vmatprep.subr.mxu0 0.0
  %788 = vmatpush2.msra.mxu0 0.0
  %789 = vmatprep.subr.mxu0 0.0
  %790 = vmatpush2.msra.mxu0 0.0
  %791 = vmatprep.subr.mxu0 0.0
  %792 = vmatpush2.msra.mxu0 0.0
  %793 = vmatprep.subr.mxu0 0.0
  %794 = vmatpush2.msra.mxu0 0.0
  %795 = vmatprep.subr.mxu0 0.0
  %796 = vmatpush2.msra.mxu0 0.0
  %797 = vmatprep.subr.mxu0 0.0
  %798 = vmatpush2.msra.mxu0 0.0
  %799 = vmatprep.subr.mxu0 0.0
  %800 = vmatpush2.msra.mxu0 0.0
  %801 = vmatprep.subr.mxu0 0.0
  %802 = vmatpush2.msra.mxu0 0.0
  %803 = vmatprep.subr.mxu0 0.0
  %804 = vmatpush2.msra.mxu0 0.0
  %805 = vmatprep.subr.mxu0 0.0
  %806 = vmatpush2.msra.mxu0 0.0
  %807 = vmatprep.subr.mxu0 0.0
  %808 = vmatpush2.msra.mxu0 0.0
  %809 = vmatprep.subr.mxu0 0.0
  %810 = vmatpush2.msra.mxu0 0.0
  %811 = vmatprep.subr.mxu0 0.0
  %812 = vmatpush2.msra.mxu0 0.0
  %813 = vmatprep.subr.mxu0 0.0
  %814 = vmatpush2.msra.mxu0 0.0
  %815 = vmatprep.subr.mxu0 0.0
  %816 = vmatpush2.msra.mxu0 0.0
  %817 = vmatprep.subr.mxu0 0.0
  %818 = vmatpush2.msra.mxu0 0.0
  %819 = vmatprep.mubr.f32.mxu0 0.0
  %820 = vmatmul.mubr.f32.gmra.mxu0 %v148
  %v821 = vpop.f32.mrf.mxu0
  %v822 = vadd.f32 0.0, %v821
  %v823 = vpop.f32.mrf.mxu0
  %824 = vdwg.mxu0
  %v825 = vld [vmem:[%s5] sm:$0xff]
  %v826 = vld [vmem:[%s5 + $0x8] sm:$0xff]
  %v827 = vld [vmem:[%s5 + $0x10] sm:$0xff]
  %v828 = vld [vmem:[%s5 + $0x18] sm:$0xff]
  %v829 = vld [vmem:[%s5 + $0x20] sm:$0xff]
  %v830 = vld [vmem:[%s5 + $0x28] sm:$0xff]
  %v831 = vld [vmem:[%s5 + $0x30] sm:$0xff]
  %v832 = vld [vmem:[%s5 + $0x38] sm:$0xff]
  %v833 = vld [vmem:[%s5 + $0x40] sm:$0xff]
  %v834 = vld [vmem:[%s5 + $0x48] sm:$0xff]
  %v835 = vld [vmem:[%s5 + $0x50] sm:$0xff]
  %v836 = vld [vmem:[%s5 + $0x58] sm:$0xff]
  %v837 = vld [vmem:[%s5 + $0x60] sm:$0xff]
  %v838 = vld [vmem:[%s5 + $0x68] sm:$0xff]
  %v839 = vld [vmem:[%s5 + $0x70] sm:$0xff]
  %v840 = vld [vmem:[%s5 + $0x78] sm:$0xff]
  %s841 = scalar_lea.vmem %s5, 128
  %v842 = vld [vmem:[%s841] sm:$0xff]
  %v843 = vld [vmem:[%s841 + $0x8] sm:$0xff]
  %v844 = vld [vmem:[%s841 + $0x10] sm:$0xff]
  %v845 = vld [vmem:[%s841 + $0x18] sm:$0xff]
  %v846 = vld [vmem:[%s841 + $0x20] sm:$0xff]
  %v847 = vld [vmem:[%s841 + $0x28] sm:$0xff]
  %v848 = vld [vmem:[%s841 + $0x30] sm:$0xff]
  %v849 = vld [vmem:[%s841 + $0x38] sm:$0xff]
  %v850 = vld [vmem:[%s841 + $0x40] sm:$0xff]
  %v851 = vld [vmem:[%s841 + $0x48] sm:$0xff]
  %v852 = vld [vmem:[%s841 + $0x50] sm:$0xff]
  %v853 = vld [vmem:[%s841 + $0x58] sm:$0xff]
  %v854 = vld [vmem:[%s841 + $0x60] sm:$0xff]
  %v855 = vld [vmem:[%s841 + $0x68] sm:$0xff]
  %v856 = vld [vmem:[%s841 + $0x70] sm:$0xff]
  %v857 = vld [vmem:[%s841 + $0x78] sm:$0xff]
  %858 = vmatprep.subr.mxu0 0.0
  %859 = vmatpush1.msra.mxu0 %v857
  %860 = vmatprep.subr.mxu0 0.0
  %861 = vmatpush1.msra.mxu0 %v856
  %862 = vmatprep.subr.mxu0 0.0
  %863 = vmatpush1.msra.mxu0 %v855
  %864 = vmatprep.subr.mxu0 0.0
  %865 = vmatpush1.msra.mxu0 %v854
  %866 = vmatprep.subr.mxu0 0.0
  %867 = vmatpush1.msra.mxu0 %v853
  %868 = vmatprep.subr.mxu0 0.0
  %869 = vmatpush1.msra.mxu0 %v852
  %870 = vmatprep.subr.mxu0 0.0
  %871 = vmatpush1.msra.mxu0 %v851
  %872 = vmatprep.subr.mxu0 0.0
  %873 = vmatpush1.msra.mxu0 %v850
  %874 = vmatprep.subr.mxu0 0.0
  %875 = vmatpush1.msra.mxu0 %v849
  %876 = vmatprep.subr.mxu0 0.0
  %877 = vmatpush1.msra.mxu0 %v848
  %878 = vmatprep.subr.mxu0 0.0
  %879 = vmatpush1.msra.mxu0 %v847
  %880 = vmatprep.subr.mxu0 0.0
  %881 = vmatpush1.msra.mxu0 %v846
  %882 = vmatprep.subr.mxu0 0.0
  %883 = vmatpush1.msra.mxu0 %v845
  %884 = vmatprep.subr.mxu0 0.0
  %885 = vmatpush1.msra.mxu0 %v844
  %886 = vmatprep.subr.mxu0 0.0
  %887 = vmatpush1.msra.mxu0 %v843
  %888 = vmatprep.subr.mxu0 0.0
  %889 = vmatpush1.msra.mxu0 %v842
  %890 = vmatprep.subr.mxu0 0.0
  %891 = vmatpush2.msra.mxu0 0.0
  %892 = vmatprep.subr.mxu0 0.0
  %893 = vmatpush2.msra.mxu0 0.0
  %894 = vmatprep.subr.mxu0 0.0
  %895 = vmatpush2.msra.mxu0 0.0
  %896 = vmatprep.subr.mxu0 0.0
  %897 = vmatpush2.msra.mxu0 0.0
  %898 = vmatprep.subr.mxu0 0.0
  %899 = vmatpush2.msra.mxu0 0.0
  %900 = vmatprep.subr.mxu0 0.0
  %901 = vmatpush2.msra.mxu0 0.0
  %902 = vmatprep.subr.mxu0 0.0
  %903 = vmatpush2.msra.mxu0 0.0
  %904 = vmatprep.subr.mxu0 0.0
  %905 = vmatpush2.msra.mxu0 0.0
  %906 = vmatprep.subr.mxu0 0.0
  %907 = vmatpush2.msra.mxu0 0.0
  %908 = vmatprep.subr.mxu0 0.0
  %909 = vmatpush2.msra.mxu0 0.0
  %910 = vmatprep.subr.mxu0 0.0
  %911 = vmatpush2.msra.mxu0 0.0
  %912 = vmatprep.subr.mxu0 0.0
  %913 = vmatpush2.msra.mxu0 0.0
  %914 = vmatprep.subr.mxu0 0.0
  %915 = vmatpush2.msra.mxu0 0.0
  %916 = vmatprep.subr.mxu0 0.0
  %917 = vmatpush2.msra.mxu0 0.0
  %918 = vmatprep.subr.mxu0 0.0
  %919 = vmatpush2.msra.mxu0 0.0
  %920 = vmatprep.subr.mxu0 0.0
  %921 = vmatpush2.msra.mxu0 0.0
  %922 = vmatprep.mubr.f32.mxu0 0.0
  %923 = vmatmul.mubr.f32.gmra.mxu0 %v538
  %v924 = vpop.f32.mrf.mxu0
  %v925 = vadd.f32 0.0, %v924
  %v926 = vpop.f32.mrf.mxu0
  %927 = vdwg.mxu0
  %928 = vmatprep.subr.mxu0 0.0
  %929 = vmatpush1.msra.mxu0 %v840
  %930 = vmatprep.subr.mxu0 0.0
  %931 = vmatpush1.msra.mxu0 %v839
  %932 = vmatprep.subr.mxu0 0.0
  %933 = vmatpush1.msra.mxu0 %v838
  %934 = vmatprep.subr.mxu0 0.0
  %935 = vmatpush1.msra.mxu0 %v837
  %936 = vmatprep.subr.mxu0 0.0
  %937 = vmatpush1.msra.mxu0 %v836
  %938 = vmatprep.subr.mxu0 0.0
  %939 = vmatpush1.msra.mxu0 %v835
  %940 = vmatprep.subr.mxu0 0.0
  %941 = vmatpush1.msra.mxu0 %v834
  %942 = vmatprep.subr.mxu0 0.0
  %943 = vmatpush1.msra.mxu0 %v833
  %944 = vmatprep.subr.mxu0 0.0
  %945 = vmatpush1.msra.mxu0 %v832
  %946 = vmatprep.subr.mxu0 0.0
  %947 = vmatpush1.msra.mxu0 %v831
  %948 = vmatprep.subr.mxu0 0.0
  %949 = vmatpush1.msra.mxu0 %v830
  %950 = vmatprep.subr.mxu0 0.0
  %951 = vmatpush1.msra.mxu0 %v829
  %952 = vmatprep.subr.mxu0 0.0
  %953 = vmatpush1.msra.mxu0 %v828
  %954 = vmatprep.subr.mxu0 0.0
  %955 = vmatpush1.msra.mxu0 %v827
  %956 = vmatprep.subr.mxu0 0.0
  %957 = vmatpush1.msra.mxu0 %v826
  %958 = vmatprep.subr.mxu0 0.0
  %959 = vmatpush1.msra.mxu0 %v825
  %960 = vmatprep.subr.mxu0 0.0
  %961 = vmatpush2.msra.mxu0 0.0
  %962 = vmatprep.subr.mxu0 0.0
  %963 = vmatpush2.msra.mxu0 0.0
  %964 = vmatprep.subr.mxu0 0.0
  %965 = vmatpush2.msra.mxu0 0.0
  %966 = vmatprep.subr.mxu0 0.0
  %967 = vmatpush2.msra.mxu0 0.0
  %968 = vmatprep.subr.mxu0 0.0
  %969 = vmatpush2.msra.mxu0 0.0
  %970 = vmatprep.subr.mxu0 0.0
  %971 = vmatpush2.msra.mxu0 0.0
  %972 = vmatprep.subr.mxu0 0.0
  %973 = vmatpush2.msra.mxu0 0.0
  %974 = vmatprep.subr.mxu0 0.0
  %975 = vmatpush2.msra.mxu0 0.0
  %976 = vmatprep.subr.mxu0 0.0
  %977 = vmatpush2.msra.mxu0 0.0
  %978 = vmatprep.subr.mxu0 0.0
  %979 = vmatpush2.msra.mxu0 0.0
  %980 = vmatprep.subr.mxu0 0.0
  %981 = vmatpush2.msra.mxu0 0.0
  %982 = vmatprep.subr.mxu0 0.0
  %983 = vmatpush2.msra.mxu0 0.0
  %984 = vmatprep.subr.mxu0 0.0
  %985 = vmatpush2.msra.mxu0 0.0
  %986 = vmatprep.subr.mxu0 0.0
  %987 = vmatpush2.msra.mxu0 0.0
  %988 = vmatprep.subr.mxu0 0.0
  %989 = vmatpush2.msra.mxu0 0.0
  %990 = vmatprep.subr.mxu0 0.0
  %991 = vmatpush2.msra.mxu0 0.0
  %992 = vmatprep.mubr.f32.mxu0 0.0
  %993 = vmatmul.mubr.f32.gmra.mxu0 %v300
  %v994 = vpop.f32.mrf.mxu0
  %v995 = vadd.f32 %v925, %v994
  %v996 = vpop.f32.mrf.mxu0
  %997 = vdwg.mxu0
  %v998 = vld [vmem:[%s6] sm:$0x1]
  %v1000 = vlaneseq
  %v1001 = vshrl.u32 %v1000, 7
  %v1002 = vsub.s32 0, %v1001
  %v1003 = vrot.slane %v998, %v1002
  %v1005 = vadd.f32 %v995, %v1003
  %v1006 = vld [vmem:[%s7] sm:$0xff]
  %v1007 = vld [vmem:[%s7 + $0x8] sm:$0xff]
  %v1008 = vld [vmem:[%s7 + $0x10] sm:$0xff]
  %v1009 = vld [vmem:[%s7 + $0x18] sm:$0xff]
  %v1010 = vld [vmem:[%s7 + $0x20] sm:$0xff]
  %v1011 = vld [vmem:[%s7 + $0x28] sm:$0xff]
  %v1012 = vld [vmem:[%s7 + $0x30] sm:$0xff]
  %v1013 = vld [vmem:[%s7 + $0x38] sm:$0xff]
  %v1014 = vld [vmem:[%s7 + $0x40] sm:$0xff]
  %v1015 = vld [vmem:[%s7 + $0x48] sm:$0xff]
  %v1016 = vld [vmem:[%s7 + $0x50] sm:$0xff]
  %v1017 = vld [vmem:[%s7 + $0x58] sm:$0xff]
  %v1018 = vld [vmem:[%s7 + $0x60] sm:$0xff]
  %v1019 = vld [vmem:[%s7 + $0x68] sm:$0xff]
  %v1020 = vld [vmem:[%s7 + $0x70] sm:$0xff]
  %v1021 = vld [vmem:[%s7 + $0x78] sm:$0xff]
  %v1022 = vld [vmem:[%s8] sm:$0xff]
  %v1023 = vld [vmem:[%s8 + $0x8] sm:$0xff]
  %v1024 = vld [vmem:[%s8 + $0x10] sm:$0xff]
  %v1025 = vld [vmem:[%s8 + $0x18] sm:$0xff]
  %v1026 = vld [vmem:[%s8 + $0x20] sm:$0xff]
  %v1027 = vld [vmem:[%s8 + $0x28] sm:$0xff]
  %v1028 = vld [vmem:[%s8 + $0x30] sm:$0xff]
  %v1029 = vld [vmem:[%s8 + $0x38] sm:$0xff]
  %v1030 = vld [vmem:[%s8 + $0x40] sm:$0xff]
  %v1031 = vld [vmem:[%s8 + $0x48] sm:$0xff]
  %v1032 = vld [vmem:[%s8 + $0x50] sm:$0xff]
  %v1033 = vld [vmem:[%s8 + $0x58] sm:$0xff]
  %v1034 = vld [vmem:[%s8 + $0x60] sm:$0xff]
  %v1035 = vld [vmem:[%s8 + $0x68] sm:$0xff]
  %v1036 = vld [vmem:[%s8 + $0x70] sm:$0xff]
  %v1037 = vld [vmem:[%s8 + $0x78] sm:$0xff]
  %1038 = vmatprep.subr.mxu0 0.0
  %1039 = vmatpush1.msra.mxu0 %v1037
  %1040 = vmatprep.subr.mxu0 0.0
  %1041 = vmatpush1.msra.mxu0 %v1036
  %1042 = vmatprep.subr.mxu0 0.0
  %1043 = vmatpush1.msra.mxu0 %v1035
  %1044 = vmatprep.subr.mxu0 0.0
  %1045 = vmatpush1.msra.mxu0 %v1034
  %1046 = vmatprep.subr.mxu0 0.0
  %1047 = vmatpush1.msra.mxu0 %v1033
  %1048 = vmatprep.subr.mxu0 0.0
  %1049 = vmatpush1.msra.mxu0 %v1032
  %1050 = vmatprep.subr.mxu0 0.0
  %1051 = vmatpush1.msra.mxu0 %v1031
  %1052 = vmatprep.subr.mxu0 0.0
  %1053 = vmatpush1.msra.mxu0 %v1030
  %1054 = vmatprep.subr.mxu0 0.0
  %1055 = vmatpush1.msra.mxu0 %v1029
  %1056 = vmatprep.subr.mxu0 0.0
  %1057 = vmatpush1.msra.mxu0 %v1028
  %1058 = vmatprep.subr.mxu0 0.0
  %1059 = vmatpush1.msra.mxu0 %v1027
  %1060 = vmatprep.subr.mxu0 0.0
  %1061 = vmatpush1.msra.mxu0 %v1026
  %1062 = vmatprep.subr.mxu0 0.0
  %1063 = vmatpush1.msra.mxu0 %v1025
  %1064 = vmatprep.subr.mxu0 0.0
  %1065 = vmatpush1.msra.mxu0 %v1024
  %1066 = vmatprep.subr.mxu0 0.0
  %1067 = vmatpush1.msra.mxu0 %v1023
  %1068 = vmatprep.subr.mxu0 0.0
  %1069 = vmatpush1.msra.mxu0 %v1022
  %1070 = vmatprep.subr.mxu0 0.0
  %1071 = vmatpush2.msra.mxu0 0.0
  %1072 = vmatprep.subr.mxu0 0.0
  %1073 = vmatpush2.msra.mxu0 0.0
  %1074 = vmatprep.subr.mxu0 0.0
  %1075 = vmatpush2.msra.mxu0 0.0
  %1076 = vmatprep.subr.mxu0 0.0
  %1077 = vmatpush2.msra.mxu0 0.0
  %1078 = vmatprep.subr.mxu0 0.0
  %1079 = vmatpush2.msra.mxu0 0.0
  %1080 = vmatprep.subr.mxu0 0.0
  %1081 = vmatpush2.msra.mxu0 0.0
  %1082 = vmatprep.subr.mxu0 0.0
  %1083 = vmatpush2.msra.mxu0 0.0
  %1084 = vmatprep.subr.mxu0 0.0
  %1085 = vmatpush2.msra.mxu0 0.0
  %1086 = vmatprep.subr.mxu0 0.0
  %1087 = vmatpush2.msra.mxu0 0.0
  %1088 = vmatprep.subr.mxu0 0.0
  %1089 = vmatpush2.msra.mxu0 0.0
  %1090 = vmatprep.subr.mxu0 0.0
  %1091 = vmatpush2.msra.mxu0 0.0
  %1092 = vmatprep.subr.mxu0 0.0
  %1093 = vmatpush2.msra.mxu0 0.0
  %1094 = vmatprep.subr.mxu0 0.0
  %1095 = vmatpush2.msra.mxu0 0.0
  %1096 = vmatprep.subr.mxu0 0.0
  %1097 = vmatpush2.msra.mxu0 0.0
  %1098 = vmatprep.subr.mxu0 0.0
  %1099 = vmatpush2.msra.mxu0 0.0
  %1100 = vmatprep.subr.mxu0 0.0
  %1101 = vmatpush2.msra.mxu0 0.0
  %1102 = vmatprep.mubr.f32.mxu0 0.0
  %1103 = vmatmul.mubr.f32.gmra.mxu0 %v752
  %v1104 = vpop.f32.mrf.mxu0
  %v1105 = vadd.f32 0.0, %v1104
  %v1106 = vpop.f32.mrf.mxu0
  %1107 = vdwg.mxu0
  %1108 = vmatprep.subr.mxu0 0.0
  %1109 = vmatpush1.msra.mxu0 %v1021
  %1110 = vmatprep.subr.mxu0 0.0
  %1111 = vmatpush1.msra.mxu0 %v1020
  %1112 = vmatprep.subr.mxu0 0.0
  %1113 = vmatpush1.msra.mxu0 %v1019
  %1114 = vmatprep.subr.mxu0 0.0
  %1115 = vmatpush1.msra.mxu0 %v1018
  %1116 = vmatprep.subr.mxu0 0.0
  %1117 = vmatpush1.msra.mxu0 %v1017
  %1118 = vmatprep.subr.mxu0 0.0
  %1119 = vmatpush1.msra.mxu0 %v1016
  %1120 = vmatprep.subr.mxu0 0.0
  %1121 = vmatpush1.msra.mxu0 %v1015
  %1122 = vmatprep.subr.mxu0 0.0
  %1123 = vmatpush1.msra.mxu0 %v1014
  %1124 = vmatprep.subr.mxu0 0.0
  %1125 = vmatpush1.msra.mxu0 %v1013
  %1126 = vmatprep.subr.mxu0 0.0
  %1127 = vmatpush1.msra.mxu0 %v1012
  %1128 = vmatprep.subr.mxu0 0.0
  %1129 = vmatpush1.msra.mxu0 %v1011
  %1130 = vmatprep.subr.mxu0 0.0
  %1131 = vmatpush1.msra.mxu0 %v1010
  %1132 = vmatprep.subr.mxu0 0.0
  %1133 = vmatpush1.msra.mxu0 %v1009
  %1134 = vmatprep.subr.mxu0 0.0
  %1135 = vmatpush1.msra.mxu0 %v1008
  %1136 = vmatprep.subr.mxu0 0.0
  %1137 = vmatpush1.msra.mxu0 %v1007
  %1138 = vmatprep.subr.mxu0 0.0
  %1139 = vmatpush1.msra.mxu0 %v1006
  %1140 = vmatprep.subr.mxu0 0.0
  %1141 = vmatpush2.msra.mxu0 0.0
  %1142 = vmatprep.subr.mxu0 0.0
  %1143 = vmatpush2.msra.mxu0 0.0
  %1144 = vmatprep.subr.mxu0 0.0
  %1145 = vmatpush2.msra.mxu0 0.0
  %1146 = vmatprep.subr.mxu0 0.0
  %1147 = vmatpush2.msra.mxu0 0.0
  %1148 = vmatprep.subr.mxu0 0.0
  %1149 = vmatpush2.msra.mxu0 0.0
  %1150 = vmatprep.subr.mxu0 0.0
  %1151 = vmatpush2.msra.mxu0 0.0
  %1152 = vmatprep.subr.mxu0 0.0
  %1153 = vmatpush2.msra.mxu0 0.0
  %1154 = vmatprep.subr.mxu0 0.0
  %1155 = vmatpush2.msra.mxu0 0.0
  %1156 = vmatprep.subr.mxu0 0.0
  %1157 = vmatpush2.msra.mxu0 0.0
  %1158 = vmatprep.subr.mxu0 0.0
  %1159 = vmatpush2.msra.mxu0 0.0
  %1160 = vmatprep.subr.mxu0 0.0
  %1161 = vmatpush2.msra.mxu0 0.0
  %1162 = vmatprep.subr.mxu0 0.0
  %1163 = vmatpush2.msra.mxu0 0.0
  %1164 = vmatprep.subr.mxu0 0.0
  %1165 = vmatpush2.msra.mxu0 0.0
  %1166 = vmatprep.subr.mxu0 0.0
  %1167 = vmatpush2.msra.mxu0 0.0
  %1168 = vmatprep.subr.mxu0 0.0
  %1169 = vmatpush2.msra.mxu0 0.0
  %1170 = vmatprep.subr.mxu0 0.0
  %1171 = vmatpush2.msra.mxu0 0.0
  %1172 = vmatprep.mubr.f32.mxu0 0.0
  %1173 = vmatmul.mubr.f32.gmra.mxu0 %v609
  %v1174 = vpop.f32.mrf.mxu0
  %v1175 = vadd.f32 %v1105, %v1174
  %v1176 = vpop.f32.mrf.mxu0
  %1177 = vdwg.mxu0
  %s1178 = scalar_lea.vmem %s7, 128
  %v1179 = vld [vmem:[%s1178] sm:$0xff]
  %v1180 = vld [vmem:[%s1178 + $0x8] sm:$0xff]
  %v1181 = vld [vmem:[%s1178 + $0x10] sm:$0xff]
  %v1182 = vld [vmem:[%s1178 + $0x18] sm:$0xff]
  %v1183 = vld [vmem:[%s1178 + $0x20] sm:$0xff]
  %v1184 = vld [vmem:[%s1178 + $0x28] sm:$0xff]
  %v1185 = vld [vmem:[%s1178 + $0x30] sm:$0xff]
  %v1186 = vld [vmem:[%s1178 + $0x38] sm:$0xff]
  %v1187 = vld [vmem:[%s1178 + $0x40] sm:$0xff]
  %v1188 = vld [vmem:[%s1178 + $0x48] sm:$0xff]
  %v1189 = vld [vmem:[%s1178 + $0x50] sm:$0xff]
  %v1190 = vld [vmem:[%s1178 + $0x58] sm:$0xff]
  %v1191 = vld [vmem:[%s1178 + $0x60] sm:$0xff]
  %v1192 = vld [vmem:[%s1178 + $0x68] sm:$0xff]
  %v1193 = vld [vmem:[%s1178 + $0x70] sm:$0xff]
  %v1194 = vld [vmem:[%s1178 + $0x78] sm:$0xff]
  %1195 = vmatprep.subr.mxu0 0.0
  %1196 = vmatpush1.msra.mxu0 %v1194
  %1197 = vmatprep.subr.mxu0 0.0
  %1198 = vmatpush1.msra.mxu0 %v1193
  %1199 = vmatprep.subr.mxu0 0.0
  %1200 = vmatpush1.msra.mxu0 %v1192
  %1201 = vmatprep.subr.mxu0 0.0
  %1202 = vmatpush1.msra.mxu0 %v1191
  %1203 = vmatprep.subr.mxu0 0.0
  %1204 = vmatpush1.msra.mxu0 %v1190
  %1205 = vmatprep.subr.mxu0 0.0
  %1206 = vmatpush1.msra.mxu0 %v1189
  %1207 = vmatprep.subr.mxu0 0.0
  %1208 = vmatpush1.msra.mxu0 %v1188
  %1209 = vmatprep.subr.mxu0 0.0
  %1210 = vmatpush1.msra.mxu0 %v1187
  %1211 = vmatprep.subr.mxu0 0.0
  %1212 = vmatpush1.msra.mxu0 %v1186
  %1213 = vmatprep.subr.mxu0 0.0
  %1214 = vmatpush1.msra.mxu0 %v1185
  %1215 = vmatprep.subr.mxu0 0.0
  %1216 = vmatpush1.msra.mxu0 %v1184
  %1217 = vmatprep.subr.mxu0 0.0
  %1218 = vmatpush1.msra.mxu0 %v1183
  %1219 = vmatprep.subr.mxu0 0.0
  %1220 = vmatpush1.msra.mxu0 %v1182
  %1221 = vmatprep.subr.mxu0 0.0
  %1222 = vmatpush1.msra.mxu0 %v1181
  %1223 = vmatprep.subr.mxu0 0.0
  %1224 = vmatpush1.msra.mxu0 %v1180
  %1225 = vmatprep.subr.mxu0 0.0
  %1226 = vmatpush1.msra.mxu0 %v1179
  %1227 = vmatprep.subr.mxu0 0.0
  %1228 = vmatpush2.msra.mxu0 0.0
  %1229 = vmatprep.subr.mxu0 0.0
  %1230 = vmatpush2.msra.mxu0 0.0
  %1231 = vmatprep.subr.mxu0 0.0
  %1232 = vmatpush2.msra.mxu0 0.0
  %1233 = vmatprep.subr.mxu0 0.0
  %1234 = vmatpush2.msra.mxu0 0.0
  %1235 = vmatprep.subr.mxu0 0.0
  %1236 = vmatpush2.msra.mxu0 0.0
  %1237 = vmatprep.subr.mxu0 0.0
  %1238 = vmatpush2.msra.mxu0 0.0
  %1239 = vmatprep.subr.mxu0 0.0
  %1240 = vmatpush2.msra.mxu0 0.0
  %1241 = vmatprep.subr.mxu0 0.0
  %1242 = vmatpush2.msra.mxu0 0.0
  %1243 = vmatprep.subr.mxu0 0.0
  %1244 = vmatpush2.msra.mxu0 0.0
  %1245 = vmatprep.subr.mxu0 0.0
  %1246 = vmatpush2.msra.mxu0 0.0
  %1247 = vmatprep.subr.mxu0 0.0
  %1248 = vmatpush2.msra.mxu0 0.0
  %1249 = vmatprep.subr.mxu0 0.0
  %1250 = vmatpush2.msra.mxu0 0.0
  %1251 = vmatprep.subr.mxu0 0.0
  %1252 = vmatpush2.msra.mxu0 0.0
  %1253 = vmatprep.subr.mxu0 0.0
  %1254 = vmatpush2.msra.mxu0 0.0
  %1255 = vmatprep.subr.mxu0 0.0
  %1256 = vmatpush2.msra.mxu0 0.0
  %1257 = vmatprep.subr.mxu0 0.0
  %1258 = vmatpush2.msra.mxu0 0.0
  %1259 = vmatprep.mubr.f32.mxu0 0.0
  %1260 = vmatmul.mubr.f32.gmra.mxu0 %v300
  %v1261 = vpop.f32.mrf.mxu0
  %v1262 = vadd.f32 0.0, %v1261
  %v1263 = vpop.f32.mrf.mxu0
  %1264 = vdwg.mxu0
  %v1265 = vadd.f32 %v1175, %v1262
  %s1266 = scalar_lea.vmem %s8, 128
  %v1267 = vld [vmem:[%s1266] sm:$0xff]
  %v1268 = vld [vmem:[%s1266 + $0x8] sm:$0xff]
  %v1269 = vld [vmem:[%s1266 + $0x10] sm:$0xff]
  %v1270 = vld [vmem:[%s1266 + $0x18] sm:$0xff]
  %v1271 = vld [vmem:[%s1266 + $0x20] sm:$0xff]
  %v1272 = vld [vmem:[%s1266 + $0x28] sm:$0xff]
  %v1273 = vld [vmem:[%s1266 + $0x30] sm:$0xff]
  %v1274 = vld [vmem:[%s1266 + $0x38] sm:$0xff]
  %v1275 = vld [vmem:[%s1266 + $0x40] sm:$0xff]
  %v1276 = vld [vmem:[%s1266 + $0x48] sm:$0xff]
  %v1277 = vld [vmem:[%s1266 + $0x50] sm:$0xff]
  %v1278 = vld [vmem:[%s1266 + $0x58] sm:$0xff]
  %v1279 = vld [vmem:[%s1266 + $0x60] sm:$0xff]
  %v1280 = vld [vmem:[%s1266 + $0x68] sm:$0xff]
  %v1281 = vld [vmem:[%s1266 + $0x70] sm:$0xff]
  %v1282 = vld [vmem:[%s1266 + $0x78] sm:$0xff]
  %1283 = vmatprep.subr.mxu0 0.0
  %1284 = vmatpush1.msra.mxu0 %v1282
  %1285 = vmatprep.subr.mxu0 0.0
  %1286 = vmatpush1.msra.mxu0 %v1281
  %1287 = vmatprep.subr.mxu0 0.0
  %1288 = vmatpush1.msra.mxu0 %v1280
  %1289 = vmatprep.subr.mxu0 0.0
  %1290 = vmatpush1.msra.mxu0 %v1279
  %1291 = vmatprep.subr.mxu0 0.0
  %1292 = vmatpush1.msra.mxu0 %v1278
  %1293 = vmatprep.subr.mxu0 0.0
  %1294 = vmatpush1.msra.mxu0 %v1277
  %1295 = vmatprep.subr.mxu0 0.0
  %1296 = vmatpush1.msra.mxu0 %v1276
  %1297 = vmatprep.subr.mxu0 0.0
  %1298 = vmatpush1.msra.mxu0 %v1275
  %1299 = vmatprep.subr.mxu0 0.0
  %1300 = vmatpush1.msra.mxu0 %v1274
  %1301 = vmatprep.subr.mxu0 0.0
  %1302 = vmatpush1.msra.mxu0 %v1273
  %1303 = vmatprep.subr.mxu0 0.0
  %1304 = vmatpush1.msra.mxu0 %v1272
  %1305 = vmatprep.subr.mxu0 0.0
  %1306 = vmatpush1.msra.mxu0 %v1271
  %1307 = vmatprep.subr.mxu0 0.0
  %1308 = vmatpush1.msra.mxu0 %v1270
  %1309 = vmatprep.subr.mxu0 0.0
  %1310 = vmatpush1.msra.mxu0 %v1269
  %1311 = vmatprep.subr.mxu0 0.0
  %1312 = vmatpush1.msra.mxu0 %v1268
  %1313 = vmatprep.subr.mxu0 0.0
  %1314 = vmatpush1.msra.mxu0 %v1267
  %1315 = vmatprep.subr.mxu0 0.0
  %1316 = vmatpush2.msra.mxu0 0.0
  %1317 = vmatprep.subr.mxu0 0.0
  %1318 = vmatpush2.msra.mxu0 0.0
  %1319 = vmatprep.subr.mxu0 0.0
  %1320 = vmatpush2.msra.mxu0 0.0
  %1321 = vmatprep.subr.mxu0 0.0
  %1322 = vmatpush2.msra.mxu0 0.0
  %1323 = vmatprep.subr.mxu0 0.0
  %1324 = vmatpush2.msra.mxu0 0.0
  %1325 = vmatprep.subr.mxu0 0.0
  %1326 = vmatpush2.msra.mxu0 0.0
  %1327 = vmatprep.subr.mxu0 0.0
  %1328 = vmatpush2.msra.mxu0 0.0
  %1329 = vmatprep.subr.mxu0 0.0
  %1330 = vmatpush2.msra.mxu0 0.0
  %1331 = vmatprep.subr.mxu0 0.0
  %1332 = vmatpush2.msra.mxu0 0.0
  %1333 = vmatprep.subr.mxu0 0.0
  %1334 = vmatpush2.msra.mxu0 0.0
  %1335 = vmatprep.subr.mxu0 0.0
  %1336 = vmatpush2.msra.mxu0 0.0
  %1337 = vmatprep.subr.mxu0 0.0
  %1338 = vmatpush2.msra.mxu0 0.0
  %1339 = vmatprep.subr.mxu0 0.0
  %1340 = vmatpush2.msra.mxu0 0.0
  %1341 = vmatprep.subr.mxu0 0.0
  %1342 = vmatpush2.msra.mxu0 0.0
  %1343 = vmatprep.subr.mxu0 0.0
  %1344 = vmatpush2.msra.mxu0 0.0
  %1345 = vmatprep.subr.mxu0 0.0
  %1346 = vmatpush2.msra.mxu0 0.0
  %1347 = vmatprep.mubr.f32.mxu0 0.0
  %1348 = vmatmul.mubr.f32.gmra.mxu0 %v538
  %v1349 = vpop.f32.mrf.mxu0
  %v1350 = vadd.f32 0.0, %v1349
  %v1351 = vpop.f32.mrf.mxu0
  %1352 = vdwg.mxu0
  %v1353 = vadd.f32 %v1265, %v1350
  %s1354 = scalar_lea.vmem %s7, 256
  %v1355 = vld [vmem:[%s1354] sm:$0xff]
  %v1356 = vld [vmem:[%s1354 + $0x8] sm:$0xff]
  %v1357 = vld [vmem:[%s1354 + $0x10] sm:$0xff]
  %v1358 = vld [vmem:[%s1354 + $0x18] sm:$0xff]
  %v1359 = vld [vmem:[%s1354 + $0x20] sm:$0xff]
  %v1360 = vld [vmem:[%s1354 + $0x28] sm:$0xff]
  %v1361 = vld [vmem:[%s1354 + $0x30] sm:$0xff]
  %v1362 = vld [vmem:[%s1354 + $0x38] sm:$0xff]
  %v1363 = vld [vmem:[%s1354 + $0x40] sm:$0xff]
  %v1364 = vld [vmem:[%s1354 + $0x48] sm:$0xff]
  %v1365 = vld [vmem:[%s1354 + $0x50] sm:$0xff]
  %v1366 = vld [vmem:[%s1354 + $0x58] sm:$0xff]
  %v1367 = vld [vmem:[%s1354 + $0x60] sm:$0xff]
  %v1368 = vld [vmem:[%s1354 + $0x68] sm:$0xff]
  %v1369 = vld [vmem:[%s1354 + $0x70] sm:$0xff]
  %v1370 = vld [vmem:[%s1354 + $0x78] sm:$0xff]
  %1371 = vmatprep.subr.mxu0 0.0
  %1372 = vmatpush1.msra.mxu0 %v1370
  %1373 = vmatprep.subr.mxu0 0.0
  %1374 = vmatpush1.msra.mxu0 %v1369
  %1375 = vmatprep.subr.mxu0 0.0
  %1376 = vmatpush1.msra.mxu0 %v1368
  %1377 = vmatprep.subr.mxu0 0.0
  %1378 = vmatpush1.msra.mxu0 %v1367
  %1379 = vmatprep.subr.mxu0 0.0
  %1380 = vmatpush1.msra.mxu0 %v1366
  %1381 = vmatprep.subr.mxu0 0.0
  %1382 = vmatpush1.msra.mxu0 %v1365
  %1383 = vmatprep.subr.mxu0 0.0
  %1384 = vmatpush1.msra.mxu0 %v1364
  %1385 = vmatprep.subr.mxu0 0.0
  %1386 = vmatpush1.msra.mxu0 %v1363
  %1387 = vmatprep.subr.mxu0 0.0
  %1388 = vmatpush1.msra.mxu0 %v1362
  %1389 = vmatprep.subr.mxu0 0.0
  %1390 = vmatpush1.msra.mxu0 %v1361
  %1391 = vmatprep.subr.mxu0 0.0
  %1392 = vmatpush1.msra.mxu0 %v1360
  %1393 = vmatprep.subr.mxu0 0.0
  %1394 = vmatpush1.msra.mxu0 %v1359
  %1395 = vmatprep.subr.mxu0 0.0
  %1396 = vmatpush1.msra.mxu0 %v1358
  %1397 = vmatprep.subr.mxu0 0.0
  %1398 = vmatpush1.msra.mxu0 %v1357
  %1399 = vmatprep.subr.mxu0 0.0
  %1400 = vmatpush1.msra.mxu0 %v1356
  %1401 = vmatprep.subr.mxu0 0.0
  %1402 = vmatpush1.msra.mxu0 %v1355
  %1403 = vmatprep.subr.mxu0 0.0
  %1404 = vmatpush2.msra.mxu0 0.0
  %1405 = vmatprep.subr.mxu0 0.0
  %1406 = vmatpush2.msra.mxu0 0.0
  %1407 = vmatprep.subr.mxu0 0.0
  %1408 = vmatpush2.msra.mxu0 0.0
  %1409 = vmatprep.subr.mxu0 0.0
  %1410 = vmatpush2.msra.mxu0 0.0
  %1411 = vmatprep.subr.mxu0 0.0
  %1412 = vmatpush2.msra.mxu0 0.0
  %1413 = vmatprep.subr.mxu0 0.0
  %1414 = vmatpush2.msra.mxu0 0.0
  %1415 = vmatprep.subr.mxu0 0.0
  %1416 = vmatpush2.msra.mxu0 0.0
  %1417 = vmatprep.subr.mxu0 0.0
  %1418 = vmatpush2.msra.mxu0 0.0
  %1419 = vmatprep.subr.mxu0 0.0
  %1420 = vmatpush2.msra.mxu0 0.0
  %1421 = vmatprep.subr.mxu0 0.0
  %1422 = vmatpush2.msra.mxu0 0.0
  %1423 = vmatprep.subr.mxu0 0.0
  %1424 = vmatpush2.msra.mxu0 0.0
  %1425 = vmatprep.subr.mxu0 0.0
  %1426 = vmatpush2.msra.mxu0 0.0
  %1427 = vmatprep.subr.mxu0 0.0
  %1428 = vmatpush2.msra.mxu0 0.0
  %1429 = vmatprep.subr.mxu0 0.0
  %1430 = vmatpush2.msra.mxu0 0.0
  %1431 = vmatprep.subr.mxu0 0.0
  %1432 = vmatpush2.msra.mxu0 0.0
  %1433 = vmatprep.subr.mxu0 0.0
  %1434 = vmatpush2.msra.mxu0 0.0
  %1435 = vmatprep.mubr.f32.mxu0 0.0
  %1436 = vmatmul.mubr.f32.gmra.mxu0 %v679
  %v1437 = vpop.f32.mrf.mxu0
  %v1438 = vadd.f32 0.0, %v1437
  %v1439 = vpop.f32.mrf.mxu0
  %1440 = vdwg.mxu0
  %v1441 = vadd.f32 %v1353, %v1438
  %s1442 = scalar_lea.vmem %s8, 256
  %v1443 = vld [vmem:[%s1442] sm:$0xff]
  %v1444 = vld [vmem:[%s1442 + $0x8] sm:$0xff]
  %v1445 = vld [vmem:[%s1442 + $0x10] sm:$0xff]
  %v1446 = vld [vmem:[%s1442 + $0x18] sm:$0xff]
  %v1447 = vld [vmem:[%s1442 + $0x20] sm:$0xff]
  %v1448 = vld [vmem:[%s1442 + $0x28] sm:$0xff]
  %v1449 = vld [vmem:[%s1442 + $0x30] sm:$0xff]
  %v1450 = vld [vmem:[%s1442 + $0x38] sm:$0xff]
  %v1451 = vld [vmem:[%s1442 + $0x40] sm:$0xff]
  %v1452 = vld [vmem:[%s1442 + $0x48] sm:$0xff]
  %v1453 = vld [vmem:[%s1442 + $0x50] sm:$0xff]
  %v1454 = vld [vmem:[%s1442 + $0x58] sm:$0xff]
  %v1455 = vld [vmem:[%s1442 + $0x60] sm:$0xff]
  %v1456 = vld [vmem:[%s1442 + $0x68] sm:$0xff]
  %v1457 = vld [vmem:[%s1442 + $0x70] sm:$0xff]
  %v1458 = vld [vmem:[%s1442 + $0x78] sm:$0xff]
  %1459 = vmatprep.subr.mxu0 0.0
  %1460 = vmatpush1.msra.mxu0 %v1458
  %1461 = vmatprep.subr.mxu0 0.0
  %1462 = vmatpush1.msra.mxu0 %v1457
  %1463 = vmatprep.subr.mxu0 0.0
  %1464 = vmatpush1.msra.mxu0 %v1456
  %1465 = vmatprep.subr.mxu0 0.0
  %1466 = vmatpush1.msra.mxu0 %v1455
  %1467 = vmatprep.subr.mxu0 0.0
  %1468 = vmatpush1.msra.mxu0 %v1454
  %1469 = vmatprep.subr.mxu0 0.0
  %1470 = vmatpush1.msra.mxu0 %v1453
  %1471 = vmatprep.subr.mxu0 0.0
  %1472 = vmatpush1.msra.mxu0 %v1452
  %1473 = vmatprep.subr.mxu0 0.0
  %1474 = vmatpush1.msra.mxu0 %v1451
  %1475 = vmatprep.subr.mxu0 0.0
  %1476 = vmatpush1.msra.mxu0 %v1450
  %1477 = vmatprep.subr.mxu0 0.0
  %1478 = vmatpush1.msra.mxu0 %v1449
  %1479 = vmatprep.subr.mxu0 0.0
  %1480 = vmatpush1.msra.mxu0 %v1448
  %1481 = vmatprep.subr.mxu0 0.0
  %1482 = vmatpush1.msra.mxu0 %v1447
  %1483 = vmatprep.subr.mxu0 0.0
  %1484 = vmatpush1.msra.mxu0 %v1446
  %1485 = vmatprep.subr.mxu0 0.0
  %1486 = vmatpush1.msra.mxu0 %v1445
  %1487 = vmatprep.subr.mxu0 0.0
  %1488 = vmatpush1.msra.mxu0 %v1444
  %1489 = vmatprep.subr.mxu0 0.0
  %1490 = vmatpush1.msra.mxu0 %v1443
  %1491 = vmatprep.subr.mxu0 0.0
  %1492 = vmatpush2.msra.mxu0 0.0
  %1493 = vmatprep.subr.mxu0 0.0
  %1494 = vmatpush2.msra.mxu0 0.0
  %1495 = vmatprep.subr.mxu0 0.0
  %1496 = vmatpush2.msra.mxu0 0.0
  %1497 = vmatprep.subr.mxu0 0.0
  %1498 = vmatpush2.msra.mxu0 0.0
  %1499 = vmatprep.subr.mxu0 0.0
  %1500 = vmatpush2.msra.mxu0 0.0
  %1501 = vmatprep.subr.mxu0 0.0
  %1502 = vmatpush2.msra.mxu0 0.0
  %1503 = vmatprep.subr.mxu0 0.0
  %1504 = vmatpush2.msra.mxu0 0.0
  %1505 = vmatprep.subr.mxu0 0.0
  %1506 = vmatpush2.msra.mxu0 0.0
  %1507 = vmatprep.subr.mxu0 0.0
  %1508 = vmatpush2.msra.mxu0 0.0
  %1509 = vmatprep.subr.mxu0 0.0
  %1510 = vmatpush2.msra.mxu0 0.0
  %1511 = vmatprep.subr.mxu0 0.0
  %1512 = vmatpush2.msra.mxu0 0.0
  %1513 = vmatprep.subr.mxu0 0.0
  %1514 = vmatpush2.msra.mxu0 0.0
  %1515 = vmatprep.subr.mxu0 0.0
  %1516 = vmatpush2.msra.mxu0 0.0
  %1517 = vmatprep.subr.mxu0 0.0
  %1518 = vmatpush2.msra.mxu0 0.0
  %1519 = vmatprep.subr.mxu0 0.0
  %1520 = vmatpush2.msra.mxu0 0.0
  %1521 = vmatprep.subr.mxu0 0.0
  %1522 = vmatpush2.msra.mxu0 0.0
  %1523 = vmatprep.mubr.f32.mxu0 0.0
  %1524 = vmatmul.mubr.f32.gmra.mxu0 %v822
  %v1525 = vpop.f32.mrf.mxu0
  %v1526 = vadd.f32 0.0, %v1525
  %v1527 = vpop.f32.mrf.mxu0
  %1528 = vdwg.mxu0
  %v1529 = vadd.f32 %v1441, %v1526
  %v1530 = vld [vmem:[%s9] sm:$0x1]
  %v1532 = vlaneseq
  %v1533 = vshrl.u32 %v1532, 7
  %v1534 = vsub.s32 0, %v1533
  %v1535 = vrot.slane %v1530, %v1534
  %v1537 = vadd.f32 %v1529, %v1535
  %v1538 = vld [vmem:[%s10] sm:$0xff]
  %v1539 = vld [vmem:[%s10 + $0x8] sm:$0xff]
  %v1540 = vld [vmem:[%s10 + $0x10] sm:$0xff]
  %v1541 = vld [vmem:[%s10 + $0x18] sm:$0xff]
  %v1542 = vld [vmem:[%s10 + $0x20] sm:$0xff]
  %v1543 = vld [vmem:[%s10 + $0x28] sm:$0xff]
  %v1544 = vld [vmem:[%s10 + $0x30] sm:$0xff]
  %v1545 = vld [vmem:[%s10 + $0x38] sm:$0xff]
  %v1546 = vld [vmem:[%s10 + $0x40] sm:$0xff]
  %v1547 = vld [vmem:[%s10 + $0x48] sm:$0xff]
  %v1548 = vld [vmem:[%s10 + $0x50] sm:$0xff]
  %v1549 = vld [vmem:[%s10 + $0x58] sm:$0xff]
  %v1550 = vld [vmem:[%s10 + $0x60] sm:$0xff]
  %v1551 = vld [vmem:[%s10 + $0x68] sm:$0xff]
  %v1552 = vld [vmem:[%s10 + $0x70] sm:$0xff]
  %v1553 = vld [vmem:[%s10 + $0x78] sm:$0xff]
  %s1554 = scalar_lea.vmem %s10, 128
  %v1555 = vld [vmem:[%s1554] sm:$0xff]
  %v1556 = vld [vmem:[%s1554 + $0x8] sm:$0xff]
  %v1557 = vld [vmem:[%s1554 + $0x10] sm:$0xff]
  %v1558 = vld [vmem:[%s1554 + $0x18] sm:$0xff]
  %v1559 = vld [vmem:[%s1554 + $0x20] sm:$0xff]
  %v1560 = vld [vmem:[%s1554 + $0x28] sm:$0xff]
  %v1561 = vld [vmem:[%s1554 + $0x30] sm:$0xff]
  %v1562 = vld [vmem:[%s1554 + $0x38] sm:$0xff]
  %v1563 = vld [vmem:[%s1554 + $0x40] sm:$0xff]
  %v1564 = vld [vmem:[%s1554 + $0x48] sm:$0xff]
  %v1565 = vld [vmem:[%s1554 + $0x50] sm:$0xff]
  %v1566 = vld [vmem:[%s1554 + $0x58] sm:$0xff]
  %v1567 = vld [vmem:[%s1554 + $0x60] sm:$0xff]
  %v1568 = vld [vmem:[%s1554 + $0x68] sm:$0xff]
  %v1569 = vld [vmem:[%s1554 + $0x70] sm:$0xff]
  %v1570 = vld [vmem:[%s1554 + $0x78] sm:$0xff]
  %vm1571 = vcmask 523264
  %v1573 = vsel %vm1571, %v1537, 0
  %1575 = vmatprep.subr.mxu0 0.0
  %1576 = vmatpush1.msra.mxu0 0.0
  %1577 = vmatprep.subr.mxu0 0.0
  %1578 = vmatpush1.msra.mxu0 0.0
  %1579 = vmatprep.subr.mxu0 0.0
  %1580 = vmatpush1.msra.mxu0 0.0
  %1581 = vmatprep.subr.mxu0 0.0
  %1582 = vmatpush1.msra.mxu0 0.0
  %1583 = vmatprep.subr.mxu0 0.0
  %1584 = vmatpush1.msra.mxu0 0.0
  %1585 = vmatprep.subr.mxu0 0.0
  %1586 = vmatpush1.msra.mxu0 0.0
  %1587 = vmatprep.subr.mxu0 0.0
  %1588 = vmatpush1.msra.mxu0 0.0
  %1589 = vmatprep.subr.mxu0 0.0
  %1590 = vmatpush1.msra.mxu0 0.0
  %1591 = vmatprep.subr.mxu0 %v1570
  %1592 = vmatpush1.msra.mxu0 %v1569
  %1593 = vmatprep.subr.mxu0 %v1568
  %1594 = vmatpush1.msra.mxu0 %v1567
  %1595 = vmatprep.subr.mxu0 %v1566
  %1596 = vmatpush1.msra.mxu0 %v1565
  %1597 = vmatprep.subr.mxu0 %v1564
  %1598 = vmatpush1.msra.mxu0 %v1563
  %1599 = vmatprep.subr.mxu0 %v1562
  %1600 = vmatpush1.msra.mxu0 %v1561
  %1601 = vmatprep.subr.mxu0 %v1560
  %1602 = vmatpush1.msra.mxu0 %v1559
  %1603 = vmatprep.subr.mxu0 %v1558
  %1604 = vmatpush1.msra.mxu0 %v1557
  %1605 = vmatprep.subr.mxu0 %v1556
  %1606 = vmatpush1.msra.mxu0 %v1555
  %1607 = vmatprep.subr.mxu0 0.0
  %1608 = vmatpush2.msra.mxu0 0.0
  %1609 = vmatprep.subr.mxu0 0.0
  %1610 = vmatpush2.msra.mxu0 0.0
  %1611 = vmatprep.subr.mxu0 0.0
  %1612 = vmatpush2.msra.mxu0 0.0
  %1613 = vmatprep.subr.mxu0 0.0
  %1614 = vmatpush2.msra.mxu0 0.0
  %1615 = vmatprep.subr.mxu0 0.0
  %1616 = vmatpush2.msra.mxu0 0.0
  %1617 = vmatprep.subr.mxu0 0.0
  %1618 = vmatpush2.msra.mxu0 0.0
  %1619 = vmatprep.subr.mxu0 0.0
  %1620 = vmatpush2.msra.mxu0 0.0
  %1621 = vmatprep.subr.mxu0 0.0
  %1622 = vmatpush2.msra.mxu0 0.0
  %1623 = vmatprep.subr.mxu0 0.0
  %1624 = vmatpush2.msra.mxu0 0.0
  %1625 = vmatprep.subr.mxu0 0.0
  %1626 = vmatpush2.msra.mxu0 0.0
  %1627 = vmatprep.subr.mxu0 0.0
  %1628 = vmatpush2.msra.mxu0 0.0
  %1629 = vmatprep.subr.mxu0 0.0
  %1630 = vmatpush2.msra.mxu0 0.0
  %1631 = vmatprep.subr.mxu0 0.0
  %1632 = vmatpush2.msra.mxu0 0.0
  %1633 = vmatprep.subr.mxu0 0.0
  %1634 = vmatpush2.msra.mxu0 0.0
  %1635 = vmatprep.subr.mxu0 0.0
  %1636 = vmatpush2.msra.mxu0 0.0
  %1637 = vmatprep.subr.mxu0 0.0
  %1638 = vmatpush2.msra.mxu0 0.0
  %1639 = vmatprep.mubr.f32.mxu0 0.0
  %1640 = vmatmul.mubr.f32.gmra.mxu0 %v1573
  %v1641 = vpop.f32.mrf.mxu0
  %v1642 = vadd.f32 0.0, %v1641
  %v1643 = vpop.f32.mrf.mxu0
  %v1644 = vadd.f32 0.0, %v1643
  %1645 = vdwg.mxu0
  %v1647 = vsel %vm1571, %v1005, 0
  %1649 = vmatprep.subr.mxu0 0.0
  %1650 = vmatpush1.msra.mxu0 0.0
  %1651 = vmatprep.subr.mxu0 0.0
  %1652 = vmatpush1.msra.mxu0 0.0
  %1653 = vmatprep.subr.mxu0 0.0
  %1654 = vmatpush1.msra.mxu0 0.0
  %1655 = vmatprep.subr.mxu0 0.0
  %1656 = vmatpush1.msra.mxu0 0.0
  %1657 = vmatprep.subr.mxu0 0.0
  %1658 = vmatpush1.msra.mxu0 0.0
  %1659 = vmatprep.subr.mxu0 0.0
  %1660 = vmatpush1.msra.mxu0 0.0
  %1661 = vmatprep.subr.mxu0 0.0
  %1662 = vmatpush1.msra.mxu0 0.0
  %1663 = vmatprep.subr.mxu0 0.0
  %1664 = vmatpush1.msra.mxu0 0.0
  %1665 = vmatprep.subr.mxu0 %v1553
  %1666 = vmatpush1.msra.mxu0 %v1552
  %1667 = vmatprep.subr.mxu0 %v1551
  %1668 = vmatpush1.msra.mxu0 %v1550
  %1669 = vmatprep.subr.mxu0 %v1549
  %1670 = vmatpush1.msra.mxu0 %v1548
  %1671 = vmatprep.subr.mxu0 %v1547
  %1672 = vmatpush1.msra.mxu0 %v1546
  %1673 = vmatprep.subr.mxu0 %v1545
  %1674 = vmatpush1.msra.mxu0 %v1544
  %1675 = vmatprep.subr.mxu0 %v1543
  %1676 = vmatpush1.msra.mxu0 %v1542
  %1677 = vmatprep.subr.mxu0 %v1541
  %1678 = vmatpush1.msra.mxu0 %v1540
  %1679 = vmatprep.subr.mxu0 %v1539
  %1680 = vmatpush1.msra.mxu0 %v1538
  %1681 = vmatprep.subr.mxu0 0.0
  %1682 = vmatpush2.msra.mxu0 0.0
  %1683 = vmatprep.subr.mxu0 0.0
  %1684 = vmatpush2.msra.mxu0 0.0
  %1685 = vmatprep.subr.mxu0 0.0
  %1686 = vmatpush2.msra.mxu0 0.0
  %1687 = vmatprep.subr.mxu0 0.0
  %1688 = vmatpush2.msra.mxu0 0.0
  %1689 = vmatprep.subr.mxu0 0.0
  %1690 = vmatpush2.msra.mxu0 0.0
  %1691 = vmatprep.subr.mxu0 0.0
  %1692 = vmatpush2.msra.mxu0 0.0
  %1693 = vmatprep.subr.mxu0 0.0
  %1694 = vmatpush2.msra.mxu0 0.0
  %1695 = vmatprep.subr.mxu0 0.0
  %1696 = vmatpush2.msra.mxu0 0.0
  %1697 = vmatprep.subr.mxu0 0.0
  %1698 = vmatpush2.msra.mxu0 0.0
  %1699 = vmatprep.subr.mxu0 0.0
  %1700 = vmatpush2.msra.mxu0 0.0
  %1701 = vmatprep.subr.mxu0 0.0
  %1702 = vmatpush2.msra.mxu0 0.0
  %1703 = vmatprep.subr.mxu0 0.0
  %1704 = vmatpush2.msra.mxu0 0.0
  %1705 = vmatprep.subr.mxu0 0.0
  %1706 = vmatpush2.msra.mxu0 0.0
  %1707 = vmatprep.subr.mxu0 0.0
  %1708 = vmatpush2.msra.mxu0 0.0
  %1709 = vmatprep.subr.mxu0 0.0
  %1710 = vmatpush2.msra.mxu0 0.0
  %1711 = vmatprep.subr.mxu0 0.0
  %1712 = vmatpush2.msra.mxu0 0.0
  %1713 = vmatprep.mubr.f32.mxu0 0.0
  %1714 = vmatmul.mubr.f32.gmra.mxu0 %v1647
  %v1715 = vpop.f32.mrf.mxu0
  %v1716 = vadd.f32 %v1642, %v1715
  %v1717 = vpop.f32.mrf.mxu0
  %v1718 = vadd.f32 %v1644, %v1717
  %1719 = vdwg.mxu0
  %v1720 = vld [vmem:[%s11] sm:$0xff]
  %v1721 = vld [vmem:[%s11 + $0x8] sm:$0xff]
  %v1722 = vld [vmem:[%s11 + $0x10] sm:$0xff]
  %v1723 = vld [vmem:[%s11 + $0x18] sm:$0xff]
  %v1724 = vld [vmem:[%s11 + $0x20] sm:$0xff]
  %v1725 = vld [vmem:[%s11 + $0x28] sm:$0xff]
  %v1726 = vld [vmem:[%s11 + $0x30] sm:$0xff]
  %v1727 = vld [vmem:[%s11 + $0x38] sm:$0xff]
  %v1728 = vld [vmem:[%s11 + $0x40] sm:$0xff]
  %v1729 = vld [vmem:[%s11 + $0x48] sm:$0xff]
  %v1730 = vld [vmem:[%s11 + $0x50] sm:$0xff]
  %v1731 = vld [vmem:[%s11 + $0x58] sm:$0xff]
  %v1732 = vld [vmem:[%s11 + $0x60] sm:$0xff]
  %v1733 = vld [vmem:[%s11 + $0x68] sm:$0xff]
  %v1734 = vld [vmem:[%s11 + $0x70] sm:$0xff]
  %v1735 = vld [vmem:[%s11 + $0x78] sm:$0xff]
  %v1737 = vsel %vm1571, 0.0, 0
  %1739 = vmatprep.subr.mxu0 0.0
  %1740 = vmatpush1.msra.mxu0 0.0
  %1741 = vmatprep.subr.mxu0 0.0
  %1742 = vmatpush1.msra.mxu0 0.0
  %1743 = vmatprep.subr.mxu0 0.0
  %1744 = vmatpush1.msra.mxu0 0.0
  %1745 = vmatprep.subr.mxu0 0.0
  %1746 = vmatpush1.msra.mxu0 0.0
  %1747 = vmatprep.subr.mxu0 0.0
  %1748 = vmatpush1.msra.mxu0 0.0
  %1749 = vmatprep.subr.mxu0 0.0
  %1750 = vmatpush1.msra.mxu0 0.0
  %1751 = vmatprep.subr.mxu0 0.0
  %1752 = vmatpush1.msra.mxu0 0.0
  %1753 = vmatprep.subr.mxu0 0.0
  %1754 = vmatpush1.msra.mxu0 0.0
  %1755 = vmatprep.subr.mxu0 %v1735
  %1756 = vmatpush1.msra.mxu0 %v1734
  %1757 = vmatprep.subr.mxu0 %v1733
  %1758 = vmatpush1.msra.mxu0 %v1732
  %1759 = vmatprep.subr.mxu0 %v1731
  %1760 = vmatpush1.msra.mxu0 %v1730
  %1761 = vmatprep.subr.mxu0 %v1729
  %1762 = vmatpush1.msra.mxu0 %v1728
  %1763 = vmatprep.subr.mxu0 %v1727
  %1764 = vmatpush1.msra.mxu0 %v1726
  %1765 = vmatprep.subr.mxu0 %v1725
  %1766 = vmatpush1.msra.mxu0 %v1724
  %1767 = vmatprep.subr.mxu0 %v1723
  %1768 = vmatpush1.msra.mxu0 %v1722
  %1769 = vmatprep.subr.mxu0 %v1721
  %1770 = vmatpush1.msra.mxu0 %v1720
  %1771 = vmatprep.subr.mxu0 0.0
  %1772 = vmatpush2.msra.mxu0 0.0
  %1773 = vmatprep.subr.mxu0 0.0
  %1774 = vmatpush2.msra.mxu0 0.0
  %1775 = vmatprep.subr.mxu0 0.0
  %1776 = vmatpush2.msra.mxu0 0.0
  %1777 = vmatprep.subr.mxu0 0.0
  %1778 = vmatpush2.msra.mxu0 0.0
  %1779 = vmatprep.subr.mxu0 0.0
  %1780 = vmatpush2.msra.mxu0 0.0
  %1781 = vmatprep.subr.mxu0 0.0
  %1782 = vmatpush2.msra.mxu0 0.0
  %1783 = vmatprep.subr.mxu0 0.0
  %1784 = vmatpush2.msra.mxu0 0.0
  %1785 = vmatprep.subr.mxu0 0.0
  %1786 = vmatpush2.msra.mxu0 0.0
  %1787 = vmatprep.subr.mxu0 0.0
  %1788 = vmatpush2.msra.mxu0 0.0
  %1789 = vmatprep.subr.mxu0 0.0
  %1790 = vmatpush2.msra.mxu0 0.0
  %1791 = vmatprep.subr.mxu0 0.0
  %1792 = vmatpush2.msra.mxu0 0.0
  %1793 = vmatprep.subr.mxu0 0.0
  %1794 = vmatpush2.msra.mxu0 0.0
  %1795 = vmatprep.subr.mxu0 0.0
  %1796 = vmatpush2.msra.mxu0 0.0
  %1797 = vmatprep.subr.mxu0 0.0
  %1798 = vmatpush2.msra.mxu0 0.0
  %1799 = vmatprep.subr.mxu0 0.0
  %1800 = vmatpush2.msra.mxu0 0.0
  %1801 = vmatprep.subr.mxu0 0.0
  %1802 = vmatpush2.msra.mxu0 0.0
  %1803 = vmatprep.mubr.f32.mxu0 0.0
  %1804 = vmatmul.mubr.f32.gmra.mxu0 %v1737
  %v1805 = vpop.f32.mrf.mxu0
  %v1806 = vadd.f32 0.0, %v1805
  %v1807 = vpop.f32.mrf.mxu0
  %v1808 = vadd.f32 0.0, %v1807
  %1809 = vdwg.mxu0
  %v1810 = vadd.f32 %v1716, %v1806
  %v1811 = vadd.f32 %v1718, %v1808
  %v1812 = vld [vmem:[%s12] sm:$0x3]
  %v1814 = vlaneseq
  %v1815 = vshrl.u32 %v1814, 7
  %v1816 = vsub.s32 0, %v1815
  %v1817 = vrot.slane %v1812, %v1816
  %v1818 = vlaneseq
  %v1819 = vshrl.u32 %v1818, 7
  %v1820 = vsub.s32 1, %v1819
  %v1821 = vrot.slane %v1812, %v1820
  %v1824 = vadd.f32 %v1810, %v1817
  %v1825 = vadd.f32 %v1811, %v1821
  %v1826 = vxor.u32 %v1824, 2147483648
  %v1827 = vmul.f32 %v1826, 1.442695
  %v1828 = vpow.pop %v1827
  %v1829 = vadd.f32 %v1828, 1.0
  %v1830 = vrcp.pop %v1829
  %v1831 = vmul.f32 1.0, %v1830
  %v1832 = vtanh.pop %v1825
  %v1833 = vxor.u32 %v1825, 2147483648
  %v1834 = vmul.f32 %v1833, 1.442695
  %v1835 = vpow.pop %v1834
  %v1836 = vadd.f32 %v1835, 1.0
  %v1837 = vrcp.pop %v1836
  %v1838 = vmul.f32 1.0, %v1837
  %v1839 = vmul.f32 %v1831, 0.0
  %v1840 = vmul.f32 %v1831, %v1832
  %1842 = vrot.lane.b32.xlu0 %v1840, 64
  %v1843 = vpop.permute.xlu0 %1842
  %v1845 = vadd.f32 %v1839, %v1843
  %v1846 = vtanh.pop %v1845
  %v1847 = vmul.f32 %v1838, %v1846
  %v1848 = vld [vmem:[%s14] sm:$0x1]
  %v1849 = vld [vmem:[%s13] sm:$0xff]
  %v1850 = vld [vmem:[%s13 + $0x8] sm:$0xff]
  %v1851 = vld [vmem:[%s13 + $0x10] sm:$0xff]
  %v1852 = vld [vmem:[%s13 + $0x18] sm:$0xff]
  %v1853 = vld [vmem:[%s13 + $0x20] sm:$0xff]
  %v1854 = vld [vmem:[%s13 + $0x28] sm:$0xff]
  %v1855 = vld [vmem:[%s13 + $0x30] sm:$0xff]
  %v1856 = vld [vmem:[%s13 + $0x38] sm:$0xff]
  %1858 = vrot.lane.b32.xlu0 %v1847, 64
  %v1859 = vpop.permute.xlu0 %1858
  %v1860 = vsel %vm1571, %v1859, 0
  %1862 = vmatprep.subr.mxu0 0.0
  %1863 = vmatpush1.msra.mxu0 0.0
  %1864 = vmatprep.subr.mxu0 0.0
  %1865 = vmatpush1.msra.mxu0 0.0
  %1866 = vmatprep.subr.mxu0 0.0
  %1867 = vmatpush1.msra.mxu0 0.0
  %1868 = vmatprep.subr.mxu0 0.0
  %1869 = vmatpush1.msra.mxu0 0.0
  %1870 = vmatprep.subr.mxu0 0.0
  %1871 = vmatpush1.msra.mxu0 0.0
  %1872 = vmatprep.subr.mxu0 0.0
  %1873 = vmatpush1.msra.mxu0 0.0
  %1874 = vmatprep.subr.mxu0 0.0
  %1875 = vmatpush1.msra.mxu0 0.0
  %1876 = vmatprep.subr.mxu0 0.0
  %1877 = vmatpush1.msra.mxu0 0.0
  %1878 = vmatprep.subr.mxu0 0.0
  %1879 = vmatpush1.msra.mxu0 %v1856
  %1880 = vmatprep.subr.mxu0 0.0
  %1881 = vmatpush1.msra.mxu0 %v1855
  %1882 = vmatprep.subr.mxu0 0.0
  %1883 = vmatpush1.msra.mxu0 %v1854
  %1884 = vmatprep.subr.mxu0 0.0
  %1885 = vmatpush1.msra.mxu0 %v1853
  %1886 = vmatprep.subr.mxu0 0.0
  %1887 = vmatpush1.msra.mxu0 %v1852
  %1888 = vmatprep.subr.mxu0 0.0
  %1889 = vmatpush1.msra.mxu0 %v1851
  %1890 = vmatprep.subr.mxu0 0.0
  %1891 = vmatpush1.msra.mxu0 %v1850
  %1892 = vmatprep.subr.mxu0 0.0
  %1893 = vmatpush1.msra.mxu0 %v1849
  %1894 = vmatprep.subr.mxu0 0.0
  %1895 = vmatpush2.msra.mxu0 0.0
  %1896 = vmatprep.subr.mxu0 0.0
  %1897 = vmatpush2.msra.mxu0 0.0
  %1898 = vmatprep.subr.mxu0 0.0
  %1899 = vmatpush2.msra.mxu0 0.0
  %1900 = vmatprep.subr.mxu0 0.0
  %1901 = vmatpush2.msra.mxu0 0.0
  %1902 = vmatprep.subr.mxu0 0.0
  %1903 = vmatpush2.msra.mxu0 0.0
  %1904 = vmatprep.subr.mxu0 0.0
  %1905 = vmatpush2.msra.mxu0 0.0
  %1906 = vmatprep.subr.mxu0 0.0
  %1907 = vmatpush2.msra.mxu0 0.0
  %1908 = vmatprep.subr.mxu0 0.0
  %1909 = vmatpush2.msra.mxu0 0.0
  %1910 = vmatprep.subr.mxu0 0.0
  %1911 = vmatpush2.msra.mxu0 0.0
  %1912 = vmatprep.subr.mxu0 0.0
  %1913 = vmatpush2.msra.mxu0 0.0
  %1914 = vmatprep.subr.mxu0 0.0
  %1915 = vmatpush2.msra.mxu0 0.0
  %1916 = vmatprep.subr.mxu0 0.0
  %1917 = vmatpush2.msra.mxu0 0.0
  %1918 = vmatprep.subr.mxu0 0.0
  %1919 = vmatpush2.msra.mxu0 0.0
  %1920 = vmatprep.subr.mxu0 0.0
  %1921 = vmatpush2.msra.mxu0 0.0
  %1922 = vmatprep.subr.mxu0 0.0
  %1923 = vmatpush2.msra.mxu0 0.0
  %1924 = vmatprep.subr.mxu0 0.0
  %1925 = vmatpush2.msra.mxu0 0.0
  %1926 = vmatprep.mubr.f32.mxu0 0.0
  %1927 = vmatmul.mubr.f32.gmra.mxu0 %v1860
  %v1928 = vpop.f32.mrf.mxu0
  %v1929 = vadd.f32 0.0, %v1928
  %v1930 = vpop.f32.mrf.mxu0
  %1931 = vdwg.mxu0
  %v1932 = vadd.f32 %v1848, %v1929
  %s1933 = scalar_lea.vmem %s13, 64
  %v1934 = vld [vmem:[%s1933] sm:$0xff]
  %v1935 = vld [vmem:[%s1933 + $0x8] sm:$0xff]
  %v1936 = vld [vmem:[%s1933 + $0x10] sm:$0xff]
  %v1937 = vld [vmem:[%s1933 + $0x18] sm:$0xff]
  %v1938 = vld [vmem:[%s1933 + $0x20] sm:$0xff]
  %v1939 = vld [vmem:[%s1933 + $0x28] sm:$0xff]
  %v1940 = vld [vmem:[%s1933 + $0x30] sm:$0xff]
  %v1941 = vld [vmem:[%s1933 + $0x38] sm:$0xff]
  %v1942 = vrot.slane %v1847, 1
  %1943 = vrot.lane.b32.xlu0 %v1942, 64
  %v1944 = vpop.permute.xlu0 %1943
  %v1945 = vsel %vm1571, %v1944, 0
  %1947 = vmatprep.subr.mxu0 0.0
  %1948 = vmatpush1.msra.mxu0 0.0
  %1949 = vmatprep.subr.mxu0 0.0
  %1950 = vmatpush1.msra.mxu0 0.0
  %1951 = vmatprep.subr.mxu0 0.0
  %1952 = vmatpush1.msra.mxu0 0.0
  %1953 = vmatprep.subr.mxu0 0.0
  %1954 = vmatpush1.msra.mxu0 0.0
  %1955 = vmatprep.subr.mxu0 0.0
  %1956 = vmatpush1.msra.mxu0 0.0
  %1957 = vmatprep.subr.mxu0 0.0
  %1958 = vmatpush1.msra.mxu0 0.0
  %1959 = vmatprep.subr.mxu0 0.0
  %1960 = vmatpush1.msra.mxu0 0.0
  %1961 = vmatprep.subr.mxu0 0.0
  %1962 = vmatpush1.msra.mxu0 0.0
  %1963 = vmatprep.subr.mxu0 0.0
  %1964 = vmatpush1.msra.mxu0 %v1941
  %1965 = vmatprep.subr.mxu0 0.0
  %1966 = vmatpush1.msra.mxu0 %v1940
  %1967 = vmatprep.subr.mxu0 0.0
  %1968 = vmatpush1.msra.mxu0 %v1939
  %1969 = vmatprep.subr.mxu0 0.0
  %1970 = vmatpush1.msra.mxu0 %v1938
  %1971 = vmatprep.subr.mxu0 0.0
  %1972 = vmatpush1.msra.mxu0 %v1937
  %1973 = vmatprep.subr.mxu0 0.0
  %1974 = vmatpush1.msra.mxu0 %v1936
  %1975 = vmatprep.subr.mxu0 0.0
  %1976 = vmatpush1.msra.mxu0 %v1935
  %1977 = vmatprep.subr.mxu0 0.0
  %1978 = vmatpush1.msra.mxu0 %v1934
  %1979 = vmatprep.subr.mxu0 0.0
  %1980 = vmatpush2.msra.mxu0 0.0
  %1981 = vmatprep.subr.mxu0 0.0
  %1982 = vmatpush2.msra.mxu0 0.0
  %1983 = vmatprep.subr.mxu0 0.0
  %1984 = vmatpush2.msra.mxu0 0.0
  %1985 = vmatprep.subr.mxu0 0.0
  %1986 = vmatpush2.msra.mxu0 0.0
  %1987 = vmatprep.subr.mxu0 0.0
  %1988 = vmatpush2.msra.mxu0 0.0
  %1989 = vmatprep.subr.mxu0 0.0
  %1990 = vmatpush2.msra.mxu0 0.0
  %1991 = vmatprep.subr.mxu0 0.0
  %1992 = vmatpush2.msra.mxu0 0.0
  %1993 = vmatprep.subr.mxu0 0.0
  %1994 = vmatpush2.msra.mxu0 0.0
  %1995 = vmatprep.subr.mxu0 0.0
  %1996 = vmatpush2.msra.mxu0 0.0
  %1997 = vmatprep.subr.mxu0 0.0
  %1998 = vmatpush2.msra.mxu0 0.0
  %1999 = vmatprep.subr.mxu0 0.0
  %2000 = vmatpush2.msra.mxu0 0.0
  %2001 = vmatprep.subr.mxu0 0.0
  %2002 = vmatpush2.msra.mxu0 0.0
  %2003 = vmatprep.subr.mxu0 0.0
  %2004 = vmatpush2.msra.mxu0 0.0
  %2005 = vmatprep.subr.mxu0 0.0
  %2006 = vmatpush2.msra.mxu0 0.0
  %2007 = vmatprep.subr.mxu0 0.0
  %2008 = vmatpush2.msra.mxu0 0.0
  %2009 = vmatprep.subr.mxu0 0.0
  %2010 = vmatpush2.msra.mxu0 0.0
  %2011 = vmatprep.mubr.f32.mxu0 0.0
  %2012 = vmatmul.mubr.f32.gmra.mxu0 %v1945
  %v2013 = vpop.f32.mrf.mxu0
  %v2014 = vadd.f32 0.0, %v2013
  %v2015 = vpop.f32.mrf.mxu0
  %2016 = vdwg.mxu0
  %v2017 = vadd.f32 %v1932, %v2014
  %s2018 = scalar_lea.vmem %s13, 128
  %v2019 = vld [vmem:[%s2018] sm:$0xff]
  %v2020 = vld [vmem:[%s2018 + $0x8] sm:$0xff]
  %v2021 = vld [vmem:[%s2018 + $0x10] sm:$0xff]
  %v2022 = vld [vmem:[%s2018 + $0x18] sm:$0xff]
  %v2023 = vld [vmem:[%s2018 + $0x20] sm:$0xff]
  %v2024 = vld [vmem:[%s2018 + $0x28] sm:$0xff]
  %v2025 = vld [vmem:[%s2018 + $0x30] sm:$0xff]
  %v2026 = vld [vmem:[%s2018 + $0x38] sm:$0xff]
  %v2027 = vrot.slane %v1847, 2
  %2028 = vrot.lane.b32.xlu0 %v2027, 64
  %v2029 = vpop.permute.xlu0 %2028
  %v2030 = vsel %vm1571, %v2029, 0
  %2032 = vmatprep.subr.mxu0 0.0
  %2033 = vmatpush1.msra.mxu0 0.0
  %2034 = vmatprep.subr.mxu0 0.0
  %2035 = vmatpush1.msra.mxu0 0.0
  %2036 = vmatprep.subr.mxu0 0.0
  %2037 = vmatpush1.msra.mxu0 0.0
  %2038 = vmatprep.subr.mxu0 0.0
  %2039 = vmatpush1.msra.mxu0 0.0
  %2040 = vmatprep.subr.mxu0 0.0
  %2041 = vmatpush1.msra.mxu0 0.0
  %2042 = vmatprep.subr.mxu0 0.0
  %2043 = vmatpush1.msra.mxu0 0.0
  %2044 = vmatprep.subr.mxu0 0.0
  %2045 = vmatpush1.msra.mxu0 0.0
  %2046 = vmatprep.subr.mxu0 0.0
  %2047 = vmatpush1.msra.mxu0 0.0
  %2048 = vmatprep.subr.mxu0 0.0
  %2049 = vmatpush1.msra.mxu0 %v2026
  %2050 = vmatprep.subr.mxu0 0.0
  %2051 = vmatpush1.msra.mxu0 %v2025
  %2052 = vmatprep.subr.mxu0 0.0
  %2053 = vmatpush1.msra.mxu0 %v2024
  %2054 = vmatprep.subr.mxu0 0.0
  %2055 = vmatpush1.msra.mxu0 %v2023
  %2056 = vmatprep.subr.mxu0 0.0
  %2057 = vmatpush1.msra.mxu0 %v2022
  %2058 = vmatprep.subr.mxu0 0.0
  %2059 = vmatpush1.msra.mxu0 %v2021
  %2060 = vmatprep.subr.mxu0 0.0
  %2061 = vmatpush1.msra.mxu0 %v2020
  %2062 = vmatprep.subr.mxu0 0.0
  %2063 = vmatpush1.msra.mxu0 %v2019
  %2064 = vmatprep.subr.mxu0 0.0
  %2065 = vmatpush2.msra.mxu0 0.0
  %2066 = vmatprep.subr.mxu0 0.0
  %2067 = vmatpush2.msra.mxu0 0.0
  %2068 = vmatprep.subr.mxu0 0.0
  %2069 = vmatpush2.msra.mxu0 0.0
  %2070 = vmatprep.subr.mxu0 0.0
  %2071 = vmatpush2.msra.mxu0 0.0
  %2072 = vmatprep.subr.mxu0 0.0
  %2073 = vmatpush2.msra.mxu0 0.0
  %2074 = vmatprep.subr.mxu0 0.0
  %2075 = vmatpush2.msra.mxu0 0.0
  %2076 = vmatprep.subr.mxu0 0.0
  %2077 = vmatpush2.msra.mxu0 0.0
  %2078 = vmatprep.subr.mxu0 0.0
  %2079 = vmatpush2.msra.mxu0 0.0
  %2080 = vmatprep.subr.mxu0 0.0
  %2081 = vmatpush2.msra.mxu0 0.0
  %2082 = vmatprep.subr.mxu0 0.0
  %2083 = vmatpush2.msra.mxu0 0.0
  %2084 = vmatprep.subr.mxu0 0.0
  %2085 = vmatpush2.msra.mxu0 0.0
  %2086 = vmatprep.subr.mxu0 0.0
  %2087 = vmatpush2.msra.mxu0 0.0
  %2088 = vmatprep.subr.mxu0 0.0
  %2089 = vmatpush2.msra.mxu0 0.0
  %2090 = vmatprep.subr.mxu0 0.0
  %2091 = vmatpush2.msra.mxu0 0.0
  %2092 = vmatprep.subr.mxu0 0.0
  %2093 = vmatpush2.msra.mxu0 0.0
  %2094 = vmatprep.subr.mxu0 0.0
  %2095 = vmatpush2.msra.mxu0 0.0
  %2096 = vmatprep.mubr.f32.mxu0 0.0
  %2097 = vmatmul.mubr.f32.gmra.mxu0 %v2030
  %v2098 = vpop.f32.mrf.mxu0
  %v2099 = vadd.f32 0.0, %v2098
  %v2100 = vpop.f32.mrf.mxu0
  %2101 = vdwg.mxu0
  %v2102 = vadd.f32 %v2017, %v2099
  %s2103 = scalar_lea.vmem %s13, 192
  %v2104 = vld [vmem:[%s2103] sm:$0xff]
  %v2105 = vld [vmem:[%s2103 + $0x8] sm:$0xff]
  %v2106 = vld [vmem:[%s2103 + $0x10] sm:$0xff]
  %v2107 = vld [vmem:[%s2103 + $0x18] sm:$0xff]
  %v2108 = vld [vmem:[%s2103 + $0x20] sm:$0xff]
  %v2109 = vld [vmem:[%s2103 + $0x28] sm:$0xff]
  %v2110 = vld [vmem:[%s2103 + $0x30] sm:$0xff]
  %v2111 = vld [vmem:[%s2103 + $0x38] sm:$0xff]
  %v2112 = vrot.slane %v1847, 3
  %2113 = vrot.lane.b32.xlu0 %v2112, 64
  %v2114 = vpop.permute.xlu0 %2113
  %v2115 = vsel %vm1571, %v2114, 0
  %2117 = vmatprep.subr.mxu0 0.0
  %2118 = vmatpush1.msra.mxu0 0.0
  %2119 = vmatprep.subr.mxu0 0.0
  %2120 = vmatpush1.msra.mxu0 0.0
  %2121 = vmatprep.subr.mxu0 0.0
  %2122 = vmatpush1.msra.mxu0 0.0
  %2123 = vmatprep.subr.mxu0 0.0
  %2124 = vmatpush1.msra.mxu0 0.0
  %2125 = vmatprep.subr.mxu0 0.0
  %2126 = vmatpush1.msra.mxu0 0.0
  %2127 = vmatprep.subr.mxu0 0.0
  %2128 = vmatpush1.msra.mxu0 0.0
  %2129 = vmatprep.subr.mxu0 0.0
  %2130 = vmatpush1.msra.mxu0 0.0
  %2131 = vmatprep.subr.mxu0 0.0
  %2132 = vmatpush1.msra.mxu0 0.0
  %2133 = vmatprep.subr.mxu0 0.0
  %2134 = vmatpush1.msra.mxu0 %v2111
  %2135 = vmatprep.subr.mxu0 0.0
  %2136 = vmatpush1.msra.mxu0 %v2110
  %2137 = vmatprep.subr.mxu0 0.0
  %2138 = vmatpush1.msra.mxu0 %v2109
  %2139 = vmatprep.subr.mxu0 0.0
  %2140 = vmatpush1.msra.mxu0 %v2108
  %2141 = vmatprep.subr.mxu0 0.0
  %2142 = vmatpush1.msra.mxu0 %v2107
  %2143 = vmatprep.subr.mxu0 0.0
  %2144 = vmatpush1.msra.mxu0 %v2106
  %2145 = vmatprep.subr.mxu0 0.0
  %2146 = vmatpush1.msra.mxu0 %v2105
  %2147 = vmatprep.subr.mxu0 0.0
  %2148 = vmatpush1.msra.mxu0 %v2104
  %2149 = vmatprep.subr.mxu0 0.0
  %2150 = vmatpush2.msra.mxu0 0.0
  %2151 = vmatprep.subr.mxu0 0.0
  %2152 = vmatpush2.msra.mxu0 0.0
  %2153 = vmatprep.subr.mxu0 0.0
  %2154 = vmatpush2.msra.mxu0 0.0
  %2155 = vmatprep.subr.mxu0 0.0
  %2156 = vmatpush2.msra.mxu0 0.0
  %2157 = vmatprep.subr.mxu0 0.0
  %2158 = vmatpush2.msra.mxu0 0.0
  %2159 = vmatprep.subr.mxu0 0.0
  %2160 = vmatpush2.msra.mxu0 0.0
  %2161 = vmatprep.subr.mxu0 0.0
  %2162 = vmatpush2.msra.mxu0 0.0
  %2163 = vmatprep.subr.mxu0 0.0
  %2164 = vmatpush2.msra.mxu0 0.0
  %2165 = vmatprep.subr.mxu0 0.0
  %2166 = vmatpush2.msra.mxu0 0.0
  %2167 = vmatprep.subr.mxu0 0.0
  %2168 = vmatpush2.msra.mxu0 0.0
  %2169 = vmatprep.subr.mxu0 0.0
  %2170 = vmatpush2.msra.mxu0 0.0
  %2171 = vmatprep.subr.mxu0 0.0
  %2172 = vmatpush2.msra.mxu0 0.0
  %2173 = vmatprep.subr.mxu0 0.0
  %2174 = vmatpush2.msra.mxu0 0.0
  %2175 = vmatprep.subr.mxu0 0.0
  %2176 = vmatpush2.msra.mxu0 0.0
  %2177 = vmatprep.subr.mxu0 0.0
  %2178 = vmatpush2.msra.mxu0 0.0
  %2179 = vmatprep.subr.mxu0 0.0
  %2180 = vmatpush2.msra.mxu0 0.0
  %2181 = vmatprep.mubr.f32.mxu0 0.0
  %2182 = vmatmul.mubr.f32.gmra.mxu0 %v2115
  %v2183 = vpop.f32.mrf.mxu0
  %v2184 = vadd.f32 0.0, %v2183
  %v2185 = vpop.f32.mrf.mxu0
  %2186 = vdwg.mxu0
  %v2187 = vadd.f32 %v2102, %v2184
  %s2188 = scalar_lea.vmem %s13, 256
  %v2189 = vld [vmem:[%s2188] sm:$0xff]
  %v2190 = vld [vmem:[%s2188 + $0x8] sm:$0xff]
  %v2191 = vld [vmem:[%s2188 + $0x10] sm:$0xff]
  %v2192 = vld [vmem:[%s2188 + $0x18] sm:$0xff]
  %v2193 = vld [vmem:[%s2188 + $0x20] sm:$0xff]
  %v2194 = vld [vmem:[%s2188 + $0x28] sm:$0xff]
  %v2195 = vld [vmem:[%s2188 + $0x30] sm:$0xff]
  %v2196 = vld [vmem:[%s2188 + $0x38] sm:$0xff]
  %v2197 = vrot.slane %v1847, 4
  %2198 = vrot.lane.b32.xlu0 %v2197, 64
  %v2199 = vpop.permute.xlu0 %2198
  %v2200 = vsel %vm1571, %v2199, 0
  %2202 = vmatprep.subr.mxu0 0.0
  %2203 = vmatpush1.msra.mxu0 0.0
  %2204 = vmatprep.subr.mxu0 0.0
  %2205 = vmatpush1.msra.mxu0 0.0
  %2206 = vmatprep.subr.mxu0 0.0
  %2207 = vmatpush1.msra.mxu0 0.0
  %2208 = vmatprep.subr.mxu0 0.0
  %2209 = vmatpush1.msra.mxu0 0.0
  %2210 = vmatprep.subr.mxu0 0.0
  %2211 = vmatpush1.msra.mxu0 0.0
  %2212 = vmatprep.subr.mxu0 0.0
  %2213 = vmatpush1.msra.mxu0 0.0
  %2214 = vmatprep.subr.mxu0 0.0
  %2215 = vmatpush1.msra.mxu0 0.0
  %2216 = vmatprep.subr.mxu0 0.0
  %2217 = vmatpush1.msra.mxu0 0.0
  %2218 = vmatprep.subr.mxu0 0.0
  %2219 = vmatpush1.msra.mxu0 %v2196
  %2220 = vmatprep.subr.mxu0 0.0
  %2221 = vmatpush1.msra.mxu0 %v2195
  %2222 = vmatprep.subr.mxu0 0.0
  %2223 = vmatpush1.msra.mxu0 %v2194
  %2224 = vmatprep.subr.mxu0 0.0
  %2225 = vmatpush1.msra.mxu0 %v2193
  %2226 = vmatprep.subr.mxu0 0.0
  %2227 = vmatpush1.msra.mxu0 %v2192
  %2228 = vmatprep.subr.mxu0 0.0
  %2229 = vmatpush1.msra.mxu0 %v2191
  %2230 = vmatprep.subr.mxu0 0.0
  %2231 = vmatpush1.msra.mxu0 %v2190
  %2232 = vmatprep.subr.mxu0 0.0
  %2233 = vmatpush1.msra.mxu0 %v2189
  %2234 = vmatprep.subr.mxu0 0.0
  %2235 = vmatpush2.msra.mxu0 0.0
  %2236 = vmatprep.subr.mxu0 0.0
  %2237 = vmatpush2.msra.mxu0 0.0
  %2238 = vmatprep.subr.mxu0 0.0
  %2239 = vmatpush2.msra.mxu0 0.0
  %2240 = vmatprep.subr.mxu0 0.0
  %2241 = vmatpush2.msra.mxu0 0.0
  %2242 = vmatprep.subr.mxu0 0.0
  %2243 = vmatpush2.msra.mxu0 0.0
  %2244 = vmatprep.subr.mxu0 0.0
  %2245 = vmatpush2.msra.mxu0 0.0
  %2246 = vmatprep.subr.mxu0 0.0
  %2247 = vmatpush2.msra.mxu0 0.0
  %2248 = vmatprep.subr.mxu0 0.0
  %2249 = vmatpush2.msra.mxu0 0.0
  %2250 = vmatprep.subr.mxu0 0.0
  %2251 = vmatpush2.msra.mxu0 0.0
  %2252 = vmatprep.subr.mxu0 0.0
  %2253 = vmatpush2.msra.mxu0 0.0
  %2254 = vmatprep.subr.mxu0 0.0
  %2255 = vmatpush2.msra.mxu0 0.0
  %2256 = vmatprep.subr.mxu0 0.0
  %2257 = vmatpush2.msra.mxu0 0.0
  %2258 = vmatprep.subr.mxu0 0.0
  %2259 = vmatpush2.msra.mxu0 0.0
  %2260 = vmatprep.subr.mxu0 0.0
  %2261 = vmatpush2.msra.mxu0 0.0
  %2262 = vmatprep.subr.mxu0 0.0
  %2263 = vmatpush2.msra.mxu0 0.0
  %2264 = vmatprep.subr.mxu0 0.0
  %2265 = vmatpush2.msra.mxu0 0.0
  %2266 = vmatprep.mubr.f32.mxu0 0.0
  %2267 = vmatmul.mubr.f32.gmra.mxu0 %v2200
  %v2268 = vpop.f32.mrf.mxu0
  %v2269 = vadd.f32 0.0, %v2268
  %v2270 = vpop.f32.mrf.mxu0
  %2271 = vdwg.mxu0
  %v2272 = vadd.f32 %v2187, %v2269
  %v2273 = vld [vmem:[%s15] sm:$0xff]
  %v2274 = vld [vmem:[%s15 + $0x8] sm:$0xff]
  %v2275 = vld [vmem:[%s15 + $0x10] sm:$0xff]
  %v2276 = vld [vmem:[%s15 + $0x18] sm:$0xff]
  %v2277 = vld [vmem:[%s16] sm:$0x1]
  %vm2278 = vcmask 261120
  %v2280 = vsel %vm2278, %v2272, 0
  %2282 = vmatprep.subr.mxu0 0.0
  %2283 = vmatpush1.msra.mxu0 0.0
  %2284 = vmatprep.subr.mxu0 0.0
  %2285 = vmatpush1.msra.mxu0 0.0
  %2286 = vmatprep.subr.mxu0 0.0
  %2287 = vmatpush1.msra.mxu0 0.0
  %2288 = vmatprep.subr.mxu0 0.0
  %2289 = vmatpush1.msra.mxu0 0.0
  %2290 = vmatprep.subr.mxu0 0.0
  %2291 = vmatpush1.msra.mxu0 0.0
  %2292 = vmatprep.subr.mxu0 0.0
  %2293 = vmatpush1.msra.mxu0 0.0
  %2294 = vmatprep.subr.mxu0 0.0
  %2295 = vmatpush1.msra.mxu0 0.0
  %2296 = vmatprep.subr.mxu0 0.0
  %2297 = vmatpush1.msra.mxu0 0.0
  %2298 = vmatprep.subr.mxu0 0.0
  %2299 = vmatpush1.msra.mxu0 0.0
  %2300 = vmatprep.subr.mxu0 0.0
  %2301 = vmatpush1.msra.mxu0 0.0
  %2302 = vmatprep.subr.mxu0 0.0
  %2303 = vmatpush1.msra.mxu0 0.0
  %2304 = vmatprep.subr.mxu0 0.0
  %2305 = vmatpush1.msra.mxu0 0.0
  %2306 = vmatprep.subr.mxu0 0.0
  %2307 = vmatpush1.msra.mxu0 %v2276
  %2308 = vmatprep.subr.mxu0 0.0
  %2309 = vmatpush1.msra.mxu0 %v2275
  %2310 = vmatprep.subr.mxu0 0.0
  %2311 = vmatpush1.msra.mxu0 %v2274
  %2312 = vmatprep.subr.mxu0 0.0
  %2313 = vmatpush1.msra.mxu0 %v2273
  %2314 = vmatprep.subr.mxu0 0.0
  %2315 = vmatpush2.msra.mxu0 0.0
  %2316 = vmatprep.subr.mxu0 0.0
  %2317 = vmatpush2.msra.mxu0 0.0
  %2318 = vmatprep.subr.mxu0 0.0
  %2319 = vmatpush2.msra.mxu0 0.0
  %2320 = vmatprep.subr.mxu0 0.0
  %2321 = vmatpush2.msra.mxu0 0.0
  %2322 = vmatprep.subr.mxu0 0.0
  %2323 = vmatpush2.msra.mxu0 0.0
  %2324 = vmatprep.subr.mxu0 0.0
  %2325 = vmatpush2.msra.mxu0 0.0
  %2326 = vmatprep.subr.mxu0 0.0
  %2327 = vmatpush2.msra.mxu0 0.0
  %2328 = vmatprep.subr.mxu0 0.0
  %2329 = vmatpush2.msra.mxu0 0.0
  %2330 = vmatprep.subr.mxu0 0.0
  %2331 = vmatpush2.msra.mxu0 0.0
  %2332 = vmatprep.subr.mxu0 0.0
  %2333 = vmatpush2.msra.mxu0 0.0
  %2334 = vmatprep.subr.mxu0 0.0
  %2335 = vmatpush2.msra.mxu0 0.0
  %2336 = vmatprep.subr.mxu0 0.0
  %2337 = vmatpush2.msra.mxu0 0.0
  %2338 = vmatprep.subr.mxu0 0.0
  %2339 = vmatpush2.msra.mxu0 0.0
  %2340 = vmatprep.subr.mxu0 0.0
  %2341 = vmatpush2.msra.mxu0 0.0
  %2342 = vmatprep.subr.mxu0 0.0
  %2343 = vmatpush2.msra.mxu0 0.0
  %2344 = vmatprep.subr.mxu0 0.0
  %2345 = vmatpush2.msra.mxu0 0.0
  %2346 = vmatprep.mubr.f32.mxu0 0.0
  %2347 = vmatmul.mubr.f32.gmra.mxu0 %v2280
  %v2348 = vpop.f32.mrf.mxu0
  %v2349 = vadd.f32 %v2277, %v2348
  %v2350 = vpop.f32.mrf.mxu0
  %2351 = vdwg.mxu0
  %vm2352 = vcmask 8192
  %v2353 = vsel %vm2352, %v2349, -inf
  %2354 = vmax.xlane.f32.xlu0 %v2353
  %v2355 = vpop.xlane.xlu0 %2354
  %v2356 = vsub.f32 %v2349, %v2355
  %v2357 = vmul.f32 %v2356, 1.442695
  %v2358 = vpow.pop %v2357
  %v2359 = vsel %vm2352, %v2358, 0.0
  %2360 = vadd.xlane.f32.xlu0 %v2359
  %v2361 = vpop.xlane.xlu0 %2360
  %v2362 = vrcp.pop %v2361
  %v2363 = vmul.f32 %v2358, %v2362
  %2364 = vst.msk [vmem:[%s17] sm:$0x1] %vm2352, %v2363
  %s2365 = scalar_lea.vmem %s0, 8
  %v2366 = vld [vmem:[%s2365] sm:$0x1f]
  %v2368 = vsel %vm73, %v2366, 0
  %2370 = vmatprep.subr.mxu0 0.0
  %2371 = vmatpush1.msra.mxu0 0.0
  %2372 = vmatprep.subr.mxu0 0.0
  %2373 = vmatpush1.msra.mxu0 0.0
  %2374 = vmatprep.subr.mxu0 0.0
  %2375 = vmatpush1.msra.mxu0 0.0
  %2376 = vmatprep.subr.mxu0 0.0
  %2377 = vmatpush1.msra.mxu0 0.0
  %2378 = vmatprep.subr.mxu0 0.0
  %2379 = vmatpush1.msra.mxu0 0.0
  %2380 = vmatprep.subr.mxu0 0.0
  %2381 = vmatpush1.msra.mxu0 0.0
  %2382 = vmatprep.subr.mxu0 0.0
  %2383 = vmatpush1.msra.mxu0 0.0
  %2384 = vmatprep.subr.mxu0 0.0
  %2385 = vmatpush1.msra.mxu0 0.0
  %2386 = vmatprep.subr.mxu0 0.0
  %2387 = vmatpush1.msra.mxu0 0.0
  %2388 = vmatprep.subr.mxu0 0.0
  %2389 = vmatpush1.msra.mxu0 0.0
  %2390 = vmatprep.subr.mxu0 0.0
  %2391 = vmatpush1.msra.mxu0 0.0
  %2392 = vmatprep.subr.mxu0 0.0
  %2393 = vmatpush1.msra.mxu0 0.0
  %2394 = vmatprep.subr.mxu0 0.0
  %2395 = vmatpush1.msra.mxu0 0.0
  %2396 = vmatprep.subr.mxu0 0.0
  %2397 = vmatpush1.msra.mxu0 0.0
  %2398 = vmatprep.subr.mxu0 0.0
  %2399 = vmatpush1.msra.mxu0 0.0
  %2400 = vmatprep.subr.mxu0 0.0
  %2401 = vmatpush1.msra.mxu0 %v2368
  %2402 = vmatprep.subr.mxu0 0.0
  %2403 = vmatpush2.msra.mxu0 0.0
  %2404 = vmatprep.subr.mxu0 0.0
  %2405 = vmatpush2.msra.mxu0 0.0
  %2406 = vmatprep.subr.mxu0 0.0
  %2407 = vmatpush2.msra.mxu0 0.0
  %2408 = vmatprep.subr.mxu0 0.0
  %2409 = vmatpush2.msra.mxu0 0.0
  %2410 = vmatprep.subr.mxu0 0.0
  %2411 = vmatpush2.msra.mxu0 0.0
  %2412 = vmatprep.subr.mxu0 0.0
  %2413 = vmatpush2.msra.mxu0 0.0
  %2414 = vmatprep.subr.mxu0 0.0
  %2415 = vmatpush2.msra.mxu0 0.0
  %2416 = vmatprep.subr.mxu0 0.0
  %2417 = vmatpush2.msra.mxu0 0.0
  %2418 = vmatprep.subr.mxu0 0.0
  %2419 = vmatpush2.msra.mxu0 0.0
  %2420 = vmatprep.subr.mxu0 0.0
  %2421 = vmatpush2.msra.mxu0 0.0
  %2422 = vmatprep.subr.mxu0 0.0
  %2423 = vmatpush2.msra.mxu0 0.0
  %2424 = vmatprep.subr.mxu0 0.0
  %2425 = vmatpush2.msra.mxu0 0.0
  %2426 = vmatprep.subr.mxu0 0.0
  %2427 = vmatpush2.msra.mxu0 0.0
  %2428 = vmatprep.subr.mxu0 0.0
  %2429 = vmatpush2.msra.mxu0 0.0
  %2430 = vmatprep.subr.mxu0 0.0
  %2431 = vmatpush2.msra.mxu0 0.0
  %2432 = vmatprep.subr.mxu0 0.0
  %2433 = vmatpush2.msra.mxu0 0.0
  %2434 = vmatprep.mubr.f32.mxu0 0.0
  %2435 = vmatmul.mubr.f32.gmra.mxu0 %v71
  %v2436 = vpop.f32.mrf.mxu0
  %v2437 = vadd.f32 0.0, %v2436
  %v2438 = vpop.f32.mrf.mxu0
  %2439 = vdwg.mxu0
  %2440 = vmatprep.subr.mxu0 0.0
  %2441 = vmatpush1.msra.mxu0 0.0
  %2442 = vmatprep.subr.mxu0 0.0
  %2443 = vmatpush1.msra.mxu0 0.0
  %2444 = vmatprep.subr.mxu0 0.0
  %2445 = vmatpush1.msra.mxu0 0.0
  %2446 = vmatprep.subr.mxu0 0.0
  %2447 = vmatpush1.msra.mxu0 0.0
  %2448 = vmatprep.subr.mxu0 0.0
  %2449 = vmatpush1.msra.mxu0 0.0
  %2450 = vmatprep.subr.mxu0 0.0
  %2451 = vmatpush1.msra.mxu0 0.0
  %2452 = vmatprep.subr.mxu0 0.0
  %2453 = vmatpush1.msra.mxu0 0.0
  %2454 = vmatprep.subr.mxu0 0.0
  %2455 = vmatpush1.msra.mxu0 0.0
  %2456 = vmatprep.subr.mxu0 0.0
  %2457 = vmatpush1.msra.mxu0 0.0
  %2458 = vmatprep.subr.mxu0 0.0
  %2459 = vmatpush1.msra.mxu0 0.0
  %2460 = vmatprep.subr.mxu0 0.0
  %2461 = vmatpush1.msra.mxu0 0.0
  %2462 = vmatprep.subr.mxu0 0.0
  %2463 = vmatpush1.msra.mxu0 0.0
  %2464 = vmatprep.subr.mxu0 0.0
  %2465 = vmatpush1.msra.mxu0 0.0
  %2466 = vmatprep.subr.mxu0 0.0
  %2467 = vmatpush1.msra.mxu0 0.0
  %2468 = vmatprep.subr.mxu0 0.0
  %2469 = vmatpush1.msra.mxu0 0.0
  %2470 = vmatprep.subr.mxu0 0.0
  %2471 = vmatpush1.msra.mxu0 %v2368
  %2472 = vmatprep.subr.mxu0 0.0
  %2473 = vmatpush2.msra.mxu0 0.0
  %2474 = vmatprep.subr.mxu0 0.0
  %2475 = vmatpush2.msra.mxu0 0.0
  %2476 = vmatprep.subr.mxu0 0.0
  %2477 = vmatpush2.msra.mxu0 0.0
  %2478 = vmatprep.subr.mxu0 0.0
  %2479 = vmatpush2.msra.mxu0 0.0
  %2480 = vmatprep.subr.mxu0 0.0
  %2481 = vmatpush2.msra.mxu0 0.0
  %2482 = vmatprep.subr.mxu0 0.0
  %2483 = vmatpush2.msra.mxu0 0.0
  %2484 = vmatprep.subr.mxu0 0.0
  %2485 = vmatpush2.msra.mxu0 0.0
  %2486 = vmatprep.subr.mxu0 0.0
  %2487 = vmatpush2.msra.mxu0 0.0
  %2488 = vmatprep.subr.mxu0 0.0
  %2489 = vmatpush2.msra.mxu0 0.0
  %2490 = vmatprep.subr.mxu0 0.0
  %2491 = vmatpush2.msra.mxu0 0.0
  %2492 = vmatprep.subr.mxu0 0.0
  %2493 = vmatpush2.msra.mxu0 0.0
  %2494 = vmatprep.subr.mxu0 0.0
  %2495 = vmatpush2.msra.mxu0 0.0
  %2496 = vmatprep.subr.mxu0 0.0
  %2497 = vmatpush2.msra.mxu0 0.0
  %2498 = vmatprep.subr.mxu0 0.0
  %2499 = vmatpush2.msra.mxu0 0.0
  %2500 = vmatprep.subr.mxu0 0.0
  %2501 = vmatpush2.msra.mxu0 0.0
  %2502 = vmatprep.subr.mxu0 0.0
  %2503 = vmatpush2.msra.mxu0 0.0
  %2504 = vmatprep.mubr.f32.mxu0 0.0
  %2505 = vmatmul.mubr.f32.gmra.mxu0 %v148
  %v2506 = vpop.f32.mrf.mxu0
  %v2507 = vadd.f32 0.0, %v2506
  %v2508 = vpop.f32.mrf.mxu0
  %2509 = vdwg.mxu0
  %v2510 = vld [vmem:[%s1] sm:$0xff]
  %v2511 = vld [vmem:[%s1 + $0x8] sm:$0xff]
  %v2512 = vld [vmem:[%s1 + $0x10] sm:$0xff]
  %v2513 = vld [vmem:[%s2] sm:$0x1]
  %v2515 = vlaneseq
  %v2516 = vshrl.u32 %v2515, 7
  %v2517 = vsub.s32 0, %v2516
  %v2518 = vrot.slane %v2513, %v2517
  %v2520 = vsel %vm230, %v2366, 0
  %2522 = vmatprep.subr.mxu0 0.0
  %2523 = vmatpush1.msra.mxu0 0.0
  %2524 = vmatprep.subr.mxu0 0.0
  %2525 = vmatpush1.msra.mxu0 0.0
  %2526 = vmatprep.subr.mxu0 0.0
  %2527 = vmatpush1.msra.mxu0 0.0
  %2528 = vmatprep.subr.mxu0 0.0
  %2529 = vmatpush1.msra.mxu0 0.0
  %2530 = vmatprep.subr.mxu0 0.0
  %2531 = vmatpush1.msra.mxu0 0.0
  %2532 = vmatprep.subr.mxu0 0.0
  %2533 = vmatpush1.msra.mxu0 0.0
  %2534 = vmatprep.subr.mxu0 0.0
  %2535 = vmatpush1.msra.mxu0 0.0
  %2536 = vmatprep.subr.mxu0 0.0
  %2537 = vmatpush1.msra.mxu0 0.0
  %2538 = vmatprep.subr.mxu0 0.0
  %2539 = vmatpush1.msra.mxu0 0.0
  %2540 = vmatprep.subr.mxu0 0.0
  %2541 = vmatpush1.msra.mxu0 0.0
  %2542 = vmatprep.subr.mxu0 0.0
  %2543 = vmatpush1.msra.mxu0 0.0
  %2544 = vmatprep.subr.mxu0 0.0
  %2545 = vmatpush1.msra.mxu0 0.0
  %2546 = vmatprep.subr.mxu0 0.0
  %2547 = vmatpush1.msra.mxu0 0.0
  %2548 = vmatprep.subr.mxu0 0.0
  %2549 = vmatpush1.msra.mxu0 %v2512
  %2550 = vmatprep.subr.mxu0 0.0
  %2551 = vmatpush1.msra.mxu0 %v2511
  %2552 = vmatprep.subr.mxu0 0.0
  %2553 = vmatpush1.msra.mxu0 %v2510
  %2554 = vmatprep.subr.mxu0 0.0
  %2555 = vmatpush2.msra.mxu0 0.0
  %2556 = vmatprep.subr.mxu0 0.0
  %2557 = vmatpush2.msra.mxu0 0.0
  %2558 = vmatprep.subr.mxu0 0.0
  %2559 = vmatpush2.msra.mxu0 0.0
  %2560 = vmatprep.subr.mxu0 0.0
  %2561 = vmatpush2.msra.mxu0 0.0
  %2562 = vmatprep.subr.mxu0 0.0
  %2563 = vmatpush2.msra.mxu0 0.0
  %2564 = vmatprep.subr.mxu0 0.0
  %2565 = vmatpush2.msra.mxu0 0.0
  %2566 = vmatprep.subr.mxu0 0.0
  %2567 = vmatpush2.msra.mxu0 0.0
  %2568 = vmatprep.subr.mxu0 0.0
  %2569 = vmatpush2.msra.mxu0 0.0
  %2570 = vmatprep.subr.mxu0 0.0
  %2571 = vmatpush2.msra.mxu0 0.0
  %2572 = vmatprep.subr.mxu0 0.0
  %2573 = vmatpush2.msra.mxu0 0.0
  %2574 = vmatprep.subr.mxu0 0.0
  %2575 = vmatpush2.msra.mxu0 0.0
  %2576 = vmatprep.subr.mxu0 0.0
  %2577 = vmatpush2.msra.mxu0 0.0
  %2578 = vmatprep.subr.mxu0 0.0
  %2579 = vmatpush2.msra.mxu0 0.0
  %2580 = vmatprep.subr.mxu0 0.0
  %2581 = vmatpush2.msra.mxu0 0.0
  %2582 = vmatprep.subr.mxu0 0.0
  %2583 = vmatpush2.msra.mxu0 0.0
  %2584 = vmatprep.subr.mxu0 0.0
  %2585 = vmatpush2.msra.mxu0 0.0
  %2586 = vmatprep.mubr.f32.mxu0 0.0
  %2587 = vmatmul.mubr.f32.gmra.mxu0 %v2520
  %v2588 = vpop.f32.mrf.mxu0
  %v2589 = vadd.f32 %v2518, %v2588
  %v2590 = vpop.f32.mrf.mxu0
  %2591 = vdwg.mxu0
  %v2592 = vld [vmem:[%s3] sm:$0xff]
  %v2593 = vld [vmem:[%s3 + $0x8] sm:$0xff]
  %v2594 = vld [vmem:[%s3 + $0x10] sm:$0xff]
  %v2595 = vld [vmem:[%s306] sm:$0xff]
  %v2596 = vld [vmem:[%s306 + $0x8] sm:$0xff]
  %v2597 = vld [vmem:[%s306 + $0x10] sm:$0xff]
  %2598 = vmatprep.subr.mxu0 0.0
  %2599 = vmatpush1.msra.mxu0 0.0
  %2600 = vmatprep.subr.mxu0 0.0
  %2601 = vmatpush1.msra.mxu0 0.0
  %2602 = vmatprep.subr.mxu0 0.0
  %2603 = vmatpush1.msra.mxu0 0.0
  %2604 = vmatprep.subr.mxu0 0.0
  %2605 = vmatpush1.msra.mxu0 0.0
  %2606 = vmatprep.subr.mxu0 0.0
  %2607 = vmatpush1.msra.mxu0 0.0
  %2608 = vmatprep.subr.mxu0 0.0
  %2609 = vmatpush1.msra.mxu0 0.0
  %2610 = vmatprep.subr.mxu0 0.0
  %2611 = vmatpush1.msra.mxu0 0.0
  %2612 = vmatprep.subr.mxu0 0.0
  %2613 = vmatpush1.msra.mxu0 0.0
  %2614 = vmatprep.subr.mxu0 0.0
  %2615 = vmatpush1.msra.mxu0 0.0
  %2616 = vmatprep.subr.mxu0 0.0
  %2617 = vmatpush1.msra.mxu0 0.0
  %2618 = vmatprep.subr.mxu0 0.0
  %2619 = vmatpush1.msra.mxu0 0.0
  %2620 = vmatprep.subr.mxu0 0.0
  %2621 = vmatpush1.msra.mxu0 0.0
  %2622 = vmatprep.subr.mxu0 0.0
  %2623 = vmatpush1.msra.mxu0 0.0
  %2624 = vmatprep.subr.mxu0 0.0
  %2625 = vmatpush1.msra.mxu0 %v2597
  %2626 = vmatprep.subr.mxu0 0.0
  %2627 = vmatpush1.msra.mxu0 %v2596
  %2628 = vmatprep.subr.mxu0 0.0
  %2629 = vmatpush1.msra.mxu0 %v2595
  %2630 = vmatprep.subr.mxu0 0.0
  %2631 = vmatpush2.msra.mxu0 0.0
  %2632 = vmatprep.subr.mxu0 0.0
  %2633 = vmatpush2.msra.mxu0 0.0
  %2634 = vmatprep.subr.mxu0 0.0
  %2635 = vmatpush2.msra.mxu0 0.0
  %2636 = vmatprep.subr.mxu0 0.0
  %2637 = vmatpush2.msra.mxu0 0.0
  %2638 = vmatprep.subr.mxu0 0.0
  %2639 = vmatpush2.msra.mxu0 0.0
  %2640 = vmatprep.subr.mxu0 0.0
  %2641 = vmatpush2.msra.mxu0 0.0
  %2642 = vmatprep.subr.mxu0 0.0
  %2643 = vmatpush2.msra.mxu0 0.0
  %2644 = vmatprep.subr.mxu0 0.0
  %2645 = vmatpush2.msra.mxu0 0.0
  %2646 = vmatprep.subr.mxu0 0.0
  %2647 = vmatpush2.msra.mxu0 0.0
  %2648 = vmatprep.subr.mxu0 0.0
  %2649 = vmatpush2.msra.mxu0 0.0
  %2650 = vmatprep.subr.mxu0 0.0
  %2651 = vmatpush2.msra.mxu0 0.0
  %2652 = vmatprep.subr.mxu0 0.0
  %2653 = vmatpush2.msra.mxu0 0.0
  %2654 = vmatprep.subr.mxu0 0.0
  %2655 = vmatpush2.msra.mxu0 0.0
  %2656 = vmatprep.subr.mxu0 0.0
  %2657 = vmatpush2.msra.mxu0 0.0
  %2658 = vmatprep.subr.mxu0 0.0
  %2659 = vmatpush2.msra.mxu0 0.0
  %2660 = vmatprep.subr.mxu0 0.0
  %2661 = vmatpush2.msra.mxu0 0.0
  %2662 = vmatprep.mubr.f32.mxu0 0.0
  %2663 = vmatmul.mubr.f32.gmra.mxu0 %v2520
  %v2664 = vpop.f32.mrf.mxu0
  %v2665 = vadd.f32 0.0, %v2664
  %v2666 = vpop.f32.mrf.mxu0
  %2667 = vdwg.mxu0
  %v2669 = vsel %vm230, %v2437, 0
  %2671 = vmatprep.subr.mxu0 0.0
  %2672 = vmatpush1.msra.mxu0 0.0
  %2673 = vmatprep.subr.mxu0 0.0
  %2674 = vmatpush1.msra.mxu0 0.0
  %2675 = vmatprep.subr.mxu0 0.0
  %2676 = vmatpush1.msra.mxu0 0.0
  %2677 = vmatprep.subr.mxu0 0.0
  %2678 = vmatpush1.msra.mxu0 0.0
  %2679 = vmatprep.subr.mxu0 0.0
  %2680 = vmatpush1.msra.mxu0 0.0
  %2681 = vmatprep.subr.mxu0 0.0
  %2682 = vmatpush1.msra.mxu0 0.0
  %2683 = vmatprep.subr.mxu0 0.0
  %2684 = vmatpush1.msra.mxu0 0.0
  %2685 = vmatprep.subr.mxu0 0.0
  %2686 = vmatpush1.msra.mxu0 0.0
  %2687 = vmatprep.subr.mxu0 0.0
  %2688 = vmatpush1.msra.mxu0 0.0
  %2689 = vmatprep.subr.mxu0 0.0
  %2690 = vmatpush1.msra.mxu0 0.0
  %2691 = vmatprep.subr.mxu0 0.0
  %2692 = vmatpush1.msra.mxu0 0.0
  %2693 = vmatprep.subr.mxu0 0.0
  %2694 = vmatpush1.msra.mxu0 0.0
  %2695 = vmatprep.subr.mxu0 0.0
  %2696 = vmatpush1.msra.mxu0 0.0
  %2697 = vmatprep.subr.mxu0 0.0
  %2698 = vmatpush1.msra.mxu0 %v2594
  %2699 = vmatprep.subr.mxu0 0.0
  %2700 = vmatpush1.msra.mxu0 %v2593
  %2701 = vmatprep.subr.mxu0 0.0
  %2702 = vmatpush1.msra.mxu0 %v2592
  %2703 = vmatprep.subr.mxu0 0.0
  %2704 = vmatpush2.msra.mxu0 0.0
  %2705 = vmatprep.subr.mxu0 0.0
  %2706 = vmatpush2.msra.mxu0 0.0
  %2707 = vmatprep.subr.mxu0 0.0
  %2708 = vmatpush2.msra.mxu0 0.0
  %2709 = vmatprep.subr.mxu0 0.0
  %2710 = vmatpush2.msra.mxu0 0.0
  %2711 = vmatprep.subr.mxu0 0.0
  %2712 = vmatpush2.msra.mxu0 0.0
  %2713 = vmatprep.subr.mxu0 0.0
  %2714 = vmatpush2.msra.mxu0 0.0
  %2715 = vmatprep.subr.mxu0 0.0
  %2716 = vmatpush2.msra.mxu0 0.0
  %2717 = vmatprep.subr.mxu0 0.0
  %2718 = vmatpush2.msra.mxu0 0.0
  %2719 = vmatprep.subr.mxu0 0.0
  %2720 = vmatpush2.msra.mxu0 0.0
  %2721 = vmatprep.subr.mxu0 0.0
  %2722 = vmatpush2.msra.mxu0 0.0
  %2723 = vmatprep.subr.mxu0 0.0
  %2724 = vmatpush2.msra.mxu0 0.0
  %2725 = vmatprep.subr.mxu0 0.0
  %2726 = vmatpush2.msra.mxu0 0.0
  %2727 = vmatprep.subr.mxu0 0.0
  %2728 = vmatpush2.msra.mxu0 0.0
  %2729 = vmatprep.subr.mxu0 0.0
  %2730 = vmatpush2.msra.mxu0 0.0
  %2731 = vmatprep.subr.mxu0 0.0
  %2732 = vmatpush2.msra.mxu0 0.0
  %2733 = vmatprep.subr.mxu0 0.0
  %2734 = vmatpush2.msra.mxu0 0.0
  %2735 = vmatprep.mubr.f32.mxu0 0.0
  %2736 = vmatmul.mubr.f32.gmra.mxu0 %v2669
  %v2737 = vpop.f32.mrf.mxu0
  %v2738 = vadd.f32 %v2665, %v2737
  %v2739 = vpop.f32.mrf.mxu0
  %2740 = vdwg.mxu0
  %v2741 = vld [vmem:[%s453] sm:$0xff]
  %v2742 = vld [vmem:[%s453 + $0x8] sm:$0xff]
  %v2743 = vld [vmem:[%s453 + $0x10] sm:$0xff]
  %v2745 = vsel %vm230, %v2507, 0
  %2747 = vmatprep.subr.mxu0 0.0
  %2748 = vmatpush1.msra.mxu0 0.0
  %2749 = vmatprep.subr.mxu0 0.0
  %2750 = vmatpush1.msra.mxu0 0.0
  %2751 = vmatprep.subr.mxu0 0.0
  %2752 = vmatpush1.msra.mxu0 0.0
  %2753 = vmatprep.subr.mxu0 0.0
  %2754 = vmatpush1.msra.mxu0 0.0
  %2755 = vmatprep.subr.mxu0 0.0
  %2756 = vmatpush1.msra.mxu0 0.0
  %2757 = vmatprep.subr.mxu0 0.0
  %2758 = vmatpush1.msra.mxu0 0.0
  %2759 = vmatprep.subr.mxu0 0.0
  %2760 = vmatpush1.msra.mxu0 0.0
  %2761 = vmatprep.subr.mxu0 0.0
  %2762 = vmatpush1.msra.mxu0 0.0
  %2763 = vmatprep.subr.mxu0 0.0
  %2764 = vmatpush1.msra.mxu0 0.0
  %2765 = vmatprep.subr.mxu0 0.0
  %2766 = vmatpush1.msra.mxu0 0.0
  %2767 = vmatprep.subr.mxu0 0.0
  %2768 = vmatpush1.msra.mxu0 0.0
  %2769 = vmatprep.subr.mxu0 0.0
  %2770 = vmatpush1.msra.mxu0 0.0
  %2771 = vmatprep.subr.mxu0 0.0
  %2772 = vmatpush1.msra.mxu0 0.0
  %2773 = vmatprep.subr.mxu0 0.0
  %2774 = vmatpush1.msra.mxu0 %v2743
  %2775 = vmatprep.subr.mxu0 0.0
  %2776 = vmatpush1.msra.mxu0 %v2742
  %2777 = vmatprep.subr.mxu0 0.0
  %2778 = vmatpush1.msra.mxu0 %v2741
  %2779 = vmatprep.subr.mxu0 0.0
  %2780 = vmatpush2.msra.mxu0 0.0
  %2781 = vmatprep.subr.mxu0 0.0
  %2782 = vmatpush2.msra.mxu0 0.0
  %2783 = vmatprep.subr.mxu0 0.0
  %2784 = vmatpush2.msra.mxu0 0.0
  %2785 = vmatprep.subr.mxu0 0.0
  %2786 = vmatpush2.msra.mxu0 0.0
  %2787 = vmatprep.subr.mxu0 0.0
  %2788 = vmatpush2.msra.mxu0 0.0
  %2789 = vmatprep.subr.mxu0 0.0
  %2790 = vmatpush2.msra.mxu0 0.0
  %2791 = vmatprep.subr.mxu0 0.0
  %2792 = vmatpush2.msra.mxu0 0.0
  %2793 = vmatprep.subr.mxu0 0.0
  %2794 = vmatpush2.msra.mxu0 0.0
  %2795 = vmatprep.subr.mxu0 0.0
  %2796 = vmatpush2.msra.mxu0 0.0
  %2797 = vmatprep.subr.mxu0 0.0
  %2798 = vmatpush2.msra.mxu0 0.0
  %2799 = vmatprep.subr.mxu0 0.0
  %2800 = vmatpush2.msra.mxu0 0.0
  %2801 = vmatprep.subr.mxu0 0.0
  %2802 = vmatpush2.msra.mxu0 0.0
  %2803 = vmatprep.subr.mxu0 0.0
  %2804 = vmatpush2.msra.mxu0 0.0
  %2805 = vmatprep.subr.mxu0 0.0
  %2806 = vmatpush2.msra.mxu0 0.0
  %2807 = vmatprep.subr.mxu0 0.0
  %2808 = vmatpush2.msra.mxu0 0.0
  %2809 = vmatprep.subr.mxu0 0.0
  %2810 = vmatpush2.msra.mxu0 0.0
  %2811 = vmatprep.mubr.f32.mxu0 0.0
  %2812 = vmatmul.mubr.f32.gmra.mxu0 %v2745
  %v2813 = vpop.f32.mrf.mxu0
  %v2814 = vadd.f32 0.0, %v2813
  %v2815 = vpop.f32.mrf.mxu0
  %2816 = vdwg.mxu0
  %v2817 = vadd.f32 %v2738, %v2814
  %v2818 = vld [vmem:[%s4] sm:$0x1]
  %v2820 = vlaneseq
  %v2821 = vshrl.u32 %v2820, 7
  %v2822 = vsub.s32 0, %v2821
  %v2823 = vrot.slane %v2818, %v2822
  %v2825 = vadd.f32 %v2817, %v2823
  %v2827 = vsel %vm73, %v2589, 0
  %2829 = vmatprep.subr.mxu0 0.0
  %2830 = vmatpush1.msra.mxu0 0.0
  %2831 = vmatprep.subr.mxu0 0.0
  %2832 = vmatpush1.msra.mxu0 0.0
  %2833 = vmatprep.subr.mxu0 0.0
  %2834 = vmatpush1.msra.mxu0 0.0
  %2835 = vmatprep.subr.mxu0 0.0
  %2836 = vmatpush1.msra.mxu0 0.0
  %2837 = vmatprep.subr.mxu0 0.0
  %2838 = vmatpush1.msra.mxu0 0.0
  %2839 = vmatprep.subr.mxu0 0.0
  %2840 = vmatpush1.msra.mxu0 0.0
  %2841 = vmatprep.subr.mxu0 0.0
  %2842 = vmatpush1.msra.mxu0 0.0
  %2843 = vmatprep.subr.mxu0 0.0
  %2844 = vmatpush1.msra.mxu0 0.0
  %2845 = vmatprep.subr.mxu0 0.0
  %2846 = vmatpush1.msra.mxu0 0.0
  %2847 = vmatprep.subr.mxu0 0.0
  %2848 = vmatpush1.msra.mxu0 0.0
  %2849 = vmatprep.subr.mxu0 0.0
  %2850 = vmatpush1.msra.mxu0 0.0
  %2851 = vmatprep.subr.mxu0 0.0
  %2852 = vmatpush1.msra.mxu0 0.0
  %2853 = vmatprep.subr.mxu0 0.0
  %2854 = vmatpush1.msra.mxu0 0.0
  %2855 = vmatprep.subr.mxu0 0.0
  %2856 = vmatpush1.msra.mxu0 0.0
  %2857 = vmatprep.subr.mxu0 0.0
  %2858 = vmatpush1.msra.mxu0 0.0
  %2859 = vmatprep.subr.mxu0 0.0
  %2860 = vmatpush1.msra.mxu0 %v2827
  %2861 = vmatprep.subr.mxu0 0.0
  %2862 = vmatpush2.msra.mxu0 0.0
  %2863 = vmatprep.subr.mxu0 0.0
  %2864 = vmatpush2.msra.mxu0 0.0
  %2865 = vmatprep.subr.mxu0 0.0
  %2866 = vmatpush2.msra.mxu0 0.0
  %2867 = vmatprep.subr.mxu0 0.0
  %2868 = vmatpush2.msra.mxu0 0.0
  %2869 = vmatprep.subr.mxu0 0.0
  %2870 = vmatpush2.msra.mxu0 0.0
  %2871 = vmatprep.subr.mxu0 0.0
  %2872 = vmatpush2.msra.mxu0 0.0
  %2873 = vmatprep.subr.mxu0 0.0
  %2874 = vmatpush2.msra.mxu0 0.0
  %2875 = vmatprep.subr.mxu0 0.0
  %2876 = vmatpush2.msra.mxu0 0.0
  %2877 = vmatprep.subr.mxu0 0.0
  %2878 = vmatpush2.msra.mxu0 0.0
  %2879 = vmatprep.subr.mxu0 0.0
  %2880 = vmatpush2.msra.mxu0 0.0
  %2881 = vmatprep.subr.mxu0 0.0
  %2882 = vmatpush2.msra.mxu0 0.0
  %2883 = vmatprep.subr.mxu0 0.0
  %2884 = vmatpush2.msra.mxu0 0.0
  %2885 = vmatprep.subr.mxu0 0.0
  %2886 = vmatpush2.msra.mxu0 0.0
  %2887 = vmatprep.subr.mxu0 0.0
  %2888 = vmatpush2.msra.mxu0 0.0
  %2889 = vmatprep.subr.mxu0 0.0
  %2890 = vmatpush2.msra.mxu0 0.0
  %2891 = vmatprep.subr.mxu0 0.0
  %2892 = vmatpush2.msra.mxu0 0.0
  %2893 = vmatprep.mubr.f32.mxu0 0.0
  %2894 = vmatmul.mubr.f32.gmra.mxu0 %v71
  %v2895 = vpop.f32.mrf.mxu0
  %v2896 = vadd.f32 0.0, %v2895
  %v2897 = vpop.f32.mrf.mxu0
  %2898 = vdwg.mxu0
  %2899 = vmatprep.subr.mxu0 0.0
  %2900 = vmatpush1.msra.mxu0 0.0
  %2901 = vmatprep.subr.mxu0 0.0
  %2902 = vmatpush1.msra.mxu0 0.0
  %2903 = vmatprep.subr.mxu0 0.0
  %2904 = vmatpush1.msra.mxu0 0.0
  %2905 = vmatprep.subr.mxu0 0.0
  %2906 = vmatpush1.msra.mxu0 0.0
  %2907 = vmatprep.subr.mxu0 0.0
  %2908 = vmatpush1.msra.mxu0 0.0
  %2909 = vmatprep.subr.mxu0 0.0
  %2910 = vmatpush1.msra.mxu0 0.0
  %2911 = vmatprep.subr.mxu0 0.0
  %2912 = vmatpush1.msra.mxu0 0.0
  %2913 = vmatprep.subr.mxu0 0.0
  %2914 = vmatpush1.msra.mxu0 0.0
  %2915 = vmatprep.subr.mxu0 0.0
  %2916 = vmatpush1.msra.mxu0 0.0
  %2917 = vmatprep.subr.mxu0 0.0
  %2918 = vmatpush1.msra.mxu0 0.0
  %2919 = vmatprep.subr.mxu0 0.0
  %2920 = vmatpush1.msra.mxu0 0.0
  %2921 = vmatprep.subr.mxu0 0.0
  %2922 = vmatpush1.msra.mxu0 0.0
  %2923 = vmatprep.subr.mxu0 0.0
  %2924 = vmatpush1.msra.mxu0 0.0
  %2925 = vmatprep.subr.mxu0 0.0
  %2926 = vmatpush1.msra.mxu0 0.0
  %2927 = vmatprep.subr.mxu0 0.0
  %2928 = vmatpush1.msra.mxu0 0.0
  %2929 = vmatprep.subr.mxu0 0.0
  %2930 = vmatpush1.msra.mxu0 %v2827
  %2931 = vmatprep.subr.mxu0 0.0
  %2932 = vmatpush2.msra.mxu0 0.0
  %2933 = vmatprep.subr.mxu0 0.0
  %2934 = vmatpush2.msra.mxu0 0.0
  %2935 = vmatprep.subr.mxu0 0.0
  %2936 = vmatpush2.msra.mxu0 0.0
  %2937 = vmatprep.subr.mxu0 0.0
  %2938 = vmatpush2.msra.mxu0 0.0
  %2939 = vmatprep.subr.mxu0 0.0
  %2940 = vmatpush2.msra.mxu0 0.0
  %2941 = vmatprep.subr.mxu0 0.0
  %2942 = vmatpush2.msra.mxu0 0.0
  %2943 = vmatprep.subr.mxu0 0.0
  %2944 = vmatpush2.msra.mxu0 0.0
  %2945 = vmatprep.subr.mxu0 0.0
  %2946 = vmatpush2.msra.mxu0 0.0
  %2947 = vmatprep.subr.mxu0 0.0
  %2948 = vmatpush2.msra.mxu0 0.0
  %2949 = vmatprep.subr.mxu0 0.0
  %2950 = vmatpush2.msra.mxu0 0.0
  %2951 = vmatprep.subr.mxu0 0.0
  %2952 = vmatpush2.msra.mxu0 0.0
  %2953 = vmatprep.subr.mxu0 0.0
  %2954 = vmatpush2.msra.mxu0 0.0
  %2955 = vmatprep.subr.mxu0 0.0
  %2956 = vmatpush2.msra.mxu0 0.0
  %2957 = vmatprep.subr.mxu0 0.0
  %2958 = vmatpush2.msra.mxu0 0.0
  %2959 = vmatprep.subr.mxu0 0.0
  %2960 = vmatpush2.msra.mxu0 0.0
  %2961 = vmatprep.subr.mxu0 0.0
  %2962 = vmatpush2.msra.mxu0 0.0
  %2963 = vmatprep.mubr.f32.mxu0 0.0
  %2964 = vmatmul.mubr.f32.gmra.mxu0 %v148
  %v2965 = vpop.f32.mrf.mxu0
  %v2966 = vadd.f32 0.0, %v2965
  %v2967 = vpop.f32.mrf.mxu0
  %2968 = vdwg.mxu0
  %v2970 = vsel %vm73, %v2825, 0
  %2972 = vmatprep.subr.mxu0 0.0
  %2973 = vmatpush1.msra.mxu0 0.0
  %2974 = vmatprep.subr.mxu0 0.0
  %2975 = vmatpush1.msra.mxu0 0.0
  %2976 = vmatprep.subr.mxu0 0.0
  %2977 = vmatpush1.msra.mxu0 0.0
  %2978 = vmatprep.subr.mxu0 0.0
  %2979 = vmatpush1.msra.mxu0 0.0
  %2980 = vmatprep.subr.mxu0 0.0
  %2981 = vmatpush1.msra.mxu0 0.0
  %2982 = vmatprep.subr.mxu0 0.0
  %2983 = vmatpush1.msra.mxu0 0.0
  %2984 = vmatprep.subr.mxu0 0.0
  %2985 = vmatpush1.msra.mxu0 0.0
  %2986 = vmatprep.subr.mxu0 0.0
  %2987 = vmatpush1.msra.mxu0 0.0
  %2988 = vmatprep.subr.mxu0 0.0
  %2989 = vmatpush1.msra.mxu0 0.0
  %2990 = vmatprep.subr.mxu0 0.0
  %2991 = vmatpush1.msra.mxu0 0.0
  %2992 = vmatprep.subr.mxu0 0.0
  %2993 = vmatpush1.msra.mxu0 0.0
  %2994 = vmatprep.subr.mxu0 0.0
  %2995 = vmatpush1.msra.mxu0 0.0
  %2996 = vmatprep.subr.mxu0 0.0
  %2997 = vmatpush1.msra.mxu0 0.0
  %2998 = vmatprep.subr.mxu0 0.0
  %2999 = vmatpush1.msra.mxu0 0.0
  %3000 = vmatprep.subr.mxu0 0.0
  %3001 = vmatpush1.msra.mxu0 0.0
  %3002 = vmatprep.subr.mxu0 0.0
  %3003 = vmatpush1.msra.mxu0 %v2970
  %3004 = vmatprep.subr.mxu0 0.0
  %3005 = vmatpush2.msra.mxu0 0.0
  %3006 = vmatprep.subr.mxu0 0.0
  %3007 = vmatpush2.msra.mxu0 0.0
  %3008 = vmatprep.subr.mxu0 0.0
  %3009 = vmatpush2.msra.mxu0 0.0
  %3010 = vmatprep.subr.mxu0 0.0
  %3011 = vmatpush2.msra.mxu0 0.0
  %3012 = vmatprep.subr.mxu0 0.0
  %3013 = vmatpush2.msra.mxu0 0.0
  %3014 = vmatprep.subr.mxu0 0.0
  %3015 = vmatpush2.msra.mxu0 0.0
  %3016 = vmatprep.subr.mxu0 0.0
  %3017 = vmatpush2.msra.mxu0 0.0
  %3018 = vmatprep.subr.mxu0 0.0
  %3019 = vmatpush2.msra.mxu0 0.0
  %3020 = vmatprep.subr.mxu0 0.0
  %3021 = vmatpush2.msra.mxu0 0.0
  %3022 = vmatprep.subr.mxu0 0.0
  %3023 = vmatpush2.msra.mxu0 0.0
  %3024 = vmatprep.subr.mxu0 0.0
  %3025 = vmatpush2.msra.mxu0 0.0
  %3026 = vmatprep.subr.mxu0 0.0
  %3027 = vmatpush2.msra.mxu0 0.0
  %3028 = vmatprep.subr.mxu0 0.0
  %3029 = vmatpush2.msra.mxu0 0.0
  %3030 = vmatprep.subr.mxu0 0.0
  %3031 = vmatpush2.msra.mxu0 0.0
  %3032 = vmatprep.subr.mxu0 0.0
  %3033 = vmatpush2.msra.mxu0 0.0
  %3034 = vmatprep.subr.mxu0 0.0
  %3035 = vmatpush2.msra.mxu0 0.0
  %3036 = vmatprep.mubr.f32.mxu0 0.0
  %3037 = vmatmul.mubr.f32.gmra.mxu0 %v71
  %v3038 = vpop.f32.mrf.mxu0
  %v3039 = vadd.f32 0.0, %v3038
  %v3040 = vpop.f32.mrf.mxu0
  %3041 = vdwg.mxu0
  %3042 = vmatprep.subr.mxu0 0.0
  %3043 = vmatpush1.msra.mxu0 0.0
  %3044 = vmatprep.subr.mxu0 0.0
  %3045 = vmatpush1.msra.mxu0 0.0
  %3046 = vmatprep.subr.mxu0 0.0
  %3047 = vmatpush1.msra.mxu0 0.0
  %3048 = vmatprep.subr.mxu0 0.0
  %3049 = vmatpush1.msra.mxu0 0.0
  %3050 = vmatprep.subr.mxu0 0.0
  %3051 = vmatpush1.msra.mxu0 0.0
  %3052 = vmatprep.subr.mxu0 0.0
  %3053 = vmatpush1.msra.mxu0 0.0
  %3054 = vmatprep.subr.mxu0 0.0
  %3055 = vmatpush1.msra.mxu0 0.0
  %3056 = vmatprep.subr.mxu0 0.0
  %3057 = vmatpush1.msra.mxu0 0.0
  %3058 = vmatprep.subr.mxu0 0.0
  %3059 = vmatpush1.msra.mxu0 0.0
  %3060 = vmatprep.subr.mxu0 0.0
  %3061 = vmatpush1.msra.mxu0 0.0
  %3062 = vmatprep.subr.mxu0 0.0
  %3063 = vmatpush1.msra.mxu0 0.0
  %3064 = vmatprep.subr.mxu0 0.0
  %3065 = vmatpush1.msra.mxu0 0.0
  %3066 = vmatprep.subr.mxu0 0.0
  %3067 = vmatpush1.msra.mxu0 0.0
  %3068 = vmatprep.subr.mxu0 0.0
  %3069 = vmatpush1.msra.mxu0 0.0
  %3070 = vmatprep.subr.mxu0 0.0
  %3071 = vmatpush1.msra.mxu0 0.0
  %3072 = vmatprep.subr.mxu0 0.0
  %3073 = vmatpush1.msra.mxu0 %v2970
  %3074 = vmatprep.subr.mxu0 0.0
  %3075 = vmatpush2.msra.mxu0 0.0
  %3076 = vmatprep.subr.mxu0 0.0
  %3077 = vmatpush2.msra.mxu0 0.0
  %3078 = vmatprep.subr.mxu0 0.0
  %3079 = vmatpush2.msra.mxu0 0.0
  %3080 = vmatprep.subr.mxu0 0.0
  %3081 = vmatpush2.msra.mxu0 0.0
  %3082 = vmatprep.subr.mxu0 0.0
  %3083 = vmatpush2.msra.mxu0 0.0
  %3084 = vmatprep.subr.mxu0 0.0
  %3085 = vmatpush2.msra.mxu0 0.0
  %3086 = vmatprep.subr.mxu0 0.0
  %3087 = vmatpush2.msra.mxu0 0.0
  %3088 = vmatprep.subr.mxu0 0.0
  %3089 = vmatpush2.msra.mxu0 0.0
  %3090 = vmatprep.subr.mxu0 0.0
  %3091 = vmatpush2.msra.mxu0 0.0
  %3092 = vmatprep.subr.mxu0 0.0
  %3093 = vmatpush2.msra.mxu0 0.0
  %3094 = vmatprep.subr.mxu0 0.0
  %3095 = vmatpush2.msra.mxu0 0.0
  %3096 = vmatprep.subr.mxu0 0.0
  %3097 = vmatpush2.msra.mxu0 0.0
  %3098 = vmatprep.subr.mxu0 0.0
  %3099 = vmatpush2.msra.mxu0 0.0
  %3100 = vmatprep.subr.mxu0 0.0
  %3101 = vmatpush2.msra.mxu0 0.0
  %3102 = vmatprep.subr.mxu0 0.0
  %3103 = vmatpush2.msra.mxu0 0.0
  %3104 = vmatprep.subr.mxu0 0.0
  %3105 = vmatpush2.msra.mxu0 0.0
  %3106 = vmatprep.mubr.f32.mxu0 0.0
  %3107 = vmatmul.mubr.f32.gmra.mxu0 %v148
  %v3108 = vpop.f32.mrf.mxu0
  %v3109 = vadd.f32 0.0, %v3108
  %v3110 = vpop.f32.mrf.mxu0
  %3111 = vdwg.mxu0
  %v3112 = vld [vmem:[%s5] sm:$0xff]
  %v3113 = vld [vmem:[%s5 + $0x8] sm:$0xff]
  %v3114 = vld [vmem:[%s5 + $0x10] sm:$0xff]
  %v3115 = vld [vmem:[%s5 + $0x18] sm:$0xff]
  %v3116 = vld [vmem:[%s5 + $0x20] sm:$0xff]
  %v3117 = vld [vmem:[%s5 + $0x28] sm:$0xff]
  %v3118 = vld [vmem:[%s5 + $0x30] sm:$0xff]
  %v3119 = vld [vmem:[%s5 + $0x38] sm:$0xff]
  %v3120 = vld [vmem:[%s5 + $0x40] sm:$0xff]
  %v3121 = vld [vmem:[%s5 + $0x48] sm:$0xff]
  %v3122 = vld [vmem:[%s5 + $0x50] sm:$0xff]
  %v3123 = vld [vmem:[%s5 + $0x58] sm:$0xff]
  %v3124 = vld [vmem:[%s5 + $0x60] sm:$0xff]
  %v3125 = vld [vmem:[%s5 + $0x68] sm:$0xff]
  %v3126 = vld [vmem:[%s5 + $0x70] sm:$0xff]
  %v3127 = vld [vmem:[%s5 + $0x78] sm:$0xff]
  %v3128 = vld [vmem:[%s841] sm:$0xff]
  %v3129 = vld [vmem:[%s841 + $0x8] sm:$0xff]
  %v3130 = vld [vmem:[%s841 + $0x10] sm:$0xff]
  %v3131 = vld [vmem:[%s841 + $0x18] sm:$0xff]
  %v3132 = vld [vmem:[%s841 + $0x20] sm:$0xff]
  %v3133 = vld [vmem:[%s841 + $0x28] sm:$0xff]
  %v3134 = vld [vmem:[%s841 + $0x30] sm:$0xff]
  %v3135 = vld [vmem:[%s841 + $0x38] sm:$0xff]
  %v3136 = vld [vmem:[%s841 + $0x40] sm:$0xff]
  %v3137 = vld [vmem:[%s841 + $0x48] sm:$0xff]
  %v3138 = vld [vmem:[%s841 + $0x50] sm:$0xff]
  %v3139 = vld [vmem:[%s841 + $0x58] sm:$0xff]
  %v3140 = vld [vmem:[%s841 + $0x60] sm:$0xff]
  %v3141 = vld [vmem:[%s841 + $0x68] sm:$0xff]
  %v3142 = vld [vmem:[%s841 + $0x70] sm:$0xff]
  %v3143 = vld [vmem:[%s841 + $0x78] sm:$0xff]
  %3144 = vmatprep.subr.mxu0 0.0
  %3145 = vmatpush1.msra.mxu0 %v3143
  %3146 = vmatprep.subr.mxu0 0.0
  %3147 = vmatpush1.msra.mxu0 %v3142
  %3148 = vmatprep.subr.mxu0 0.0
  %3149 = vmatpush1.msra.mxu0 %v3141
  %3150 = vmatprep.subr.mxu0 0.0
  %3151 = vmatpush1.msra.mxu0 %v3140
  %3152 = vmatprep.subr.mxu0 0.0
  %3153 = vmatpush1.msra.mxu0 %v3139
  %3154 = vmatprep.subr.mxu0 0.0
  %3155 = vmatpush1.msra.mxu0 %v3138
  %3156 = vmatprep.subr.mxu0 0.0
  %3157 = vmatpush1.msra.mxu0 %v3137
  %3158 = vmatprep.subr.mxu0 0.0
  %3159 = vmatpush1.msra.mxu0 %v3136
  %3160 = vmatprep.subr.mxu0 0.0
  %3161 = vmatpush1.msra.mxu0 %v3135
  %3162 = vmatprep.subr.mxu0 0.0
  %3163 = vmatpush1.msra.mxu0 %v3134
  %3164 = vmatprep.subr.mxu0 0.0
  %3165 = vmatpush1.msra.mxu0 %v3133
  %3166 = vmatprep.subr.mxu0 0.0
  %3167 = vmatpush1.msra.mxu0 %v3132
  %3168 = vmatprep.subr.mxu0 0.0
  %3169 = vmatpush1.msra.mxu0 %v3131
  %3170 = vmatprep.subr.mxu0 0.0
  %3171 = vmatpush1.msra.mxu0 %v3130
  %3172 = vmatprep.subr.mxu0 0.0
  %3173 = vmatpush1.msra.mxu0 %v3129
  %3174 = vmatprep.subr.mxu0 0.0
  %3175 = vmatpush1.msra.mxu0 %v3128
  %3176 = vmatprep.subr.mxu0 0.0
  %3177 = vmatpush2.msra.mxu0 0.0
  %3178 = vmatprep.subr.mxu0 0.0
  %3179 = vmatpush2.msra.mxu0 0.0
  %3180 = vmatprep.subr.mxu0 0.0
  %3181 = vmatpush2.msra.mxu0 0.0
  %3182 = vmatprep.subr.mxu0 0.0
  %3183 = vmatpush2.msra.mxu0 0.0
  %3184 = vmatprep.subr.mxu0 0.0
  %3185 = vmatpush2.msra.mxu0 0.0
  %3186 = vmatprep.subr.mxu0 0.0
  %3187 = vmatpush2.msra.mxu0 0.0
  %3188 = vmatprep.subr.mxu0 0.0
  %3189 = vmatpush2.msra.mxu0 0.0
  %3190 = vmatprep.subr.mxu0 0.0
  %3191 = vmatpush2.msra.mxu0 0.0
  %3192 = vmatprep.subr.mxu0 0.0
  %3193 = vmatpush2.msra.mxu0 0.0
  %3194 = vmatprep.subr.mxu0 0.0
  %3195 = vmatpush2.msra.mxu0 0.0
  %3196 = vmatprep.subr.mxu0 0.0
  %3197 = vmatpush2.msra.mxu0 0.0
  %3198 = vmatprep.subr.mxu0 0.0
  %3199 = vmatpush2.msra.mxu0 0.0
  %3200 = vmatprep.subr.mxu0 0.0
  %3201 = vmatpush2.msra.mxu0 0.0
  %3202 = vmatprep.subr.mxu0 0.0
  %3203 = vmatpush2.msra.mxu0 0.0
  %3204 = vmatprep.subr.mxu0 0.0
  %3205 = vmatpush2.msra.mxu0 0.0
  %3206 = vmatprep.subr.mxu0 0.0
  %3207 = vmatpush2.msra.mxu0 0.0
  %3208 = vmatprep.mubr.f32.mxu0 0.0
  %3209 = vmatmul.mubr.f32.gmra.mxu0 %v2825
  %v3210 = vpop.f32.mrf.mxu0
  %v3211 = vadd.f32 0.0, %v3210
  %v3212 = vpop.f32.mrf.mxu0
  %3213 = vdwg.mxu0
  %3214 = vmatprep.subr.mxu0 0.0
  %3215 = vmatpush1.msra.mxu0 %v3127
  %3216 = vmatprep.subr.mxu0 0.0
  %3217 = vmatpush1.msra.mxu0 %v3126
  %3218 = vmatprep.subr.mxu0 0.0
  %3219 = vmatpush1.msra.mxu0 %v3125
  %3220 = vmatprep.subr.mxu0 0.0
  %3221 = vmatpush1.msra.mxu0 %v3124
  %3222 = vmatprep.subr.mxu0 0.0
  %3223 = vmatpush1.msra.mxu0 %v3123
  %3224 = vmatprep.subr.mxu0 0.0
  %3225 = vmatpush1.msra.mxu0 %v3122
  %3226 = vmatprep.subr.mxu0 0.0
  %3227 = vmatpush1.msra.mxu0 %v3121
  %3228 = vmatprep.subr.mxu0 0.0
  %3229 = vmatpush1.msra.mxu0 %v3120
  %3230 = vmatprep.subr.mxu0 0.0
  %3231 = vmatpush1.msra.mxu0 %v3119
  %3232 = vmatprep.subr.mxu0 0.0
  %3233 = vmatpush1.msra.mxu0 %v3118
  %3234 = vmatprep.subr.mxu0 0.0
  %3235 = vmatpush1.msra.mxu0 %v3117
  %3236 = vmatprep.subr.mxu0 0.0
  %3237 = vmatpush1.msra.mxu0 %v3116
  %3238 = vmatprep.subr.mxu0 0.0
  %3239 = vmatpush1.msra.mxu0 %v3115
  %3240 = vmatprep.subr.mxu0 0.0
  %3241 = vmatpush1.msra.mxu0 %v3114
  %3242 = vmatprep.subr.mxu0 0.0
  %3243 = vmatpush1.msra.mxu0 %v3113
  %3244 = vmatprep.subr.mxu0 0.0
  %3245 = vmatpush1.msra.mxu0 %v3112
  %3246 = vmatprep.subr.mxu0 0.0
  %3247 = vmatpush2.msra.mxu0 0.0
  %3248 = vmatprep.subr.mxu0 0.0
  %3249 = vmatpush2.msra.mxu0 0.0
  %3250 = vmatprep.subr.mxu0 0.0
  %3251 = vmatpush2.msra.mxu0 0.0
  %3252 = vmatprep.subr.mxu0 0.0
  %3253 = vmatpush2.msra.mxu0 0.0
  %3254 = vmatprep.subr.mxu0 0.0
  %3255 = vmatpush2.msra.mxu0 0.0
  %3256 = vmatprep.subr.mxu0 0.0
  %3257 = vmatpush2.msra.mxu0 0.0
  %3258 = vmatprep.subr.mxu0 0.0
  %3259 = vmatpush2.msra.mxu0 0.0
  %3260 = vmatprep.subr.mxu0 0.0
  %3261 = vmatpush2.msra.mxu0 0.0
  %3262 = vmatprep.subr.mxu0 0.0
  %3263 = vmatpush2.msra.mxu0 0.0
  %3264 = vmatprep.subr.mxu0 0.0
  %3265 = vmatpush2.msra.mxu0 0.0
  %3266 = vmatprep.subr.mxu0 0.0
  %3267 = vmatpush2.msra.mxu0 0.0
  %3268 = vmatprep.subr.mxu0 0.0
  %3269 = vmatpush2.msra.mxu0 0.0
  %3270 = vmatprep.subr.mxu0 0.0
  %3271 = vmatpush2.msra.mxu0 0.0
  %3272 = vmatprep.subr.mxu0 0.0
  %3273 = vmatpush2.msra.mxu0 0.0
  %3274 = vmatprep.subr.mxu0 0.0
  %3275 = vmatpush2.msra.mxu0 0.0
  %3276 = vmatprep.subr.mxu0 0.0
  %3277 = vmatpush2.msra.mxu0 0.0
  %3278 = vmatprep.mubr.f32.mxu0 0.0
  %3279 = vmatmul.mubr.f32.gmra.mxu0 %v2589
  %v3280 = vpop.f32.mrf.mxu0
  %v3281 = vadd.f32 %v3211, %v3280
  %v3282 = vpop.f32.mrf.mxu0
  %3283 = vdwg.mxu0
  %v3284 = vld [vmem:[%s6] sm:$0x1]
  %v3286 = vlaneseq
  %v3287 = vshrl.u32 %v3286, 7
  %v3288 = vsub.s32 0, %v3287
  %v3289 = vrot.slane %v3284, %v3288
  %v3291 = vadd.f32 %v3281, %v3289
  %v3292 = vld [vmem:[%s7] sm:$0xff]
  %v3293 = vld [vmem:[%s7 + $0x8] sm:$0xff]
  %v3294 = vld [vmem:[%s7 + $0x10] sm:$0xff]
  %v3295 = vld [vmem:[%s7 + $0x18] sm:$0xff]
  %v3296 = vld [vmem:[%s7 + $0x20] sm:$0xff]
  %v3297 = vld [vmem:[%s7 + $0x28] sm:$0xff]
  %v3298 = vld [vmem:[%s7 + $0x30] sm:$0xff]
  %v3299 = vld [vmem:[%s7 + $0x38] sm:$0xff]
  %v3300 = vld [vmem:[%s7 + $0x40] sm:$0xff]
  %v3301 = vld [vmem:[%s7 + $0x48] sm:$0xff]
  %v3302 = vld [vmem:[%s7 + $0x50] sm:$0xff]
  %v3303 = vld [vmem:[%s7 + $0x58] sm:$0xff]
  %v3304 = vld [vmem:[%s7 + $0x60] sm:$0xff]
  %v3305 = vld [vmem:[%s7 + $0x68] sm:$0xff]
  %v3306 = vld [vmem:[%s7 + $0x70] sm:$0xff]
  %v3307 = vld [vmem:[%s7 + $0x78] sm:$0xff]
  %v3308 = vld [vmem:[%s8] sm:$0xff]
  %v3309 = vld [vmem:[%s8 + $0x8] sm:$0xff]
  %v3310 = vld [vmem:[%s8 + $0x10] sm:$0xff]
  %v3311 = vld [vmem:[%s8 + $0x18] sm:$0xff]
  %v3312 = vld [vmem:[%s8 + $0x20] sm:$0xff]
  %v3313 = vld [vmem:[%s8 + $0x28] sm:$0xff]
  %v3314 = vld [vmem:[%s8 + $0x30] sm:$0xff]
  %v3315 = vld [vmem:[%s8 + $0x38] sm:$0xff]
  %v3316 = vld [vmem:[%s8 + $0x40] sm:$0xff]
  %v3317 = vld [vmem:[%s8 + $0x48] sm:$0xff]
  %v3318 = vld [vmem:[%s8 + $0x50] sm:$0xff]
  %v3319 = vld [vmem:[%s8 + $0x58] sm:$0xff]
  %v3320 = vld [vmem:[%s8 + $0x60] sm:$0xff]
  %v3321 = vld [vmem:[%s8 + $0x68] sm:$0xff]
  %v3322 = vld [vmem:[%s8 + $0x70] sm:$0xff]
  %v3323 = vld [vmem:[%s8 + $0x78] sm:$0xff]
  %3324 = vmatprep.subr.mxu0 0.0
  %3325 = vmatpush1.msra.mxu0 %v3323
  %3326 = vmatprep.subr.mxu0 0.0
  %3327 = vmatpush1.msra.mxu0 %v3322
  %3328 = vmatprep.subr.mxu0 0.0
  %3329 = vmatpush1.msra.mxu0 %v3321
  %3330 = vmatprep.subr.mxu0 0.0
  %3331 = vmatpush1.msra.mxu0 %v3320
  %3332 = vmatprep.subr.mxu0 0.0
  %3333 = vmatpush1.msra.mxu0 %v3319
  %3334 = vmatprep.subr.mxu0 0.0
  %3335 = vmatpush1.msra.mxu0 %v3318
  %3336 = vmatprep.subr.mxu0 0.0
  %3337 = vmatpush1.msra.mxu0 %v3317
  %3338 = vmatprep.subr.mxu0 0.0
  %3339 = vmatpush1.msra.mxu0 %v3316
  %3340 = vmatprep.subr.mxu0 0.0
  %3341 = vmatpush1.msra.mxu0 %v3315
  %3342 = vmatprep.subr.mxu0 0.0
  %3343 = vmatpush1.msra.mxu0 %v3314
  %3344 = vmatprep.subr.mxu0 0.0
  %3345 = vmatpush1.msra.mxu0 %v3313
  %3346 = vmatprep.subr.mxu0 0.0
  %3347 = vmatpush1.msra.mxu0 %v3312
  %3348 = vmatprep.subr.mxu0 0.0
  %3349 = vmatpush1.msra.mxu0 %v3311
  %3350 = vmatprep.subr.mxu0 0.0
  %3351 = vmatpush1.msra.mxu0 %v3310
  %3352 = vmatprep.subr.mxu0 0.0
  %3353 = vmatpush1.msra.mxu0 %v3309
  %3354 = vmatprep.subr.mxu0 0.0
  %3355 = vmatpush1.msra.mxu0 %v3308
  %3356 = vmatprep.subr.mxu0 0.0
  %3357 = vmatpush2.msra.mxu0 0.0
  %3358 = vmatprep.subr.mxu0 0.0
  %3359 = vmatpush2.msra.mxu0 0.0
  %3360 = vmatprep.subr.mxu0 0.0
  %3361 = vmatpush2.msra.mxu0 0.0
  %3362 = vmatprep.subr.mxu0 0.0
  %3363 = vmatpush2.msra.mxu0 0.0
  %3364 = vmatprep.subr.mxu0 0.0
  %3365 = vmatpush2.msra.mxu0 0.0
  %3366 = vmatprep.subr.mxu0 0.0
  %3367 = vmatpush2.msra.mxu0 0.0
  %3368 = vmatprep.subr.mxu0 0.0
  %3369 = vmatpush2.msra.mxu0 0.0
  %3370 = vmatprep.subr.mxu0 0.0
  %3371 = vmatpush2.msra.mxu0 0.0
  %3372 = vmatprep.subr.mxu0 0.0
  %3373 = vmatpush2.msra.mxu0 0.0
  %3374 = vmatprep.subr.mxu0 0.0
  %3375 = vmatpush2.msra.mxu0 0.0
  %3376 = vmatprep.subr.mxu0 0.0
  %3377 = vmatpush2.msra.mxu0 0.0
  %3378 = vmatprep.subr.mxu0 0.0
  %3379 = vmatpush2.msra.mxu0 0.0
  %3380 = vmatprep.subr.mxu0 0.0
  %3381 = vmatpush2.msra.mxu0 0.0
  %3382 = vmatprep.subr.mxu0 0.0
  %3383 = vmatpush2.msra.mxu0 0.0
  %3384 = vmatprep.subr.mxu0 0.0
  %3385 = vmatpush2.msra.mxu0 0.0
  %3386 = vmatprep.subr.mxu0 0.0
  %3387 = vmatpush2.msra.mxu0 0.0
  %3388 = vmatprep.mubr.f32.mxu0 0.0
  %3389 = vmatmul.mubr.f32.gmra.mxu0 %v3039
  %v3390 = vpop.f32.mrf.mxu0
  %v3391 = vadd.f32 0.0, %v3390
  %v3392 = vpop.f32.mrf.mxu0
  %3393 = vdwg.mxu0
  %3394 = vmatprep.subr.mxu0 0.0
  %3395 = vmatpush1.msra.mxu0 %v3307
  %3396 = vmatprep.subr.mxu0 0.0
  %3397 = vmatpush1.msra.mxu0 %v3306
  %3398 = vmatprep.subr.mxu0 0.0
  %3399 = vmatpush1.msra.mxu0 %v3305
  %3400 = vmatprep.subr.mxu0 0.0
  %3401 = vmatpush1.msra.mxu0 %v3304
  %3402 = vmatprep.subr.mxu0 0.0
  %3403 = vmatpush1.msra.mxu0 %v3303
  %3404 = vmatprep.subr.mxu0 0.0
  %3405 = vmatpush1.msra.mxu0 %v3302
  %3406 = vmatprep.subr.mxu0 0.0
  %3407 = vmatpush1.msra.mxu0 %v3301
  %3408 = vmatprep.subr.mxu0 0.0
  %3409 = vmatpush1.msra.mxu0 %v3300
  %3410 = vmatprep.subr.mxu0 0.0
  %3411 = vmatpush1.msra.mxu0 %v3299
  %3412 = vmatprep.subr.mxu0 0.0
  %3413 = vmatpush1.msra.mxu0 %v3298
  %3414 = vmatprep.subr.mxu0 0.0
  %3415 = vmatpush1.msra.mxu0 %v3297
  %3416 = vmatprep.subr.mxu0 0.0
  %3417 = vmatpush1.msra.mxu0 %v3296
  %3418 = vmatprep.subr.mxu0 0.0
  %3419 = vmatpush1.msra.mxu0 %v3295
  %3420 = vmatprep.subr.mxu0 0.0
  %3421 = vmatpush1.msra.mxu0 %v3294
  %3422 = vmatprep.subr.mxu0 0.0
  %3423 = vmatpush1.msra.mxu0 %v3293
  %3424 = vmatprep.subr.mxu0 0.0
  %3425 = vmatpush1.msra.mxu0 %v3292
  %3426 = vmatprep.subr.mxu0 0.0
  %3427 = vmatpush2.msra.mxu0 0.0
  %3428 = vmatprep.subr.mxu0 0.0
  %3429 = vmatpush2.msra.mxu0 0.0
  %3430 = vmatprep.subr.mxu0 0.0
  %3431 = vmatpush2.msra.mxu0 0.0
  %3432 = vmatprep.subr.mxu0 0.0
  %3433 = vmatpush2.msra.mxu0 0.0
  %3434 = vmatprep.subr.mxu0 0.0
  %3435 = vmatpush2.msra.mxu0 0.0
  %3436 = vmatprep.subr.mxu0 0.0
  %3437 = vmatpush2.msra.mxu0 0.0
  %3438 = vmatprep.subr.mxu0 0.0
  %3439 = vmatpush2.msra.mxu0 0.0
  %3440 = vmatprep.subr.mxu0 0.0
  %3441 = vmatpush2.msra.mxu0 0.0
  %3442 = vmatprep.subr.mxu0 0.0
  %3443 = vmatpush2.msra.mxu0 0.0
  %3444 = vmatprep.subr.mxu0 0.0
  %3445 = vmatpush2.msra.mxu0 0.0
  %3446 = vmatprep.subr.mxu0 0.0
  %3447 = vmatpush2.msra.mxu0 0.0
  %3448 = vmatprep.subr.mxu0 0.0
  %3449 = vmatpush2.msra.mxu0 0.0
  %3450 = vmatprep.subr.mxu0 0.0
  %3451 = vmatpush2.msra.mxu0 0.0
  %3452 = vmatprep.subr.mxu0 0.0
  %3453 = vmatpush2.msra.mxu0 0.0
  %3454 = vmatprep.subr.mxu0 0.0
  %3455 = vmatpush2.msra.mxu0 0.0
  %3456 = vmatprep.subr.mxu0 0.0
  %3457 = vmatpush2.msra.mxu0 0.0
  %3458 = vmatprep.mubr.f32.mxu0 0.0
  %3459 = vmatmul.mubr.f32.gmra.mxu0 %v2896
  %v3460 = vpop.f32.mrf.mxu0
  %v3461 = vadd.f32 %v3391, %v3460
  %v3462 = vpop.f32.mrf.mxu0
  %3463 = vdwg.mxu0
  %v3464 = vld [vmem:[%s1178] sm:$0xff]
  %v3465 = vld [vmem:[%s1178 + $0x8] sm:$0xff]
  %v3466 = vld [vmem:[%s1178 + $0x10] sm:$0xff]
  %v3467 = vld [vmem:[%s1178 + $0x18] sm:$0xff]
  %v3468 = vld [vmem:[%s1178 + $0x20] sm:$0xff]
  %v3469 = vld [vmem:[%s1178 + $0x28] sm:$0xff]
  %v3470 = vld [vmem:[%s1178 + $0x30] sm:$0xff]
  %v3471 = vld [vmem:[%s1178 + $0x38] sm:$0xff]
  %v3472 = vld [vmem:[%s1178 + $0x40] sm:$0xff]
  %v3473 = vld [vmem:[%s1178 + $0x48] sm:$0xff]
  %v3474 = vld [vmem:[%s1178 + $0x50] sm:$0xff]
  %v3475 = vld [vmem:[%s1178 + $0x58] sm:$0xff]
  %v3476 = vld [vmem:[%s1178 + $0x60] sm:$0xff]
  %v3477 = vld [vmem:[%s1178 + $0x68] sm:$0xff]
  %v3478 = vld [vmem:[%s1178 + $0x70] sm:$0xff]
  %v3479 = vld [vmem:[%s1178 + $0x78] sm:$0xff]
  %3480 = vmatprep.subr.mxu0 0.0
  %3481 = vmatpush1.msra.mxu0 %v3479
  %3482 = vmatprep.subr.mxu0 0.0
  %3483 = vmatpush1.msra.mxu0 %v3478
  %3484 = vmatprep.subr.mxu0 0.0
  %3485 = vmatpush1.msra.mxu0 %v3477
  %3486 = vmatprep.subr.mxu0 0.0
  %3487 = vmatpush1.msra.mxu0 %v3476
  %3488 = vmatprep.subr.mxu0 0.0
  %3489 = vmatpush1.msra.mxu0 %v3475
  %3490 = vmatprep.subr.mxu0 0.0
  %3491 = vmatpush1.msra.mxu0 %v3474
  %3492 = vmatprep.subr.mxu0 0.0
  %3493 = vmatpush1.msra.mxu0 %v3473
  %3494 = vmatprep.subr.mxu0 0.0
  %3495 = vmatpush1.msra.mxu0 %v3472
  %3496 = vmatprep.subr.mxu0 0.0
  %3497 = vmatpush1.msra.mxu0 %v3471
  %3498 = vmatprep.subr.mxu0 0.0
  %3499 = vmatpush1.msra.mxu0 %v3470
  %3500 = vmatprep.subr.mxu0 0.0
  %3501 = vmatpush1.msra.mxu0 %v3469
  %3502 = vmatprep.subr.mxu0 0.0
  %3503 = vmatpush1.msra.mxu0 %v3468
  %3504 = vmatprep.subr.mxu0 0.0
  %3505 = vmatpush1.msra.mxu0 %v3467
  %3506 = vmatprep.subr.mxu0 0.0
  %3507 = vmatpush1.msra.mxu0 %v3466
  %3508 = vmatprep.subr.mxu0 0.0
  %3509 = vmatpush1.msra.mxu0 %v3465
  %3510 = vmatprep.subr.mxu0 0.0
  %3511 = vmatpush1.msra.mxu0 %v3464
  %3512 = vmatprep.subr.mxu0 0.0
  %3513 = vmatpush2.msra.mxu0 0.0
  %3514 = vmatprep.subr.mxu0 0.0
  %3515 = vmatpush2.msra.mxu0 0.0
  %3516 = vmatprep.subr.mxu0 0.0
  %3517 = vmatpush2.msra.mxu0 0.0
  %3518 = vmatprep.subr.mxu0 0.0
  %3519 = vmatpush2.msra.mxu0 0.0
  %3520 = vmatprep.subr.mxu0 0.0
  %3521 = vmatpush2.msra.mxu0 0.0
  %3522 = vmatprep.subr.mxu0 0.0
  %3523 = vmatpush2.msra.mxu0 0.0
  %3524 = vmatprep.subr.mxu0 0.0
  %3525 = vmatpush2.msra.mxu0 0.0
  %3526 = vmatprep.subr.mxu0 0.0
  %3527 = vmatpush2.msra.mxu0 0.0
  %3528 = vmatprep.subr.mxu0 0.0
  %3529 = vmatpush2.msra.mxu0 0.0
  %3530 = vmatprep.subr.mxu0 0.0
  %3531 = vmatpush2.msra.mxu0 0.0
  %3532 = vmatprep.subr.mxu0 0.0
  %3533 = vmatpush2.msra.mxu0 0.0
  %3534 = vmatprep.subr.mxu0 0.0
  %3535 = vmatpush2.msra.mxu0 0.0
  %3536 = vmatprep.subr.mxu0 0.0
  %3537 = vmatpush2.msra.mxu0 0.0
  %3538 = vmatprep.subr.mxu0 0.0
  %3539 = vmatpush2.msra.mxu0 0.0
  %3540 = vmatprep.subr.mxu0 0.0
  %3541 = vmatpush2.msra.mxu0 0.0
  %3542 = vmatprep.subr.mxu0 0.0
  %3543 = vmatpush2.msra.mxu0 0.0
  %3544 = vmatprep.mubr.f32.mxu0 0.0
  %3545 = vmatmul.mubr.f32.gmra.mxu0 %v2589
  %v3546 = vpop.f32.mrf.mxu0
  %v3547 = vadd.f32 0.0, %v3546
  %v3548 = vpop.f32.mrf.mxu0
  %3549 = vdwg.mxu0
  %v3550 = vadd.f32 %v3461, %v3547
  %v3551 = vld [vmem:[%s1266] sm:$0xff]
  %v3552 = vld [vmem:[%s1266 + $0x8] sm:$0xff]
  %v3553 = vld [vmem:[%s1266 + $0x10] sm:$0xff]
  %v3554 = vld [vmem:[%s1266 + $0x18] sm:$0xff]
  %v3555 = vld [vmem:[%s1266 + $0x20] sm:$0xff]
  %v3556 = vld [vmem:[%s1266 + $0x28] sm:$0xff]
  %v3557 = vld [vmem:[%s1266 + $0x30] sm:$0xff]
  %v3558 = vld [vmem:[%s1266 + $0x38] sm:$0xff]
  %v3559 = vld [vmem:[%s1266 + $0x40] sm:$0xff]
  %v3560 = vld [vmem:[%s1266 + $0x48] sm:$0xff]
  %v3561 = vld [vmem:[%s1266 + $0x50] sm:$0xff]
  %v3562 = vld [vmem:[%s1266 + $0x58] sm:$0xff]
  %v3563 = vld [vmem:[%s1266 + $0x60] sm:$0xff]
  %v3564 = vld [vmem:[%s1266 + $0x68] sm:$0xff]
  %v3565 = vld [vmem:[%s1266 + $0x70] sm:$0xff]
  %v3566 = vld [vmem:[%s1266 + $0x78] sm:$0xff]
  %3567 = vmatprep.subr.mxu0 0.0
  %3568 = vmatpush1.msra.mxu0 %v3566
  %3569 = vmatprep.subr.mxu0 0.0
  %3570 = vmatpush1.msra.mxu0 %v3565
  %3571 = vmatprep.subr.mxu0 0.0
  %3572 = vmatpush1.msra.mxu0 %v3564
  %3573 = vmatprep.subr.mxu0 0.0
  %3574 = vmatpush1.msra.mxu0 %v3563
  %3575 = vmatprep.subr.mxu0 0.0
  %3576 = vmatpush1.msra.mxu0 %v3562
  %3577 = vmatprep.subr.mxu0 0.0
  %3578 = vmatpush1.msra.mxu0 %v3561
  %3579 = vmatprep.subr.mxu0 0.0
  %3580 = vmatpush1.msra.mxu0 %v3560
  %3581 = vmatprep.subr.mxu0 0.0
  %3582 = vmatpush1.msra.mxu0 %v3559
  %3583 = vmatprep.subr.mxu0 0.0
  %3584 = vmatpush1.msra.mxu0 %v3558
  %3585 = vmatprep.subr.mxu0 0.0
  %3586 = vmatpush1.msra.mxu0 %v3557
  %3587 = vmatprep.subr.mxu0 0.0
  %3588 = vmatpush1.msra.mxu0 %v3556
  %3589 = vmatprep.subr.mxu0 0.0
  %3590 = vmatpush1.msra.mxu0 %v3555
  %3591 = vmatprep.subr.mxu0 0.0
  %3592 = vmatpush1.msra.mxu0 %v3554
  %3593 = vmatprep.subr.mxu0 0.0
  %3594 = vmatpush1.msra.mxu0 %v3553
  %3595 = vmatprep.subr.mxu0 0.0
  %3596 = vmatpush1.msra.mxu0 %v3552
  %3597 = vmatprep.subr.mxu0 0.0
  %3598 = vmatpush1.msra.mxu0 %v3551
  %3599 = vmatprep.subr.mxu0 0.0
  %3600 = vmatpush2.msra.mxu0 0.0
  %3601 = vmatprep.subr.mxu0 0.0
  %3602 = vmatpush2.msra.mxu0 0.0
  %3603 = vmatprep.subr.mxu0 0.0
  %3604 = vmatpush2.msra.mxu0 0.0
  %3605 = vmatprep.subr.mxu0 0.0
  %3606 = vmatpush2.msra.mxu0 0.0
  %3607 = vmatprep.subr.mxu0 0.0
  %3608 = vmatpush2.msra.mxu0 0.0
  %3609 = vmatprep.subr.mxu0 0.0
  %3610 = vmatpush2.msra.mxu0 0.0
  %3611 = vmatprep.subr.mxu0 0.0
  %3612 = vmatpush2.msra.mxu0 0.0
  %3613 = vmatprep.subr.mxu0 0.0
  %3614 = vmatpush2.msra.mxu0 0.0
  %3615 = vmatprep.subr.mxu0 0.0
  %3616 = vmatpush2.msra.mxu0 0.0
  %3617 = vmatprep.subr.mxu0 0.0
  %3618 = vmatpush2.msra.mxu0 0.0
  %3619 = vmatprep.subr.mxu0 0.0
  %3620 = vmatpush2.msra.mxu0 0.0
  %3621 = vmatprep.subr.mxu0 0.0
  %3622 = vmatpush2.msra.mxu0 0.0
  %3623 = vmatprep.subr.mxu0 0.0
  %3624 = vmatpush2.msra.mxu0 0.0
  %3625 = vmatprep.subr.mxu0 0.0
  %3626 = vmatpush2.msra.mxu0 0.0
  %3627 = vmatprep.subr.mxu0 0.0
  %3628 = vmatpush2.msra.mxu0 0.0
  %3629 = vmatprep.subr.mxu0 0.0
  %3630 = vmatpush2.msra.mxu0 0.0
  %3631 = vmatprep.mubr.f32.mxu0 0.0
  %3632 = vmatmul.mubr.f32.gmra.mxu0 %v2825
  %v3633 = vpop.f32.mrf.mxu0
  %v3634 = vadd.f32 0.0, %v3633
  %v3635 = vpop.f32.mrf.mxu0
  %3636 = vdwg.mxu0
  %v3637 = vadd.f32 %v3550, %v3634
  %v3638 = vld [vmem:[%s1354] sm:$0xff]
  %v3639 = vld [vmem:[%s1354 + $0x8] sm:$0xff]
  %v3640 = vld [vmem:[%s1354 + $0x10] sm:$0xff]
  %v3641 = vld [vmem:[%s1354 + $0x18] sm:$0xff]
  %v3642 = vld [vmem:[%s1354 + $0x20] sm:$0xff]
  %v3643 = vld [vmem:[%s1354 + $0x28] sm:$0xff]
  %v3644 = vld [vmem:[%s1354 + $0x30] sm:$0xff]
  %v3645 = vld [vmem:[%s1354 + $0x38] sm:$0xff]
  %v3646 = vld [vmem:[%s1354 + $0x40] sm:$0xff]
  %v3647 = vld [vmem:[%s1354 + $0x48] sm:$0xff]
  %v3648 = vld [vmem:[%s1354 + $0x50] sm:$0xff]
  %v3649 = vld [vmem:[%s1354 + $0x58] sm:$0xff]
  %v3650 = vld [vmem:[%s1354 + $0x60] sm:$0xff]
  %v3651 = vld [vmem:[%s1354 + $0x68] sm:$0xff]
  %v3652 = vld [vmem:[%s1354 + $0x70] sm:$0xff]
  %v3653 = vld [vmem:[%s1354 + $0x78] sm:$0xff]
  %3654 = vmatprep.subr.mxu0 0.0
  %3655 = vmatpush1.msra.mxu0 %v3653
  %3656 = vmatprep.subr.mxu0 0.0
  %3657 = vmatpush1.msra.mxu0 %v3652
  %3658 = vmatprep.subr.mxu0 0.0
  %3659 = vmatpush1.msra.mxu0 %v3651
  %3660 = vmatprep.subr.mxu0 0.0
  %3661 = vmatpush1.msra.mxu0 %v3650
  %3662 = vmatprep.subr.mxu0 0.0
  %3663 = vmatpush1.msra.mxu0 %v3649
  %3664 = vmatprep.subr.mxu0 0.0
  %3665 = vmatpush1.msra.mxu0 %v3648
  %3666 = vmatprep.subr.mxu0 0.0
  %3667 = vmatpush1.msra.mxu0 %v3647
  %3668 = vmatprep.subr.mxu0 0.0
  %3669 = vmatpush1.msra.mxu0 %v3646
  %3670 = vmatprep.subr.mxu0 0.0
  %3671 = vmatpush1.msra.mxu0 %v3645
  %3672 = vmatprep.subr.mxu0 0.0
  %3673 = vmatpush1.msra.mxu0 %v3644
  %3674 = vmatprep.subr.mxu0 0.0
  %3675 = vmatpush1.msra.mxu0 %v3643
  %3676 = vmatprep.subr.mxu0 0.0
  %3677 = vmatpush1.msra.mxu0 %v3642
  %3678 = vmatprep.subr.mxu0 0.0
  %3679 = vmatpush1.msra.mxu0 %v3641
  %3680 = vmatprep.subr.mxu0 0.0
  %3681 = vmatpush1.msra.mxu0 %v3640
  %3682 = vmatprep.subr.mxu0 0.0
  %3683 = vmatpush1.msra.mxu0 %v3639
  %3684 = vmatprep.subr.mxu0 0.0
  %3685 = vmatpush1.msra.mxu0 %v3638
  %3686 = vmatprep.subr.mxu0 0.0
  %3687 = vmatpush2.msra.mxu0 0.0
  %3688 = vmatprep.subr.mxu0 0.0
  %3689 = vmatpush2.msra.mxu0 0.0
  %3690 = vmatprep.subr.mxu0 0.0
  %3691 = vmatpush2.msra.mxu0 0.0
  %3692 = vmatprep.subr.mxu0 0.0
  %3693 = vmatpush2.msra.mxu0 0.0
  %3694 = vmatprep.subr.mxu0 0.0
  %3695 = vmatpush2.msra.mxu0 0.0
  %3696 = vmatprep.subr.mxu0 0.0
  %3697 = vmatpush2.msra.mxu0 0.0
  %3698 = vmatprep.subr.mxu0 0.0
  %3699 = vmatpush2.msra.mxu0 0.0
  %3700 = vmatprep.subr.mxu0 0.0
  %3701 = vmatpush2.msra.mxu0 0.0
  %3702 = vmatprep.subr.mxu0 0.0
  %3703 = vmatpush2.msra.mxu0 0.0
  %3704 = vmatprep.subr.mxu0 0.0
  %3705 = vmatpush2.msra.mxu0 0.0
  %3706 = vmatprep.subr.mxu0 0.0
  %3707 = vmatpush2.msra.mxu0 0.0
  %3708 = vmatprep.subr.mxu0 0.0
  %3709 = vmatpush2.msra.mxu0 0.0
  %3710 = vmatprep.subr.mxu0 0.0
  %3711 = vmatpush2.msra.mxu0 0.0
  %3712 = vmatprep.subr.mxu0 0.0
  %3713 = vmatpush2.msra.mxu0 0.0
  %3714 = vmatprep.subr.mxu0 0.0
  %3715 = vmatpush2.msra.mxu0 0.0
  %3716 = vmatprep.subr.mxu0 0.0
  %3717 = vmatpush2.msra.mxu0 0.0
  %3718 = vmatprep.mubr.f32.mxu0 0.0
  %3719 = vmatmul.mubr.f32.gmra.mxu0 %v2966
  %v3720 = vpop.f32.mrf.mxu0
  %v3721 = vadd.f32 0.0, %v3720
  %v3722 = vpop.f32.mrf.mxu0
  %3723 = vdwg.mxu0
  %v3724 = vadd.f32 %v3637, %v3721
  %v3725 = vld [vmem:[%s1442] sm:$0xff]
  %v3726 = vld [vmem:[%s1442 + $0x8] sm:$0xff]
  %v3727 = vld [vmem:[%s1442 + $0x10] sm:$0xff]
  %v3728 = vld [vmem:[%s1442 + $0x18] sm:$0xff]
  %v3729 = vld [vmem:[%s1442 + $0x20] sm:$0xff]
  %v3730 = vld [vmem:[%s1442 + $0x28] sm:$0xff]
  %v3731 = vld [vmem:[%s1442 + $0x30] sm:$0xff]
  %v3732 = vld [vmem:[%s1442 + $0x38] sm:$0xff]
  %v3733 = vld [vmem:[%s1442 + $0x40] sm:$0xff]
  %v3734 = vld [vmem:[%s1442 + $0x48] sm:$0xff]
  %v3735 = vld [vmem:[%s1442 + $0x50] sm:$0xff]
  %v3736 = vld [vmem:[%s1442 + $0x58] sm:$0xff]
  %v3737 = vld [vmem:[%s1442 + $0x60] sm:$0xff]
  %v3738 = vld [vmem:[%s1442 + $0x68] sm:$0xff]
  %v3739 = vld [vmem:[%s1442 + $0x70] sm:$0xff]
  %v3740 = vld [vmem:[%s1442 + $0x78] sm:$0xff]
  %3741 = vmatprep.subr.mxu0 0.0
  %3742 = vmatpush1.msra.mxu0 %v3740
  %3743 = vmatprep.subr.mxu0 0.0
  %3744 = vmatpush1.msra.mxu0 %v3739
  %3745 = vmatprep.subr.mxu0 0.0
  %3746 = vmatpush1.msra.mxu0 %v3738
  %3747 = vmatprep.subr.mxu0 0.0
  %3748 = vmatpush1.msra.mxu0 %v3737
  %3749 = vmatprep.subr.mxu0 0.0
  %3750 = vmatpush1.msra.mxu0 %v3736
  %3751 = vmatprep.subr.mxu0 0.0
  %3752 = vmatpush1.msra.mxu0 %v3735
  %3753 = vmatprep.subr.mxu0 0.0
  %3754 = vmatpush1.msra.mxu0 %v3734
  %3755 = vmatprep.subr.mxu0 0.0
  %3756 = vmatpush1.msra.mxu0 %v3733
  %3757 = vmatprep.subr.mxu0 0.0
  %3758 = vmatpush1.msra.mxu0 %v3732
  %3759 = vmatprep.subr.mxu0 0.0
  %3760 = vmatpush1.msra.mxu0 %v3731
  %3761 = vmatprep.subr.mxu0 0.0
  %3762 = vmatpush1.msra.mxu0 %v3730
  %3763 = vmatprep.subr.mxu0 0.0
  %3764 = vmatpush1.msra.mxu0 %v3729
  %3765 = vmatprep.subr.mxu0 0.0
  %3766 = vmatpush1.msra.mxu0 %v3728
  %3767 = vmatprep.subr.mxu0 0.0
  %3768 = vmatpush1.msra.mxu0 %v3727
  %3769 = vmatprep.subr.mxu0 0.0
  %3770 = vmatpush1.msra.mxu0 %v3726
  %3771 = vmatprep.subr.mxu0 0.0
  %3772 = vmatpush1.msra.mxu0 %v3725
  %3773 = vmatprep.subr.mxu0 0.0
  %3774 = vmatpush2.msra.mxu0 0.0
  %3775 = vmatprep.subr.mxu0 0.0
  %3776 = vmatpush2.msra.mxu0 0.0
  %3777 = vmatprep.subr.mxu0 0.0
  %3778 = vmatpush2.msra.mxu0 0.0
  %3779 = vmatprep.subr.mxu0 0.0
  %3780 = vmatpush2.msra.mxu0 0.0
  %3781 = vmatprep.subr.mxu0 0.0
  %3782 = vmatpush2.msra.mxu0 0.0
  %3783 = vmatprep.subr.mxu0 0.0
  %3784 = vmatpush2.msra.mxu0 0.0
  %3785 = vmatprep.subr.mxu0 0.0
  %3786 = vmatpush2.msra.mxu0 0.0
  %3787 = vmatprep.subr.mxu0 0.0
  %3788 = vmatpush2.msra.mxu0 0.0
  %3789 = vmatprep.subr.mxu0 0.0
  %3790 = vmatpush2.msra.mxu0 0.0
  %3791 = vmatprep.subr.mxu0 0.0
  %3792 = vmatpush2.msra.mxu0 0.0
  %3793 = vmatprep.subr.mxu0 0.0
  %3794 = vmatpush2.msra.mxu0 0.0
  %3795 = vmatprep.subr.mxu0 0.0
  %3796 = vmatpush2.msra.mxu0 0.0
  %3797 = vmatprep.subr.mxu0 0.0
  %3798 = vmatpush2.msra.mxu0 0.0
  %3799 = vmatprep.subr.mxu0 0.0
  %3800 = vmatpush2.msra.mxu0 0.0
  %3801 = vmatprep.subr.mxu0 0.0
  %3802 = vmatpush2.msra.mxu0 0.0
  %3803 = vmatprep.subr.mxu0 0.0
  %3804 = vmatpush2.msra.mxu0 0.0
  %3805 = vmatprep.mubr.f32.mxu0 0.0
  %3806 = vmatmul.mubr.f32.gmra.mxu0 %v3109
  %v3807 = vpop.f32.mrf.mxu0
  %v3808 = vadd.f32 0.0, %v3807
  %v3809 = vpop.f32.mrf.mxu0
  %3810 = vdwg.mxu0
  %v3811 = vadd.f32 %v3724, %v3808
  %v3812 = vld [vmem:[%s9] sm:$0x1]
  %v3814 = vlaneseq
  %v3815 = vshrl.u32 %v3814, 7
  %v3816 = vsub.s32 0, %v3815
  %v3817 = vrot.slane %v3812, %v3816
  %v3819 = vadd.f32 %v3811, %v3817
  %v3820 = vld [vmem:[%s10] sm:$0xff]
  %v3821 = vld [vmem:[%s10 + $0x8] sm:$0xff]
  %v3822 = vld [vmem:[%s10 + $0x10] sm:$0xff]
  %v3823 = vld [vmem:[%s10 + $0x18] sm:$0xff]
  %v3824 = vld [vmem:[%s10 + $0x20] sm:$0xff]
  %v3825 = vld [vmem:[%s10 + $0x28] sm:$0xff]
  %v3826 = vld [vmem:[%s10 + $0x30] sm:$0xff]
  %v3827 = vld [vmem:[%s10 + $0x38] sm:$0xff]
  %v3828 = vld [vmem:[%s10 + $0x40] sm:$0xff]
  %v3829 = vld [vmem:[%s10 + $0x48] sm:$0xff]
  %v3830 = vld [vmem:[%s10 + $0x50] sm:$0xff]
  %v3831 = vld [vmem:[%s10 + $0x58] sm:$0xff]
  %v3832 = vld [vmem:[%s10 + $0x60] sm:$0xff]
  %v3833 = vld [vmem:[%s10 + $0x68] sm:$0xff]
  %v3834 = vld [vmem:[%s10 + $0x70] sm:$0xff]
  %v3835 = vld [vmem:[%s10 + $0x78] sm:$0xff]
  %v3836 = vld [vmem:[%s1554] sm:$0xff]
  %v3837 = vld [vmem:[%s1554 + $0x8] sm:$0xff]
  %v3838 = vld [vmem:[%s1554 + $0x10] sm:$0xff]
  %v3839 = vld [vmem:[%s1554 + $0x18] sm:$0xff]
  %v3840 = vld [vmem:[%s1554 + $0x20] sm:$0xff]
  %v3841 = vld [vmem:[%s1554 + $0x28] sm:$0xff]
  %v3842 = vld [vmem:[%s1554 + $0x30] sm:$0xff]
  %v3843 = vld [vmem:[%s1554 + $0x38] sm:$0xff]
  %v3844 = vld [vmem:[%s1554 + $0x40] sm:$0xff]
  %v3845 = vld [vmem:[%s1554 + $0x48] sm:$0xff]
  %v3846 = vld [vmem:[%s1554 + $0x50] sm:$0xff]
  %v3847 = vld [vmem:[%s1554 + $0x58] sm:$0xff]
  %v3848 = vld [vmem:[%s1554 + $0x60] sm:$0xff]
  %v3849 = vld [vmem:[%s1554 + $0x68] sm:$0xff]
  %v3850 = vld [vmem:[%s1554 + $0x70] sm:$0xff]
  %v3851 = vld [vmem:[%s1554 + $0x78] sm:$0xff]
  %v3853 = vsel %vm1571, %v3819, 0
  %3855 = vmatprep.subr.mxu0 0.0
  %3856 = vmatpush1.msra.mxu0 0.0
  %3857 = vmatprep.subr.mxu0 0.0
  %3858 = vmatpush1.msra.mxu0 0.0
  %3859 = vmatprep.subr.mxu0 0.0
  %3860 = vmatpush1.msra.mxu0 0.0
  %3861 = vmatprep.subr.mxu0 0.0
  %3862 = vmatpush1.msra.mxu0 0.0
  %3863 = vmatprep.subr.mxu0 0.0
  %3864 = vmatpush1.msra.mxu0 0.0
  %3865 = vmatprep.subr.mxu0 0.0
  %3866 = vmatpush1.msra.mxu0 0.0
  %3867 = vmatprep.subr.mxu0 0.0
  %3868 = vmatpush1.msra.mxu0 0.0
  %3869 = vmatprep.subr.mxu0 0.0
  %3870 = vmatpush1.msra.mxu0 0.0
  %3871 = vmatprep.subr.mxu0 %v3851
  %3872 = vmatpush1.msra.mxu0 %v3850
  %3873 = vmatprep.subr.mxu0 %v3849
  %3874 = vmatpush1.msra.mxu0 %v3848
  %3875 = vmatprep.subr.mxu0 %v3847
  %3876 = vmatpush1.msra.mxu0 %v3846
  %3877 = vmatprep.subr.mxu0 %v3845
  %3878 = vmatpush1.msra.mxu0 %v3844
  %3879 = vmatprep.subr.mxu0 %v3843
  %3880 = vmatpush1.msra.mxu0 %v3842
  %3881 = vmatprep.subr.mxu0 %v3841
  %3882 = vmatpush1.msra.mxu0 %v3840
  %3883 = vmatprep.subr.mxu0 %v3839
  %3884 = vmatpush1.msra.mxu0 %v3838
  %3885 = vmatprep.subr.mxu0 %v3837
  %3886 = vmatpush1.msra.mxu0 %v3836
  %3887 = vmatprep.subr.mxu0 0.0
  %3888 = vmatpush2.msra.mxu0 0.0
  %3889 = vmatprep.subr.mxu0 0.0
  %3890 = vmatpush2.msra.mxu0 0.0
  %3891 = vmatprep.subr.mxu0 0.0
  %3892 = vmatpush2.msra.mxu0 0.0
  %3893 = vmatprep.subr.mxu0 0.0
  %3894 = vmatpush2.msra.mxu0 0.0
  %3895 = vmatprep.subr.mxu0 0.0
  %3896 = vmatpush2.msra.mxu0 0.0
  %3897 = vmatprep.subr.mxu0 0.0
  %3898 = vmatpush2.msra.mxu0 0.0
  %3899 = vmatprep.subr.mxu0 0.0
  %3900 = vmatpush2.msra.mxu0 0.0
  %3901 = vmatprep.subr.mxu0 0.0
  %3902 = vmatpush2.msra.mxu0 0.0
  %3903 = vmatprep.subr.mxu0 0.0
  %3904 = vmatpush2.msra.mxu0 0.0
  %3905 = vmatprep.subr.mxu0 0.0
  %3906 = vmatpush2.msra.mxu0 0.0
  %3907 = vmatprep.subr.mxu0 0.0
  %3908 = vmatpush2.msra.mxu0 0.0
  %3909 = vmatprep.subr.mxu0 0.0
  %3910 = vmatpush2.msra.mxu0 0.0
  %3911 = vmatprep.subr.mxu0 0.0
  %3912 = vmatpush2.msra.mxu0 0.0
  %3913 = vmatprep.subr.mxu0 0.0
  %3914 = vmatpush2.msra.mxu0 0.0
  %3915 = vmatprep.subr.mxu0 0.0
  %3916 = vmatpush2.msra.mxu0 0.0
  %3917 = vmatprep.subr.mxu0 0.0
  %3918 = vmatpush2.msra.mxu0 0.0
  %3919 = vmatprep.mubr.f32.mxu0 0.0
  %3920 = vmatmul.mubr.f32.gmra.mxu0 %v3853
  %v3921 = vpop.f32.mrf.mxu0
  %v3922 = vadd.f32 0.0, %v3921
  %v3923 = vpop.f32.mrf.mxu0
  %v3924 = vadd.f32 0.0, %v3923
  %3925 = vdwg.mxu0
  %v3927 = vsel %vm1571, %v3291, 0
  %3929 = vmatprep.subr.mxu0 0.0
  %3930 = vmatpush1.msra.mxu0 0.0
  %3931 = vmatprep.subr.mxu0 0.0
  %3932 = vmatpush1.msra.mxu0 0.0
  %3933 = vmatprep.subr.mxu0 0.0
  %3934 = vmatpush1.msra.mxu0 0.0
  %3935 = vmatprep.subr.mxu0 0.0
  %3936 = vmatpush1.msra.mxu0 0.0
  %3937 = vmatprep.subr.mxu0 0.0
  %3938 = vmatpush1.msra.mxu0 0.0
  %3939 = vmatprep.subr.mxu0 0.0
  %3940 = vmatpush1.msra.mxu0 0.0
  %3941 = vmatprep.subr.mxu0 0.0
  %3942 = vmatpush1.msra.mxu0 0.0
  %3943 = vmatprep.subr.mxu0 0.0
  %3944 = vmatpush1.msra.mxu0 0.0
  %3945 = vmatprep.subr.mxu0 %v3835
  %3946 = vmatpush1.msra.mxu0 %v3834
  %3947 = vmatprep.subr.mxu0 %v3833
  %3948 = vmatpush1.msra.mxu0 %v3832
  %3949 = vmatprep.subr.mxu0 %v3831
  %3950 = vmatpush1.msra.mxu0 %v3830
  %3951 = vmatprep.subr.mxu0 %v3829
  %3952 = vmatpush1.msra.mxu0 %v3828
  %3953 = vmatprep.subr.mxu0 %v3827
  %3954 = vmatpush1.msra.mxu0 %v3826
  %3955 = vmatprep.subr.mxu0 %v3825
  %3956 = vmatpush1.msra.mxu0 %v3824
  %3957 = vmatprep.subr.mxu0 %v3823
  %3958 = vmatpush1.msra.mxu0 %v3822
  %3959 = vmatprep.subr.mxu0 %v3821
  %3960 = vmatpush1.msra.mxu0 %v3820
  %3961 = vmatprep.subr.mxu0 0.0
  %3962 = vmatpush2.msra.mxu0 0.0
  %3963 = vmatprep.subr.mxu0 0.0
  %3964 = vmatpush2.msra.mxu0 0.0
  %3965 = vmatprep.subr.mxu0 0.0
  %3966 = vmatpush2.msra.mxu0 0.0
  %3967 = vmatprep.subr.mxu0 0.0
  %3968 = vmatpush2.msra.mxu0 0.0
  %3969 = vmatprep.subr.mxu0 0.0
  %3970 = vmatpush2.msra.mxu0 0.0
  %3971 = vmatprep.subr.mxu0 0.0
  %3972 = vmatpush2.msra.mxu0 0.0
  %3973 = vmatprep.subr.mxu0 0.0
  %3974 = vmatpush2.msra.mxu0 0.0
  %3975 = vmatprep.subr.mxu0 0.0
  %3976 = vmatpush2.msra.mxu0 0.0
  %3977 = vmatprep.subr.mxu0 0.0
  %3978 = vmatpush2.msra.mxu0 0.0
  %3979 = vmatprep.subr.mxu0 0.0
  %3980 = vmatpush2.msra.mxu0 0.0
  %3981 = vmatprep.subr.mxu0 0.0
  %3982 = vmatpush2.msra.mxu0 0.0
  %3983 = vmatprep.subr.mxu0 0.0
  %3984 = vmatpush2.msra.mxu0 0.0
  %3985 = vmatprep.subr.mxu0 0.0
  %3986 = vmatpush2.msra.mxu0 0.0
  %3987 = vmatprep.subr.mxu0 0.0
  %3988 = vmatpush2.msra.mxu0 0.0
  %3989 = vmatprep.subr.mxu0 0.0
  %3990 = vmatpush2.msra.mxu0 0.0
  %3991 = vmatprep.subr.mxu0 0.0
  %3992 = vmatpush2.msra.mxu0 0.0
  %3993 = vmatprep.mubr.f32.mxu0 0.0
  %3994 = vmatmul.mubr.f32.gmra.mxu0 %v3927
  %v3995 = vpop.f32.mrf.mxu0
  %v3996 = vadd.f32 %v3922, %v3995
  %v3997 = vpop.f32.mrf.mxu0
  %v3998 = vadd.f32 %v3924, %v3997
  %3999 = vdwg.mxu0
  %v4000 = vld [vmem:[%s11] sm:$0xff]
  %v4001 = vld [vmem:[%s11 + $0x8] sm:$0xff]
  %v4002 = vld [vmem:[%s11 + $0x10] sm:$0xff]
  %v4003 = vld [vmem:[%s11 + $0x18] sm:$0xff]
  %v4004 = vld [vmem:[%s11 + $0x20] sm:$0xff]
  %v4005 = vld [vmem:[%s11 + $0x28] sm:$0xff]
  %v4006 = vld [vmem:[%s11 + $0x30] sm:$0xff]
  %v4007 = vld [vmem:[%s11 + $0x38] sm:$0xff]
  %v4008 = vld [vmem:[%s11 + $0x40] sm:$0xff]
  %v4009 = vld [vmem:[%s11 + $0x48] sm:$0xff]
  %v4010 = vld [vmem:[%s11 + $0x50] sm:$0xff]
  %v4011 = vld [vmem:[%s11 + $0x58] sm:$0xff]
  %v4012 = vld [vmem:[%s11 + $0x60] sm:$0xff]
  %v4013 = vld [vmem:[%s11 + $0x68] sm:$0xff]
  %v4014 = vld [vmem:[%s11 + $0x70] sm:$0xff]
  %v4015 = vld [vmem:[%s11 + $0x78] sm:$0xff]
  %4016 = vmatprep.subr.mxu0 0.0
  %4017 = vmatpush1.msra.mxu0 0.0
  %4018 = vmatprep.subr.mxu0 0.0
  %4019 = vmatpush1.msra.mxu0 0.0
  %4020 = vmatprep.subr.mxu0 0.0
  %4021 = vmatpush1.msra.mxu0 0.0
  %4022 = vmatprep.subr.mxu0 0.0
  %4023 = vmatpush1.msra.mxu0 0.0
  %4024 = vmatprep.subr.mxu0 0.0
  %4025 = vmatpush1.msra.mxu0 0.0
  %4026 = vmatprep.subr.mxu0 0.0
  %4027 = vmatpush1.msra.mxu0 0.0
  %4028 = vmatprep.subr.mxu0 0.0
  %4029 = vmatpush1.msra.mxu0 0.0
  %4030 = vmatprep.subr.mxu0 0.0
  %4031 = vmatpush1.msra.mxu0 0.0
  %4032 = vmatprep.subr.mxu0 %v4015
  %4033 = vmatpush1.msra.mxu0 %v4014
  %4034 = vmatprep.subr.mxu0 %v4013
  %4035 = vmatpush1.msra.mxu0 %v4012
  %4036 = vmatprep.subr.mxu0 %v4011
  %4037 = vmatpush1.msra.mxu0 %v4010
  %4038 = vmatprep.subr.mxu0 %v4009
  %4039 = vmatpush1.msra.mxu0 %v4008
  %4040 = vmatprep.subr.mxu0 %v4007
  %4041 = vmatpush1.msra.mxu0 %v4006
  %4042 = vmatprep.subr.mxu0 %v4005
  %4043 = vmatpush1.msra.mxu0 %v4004
  %4044 = vmatprep.subr.mxu0 %v4003
  %4045 = vmatpush1.msra.mxu0 %v4002
  %4046 = vmatprep.subr.mxu0 %v4001
  %4047 = vmatpush1.msra.mxu0 %v4000
  %4048 = vmatprep.subr.mxu0 0.0
  %4049 = vmatpush2.msra.mxu0 0.0
  %4050 = vmatprep.subr.mxu0 0.0
  %4051 = vmatpush2.msra.mxu0 0.0
  %4052 = vmatprep.subr.mxu0 0.0
  %4053 = vmatpush2.msra.mxu0 0.0
  %4054 = vmatprep.subr.mxu0 0.0
  %4055 = vmatpush2.msra.mxu0 0.0
  %4056 = vmatprep.subr.mxu0 0.0
  %4057 = vmatpush2.msra.mxu0 0.0
  %4058 = vmatprep.subr.mxu0 0.0
  %4059 = vmatpush2.msra.mxu0 0.0
  %4060 = vmatprep.subr.mxu0 0.0
  %4061 = vmatpush2.msra.mxu0 0.0
  %4062 = vmatprep.subr.mxu0 0.0
  %4063 = vmatpush2.msra.mxu0 0.0
  %4064 = vmatprep.subr.mxu0 0.0
  %4065 = vmatpush2.msra.mxu0 0.0
  %4066 = vmatprep.subr.mxu0 0.0
  %4067 = vmatpush2.msra.mxu0 0.0
  %4068 = vmatprep.subr.mxu0 0.0
  %4069 = vmatpush2.msra.mxu0 0.0
  %4070 = vmatprep.subr.mxu0 0.0
  %4071 = vmatpush2.msra.mxu0 0.0
  %4072 = vmatprep.subr.mxu0 0.0
  %4073 = vmatpush2.msra.mxu0 0.0
  %4074 = vmatprep.subr.mxu0 0.0
  %4075 = vmatpush2.msra.mxu0 0.0
  %4076 = vmatprep.subr.mxu0 0.0
  %4077 = vmatpush2.msra.mxu0 0.0
  %4078 = vmatprep.subr.mxu0 0.0
  %4079 = vmatpush2.msra.mxu0 0.0
  %4080 = vmatprep.mubr.f32.mxu0 0.0
  %4081 = vmatmul.mubr.f32.gmra.mxu0 %v1860
  %v4082 = vpop.f32.mrf.mxu0
  %v4083 = vadd.f32 0.0, %v4082
  %v4084 = vpop.f32.mrf.mxu0
  %v4085 = vadd.f32 0.0, %v4084
  %4086 = vdwg.mxu0
  %v4087 = vadd.f32 %v3996, %v4083
  %v4088 = vadd.f32 %v3998, %v4085
  %v4089 = vld [vmem:[%s12] sm:$0x3]
  %v4091 = vlaneseq
  %v4092 = vshrl.u32 %v4091, 7
  %v4093 = vsub.s32 0, %v4092
  %v4094 = vrot.slane %v4089, %v4093
  %v4095 = vlaneseq
  %v4096 = vshrl.u32 %v4095, 7
  %v4097 = vsub.s32 1, %v4096
  %v4098 = vrot.slane %v4089, %v4097
  %v4101 = vadd.f32 %v4087, %v4094
  %v4102 = vadd.f32 %v4088, %v4098
  %v4103 = vxor.u32 %v4101, 2147483648
  %v4104 = vmul.f32 %v4103, 1.442695
  %v4105 = vpow.pop %v4104
  %v4106 = vadd.f32 %v4105, 1.0
  %v4107 = vrcp.pop %v4106
  %v4108 = vmul.f32 1.0, %v4107
  %v4109 = vtanh.pop %v4102
  %v4110 = vxor.u32 %v4102, 2147483648
  %v4111 = vmul.f32 %v4110, 1.442695
  %v4112 = vpow.pop %v4111
  %v4113 = vadd.f32 %v4112, 1.0
  %v4114 = vrcp.pop %v4113
  %v4115 = vmul.f32 1.0, %v4114
  %v4116 = vmul.f32 %v4108, %v1845
  %v4117 = vmul.f32 %v4108, %v4109
  %4119 = vrot.lane.b32.xlu0 %v4117, 64
  %v4120 = vpop.permute.xlu0 %4119
  %v4122 = vadd.f32 %v4116, %v4120
  %v4123 = vtanh.pop %v4122
  %v4124 = vmul.f32 %v4115, %v4123
  %v4125 = vld [vmem:[%s14] sm:$0x1]
  %v4126 = vld [vmem:[%s13] sm:$0xff]
  %v4127 = vld [vmem:[%s13 + $0x8] sm:$0xff]
  %v4128 = vld [vmem:[%s13 + $0x10] sm:$0xff]
  %v4129 = vld [vmem:[%s13 + $0x18] sm:$0xff]
  %v4130 = vld [vmem:[%s13 + $0x20] sm:$0xff]
  %v4131 = vld [vmem:[%s13 + $0x28] sm:$0xff]
  %v4132 = vld [vmem:[%s13 + $0x30] sm:$0xff]
  %v4133 = vld [vmem:[%s13 + $0x38] sm:$0xff]
  %4135 = vrot.lane.b32.xlu0 %v4124, 64
  %v4136 = vpop.permute.xlu0 %4135
  %v4137 = vsel %vm1571, %v4136, 0
  %4139 = vmatprep.subr.mxu0 0.0
  %4140 = vmatpush1.msra.mxu0 0.0
  %4141 = vmatprep.subr.mxu0 0.0
  %4142 = vmatpush1.msra.mxu0 0.0
  %4143 = vmatprep.subr.mxu0 0.0
  %4144 = vmatpush1.msra.mxu0 0.0
  %4145 = vmatprep.subr.mxu0 0.0
  %4146 = vmatpush1.msra.mxu0 0.0
  %4147 = vmatprep.subr.mxu0 0.0
  %4148 = vmatpush1.msra.mxu0 0.0
  %4149 = vmatprep.subr.mxu0 0.0
  %4150 = vmatpush1.msra.mxu0 0.0
  %4151 = vmatprep.subr.mxu0 0.0
  %4152 = vmatpush1.msra.mxu0 0.0
  %4153 = vmatprep.subr.mxu0 0.0
  %4154 = vmatpush1.msra.mxu0 0.0
  %4155 = vmatprep.subr.mxu0 0.0
  %4156 = vmatpush1.msra.mxu0 %v4133
  %4157 = vmatprep.subr.mxu0 0.0
  %4158 = vmatpush1.msra.mxu0 %v4132
  %4159 = vmatprep.subr.mxu0 0.0
  %4160 = vmatpush1.msra.mxu0 %v4131
  %4161 = vmatprep.subr.mxu0 0.0
  %4162 = vmatpush1.msra.mxu0 %v4130
  %4163 = vmatprep.subr.mxu0 0.0
  %4164 = vmatpush1.msra.mxu0 %v4129
  %4165 = vmatprep.subr.mxu0 0.0
  %4166 = vmatpush1.msra.mxu0 %v4128
  %4167 = vmatprep.subr.mxu0 0.0
  %4168 = vmatpush1.msra.mxu0 %v4127
  %4169 = vmatprep.subr.mxu0 0.0
  %4170 = vmatpush1.msra.mxu0 %v4126
  %4171 = vmatprep.subr.mxu0 0.0
  %4172 = vmatpush2.msra.mxu0 0.0
  %4173 = vmatprep.subr.mxu0 0.0
  %4174 = vmatpush2.msra.mxu0 0.0
  %4175 = vmatprep.subr.mxu0 0.0
  %4176 = vmatpush2.msra.mxu0 0.0
  %4177 = vmatprep.subr.mxu0 0.0
  %4178 = vmatpush2.msra.mxu0 0.0
  %4179 = vmatprep.subr.mxu0 0.0
  %4180 = vmatpush2.msra.mxu0 0.0
  %4181 = vmatprep.subr.mxu0 0.0
  %4182 = vmatpush2.msra.mxu0 0.0
  %4183 = vmatprep.subr.mxu0 0.0
  %4184 = vmatpush2.msra.mxu0 0.0
  %4185 = vmatprep.subr.mxu0 0.0
  %4186 = vmatpush2.msra.mxu0 0.0
  %4187 = vmatprep.subr.mxu0 0.0
  %4188 = vmatpush2.msra.mxu0 0.0
  %4189 = vmatprep.subr.mxu0 0.0
  %4190 = vmatpush2.msra.mxu0 0.0
  %4191 = vmatprep.subr.mxu0 0.0
  %4192 = vmatpush2.msra.mxu0 0.0
  %4193 = vmatprep.subr.mxu0 0.0
  %4194 = vmatpush2.msra.mxu0 0.0
  %4195 = vmatprep.subr.mxu0 0.0
  %4196 = vmatpush2.msra.mxu0 0.0
  %4197 = vmatprep.subr.mxu0 0.0
  %4198 = vmatpush2.msra.mxu0 0.0
  %4199 = vmatprep.subr.mxu0 0.0
  %4200 = vmatpush2.msra.mxu0 0.0
  %4201 = vmatprep.subr.mxu0 0.0
  %4202 = vmatpush2.msra.mxu0 0.0
  %4203 = vmatprep.mubr.f32.mxu0 0.0
  %4204 = vmatmul.mubr.f32.gmra.mxu0 %v4137
  %v4205 = vpop.f32.mrf.mxu0
  %v4206 = vadd.f32 0.0, %v4205
  %v4207 = vpop.f32.mrf.mxu0
  %4208 = vdwg.mxu0
  %v4209 = vadd.f32 %v4125, %v4206
  %v4210 = vld [vmem:[%s1933] sm:$0xff]
  %v4211 = vld [vmem:[%s1933 + $0x8] sm:$0xff]
  %v4212 = vld [vmem:[%s1933 + $0x10] sm:$0xff]
  %v4213 = vld [vmem:[%s1933 + $0x18] sm:$0xff]
  %v4214 = vld [vmem:[%s1933 + $0x20] sm:$0xff]
  %v4215 = vld [vmem:[%s1933 + $0x28] sm:$0xff]
  %v4216 = vld [vmem:[%s1933 + $0x30] sm:$0xff]
  %v4217 = vld [vmem:[%s1933 + $0x38] sm:$0xff]
  %v4218 = vrot.slane %v4124, 1
  %4219 = vrot.lane.b32.xlu0 %v4218, 64
  %v4220 = vpop.permute.xlu0 %4219
  %v4221 = vsel %vm1571, %v4220, 0
  %4223 = vmatprep.subr.mxu0 0.0
  %4224 = vmatpush1.msra.mxu0 0.0
  %4225 = vmatprep.subr.mxu0 0.0
  %4226 = vmatpush1.msra.mxu0 0.0
  %4227 = vmatprep.subr.mxu0 0.0
  %4228 = vmatpush1.msra.mxu0 0.0
  %4229 = vmatprep.subr.mxu0 0.0
  %4230 = vmatpush1.msra.mxu0 0.0
  %4231 = vmatprep.subr.mxu0 0.0
  %4232 = vmatpush1.msra.mxu0 0.0
  %4233 = vmatprep.subr.mxu0 0.0
  %4234 = vmatpush1.msra.mxu0 0.0
  %4235 = vmatprep.subr.mxu0 0.0
  %4236 = vmatpush1.msra.mxu0 0.0
  %4237 = vmatprep.subr.mxu0 0.0
  %4238 = vmatpush1.msra.mxu0 0.0
  %4239 = vmatprep.subr.mxu0 0.0
  %4240 = vmatpush1.msra.mxu0 %v4217
  %4241 = vmatprep.subr.mxu0 0.0
  %4242 = vmatpush1.msra.mxu0 %v4216
  %4243 = vmatprep.subr.mxu0 0.0
  %4244 = vmatpush1.msra.mxu0 %v4215
  %4245 = vmatprep.subr.mxu0 0.0
  %4246 = vmatpush1.msra.mxu0 %v4214
  %4247 = vmatprep.subr.mxu0 0.0
  %4248 = vmatpush1.msra.mxu0 %v4213
  %4249 = vmatprep.subr.mxu0 0.0
  %4250 = vmatpush1.msra.mxu0 %v4212
  %4251 = vmatprep.subr.mxu0 0.0
  %4252 = vmatpush1.msra.mxu0 %v4211
  %4253 = vmatprep.subr.mxu0 0.0
  %4254 = vmatpush1.msra.mxu0 %v4210
  %4255 = vmatprep.subr.mxu0 0.0
  %4256 = vmatpush2.msra.mxu0 0.0
  %4257 = vmatprep.subr.mxu0 0.0
  %4258 = vmatpush2.msra.mxu0 0.0
  %4259 = vmatprep.subr.mxu0 0.0
  %4260 = vmatpush2.msra.mxu0 0.0
  %4261 = vmatprep.subr.mxu0 0.0
  %4262 = vmatpush2.msra.mxu0 0.0
  %4263 = vmatprep.subr.mxu0 0.0
  %4264 = vmatpush2.msra.mxu0 0.0
  %4265 = vmatprep.subr.mxu0 0.0
  %4266 = vmatpush2.msra.mxu0 0.0
  %4267 = vmatprep.subr.mxu0 0.0
  %4268 = vmatpush2.msra.mxu0 0.0
  %4269 = vmatprep.subr.mxu0 0.0
  %4270 = vmatpush2.msra.mxu0 0.0
  %4271 = vmatprep.subr.mxu0 0.0
  %4272 = vmatpush2.msra.mxu0 0.0
  %4273 = vmatprep.subr.mxu0 0.0
  %4274 = vmatpush2.msra.mxu0 0.0
  %4275 = vmatprep.subr.mxu0 0.0
  %4276 = vmatpush2.msra.mxu0 0.0
  %4277 = vmatprep.subr.mxu0 0.0
  %4278 = vmatpush2.msra.mxu0 0.0
  %4279 = vmatprep.subr.mxu0 0.0
  %4280 = vmatpush2.msra.mxu0 0.0
  %4281 = vmatprep.subr.mxu0 0.0
  %4282 = vmatpush2.msra.mxu0 0.0
  %4283 = vmatprep.subr.mxu0 0.0
  %4284 = vmatpush2.msra.mxu0 0.0
  %4285 = vmatprep.subr.mxu0 0.0
  %4286 = vmatpush2.msra.mxu0 0.0
  %4287 = vmatprep.mubr.f32.mxu0 0.0
  %4288 = vmatmul.mubr.f32.gmra.mxu0 %v4221
  %v4289 = vpop.f32.mrf.mxu0
  %v4290 = vadd.f32 0.0, %v4289
  %v4291 = vpop.f32.mrf.mxu0
  %4292 = vdwg.mxu0
  %v4293 = vadd.f32 %v4209, %v4290
  %v4294 = vld [vmem:[%s2018] sm:$0xff]
  %v4295 = vld [vmem:[%s2018 + $0x8] sm:$0xff]
  %v4296 = vld [vmem:[%s2018 + $0x10] sm:$0xff]
  %v4297 = vld [vmem:[%s2018 + $0x18] sm:$0xff]
  %v4298 = vld [vmem:[%s2018 + $0x20] sm:$0xff]
  %v4299 = vld [vmem:[%s2018 + $0x28] sm:$0xff]
  %v4300 = vld [vmem:[%s2018 + $0x30] sm:$0xff]
  %v4301 = vld [vmem:[%s2018 + $0x38] sm:$0xff]
  %v4302 = vrot.slane %v4124, 2
  %4303 = vrot.lane.b32.xlu0 %v4302, 64
  %v4304 = vpop.permute.xlu0 %4303
  %v4305 = vsel %vm1571, %v4304, 0
  %4307 = vmatprep.subr.mxu0 0.0
  %4308 = vmatpush1.msra.mxu0 0.0
  %4309 = vmatprep.subr.mxu0 0.0
  %4310 = vmatpush1.msra.mxu0 0.0
  %4311 = vmatprep.subr.mxu0 0.0
  %4312 = vmatpush1.msra.mxu0 0.0
  %4313 = vmatprep.subr.mxu0 0.0
  %4314 = vmatpush1.msra.mxu0 0.0
  %4315 = vmatprep.subr.mxu0 0.0
  %4316 = vmatpush1.msra.mxu0 0.0
  %4317 = vmatprep.subr.mxu0 0.0
  %4318 = vmatpush1.msra.mxu0 0.0
  %4319 = vmatprep.subr.mxu0 0.0
  %4320 = vmatpush1.msra.mxu0 0.0
  %4321 = vmatprep.subr.mxu0 0.0
  %4322 = vmatpush1.msra.mxu0 0.0
  %4323 = vmatprep.subr.mxu0 0.0
  %4324 = vmatpush1.msra.mxu0 %v4301
  %4325 = vmatprep.subr.mxu0 0.0
  %4326 = vmatpush1.msra.mxu0 %v4300
  %4327 = vmatprep.subr.mxu0 0.0
  %4328 = vmatpush1.msra.mxu0 %v4299
  %4329 = vmatprep.subr.mxu0 0.0
  %4330 = vmatpush1.msra.mxu0 %v4298
  %4331 = vmatprep.subr.mxu0 0.0
  %4332 = vmatpush1.msra.mxu0 %v4297
  %4333 = vmatprep.subr.mxu0 0.0
  %4334 = vmatpush1.msra.mxu0 %v4296
  %4335 = vmatprep.subr.mxu0 0.0
  %4336 = vmatpush1.msra.mxu0 %v4295
  %4337 = vmatprep.subr.mxu0 0.0
  %4338 = vmatpush1.msra.mxu0 %v4294
  %4339 = vmatprep.subr.mxu0 0.0
  %4340 = vmatpush2.msra.mxu0 0.0
  %4341 = vmatprep.subr.mxu0 0.0
  %4342 = vmatpush2.msra.mxu0 0.0
  %4343 = vmatprep.subr.mxu0 0.0
  %4344 = vmatpush2.msra.mxu0 0.0
  %4345 = vmatprep.subr.mxu0 0.0
  %4346 = vmatpush2.msra.mxu0 0.0
  %4347 = vmatprep.subr.mxu0 0.0
  %4348 = vmatpush2.msra.mxu0 0.0
  %4349 = vmatprep.subr.mxu0 0.0
  %4350 = vmatpush2.msra.mxu0 0.0
  %4351 = vmatprep.subr.mxu0 0.0
  %4352 = vmatpush2.msra.mxu0 0.0
  %4353 = vmatprep.subr.mxu0 0.0
  %4354 = vmatpush2.msra.mxu0 0.0
  %4355 = vmatprep.subr.mxu0 0.0
  %4356 = vmatpush2.msra.mxu0 0.0
  %4357 = vmatprep.subr.mxu0 0.0
  %4358 = vmatpush2.msra.mxu0 0.0
  %4359 = vmatprep.subr.mxu0 0.0
  %4360 = vmatpush2.msra.mxu0 0.0
  %4361 = vmatprep.subr.mxu0 0.0
  %4362 = vmatpush2.msra.mxu0 0.0
  %4363 = vmatprep.subr.mxu0 0.0
  %4364 = vmatpush2.msra.mxu0 0.0
  %4365 = vmatprep.subr.mxu0 0.0
  %4366 = vmatpush2.msra.mxu0 0.0
  %4367 = vmatprep.subr.mxu0 0.0
  %4368 = vmatpush2.msra.mxu0 0.0
  %4369 = vmatprep.subr.mxu0 0.0
  %4370 = vmatpush2.msra.mxu0 0.0
  %4371 = vmatprep.mubr.f32.mxu0 0.0
  %4372 = vmatmul.mubr.f32.gmra.mxu0 %v4305
  %v4373 = vpop.f32.mrf.mxu0
  %v4374 = vadd.f32 0.0, %v4373
  %v4375 = vpop.f32.mrf.mxu0
  %4376 = vdwg.mxu0
  %v4377 = vadd.f32 %v4293, %v4374
  %v4378 = vld [vmem:[%s2103] sm:$0xff]
  %v4379 = vld [vmem:[%s2103 + $0x8] sm:$0xff]
  %v4380 = vld [vmem:[%s2103 + $0x10] sm:$0xff]
  %v4381 = vld [vmem:[%s2103 + $0x18] sm:$0xff]
  %v4382 = vld [vmem:[%s2103 + $0x20] sm:$0xff]
  %v4383 = vld [vmem:[%s2103 + $0x28] sm:$0xff]
  %v4384 = vld [vmem:[%s2103 + $0x30] sm:$0xff]
  %v4385 = vld [vmem:[%s2103 + $0x38] sm:$0xff]
  %v4386 = vrot.slane %v4124, 3
  %4387 = vrot.lane.b32.xlu0 %v4386, 64
  %v4388 = vpop.permute.xlu0 %4387
  %v4389 = vsel %vm1571, %v4388, 0
  %4391 = vmatprep.subr.mxu0 0.0
  %4392 = vmatpush1.msra.mxu0 0.0
  %4393 = vmatprep.subr.mxu0 0.0
  %4394 = vmatpush1.msra.mxu0 0.0
  %4395 = vmatprep.subr.mxu0 0.0
  %4396 = vmatpush1.msra.mxu0 0.0
  %4397 = vmatprep.subr.mxu0 0.0
  %4398 = vmatpush1.msra.mxu0 0.0
  %4399 = vmatprep.subr.mxu0 0.0
  %4400 = vmatpush1.msra.mxu0 0.0
  %4401 = vmatprep.subr.mxu0 0.0
  %4402 = vmatpush1.msra.mxu0 0.0
  %4403 = vmatprep.subr.mxu0 0.0
  %4404 = vmatpush1.msra.mxu0 0.0
  %4405 = vmatprep.subr.mxu0 0.0
  %4406 = vmatpush1.msra.mxu0 0.0
  %4407 = vmatprep.subr.mxu0 0.0
  %4408 = vmatpush1.msra.mxu0 %v4385
  %4409 = vmatprep.subr.mxu0 0.0
  %4410 = vmatpush1.msra.mxu0 %v4384
  %4411 = vmatprep.subr.mxu0 0.0
  %4412 = vmatpush1.msra.mxu0 %v4383
  %4413 = vmatprep.subr.mxu0 0.0
  %4414 = vmatpush1.msra.mxu0 %v4382
  %4415 = vmatprep.subr.mxu0 0.0
  %4416 = vmatpush1.msra.mxu0 %v4381
  %4417 = vmatprep.subr.mxu0 0.0
  %4418 = vmatpush1.msra.mxu0 %v4380
  %4419 = vmatprep.subr.mxu0 0.0
  %4420 = vmatpush1.msra.mxu0 %v4379
  %4421 = vmatprep.subr.mxu0 0.0
  %4422 = vmatpush1.msra.mxu0 %v4378
  %4423 = vmatprep.subr.mxu0 0.0
  %4424 = vmatpush2.msra.mxu0 0.0
  %4425 = vmatprep.subr.mxu0 0.0
  %4426 = vmatpush2.msra.mxu0 0.0
  %4427 = vmatprep.subr.mxu0 0.0
  %4428 = vmatpush2.msra.mxu0 0.0
  %4429 = vmatprep.subr.mxu0 0.0
  %4430 = vmatpush2.msra.mxu0 0.0
  %4431 = vmatprep.subr.mxu0 0.0
  %4432 = vmatpush2.msra.mxu0 0.0
  %4433 = vmatprep.subr.mxu0 0.0
  %4434 = vmatpush2.msra.mxu0 0.0
  %4435 = vmatprep.subr.mxu0 0.0
  %4436 = vmatpush2.msra.mxu0 0.0
  %4437 = vmatprep.subr.mxu0 0.0
  %4438 = vmatpush2.msra.mxu0 0.0
  %4439 = vmatprep.subr.mxu0 0.0
  %4440 = vmatpush2.msra.mxu0 0.0
  %4441 = vmatprep.subr.mxu0 0.0
  %4442 = vmatpush2.msra.mxu0 0.0
  %4443 = vmatprep.subr.mxu0 0.0
  %4444 = vmatpush2.msra.mxu0 0.0
  %4445 = vmatprep.subr.mxu0 0.0
  %4446 = vmatpush2.msra.mxu0 0.0
  %4447 = vmatprep.subr.mxu0 0.0
  %4448 = vmatpush2.msra.mxu0 0.0
  %4449 = vmatprep.subr.mxu0 0.0
  %4450 = vmatpush2.msra.mxu0 0.0
  %4451 = vmatprep.subr.mxu0 0.0
  %4452 = vmatpush2.msra.mxu0 0.0
  %4453 = vmatprep.subr.mxu0 0.0
  %4454 = vmatpush2.msra.mxu0 0.0
  %4455 = vmatprep.mubr.f32.mxu0 0.0
  %4456 = vmatmul.mubr.f32.gmra.mxu0 %v4389
  %v4457 = vpop.f32.mrf.mxu0
  %v4458 = vadd.f32 0.0, %v4457
  %v4459 = vpop.f32.mrf.mxu0
  %4460 = vdwg.mxu0
  %v4461 = vadd.f32 %v4377, %v4458
  %v4462 = vld [vmem:[%s2188] sm:$0xff]
  %v4463 = vld [vmem:[%s2188 + $0x8] sm:$0xff]
  %v4464 = vld [vmem:[%s2188 + $0x10] sm:$0xff]
  %v4465 = vld [vmem:[%s2188 + $0x18] sm:$0xff]
  %v4466 = vld [vmem:[%s2188 + $0x20] sm:$0xff]
  %v4467 = vld [vmem:[%s2188 + $0x28] sm:$0xff]
  %v4468 = vld [vmem:[%s2188 + $0x30] sm:$0xff]
  %v4469 = vld [vmem:[%s2188 + $0x38] sm:$0xff]
  %v4470 = vrot.slane %v4124, 4
  %4471 = vrot.lane.b32.xlu0 %v4470, 64
  %v4472 = vpop.permute.xlu0 %4471
  %v4473 = vsel %vm1571, %v4472, 0
  %4475 = vmatprep.subr.mxu0 0.0
  %4476 = vmatpush1.msra.mxu0 0.0
  %4477 = vmatprep.subr.mxu0 0.0
  %4478 = vmatpush1.msra.mxu0 0.0
  %4479 = vmatprep.subr.mxu0 0.0
  %4480 = vmatpush1.msra.mxu0 0.0
  %4481 = vmatprep.subr.mxu0 0.0
  %4482 = vmatpush1.msra.mxu0 0.0
  %4483 = vmatprep.subr.mxu0 0.0
  %4484 = vmatpush1.msra.mxu0 0.0
  %4485 = vmatprep.subr.mxu0 0.0
  %4486 = vmatpush1.msra.mxu0 0.0
  %4487 = vmatprep.subr.mxu0 0.0
  %4488 = vmatpush1.msra.mxu0 0.0
  %4489 = vmatprep.subr.mxu0 0.0
  %4490 = vmatpush1.msra.mxu0 0.0
  %4491 = vmatprep.subr.mxu0 0.0
  %4492 = vmatpush1.msra.mxu0 %v4469
  %4493 = vmatprep.subr.mxu0 0.0
  %4494 = vmatpush1.msra.mxu0 %v4468
  %4495 = vmatprep.subr.mxu0 0.0
  %4496 = vmatpush1.msra.mxu0 %v4467
  %4497 = vmatprep.subr.mxu0 0.0
  %4498 = vmatpush1.msra.mxu0 %v4466
  %4499 = vmatprep.subr.mxu0 0.0
  %4500 = vmatpush1.msra.mxu0 %v4465
  %4501 = vmatprep.subr.mxu0 0.0
  %4502 = vmatpush1.msra.mxu0 %v4464
  %4503 = vmatprep.subr.mxu0 0.0
  %4504 = vmatpush1.msra.mxu0 %v4463
  %4505 = vmatprep.subr.mxu0 0.0
  %4506 = vmatpush1.msra.mxu0 %v4462
  %4507 = vmatprep.subr.mxu0 0.0
  %4508 = vmatpush2.msra.mxu0 0.0
  %4509 = vmatprep.subr.mxu0 0.0
  %4510 = vmatpush2.msra.mxu0 0.0
  %4511 = vmatprep.subr.mxu0 0.0
  %4512 = vmatpush2.msra.mxu0 0.0
  %4513 = vmatprep.subr.mxu0 0.0
  %4514 = vmatpush2.msra.mxu0 0.0
  %4515 = vmatprep.subr.mxu0 0.0
  %4516 = vmatpush2.msra.mxu0 0.0
  %4517 = vmatprep.subr.mxu0 0.0
  %4518 = vmatpush2.msra.mxu0 0.0
  %4519 = vmatprep.subr.mxu0 0.0
  %4520 = vmatpush2.msra.mxu0 0.0
  %4521 = vmatprep.subr.mxu0 0.0
  %4522 = vmatpush2.msra.mxu0 0.0
  %4523 = vmatprep.subr.mxu0 0.0
  %4524 = vmatpush2.msra.mxu0 0.0
  %4525 = vmatprep.subr.mxu0 0.0
  %4526 = vmatpush2.msra.mxu0 0.0
  %4527 = vmatprep.subr.mxu0 0.0
  %4528 = vmatpush2.msra.mxu0 0.0
  %4529 = vmatprep.subr.mxu0 0.0
  %4530 = vmatpush2.msra.mxu0 0.0
  %4531 = vmatprep.subr.mxu0 0.0
  %4532 = vmatpush2.msra.mxu0 0.0
  %4533 = vmatprep.subr.mxu0 0.0
  %4534 = vmatpush2.msra.mxu0 0.0
  %4535 = vmatprep.subr.mxu0 0.0
  %4536 = vmatpush2.msra.mxu0 0.0
  %4537 = vmatprep.subr.mxu0 0.0
  %4538 = vmatpush2.msra.mxu0 0.0
  %4539 = vmatprep.mubr.f32.mxu0 0.0
  %4540 = vmatmul.mubr.f32.gmra.mxu0 %v4473
  %v4541 = vpop.f32.mrf.mxu0
  %v4542 = vadd.f32 0.0, %v4541
  %v4543 = vpop.f32.mrf.mxu0
  %4544 = vdwg.mxu0
  %v4545 = vadd.f32 %v4461, %v4542
  %v4546 = vld [vmem:[%s15] sm:$0xff]
  %v4547 = vld [vmem:[%s15 + $0x8] sm:$0xff]
  %v4548 = vld [vmem:[%s15 + $0x10] sm:$0xff]
  %v4549 = vld [vmem:[%s15 + $0x18] sm:$0xff]
  %v4550 = vld [vmem:[%s16] sm:$0x1]
  %v4552 = vsel %vm2278, %v4545, 0
  %4554 = vmatprep.subr.mxu0 0.0
  %4555 = vmatpush1.msra.mxu0 0.0
  %4556 = vmatprep.subr.mxu0 0.0
  %4557 = vmatpush1.msra.mxu0 0.0
  %4558 = vmatprep.subr.mxu0 0.0
  %4559 = vmatpush1.msra.mxu0 0.0
  %4560 = vmatprep.subr.mxu0 0.0
  %4561 = vmatpush1.msra.mxu0 0.0
  %4562 = vmatprep.subr.mxu0 0.0
  %4563 = vmatpush1.msra.mxu0 0.0
  %4564 = vmatprep.subr.mxu0 0.0
  %4565 = vmatpush1.msra.mxu0 0.0
  %4566 = vmatprep.subr.mxu0 0.0
  %4567 = vmatpush1.msra.mxu0 0.0
  %4568 = vmatprep.subr.mxu0 0.0
  %4569 = vmatpush1.msra.mxu0 0.0
  %4570 = vmatprep.subr.mxu0 0.0
  %4571 = vmatpush1.msra.mxu0 0.0
  %4572 = vmatprep.subr.mxu0 0.0
  %4573 = vmatpush1.msra.mxu0 0.0
  %4574 = vmatprep.subr.mxu0 0.0
  %4575 = vmatpush1.msra.mxu0 0.0
  %4576 = vmatprep.subr.mxu0 0.0
  %4577 = vmatpush1.msra.mxu0 0.0
  %4578 = vmatprep.subr.mxu0 0.0
  %4579 = vmatpush1.msra.mxu0 %v4549
  %4580 = vmatprep.subr.mxu0 0.0
  %4581 = vmatpush1.msra.mxu0 %v4548
  %4582 = vmatprep.subr.mxu0 0.0
  %4583 = vmatpush1.msra.mxu0 %v4547
  %4584 = vmatprep.subr.mxu0 0.0
  %4585 = vmatpush1.msra.mxu0 %v4546
  %4586 = vmatprep.subr.mxu0 0.0
  %4587 = vmatpush2.msra.mxu0 0.0
  %4588 = vmatprep.subr.mxu0 0.0
  %4589 = vmatpush2.msra.mxu0 0.0
  %4590 = vmatprep.subr.mxu0 0.0
  %4591 = vmatpush2.msra.mxu0 0.0
  %4592 = vmatprep.subr.mxu0 0.0
  %4593 = vmatpush2.msra.mxu0 0.0
  %4594 = vmatprep.subr.mxu0 0.0
  %4595 = vmatpush2.msra.mxu0 0.0
  %4596 = vmatprep.subr.mxu0 0.0
  %4597 = vmatpush2.msra.mxu0 0.0
  %4598 = vmatprep.subr.mxu0 0.0
  %4599 = vmatpush2.msra.mxu0 0.0
  %4600 = vmatprep.subr.mxu0 0.0
  %4601 = vmatpush2.msra.mxu0 0.0
  %4602 = vmatprep.subr.mxu0 0.0
  %4603 = vmatpush2.msra.mxu0 0.0
  %4604 = vmatprep.subr.mxu0 0.0
  %4605 = vmatpush2.msra.mxu0 0.0
  %4606 = vmatprep.subr.mxu0 0.0
  %4607 = vmatpush2.msra.mxu0 0.0
  %4608 = vmatprep.subr.mxu0 0.0
  %4609 = vmatpush2.msra.mxu0 0.0
  %4610 = vmatprep.subr.mxu0 0.0
  %4611 = vmatpush2.msra.mxu0 0.0
  %4612 = vmatprep.subr.mxu0 0.0
  %4613 = vmatpush2.msra.mxu0 0.0
  %4614 = vmatprep.subr.mxu0 0.0
  %4615 = vmatpush2.msra.mxu0 0.0
  %4616 = vmatprep.subr.mxu0 0.0
  %4617 = vmatpush2.msra.mxu0 0.0
  %4618 = vmatprep.mubr.f32.mxu0 0.0
  %4619 = vmatmul.mubr.f32.gmra.mxu0 %v4552
  %v4620 = vpop.f32.mrf.mxu0
  %v4621 = vadd.f32 %v4550, %v4620
  %v4622 = vpop.f32.mrf.mxu0
  %4623 = vdwg.mxu0
  %v4624 = vsel %vm2352, %v4621, -inf
  %4625 = vmax.xlane.f32.xlu0 %v4624
  %v4626 = vpop.xlane.xlu0 %4625
  %v4627 = vsub.f32 %v4621, %v4626
  %v4628 = vmul.f32 %v4627, 1.442695
  %v4629 = vpow.pop %v4628
  %v4630 = vsel %vm2352, %v4629, 0.0
  %4631 = vadd.xlane.f32.xlu0 %v4630
  %v4632 = vpop.xlane.xlu0 %4631
  %v4633 = vrcp.pop %v4632
  %v4634 = vmul.f32 %v4629, %v4633
  %4635 = vst.msk [vmem:[%s17 + $0x1] sm:$0x1] %vm2352, %v4634
  %s4636 = scalar_lea.vmem %s0, 16
  %v4637 = vld [vmem:[%s4636] sm:$0x1f]
  %v4639 = vsel %vm73, %v4637, 0
  %4641 = vmatprep.subr.mxu0 0.0
  %4642 = vmatpush1.msra.mxu0 0.0
  %4643 = vmatprep.subr.mxu0 0.0
  %4644 = vmatpush1.msra.mxu0 0.0
  %4645 = vmatprep.subr.mxu0 0.0
  %4646 = vmatpush1.msra.mxu0 0.0
  %4647 = vmatprep.subr.mxu0 0.0
  %4648 = vmatpush1.msra.mxu0 0.0
  %4649 = vmatprep.subr.mxu0 0.0
  %4650 = vmatpush1.msra.mxu0 0.0
  %4651 = vmatprep.subr.mxu0 0.0
  %4652 = vmatpush1.msra.mxu0 0.0
  %4653 = vmatprep.subr.mxu0 0.0
  %4654 = vmatpush1.msra.mxu0 0.0
  %4655 = vmatprep.subr.mxu0 0.0
  %4656 = vmatpush1.msra.mxu0 0.0
  %4657 = vmatprep.subr.mxu0 0.0
  %4658 = vmatpush1.msra.mxu0 0.0
  %4659 = vmatprep.subr.mxu0 0.0
  %4660 = vmatpush1.msra.mxu0 0.0
  %4661 = vmatprep.subr.mxu0 0.0
  %4662 = vmatpush1.msra.mxu0 0.0
  %4663 = vmatprep.subr.mxu0 0.0
  %4664 = vmatpush1.msra.mxu0 0.0
  %4665 = vmatprep.subr.mxu0 0.0
  %4666 = vmatpush1.msra.mxu0 0.0
  %4667 = vmatprep.subr.mxu0 0.0
  %4668 = vmatpush1.msra.mxu0 0.0
  %4669 = vmatprep.subr.mxu0 0.0
  %4670 = vmatpush1.msra.mxu0 0.0
  %4671 = vmatprep.subr.mxu0 0.0
  %4672 = vmatpush1.msra.mxu0 %v4639
  %4673 = vmatprep.subr.mxu0 0.0
  %4674 = vmatpush2.msra.mxu0 0.0
  %4675 = vmatprep.subr.mxu0 0.0
  %4676 = vmatpush2.msra.mxu0 0.0
  %4677 = vmatprep.subr.mxu0 0.0
  %4678 = vmatpush2.msra.mxu0 0.0
  %4679 = vmatprep.subr.mxu0 0.0
  %4680 = vmatpush2.msra.mxu0 0.0
  %4681 = vmatprep.subr.mxu0 0.0
  %4682 = vmatpush2.msra.mxu0 0.0
  %4683 = vmatprep.subr.mxu0 0.0
  %4684 = vmatpush2.msra.mxu0 0.0
  %4685 = vmatprep.subr.mxu0 0.0
  %4686 = vmatpush2.msra.mxu0 0.0
  %4687 = vmatprep.subr.mxu0 0.0
  %4688 = vmatpush2.msra.mxu0 0.0
  %4689 = vmatprep.subr.mxu0 0.0
  %4690 = vmatpush2.msra.mxu0 0.0
  %4691 = vmatprep.subr.mxu0 0.0
  %4692 = vmatpush2.msra.mxu0 0.0
  %4693 = vmatprep.subr.mxu0 0.0
  %4694 = vmatpush2.msra.mxu0 0.0
  %4695 = vmatprep.subr.mxu0 0.0
  %4696 = vmatpush2.msra.mxu0 0.0
  %4697 = vmatprep.subr.mxu0 0.0
  %4698 = vmatpush2.msra.mxu0 0.0
  %4699 = vmatprep.subr.mxu0 0.0
  %4700 = vmatpush2.msra.mxu0 0.0
  %4701 = vmatprep.subr.mxu0 0.0
  %4702 = vmatpush2.msra.mxu0 0.0
  %4703 = vmatprep.subr.mxu0 0.0
  %4704 = vmatpush2.msra.mxu0 0.0
  %4705 = vmatprep.mubr.f32.mxu0 0.0
  %4706 = vmatmul.mubr.f32.gmra.mxu0 %v71
  %v4707 = vpop.f32.mrf.mxu0
  %v4708 = vadd.f32 0.0, %v4707
  %v4709 = vpop.f32.mrf.mxu0
  %4710 = vdwg.mxu0
  %4711 = vmatprep.subr.mxu0 0.0
  %4712 = vmatpush1.msra.mxu0 0.0
  %4713 = vmatprep.subr.mxu0 0.0
  %4714 = vmatpush1.msra.mxu0 0.0
  %4715 = vmatprep.subr.mxu0 0.0
  %4716 = vmatpush1.msra.mxu0 0.0
  %4717 = vmatprep.subr.mxu0 0.0
  %4718 = vmatpush1.msra.mxu0 0.0
  %4719 = vmatprep.subr.mxu0 0.0
  %4720 = vmatpush1.msra.mxu0 0.0
  %4721 = vmatprep.subr.mxu0 0.0
  %4722 = vmatpush1.msra.mxu0 0.0
  %4723 = vmatprep.subr.mxu0 0.0
  %4724 = vmatpush1.msra.mxu0 0.0
  %4725 = vmatprep.subr.mxu0 0.0
  %4726 = vmatpush1.msra.mxu0 0.0
  %4727 = vmatprep.subr.mxu0 0.0
  %4728 = vmatpush1.msra.mxu0 0.0
  %4729 = vmatprep.subr.mxu0 0.0
  %4730 = vmatpush1.msra.mxu0 0.0
  %4731 = vmatprep.subr.mxu0 0.0
  %4732 = vmatpush1.msra.mxu0 0.0
  %4733 = vmatprep.subr.mxu0 0.0
  %4734 = vmatpush1.msra.mxu0 0.0
  %4735 = vmatprep.subr.mxu0 0.0
  %4736 = vmatpush1.msra.mxu0 0.0
  %4737 = vmatprep.subr.mxu0 0.0
  %4738 = vmatpush1.msra.mxu0 0.0
  %4739 = vmatprep.subr.mxu0 0.0
  %4740 = vmatpush1.msra.mxu0 0.0
  %4741 = vmatprep.subr.mxu0 0.0
  %4742 = vmatpush1.msra.mxu0 %v4639
  %4743 = vmatprep.subr.mxu0 0.0
  %4744 = vmatpush2.msra.mxu0 0.0
  %4745 = vmatprep.subr.mxu0 0.0
  %4746 = vmatpush2.msra.mxu0 0.0
  %4747 = vmatprep.subr.mxu0 0.0
  %4748 = vmatpush2.msra.mxu0 0.0
  %4749 = vmatprep.subr.mxu0 0.0
  %4750 = vmatpush2.msra.mxu0 0.0
  %4751 = vmatprep.subr.mxu0 0.0
  %4752 = vmatpush2.msra.mxu0 0.0
  %4753 = vmatprep.subr.mxu0 0.0
  %4754 = vmatpush2.msra.mxu0 0.0
  %4755 = vmatprep.subr.mxu0 0.0
  %4756 = vmatpush2.msra.mxu0 0.0
  %4757 = vmatprep.subr.mxu0 0.0
  %4758 = vmatpush2.msra.mxu0 0.0
  %4759 = vmatprep.subr.mxu0 0.0
  %4760 = vmatpush2.msra.mxu0 0.0
  %4761 = vmatprep.subr.mxu0 0.0
  %4762 = vmatpush2.msra.mxu0 0.0
  %4763 = vmatprep.subr.mxu0 0.0
  %4764 = vmatpush2.msra.mxu0 0.0
  %4765 = vmatprep.subr.mxu0 0.0
  %4766 = vmatpush2.msra.mxu0 0.0
  %4767 = vmatprep.subr.mxu0 0.0
  %4768 = vmatpush2.msra.mxu0 0.0
  %4769 = vmatprep.subr.mxu0 0.0
  %4770 = vmatpush2.msra.mxu0 0.0
  %4771 = vmatprep.subr.mxu0 0.0
  %4772 = vmatpush2.msra.mxu0 0.0
  %4773 = vmatprep.subr.mxu0 0.0
  %4774 = vmatpush2.msra.mxu0 0.0
  %4775 = vmatprep.mubr.f32.mxu0 0.0
  %4776 = vmatmul.mubr.f32.gmra.mxu0 %v148
  %v4777 = vpop.f32.mrf.mxu0
  %v4778 = vadd.f32 0.0, %v4777
  %v4779 = vpop.f32.mrf.mxu0
  %4780 = vdwg.mxu0
  %v4781 = vld [vmem:[%s1] sm:$0xff]
  %v4782 = vld [vmem:[%s1 + $0x8] sm:$0xff]
  %v4783 = vld [vmem:[%s1 + $0x10] sm:$0xff]
  %v4784 = vld [vmem:[%s2] sm:$0x1]
  %v4786 = vlaneseq
  %v4787 = vshrl.u32 %v4786, 7
  %v4788 = vsub.s32 0, %v4787
  %v4789 = vrot.slane %v4784, %v4788
  %v4791 = vsel %vm230, %v4637, 0
  %4793 = vmatprep.subr.mxu0 0.0
  %4794 = vmatpush1.msra.mxu0 0.0
  %4795 = vmatprep.subr.mxu0 0.0
  %4796 = vmatpush1.msra.mxu0 0.0
  %4797 = vmatprep.subr.mxu0 0.0
  %4798 = vmatpush1.msra.mxu0 0.0
  %4799 = vmatprep.subr.mxu0 0.0
  %4800 = vmatpush1.msra.mxu0 0.0
  %4801 = vmatprep.subr.mxu0 0.0
  %4802 = vmatpush1.msra.mxu0 0.0
  %4803 = vmatprep.subr.mxu0 0.0
  %4804 = vmatpush1.msra.mxu0 0.0
  %4805 = vmatprep.subr.mxu0 0.0
  %4806 = vmatpush1.msra.mxu0 0.0
  %4807 = vmatprep.subr.mxu0 0.0
  %4808 = vmatpush1.msra.mxu0 0.0
  %4809 = vmatprep.subr.mxu0 0.0
  %4810 = vmatpush1.msra.mxu0 0.0
  %4811 = vmatprep.subr.mxu0 0.0
  %4812 = vmatpush1.msra.mxu0 0.0
  %4813 = vmatprep.subr.mxu0 0.0
  %4814 = vmatpush1.msra.mxu0 0.0
  %4815 = vmatprep.subr.mxu0 0.0
  %4816 = vmatpush1.msra.mxu0 0.0
  %4817 = vmatprep.subr.mxu0 0.0
  %4818 = vmatpush1.msra.mxu0 0.0
  %4819 = vmatprep.subr.mxu0 0.0
  %4820 = vmatpush1.msra.mxu0 %v4783
  %4821 = vmatprep.subr.mxu0 0.0
  %4822 = vmatpush1.msra.mxu0 %v4782
  %4823 = vmatprep.subr.mxu0 0.0
  %4824 = vmatpush1.msra.mxu0 %v4781
  %4825 = vmatprep.subr.mxu0 0.0
  %4826 = vmatpush2.msra.mxu0 0.0
  %4827 = vmatprep.subr.mxu0 0.0
  %4828 = vmatpush2.msra.mxu0 0.0
  %4829 = vmatprep.subr.mxu0 0.0
  %4830 = vmatpush2.msra.mxu0 0.0
  %4831 = vmatprep.subr.mxu0 0.0
  %4832 = vmatpush2.msra.mxu0 0.0
  %4833 = vmatprep.subr.mxu0 0.0
  %4834 = vmatpush2.msra.mxu0 0.0
  %4835 = vmatprep.subr.mxu0 0.0
  %4836 = vmatpush2.msra.mxu0 0.0
  %4837 = vmatprep.subr.mxu0 0.0
  %4838 = vmatpush2.msra.mxu0 0.0
  %4839 = vmatprep.subr.mxu0 0.0
  %4840 = vmatpush2.msra.mxu0 0.0
  %4841 = vmatprep.subr.mxu0 0.0
  %4842 = vmatpush2.msra.mxu0 0.0
  %4843 = vmatprep.subr.mxu0 0.0
  %4844 = vmatpush2.msra.mxu0 0.0
  %4845 = vmatprep.subr.mxu0 0.0
  %4846 = vmatpush2.msra.mxu0 0.0
  %4847 = vmatprep.subr.mxu0 0.0
  %4848 = vmatpush2.msra.mxu0 0.0
  %4849 = vmatprep.subr.mxu0 0.0
  %4850 = vmatpush2.msra.mxu0 0.0
  %4851 = vmatprep.subr.mxu0 0.0
  %4852 = vmatpush2.msra.mxu0 0.0
  %4853 = vmatprep.subr.mxu0 0.0
  %4854 = vmatpush2.msra.mxu0 0.0
  %4855 = vmatprep.subr.mxu0 0.0
  %4856 = vmatpush2.msra.mxu0 0.0
  %4857 = vmatprep.mubr.f32.mxu0 0.0
  %4858 = vmatmul.mubr.f32.gmra.mxu0 %v4791
  %v4859 = vpop.f32.mrf.mxu0
  %v4860 = vadd.f32 %v4789, %v4859
  %v4861 = vpop.f32.mrf.mxu0
  %4862 = vdwg.mxu0
  %v4863 = vld [vmem:[%s3] sm:$0xff]
  %v4864 = vld [vmem:[%s3 + $0x8] sm:$0xff]
  %v4865 = vld [vmem:[%s3 + $0x10] sm:$0xff]
  %v4866 = vld [vmem:[%s306] sm:$0xff]
  %v4867 = vld [vmem:[%s306 + $0x8] sm:$0xff]
  %v4868 = vld [vmem:[%s306 + $0x10] sm:$0xff]
  %4869 = vmatprep.subr.mxu0 0.0
  %4870 = vmatpush1.msra.mxu0 0.0
  %4871 = vmatprep.subr.mxu0 0.0
  %4872 = vmatpush1.msra.mxu0 0.0
  %4873 = vmatprep.subr.mxu0 0.0
  %4874 = vmatpush1.msra.mxu0 0.0
  %4875 = vmatprep.subr.mxu0 0.0
  %4876 = vmatpush1.msra.mxu0 0.0
  %4877 = vmatprep.subr.mxu0 0.0
  %4878 = vmatpush1.msra.mxu0 0.0
  %4879 = vmatprep.subr.mxu0 0.0
  %4880 = vmatpush1.msra.mxu0 0.0
  %4881 = vmatprep.subr.mxu0 0.0
  %4882 = vmatpush1.msra.mxu0 0.0
  %4883 = vmatprep.subr.mxu0 0.0
  %4884 = vmatpush1.msra.mxu0 0.0
  %4885 = vmatprep.subr.mxu0 0.0
  %4886 = vmatpush1.msra.mxu0 0.0
  %4887 = vmatprep.subr.mxu0 0.0
  %4888 = vmatpush1.msra.mxu0 0.0
  %4889 = vmatprep.subr.mxu0 0.0
  %4890 = vmatpush1.msra.mxu0 0.0
  %4891 = vmatprep.subr.mxu0 0.0
  %4892 = vmatpush1.msra.mxu0 0.0
  %4893 = vmatprep.subr.mxu0 0.0
  %4894 = vmatpush1.msra.mxu0 0.0
  %4895 = vmatprep.subr.mxu0 0.0
  %4896 = vmatpush1.msra.mxu0 %v4868
  %4897 = vmatprep.subr.mxu0 0.0
  %4898 = vmatpush1.msra.mxu0 %v4867
  %4899 = vmatprep.subr.mxu0 0.0
  %4900 = vmatpush1.msra.mxu0 %v4866
  %4901 = vmatprep.subr.mxu0 0.0
  %4902 = vmatpush2.msra.mxu0 0.0
  %4903 = vmatprep.subr.mxu0 0.0
  %4904 = vmatpush2.msra.mxu0 0.0
  %4905 = vmatprep.subr.mxu0 0.0
  %4906 = vmatpush2.msra.mxu0 0.0
  %4907 = vmatprep.subr.mxu0 0.0
  %4908 = vmatpush2.msra.mxu0 0.0
  %4909 = vmatprep.subr.mxu0 0.0
  %4910 = vmatpush2.msra.mxu0 0.0
  %4911 = vmatprep.subr.mxu0 0.0
  %4912 = vmatpush2.msra.mxu0 0.0
  %4913 = vmatprep.subr.mxu0 0.0
  %4914 = vmatpush2.msra.mxu0 0.0
  %4915 = vmatprep.subr.mxu0 0.0
  %4916 = vmatpush2.msra.mxu0 0.0
  %4917 = vmatprep.subr.mxu0 0.0
  %4918 = vmatpush2.msra.mxu0 0.0
  %4919 = vmatprep.subr.mxu0 0.0
  %4920 = vmatpush2.msra.mxu0 0.0
  %4921 = vmatprep.subr.mxu0 0.0
  %4922 = vmatpush2.msra.mxu0 0.0
  %4923 = vmatprep.subr.mxu0 0.0
  %4924 = vmatpush2.msra.mxu0 0.0
  %4925 = vmatprep.subr.mxu0 0.0
  %4926 = vmatpush2.msra.mxu0 0.0
  %4927 = vmatprep.subr.mxu0 0.0
  %4928 = vmatpush2.msra.mxu0 0.0
  %4929 = vmatprep.subr.mxu0 0.0
  %4930 = vmatpush2.msra.mxu0 0.0
  %4931 = vmatprep.subr.mxu0 0.0
  %4932 = vmatpush2.msra.mxu0 0.0
  %4933 = vmatprep.mubr.f32.mxu0 0.0
  %4934 = vmatmul.mubr.f32.gmra.mxu0 %v4791
  %v4935 = vpop.f32.mrf.mxu0
  %v4936 = vadd.f32 0.0, %v4935
  %v4937 = vpop.f32.mrf.mxu0
  %4938 = vdwg.mxu0
  %v4940 = vsel %vm230, %v4708, 0
  %4942 = vmatprep.subr.mxu0 0.0
  %4943 = vmatpush1.msra.mxu0 0.0
  %4944 = vmatprep.subr.mxu0 0.0
  %4945 = vmatpush1.msra.mxu0 0.0
  %4946 = vmatprep.subr.mxu0 0.0
  %4947 = vmatpush1.msra.mxu0 0.0
  %4948 = vmatprep.subr.mxu0 0.0
  %4949 = vmatpush1.msra.mxu0 0.0
  %4950 = vmatprep.subr.mxu0 0.0
  %4951 = vmatpush1.msra.mxu0 0.0
  %4952 = vmatprep.subr.mxu0 0.0
  %4953 = vmatpush1.msra.mxu0 0.0
  %4954 = vmatprep.subr.mxu0 0.0
  %4955 = vmatpush1.msra.mxu0 0.0
  %4956 = vmatprep.subr.mxu0 0.0
  %4957 = vmatpush1.msra.mxu0 0.0
  %4958 = vmatprep.subr.mxu0 0.0
  %4959 = vmatpush1.msra.mxu0 0.0
  %4960 = vmatprep.subr.mxu0 0.0
  %4961 = vmatpush1.msra.mxu0 0.0
  %4962 = vmatprep.subr.mxu0 0.0
  %4963 = vmatpush1.msra.mxu0 0.0
  %4964 = vmatprep.subr.mxu0 0.0
  %4965 = vmatpush1.msra.mxu0 0.0
  %4966 = vmatprep.subr.mxu0 0.0
  %4967 = vmatpush1.msra.mxu0 0.0
  %4968 = vmatprep.subr.mxu0 0.0
  %4969 = vmatpush1.msra.mxu0 %v4865
  %4970 = vmatprep.subr.mxu0 0.0
  %4971 = vmatpush1.msra.mxu0 %v4864
  %4972 = vmatprep.subr.mxu0 0.0
  %4973 = vmatpush1.msra.mxu0 %v4863
  %4974 = vmatprep.subr.mxu0 0.0
  %4975 = vmatpush2.msra.mxu0 0.0
  %4976 = vmatprep.subr.mxu0 0.0
  %4977 = vmatpush2.msra.mxu0 0.0
  %4978 = vmatprep.subr.mxu0 0.0
  %4979 = vmatpush2.msra.mxu0 0.0
  %4980 = vmatprep.subr.mxu0 0.0
  %4981 = vmatpush2.msra.mxu0 0.0
  %4982 = vmatprep.subr.mxu0 0.0
  %4983 = vmatpush2.msra.mxu0 0.0
  %4984 = vmatprep.subr.mxu0 0.0
  %4985 = vmatpush2.msra.mxu0 0.0
  %4986 = vmatprep.subr.mxu0 0.0
  %4987 = vmatpush2.msra.mxu0 0.0
  %4988 = vmatprep.subr.mxu0 0.0
  %4989 = vmatpush2.msra.mxu0 0.0
  %4990 = vmatprep.subr.mxu0 0.0
  %4991 = vmatpush2.msra.mxu0 0.0
  %4992 = vmatprep.subr.mxu0 0.0
  %4993 = vmatpush2.msra.mxu0 0.0
  %4994 = vmatprep.subr.mxu0 0.0
  %4995 = vmatpush2.msra.mxu0 0.0
  %4996 = vmatprep.subr.mxu0 0.0
  %4997 = vmatpush2.msra.mxu0 0.0
  %4998 = vmatprep.subr.mxu0 0.0
  %4999 = vmatpush2.msra.mxu0 0.0
  %5000 = vmatprep.subr.mxu0 0.0
  %5001 = vmatpush2.msra.mxu0 0.0
  %5002 = vmatprep.subr.mxu0 0.0
  %5003 = vmatpush2.msra.mxu0 0.0
  %5004 = vmatprep.subr.mxu0 0.0
  %5005 = vmatpush2.msra.mxu0 0.0
  %5006 = vmatprep.mubr.f32.mxu0 0.0
  %5007 = vmatmul.mubr.f32.gmra.mxu0 %v4940
  %v5008 = vpop.f32.mrf.mxu0
  %v5009 = vadd.f32 %v4936, %v5008
  %v5010 = vpop.f32.mrf.mxu0
  %5011 = vdwg.mxu0
  %v5012 = vld [vmem:[%s453] sm:$0xff]
  %v5013 = vld [vmem:[%s453 + $0x8] sm:$0xff]
  %v5014 = vld [vmem:[%s453 + $0x10] sm:$0xff]
  %v5016 = vsel %vm230, %v4778, 0
  %5018 = vmatprep.subr.mxu0 0.0
  %5019 = vmatpush1.msra.mxu0 0.0
  %5020 = vmatprep.subr.mxu0 0.0
  %5021 = vmatpush1.msra.mxu0 0.0
  %5022 = vmatprep.subr.mxu0 0.0
  %5023 = vmatpush1.msra.mxu0 0.0
  %5024 = vmatprep.subr.mxu0 0.0
  %5025 = vmatpush1.msra.mxu0 0.0
  %5026 = vmatprep.subr.mxu0 0.0
  %5027 = vmatpush1.msra.mxu0 0.0
  %5028 = vmatprep.subr.mxu0 0.0
  %5029 = vmatpush1.msra.mxu0 0.0
  %5030 = vmatprep.subr.mxu0 0.0
  %5031 = vmatpush1.msra.mxu0 0.0
  %5032 = vmatprep.subr.mxu0 0.0
  %5033 = vmatpush1.msra.mxu0 0.0
  %5034 = vmatprep.subr.mxu0 0.0
  %5035 = vmatpush1.msra.mxu0 0.0
  %5036 = vmatprep.subr.mxu0 0.0
  %5037 = vmatpush1.msra.mxu0 0.0
  %5038 = vmatprep.subr.mxu0 0.0
  %5039 = vmatpush1.msra.mxu0 0.0
  %5040 = vmatprep.subr.mxu0 0.0
  %5041 = vmatpush1.msra.mxu0 0.0
  %5042 = vmatprep.subr.mxu0 0.0
  %5043 = vmatpush1.msra.mxu0 0.0
  %5044 = vmatprep.subr.mxu0 0.0
  %5045 = vmatpush1.msra.mxu0 %v5014
  %5046 = vmatprep.subr.mxu0 0.0
  %5047 = vmatpush1.msra.mxu0 %v5013
  %5048 = vmatprep.subr.mxu0 0.0
  %5049 = vmatpush1.msra.mxu0 %v5012
  %5050 = vmatprep.subr.mxu0 0.0
  %5051 = vmatpush2.msra.mxu0 0.0
  %5052 = vmatprep.subr.mxu0 0.0
  %5053 = vmatpush2.msra.mxu0 0.0
  %5054 = vmatprep.subr.mxu0 0.0
  %5055 = vmatpush2.msra.mxu0 0.0
  %5056 = vmatprep.subr.mxu0 0.0
  %5057 = vmatpush2.msra.mxu0 0.0
  %5058 = vmatprep.subr.mxu0 0.0
  %5059 = vmatpush2.msra.mxu0 0.0
  %5060 = vmatprep.subr.mxu0 0.0
  %5061 = vmatpush2.msra.mxu0 0.0
  %5062 = vmatprep.subr.mxu0 0.0
  %5063 = vmatpush2.msra.mxu0 0.0
  %5064 = vmatprep.subr.mxu0 0.0
  %5065 = vmatpush2.msra.mxu0 0.0
  %5066 = vmatprep.subr.mxu0 0.0
  %5067 = vmatpush2.msra.mxu0 0.0
  %5068 = vmatprep.subr.mxu0 0.0
  %5069 = vmatpush2.msra.mxu0 0.0
  %5070 = vmatprep.subr.mxu0 0.0
  %5071 = vmatpush2.msra.mxu0 0.0
  %5072 = vmatprep.subr.mxu0 0.0
  %5073 = vmatpush2.msra.mxu0 0.0
  %5074 = vmatprep.subr.mxu0 0.0
  %5075 = vmatpush2.msra.mxu0 0.0
  %5076 = vmatprep.subr.mxu0 0.0
  %5077 = vmatpush2.msra.mxu0 0.0
  %5078 = vmatprep.subr.mxu0 0.0
  %5079 = vmatpush2.msra.mxu0 0.0
  %5080 = vmatprep.subr.mxu0 0.0
  %5081 = vmatpush2.msra.mxu0 0.0
  %5082 = vmatprep.mubr.f32.mxu0 0.0
  %5083 = vmatmul.mubr.f32.gmra.mxu0 %v5016
  %v5084 = vpop.f32.mrf.mxu0
  %v5085 = vadd.f32 0.0, %v5084
  %v5086 = vpop.f32.mrf.mxu0
  %5087 = vdwg.mxu0
  %v5088 = vadd.f32 %v5009, %v5085
  %v5089 = vld [vmem:[%s4] sm:$0x1]
  %v5091 = vlaneseq
  %v5092 = vshrl.u32 %v5091, 7
  %v5093 = vsub.s32 0, %v5092
  %v5094 = vrot.slane %v5089, %v5093
  %v5096 = vadd.f32 %v5088, %v5094
  %v5098 = vsel %vm73, %v4860, 0
  %5100 = vmatprep.subr.mxu0 0.0
  %5101 = vmatpush1.msra.mxu0 0.0
  %5102 = vmatprep.subr.mxu0 0.0
  %5103 = vmatpush1.msra.mxu0 0.0
  %5104 = vmatprep.subr.mxu0 0.0
  %5105 = vmatpush1.msra.mxu0 0.0
  %5106 = vmatprep.subr.mxu0 0.0
  %5107 = vmatpush1.msra.mxu0 0.0
  %5108 = vmatprep.subr.mxu0 0.0
  %5109 = vmatpush1.msra.mxu0 0.0
  %5110 = vmatprep.subr.mxu0 0.0
  %5111 = vmatpush1.msra.mxu0 0.0
  %5112 = vmatprep.subr.mxu0 0.0
  %5113 = vmatpush1.msra.mxu0 0.0
  %5114 = vmatprep.subr.mxu0 0.0
  %5115 = vmatpush1.msra.mxu0 0.0
  %5116 = vmatprep.subr.mxu0 0.0
  %5117 = vmatpush1.msra.mxu0 0.0
  %5118 = vmatprep.subr.mxu0 0.0
  %5119 = vmatpush1.msra.mxu0 0.0
  %5120 = vmatprep.subr.mxu0 0.0
  %5121 = vmatpush1.msra.mxu0 0.0
  %5122 = vmatprep.subr.mxu0 0.0
  %5123 = vmatpush1.msra.mxu0 0.0
  %5124 = vmatprep.subr.mxu0 0.0
  %5125 = vmatpush1.msra.mxu0 0.0
  %5126 = vmatprep.subr.mxu0 0.0
  %5127 = vmatpush1.msra.mxu0 0.0
  %5128 = vmatprep.subr.mxu0 0.0
  %5129 = vmatpush1.msra.mxu0 0.0
  %5130 = vmatprep.subr.mxu0 0.0
  %5131 = vmatpush1.msra.mxu0 %v5098
  %5132 = vmatprep.subr.mxu0 0.0
  %5133 = vmatpush2.msra.mxu0 0.0
  %5134 = vmatprep.subr.mxu0 0.0
  %5135 = vmatpush2.msra.mxu0 0.0
  %5136 = vmatprep.subr.mxu0 0.0
  %5137 = vmatpush2.msra.mxu0 0.0
  %5138 = vmatprep.subr.mxu0 0.0
  %5139 = vmatpush2.msra.mxu0 0.0
  %5140 = vmatprep.subr.mxu0 0.0
  %5141 = vmatpush2.msra.mxu0 0.0
  %5142 = vmatprep.subr.mxu0 0.0
  %5143 = vmatpush2.msra.mxu0 0.0
  %5144 = vmatprep.subr.mxu0 0.0
  %5145 = vmatpush2.msra.mxu0 0.0
  %5146 = vmatprep.subr.mxu0 0.0
  %5147 = vmatpush2.msra.mxu0 0.0
  %5148 = vmatprep.subr.mxu0 0.0
  %5149 = vmatpush2.msra.mxu0 0.0
  %5150 = vmatprep.subr.mxu0 0.0
  %5151 = vmatpush2.msra.mxu0 0.0
  %5152 = vmatprep.subr.mxu0 0.0
  %5153 = vmatpush2.msra.mxu0 0.0
  %5154 = vmatprep.subr.mxu0 0.0
  %5155 = vmatpush2.msra.mxu0 0.0
  %5156 = vmatprep.subr.mxu0 0.0
  %5157 = vmatpush2.msra.mxu0 0.0
  %5158 = vmatprep.subr.mxu0 0.0
  %5159 = vmatpush2.msra.mxu0 0.0
  %5160 = vmatprep.subr.mxu0 0.0
  %5161 = vmatpush2.msra.mxu0 0.0
  %5162 = vmatprep.subr.mxu0 0.0
  %5163 = vmatpush2.msra.mxu0 0.0
  %5164 = vmatprep.mubr.f32.mxu0 0.0
  %5165 = vmatmul.mubr.f32.gmra.mxu0 %v71
  %v5166 = vpop.f32.mrf.mxu0
  %v5167 = vadd.f32 0.0, %v5166
  %v5168 = vpop.f32.mrf.mxu0
  %5169 = vdwg.mxu0
  %5170 = vmatprep.subr.mxu0 0.0
  %5171 = vmatpush1.msra.mxu0 0.0
  %5172 = vmatprep.subr.mxu0 0.0
  %5173 = vmatpush1.msra.mxu0 0.0
  %5174 = vmatprep.subr.mxu0 0.0
  %5175 = vmatpush1.msra.mxu0 0.0
  %5176 = vmatprep.subr.mxu0 0.0
  %5177 = vmatpush1.msra.mxu0 0.0
  %5178 = vmatprep.subr.mxu0 0.0
  %5179 = vmatpush1.msra.mxu0 0.0
  %5180 = vmatprep.subr.mxu0 0.0
  %5181 = vmatpush1.msra.mxu0 0.0
  %5182 = vmatprep.subr.mxu0 0.0
  %5183 = vmatpush1.msra.mxu0 0.0
  %5184 = vmatprep.subr.mxu0 0.0
  %5185 = vmatpush1.msra.mxu0 0.0
  %5186 = vmatprep.subr.mxu0 0.0
  %5187 = vmatpush1.msra.mxu0 0.0
  %5188 = vmatprep.subr.mxu0 0.0
  %5189 = vmatpush1.msra.mxu0 0.0
  %5190 = vmatprep.subr.mxu0 0.0
  %5191 = vmatpush1.msra.mxu0 0.0
  %5192 = vmatprep.subr.mxu0 0.0
  %5193 = vmatpush1.msra.mxu0 0.0
  %5194 = vmatprep.subr.mxu0 0.0
  %5195 = vmatpush1.msra.mxu0 0.0
  %5196 = vmatprep.subr.mxu0 0.0
  %5197 = vmatpush1.msra.mxu0 0.0
  %5198 = vmatprep.subr.mxu0 0.0
  %5199 = vmatpush1.msra.mxu0 0.0
  %5200 = vmatprep.subr.mxu0 0.0
  %5201 = vmatpush1.msra.mxu0 %v5098
  %5202 = vmatprep.subr.mxu0 0.0
  %5203 = vmatpush2.msra.mxu0 0.0
  %5204 = vmatprep.subr.mxu0 0.0
  %5205 = vmatpush2.msra.mxu0 0.0
  %5206 = vmatprep.subr.mxu0 0.0
  %5207 = vmatpush2.msra.mxu0 0.0
  %5208 = vmatprep.subr.mxu0 0.0
  %5209 = vmatpush2.msra.mxu0 0.0
  %5210 = vmatprep.subr.mxu0 0.0
  %5211 = vmatpush2.msra.mxu0 0.0
  %5212 = vmatprep.subr.mxu0 0.0
  %5213 = vmatpush2.msra.mxu0 0.0
  %5214 = vmatprep.subr.mxu0 0.0
  %5215 = vmatpush2.msra.mxu0 0.0
  %5216 = vmatprep.subr.mxu0 0.0
  %5217 = vmatpush2.msra.mxu0 0.0
  %5218 = vmatprep.subr.mxu0 0.0
  %5219 = vmatpush2.msra.mxu0 0.0
  %5220 = vmatprep.subr.mxu0 0.0
  %5221 = vmatpush2.msra.mxu0 0.0
  %5222 = vmatprep.subr.mxu0 0.0
  %5223 = vmatpush2.msra.mxu0 0.0
  %5224 = vmatprep.subr.mxu0 0.0
  %5225 = vmatpush2.msra.mxu0 0.0
  %5226 = vmatprep.subr.mxu0 0.0
  %5227 = vmatpush2.msra.mxu0 0.0
  %5228 = vmatprep.subr.mxu0 0.0
  %5229 = vmatpush2.msra.mxu0 0.0
  %5230 = vmatprep.subr.mxu0 0.0
  %5231 = vmatpush2.msra.mxu0 0.0
  %5232 = vmatprep.subr.mxu0 0.0
  %5233 = vmatpush2.msra.mxu0 0.0
  %5234 = vmatprep.mubr.f32.mxu0 0.0
  %5235 = vmatmul.mubr.f32.gmra.mxu0 %v148
  %v5236 = vpop.f32.mrf.mxu0
  %v5237 = vadd.f32 0.0, %v5236
  %v5238 = vpop.f32.mrf.mxu0
  %5239 = vdwg.mxu0
  %v5241 = vsel %vm73, %v5096, 0
  %5243 = vmatprep.subr.mxu0 0.0
  %5244 = vmatpush1.msra.mxu0 0.0
  %5245 = vmatprep.subr.mxu0 0.0
  %5246 = vmatpush1.msra.mxu0 0.0
  %5247 = vmatprep.subr.mxu0 0.0
  %5248 = vmatpush1.msra.mxu0 0.0
  %5249 = vmatprep.subr.mxu0 0.0
  %5250 = vmatpush1.msra.mxu0 0.0
  %5251 = vmatprep.subr.mxu0 0.0
  %5252 = vmatpush1.msra.mxu0 0.0
  %5253 = vmatprep.subr.mxu0 0.0
  %5254 = vmatpush1.msra.mxu0 0.0
  %5255 = vmatprep.subr.mxu0 0.0
  %5256 = vmatpush1.msra.mxu0 0.0
  %5257 = vmatprep.subr.mxu0 0.0
  %5258 = vmatpush1.msra.mxu0 0.0
  %5259 = vmatprep.subr.mxu0 0.0
  %5260 = vmatpush1.msra.mxu0 0.0
  %5261 = vmatprep.subr.mxu0 0.0
  %5262 = vmatpush1.msra.mxu0 0.0
  %5263 = vmatprep.subr.mxu0 0.0
  %5264 = vmatpush1.msra.mxu0 0.0
  %5265 = vmatprep.subr.mxu0 0.0
  %5266 = vmatpush1.msra.mxu0 0.0
  %5267 = vmatprep.subr.mxu0 0.0
  %5268 = vmatpush1.msra.mxu0 0.0
  %5269 = vmatprep.subr.mxu0 0.0
  %5270 = vmatpush1.msra.mxu0 0.0
  %5271 = vmatprep.subr.mxu0 0.0
  %5272 = vmatpush1.msra.mxu0 0.0
  %5273 = vmatprep.subr.mxu0 0.0
  %5274 = vmatpush1.msra.mxu0 %v5241
  %5275 = vmatprep.subr.mxu0 0.0
  %5276 = vmatpush2.msra.mxu0 0.0
  %5277 = vmatprep.subr.mxu0 0.0
  %5278 = vmatpush2.msra.mxu0 0.0
  %5279 = vmatprep.subr.mxu0 0.0
  %5280 = vmatpush2.msra.mxu0 0.0
  %5281 = vmatprep.subr.mxu0 0.0
  %5282 = vmatpush2.msra.mxu0 0.0
  %5283 = vmatprep.subr.mxu0 0.0
  %5284 = vmatpush2.msra.mxu0 0.0
  %5285 = vmatprep.subr.mxu0 0.0
  %5286 = vmatpush2.msra.mxu0 0.0
  %5287 = vmatprep.subr.mxu0 0.0
  %5288 = vmatpush2.msra.mxu0 0.0
  %5289 = vmatprep.subr.mxu0 0.0
  %5290 = vmatpush2.msra.mxu0 0.0
  %5291 = vmatprep.subr.mxu0 0.0
  %5292 = vmatpush2.msra.mxu0 0.0
  %5293 = vmatprep.subr.mxu0 0.0
  %5294 = vmatpush2.msra.mxu0 0.0
  %5295 = vmatprep.subr.mxu0 0.0
  %5296 = vmatpush2.msra.mxu0 0.0
  %5297 = vmatprep.subr.mxu0 0.0
  %5298 = vmatpush2.msra.mxu0 0.0
  %5299 = vmatprep.subr.mxu0 0.0
  %5300 = vmatpush2.msra.mxu0 0.0
  %5301 = vmatprep.subr.mxu0 0.0
  %5302 = vmatpush2.msra.mxu0 0.0
  %5303 = vmatprep.subr.mxu0 0.0
  %5304 = vmatpush2.msra.mxu0 0.0
  %5305 = vmatprep.subr.mxu0 0.0
  %5306 = vmatpush2.msra.mxu0 0.0
  %5307 = vmatprep.mubr.f32.mxu0 0.0
  %5308 = vmatmul.mubr.f32.gmra.mxu0 %v71
  %v5309 = vpop.f32.mrf.mxu0
  %v5310 = vadd.f32 0.0, %v5309
  %v5311 = vpop.f32.mrf.mxu0
  %5312 = vdwg.mxu0
  %5313 = vmatprep.subr.mxu0 0.0
  %5314 = vmatpush1.msra.mxu0 0.0
  %5315 = vmatprep.subr.mxu0 0.0
  %5316 = vmatpush1.msra.mxu0 0.0
  %5317 = vmatprep.subr.mxu0 0.0
  %5318 = vmatpush1.msra.mxu0 0.0
  %5319 = vmatprep.subr.mxu0 0.0
  %5320 = vmatpush1.msra.mxu0 0.0
  %5321 = vmatprep.subr.mxu0 0.0
  %5322 = vmatpush1.msra.mxu0 0.0
  %5323 = vmatprep.subr.mxu0 0.0
  %5324 = vmatpush1.msra.mxu0 0.0
  %5325 = vmatprep.subr.mxu0 0.0
  %5326 = vmatpush1.msra.mxu0 0.0
  %5327 = vmatprep.subr.mxu0 0.0
  %5328 = vmatpush1.msra.mxu0 0.0
  %5329 = vmatprep.subr.mxu0 0.0
  %5330 = vmatpush1.msra.mxu0 0.0
  %5331 = vmatprep.subr.mxu0 0.0
  %5332 = vmatpush1.msra.mxu0 0.0
  %5333 = vmatprep.subr.mxu0 0.0
  %5334 = vmatpush1.msra.mxu0 0.0
  %5335 = vmatprep.subr.mxu0 0.0
  %5336 = vmatpush1.msra.mxu0 0.0
  %5337 = vmatprep.subr.mxu0 0.0
  %5338 = vmatpush1.msra.mxu0 0.0
  %5339 = vmatprep.subr.mxu0 0.0
  %5340 = vmatpush1.msra.mxu0 0.0
  %5341 = vmatprep.subr.mxu0 0.0
  %5342 = vmatpush1.msra.mxu0 0.0
  %5343 = vmatprep.subr.mxu0 0.0
  %5344 = vmatpush1.msra.mxu0 %v5241
  %5345 = vmatprep.subr.mxu0 0.0
  %5346 = vmatpush2.msra.mxu0 0.0
  %5347 = vmatprep.subr.mxu0 0.0
  %5348 = vmatpush2.msra.mxu0 0.0
  %5349 = vmatprep.subr.mxu0 0.0
  %5350 = vmatpush2.msra.mxu0 0.0
  %5351 = vmatprep.subr.mxu0 0.0
  %5352 = vmatpush2.msra.mxu0 0.0
  %5353 = vmatprep.subr.mxu0 0.0
  %5354 = vmatpush2.msra.mxu0 0.0
  %5355 = vmatprep.subr.mxu0 0.0
  %5356 = vmatpush2.msra.mxu0 0.0
  %5357 = vmatprep.subr.mxu0 0.0
  %5358 = vmatpush2.msra.mxu0 0.0
  %5359 = vmatprep.subr.mxu0 0.0
  %5360 = vmatpush2.msra.mxu0 0.0
  %5361 = vmatprep.subr.mxu0 0.0
  %5362 = vmatpush2.msra.mxu0 0.0
  %5363 = vmatprep.subr.mxu0 0.0
  %5364 = vmatpush2.msra.mxu0 0.0
  %5365 = vmatprep.subr.mxu0 0.0
  %5366 = vmatpush2.msra.mxu0 0.0
  %5367 = vmatprep.subr.mxu0 0.0
  %5368 = vmatpush2.msra.mxu0 0.0
  %5369 = vmatprep.subr.mxu0 0.0
  %5370 = vmatpush2.msra.mxu0 0.0
  %5371 = vmatprep.subr.mxu0 0.0
  %5372 = vmatpush2.msra.mxu0 0.0
  %5373 = vmatprep.subr.mxu0 0.0
  %5374 = vmatpush2.msra.mxu0 0.0
  %5375 = vmatprep.subr.mxu0 0.0
  %5376 = vmatpush2.msra.mxu0 0.0
  %5377 = vmatprep.mubr.f32.mxu0 0.0
  %5378 = vmatmul.mubr.f32.gmra.mxu0 %v148
  %v5379 = vpop.f32.mrf.mxu0
  %v5380 = vadd.f32 0.0, %v5379
  %v5381 = vpop.f32.mrf.mxu0
  %5382 = vdwg.mxu0
  %v5383 = vld [vmem:[%s5] sm:$0xff]
  %v5384 = vld [vmem:[%s5 + $0x8] sm:$0xff]
  %v5385 = vld [vmem:[%s5 + $0x10] sm:$0xff]
  %v5386 = vld [vmem:[%s5 + $0x18] sm:$0xff]
  %v5387 = vld [vmem:[%s5 + $0x20] sm:$0xff]
  %v5388 = vld [vmem:[%s5 + $0x28] sm:$0xff]
  %v5389 = vld [vmem:[%s5 + $0x30] sm:$0xff]
  %v5390 = vld [vmem:[%s5 + $0x38] sm:$0xff]
  %v5391 = vld [vmem:[%s5 + $0x40] sm:$0xff]
  %v5392 = vld [vmem:[%s5 + $0x48] sm:$0xff]
  %v5393 = vld [vmem:[%s5 + $0x50] sm:$0xff]
  %v5394 = vld [vmem:[%s5 + $0x58] sm:$0xff]
  %v5395 = vld [vmem:[%s5 + $0x60] sm:$0xff]
  %v5396 = vld [vmem:[%s5 + $0x68] sm:$0xff]
  %v5397 = vld [vmem:[%s5 + $0x70] sm:$0xff]
  %v5398 = vld [vmem:[%s5 + $0x78] sm:$0xff]
  %v5399 = vld [vmem:[%s841] sm:$0xff]
  %v5400 = vld [vmem:[%s841 + $0x8] sm:$0xff]
  %v5401 = vld [vmem:[%s841 + $0x10] sm:$0xff]
  %v5402 = vld [vmem:[%s841 + $0x18] sm:$0xff]
  %v5403 = vld [vmem:[%s841 + $0x20] sm:$0xff]
  %v5404 = vld [vmem:[%s841 + $0x28] sm:$0xff]
  %v5405 = vld [vmem:[%s841 + $0x30] sm:$0xff]
  %v5406 = vld [vmem:[%s841 + $0x38] sm:$0xff]
  %v5407 = vld [vmem:[%s841 + $0x40] sm:$0xff]
  %v5408 = vld [vmem:[%s841 + $0x48] sm:$0xff]
  %v5409 = vld [vmem:[%s841 + $0x50] sm:$0xff]
  %v5410 = vld [vmem:[%s841 + $0x58] sm:$0xff]
  %v5411 = vld [vmem:[%s841 + $0x60] sm:$0xff]
  %v5412 = vld [vmem:[%s841 + $0x68] sm:$0xff]
  %v5413 = vld [vmem:[%s841 + $0x70] sm:$0xff]
  %v5414 = vld [vmem:[%s841 + $0x78] sm:$0xff]
  %5415 = vmatprep.subr.mxu0 0.0
  %5416 = vmatpush1.msra.mxu0 %v5414
  %5417 = vmatprep.subr.mxu0 0.0
  %5418 = vmatpush1.msra.mxu0 %v5413
  %5419 = vmatprep.subr.mxu0 0.0
  %5420 = vmatpush1.msra.mxu0 %v5412
  %5421 = vmatprep.subr.mxu0 0.0
  %5422 = vmatpush1.msra.mxu0 %v5411
  %5423 = vmatprep.subr.mxu0 0.0
  %5424 = vmatpush1.msra.mxu0 %v5410
  %5425 = vmatprep.subr.mxu0 0.0
  %5426 = vmatpush1.msra.mxu0 %v5409
  %5427 = vmatprep.subr.mxu0 0.0
  %5428 = vmatpush1.msra.mxu0 %v5408
  %5429 = vmatprep.subr.mxu0 0.0
  %5430 = vmatpush1.msra.mxu0 %v5407
  %5431 = vmatprep.subr.mxu0 0.0
  %5432 = vmatpush1.msra.mxu0 %v5406
  %5433 = vmatprep.subr.mxu0 0.0
  %5434 = vmatpush1.msra.mxu0 %v5405
  %5435 = vmatprep.subr.mxu0 0.0
  %5436 = vmatpush1.msra.mxu0 %v5404
  %5437 = vmatprep.subr.mxu0 0.0
  %5438 = vmatpush1.msra.mxu0 %v5403
  %5439 = vmatprep.subr.mxu0 0.0
  %5440 = vmatpush1.msra.mxu0 %v5402
  %5441 = vmatprep.subr.mxu0 0.0
  %5442 = vmatpush1.msra.mxu0 %v5401
  %5443 = vmatprep.subr.mxu0 0.0
  %5444 = vmatpush1.msra.mxu0 %v5400
  %5445 = vmatprep.subr.mxu0 0.0
  %5446 = vmatpush1.msra.mxu0 %v5399
  %5447 = vmatprep.subr.mxu0 0.0
  %5448 = vmatpush2.msra.mxu0 0.0
  %5449 = vmatprep.subr.mxu0 0.0
  %5450 = vmatpush2.msra.mxu0 0.0
  %5451 = vmatprep.subr.mxu0 0.0
  %5452 = vmatpush2.msra.mxu0 0.0
  %5453 = vmatprep.subr.mxu0 0.0
  %5454 = vmatpush2.msra.mxu0 0.0
  %5455 = vmatprep.subr.mxu0 0.0
  %5456 = vmatpush2.msra.mxu0 0.0
  %5457 = vmatprep.subr.mxu0 0.0
  %5458 = vmatpush2.msra.mxu0 0.0
  %5459 = vmatprep.subr.mxu0 0.0
  %5460 = vmatpush2.msra.mxu0 0.0
  %5461 = vmatprep.subr.mxu0 0.0
  %5462 = vmatpush2.msra.mxu0 0.0
  %5463 = vmatprep.subr.mxu0 0.0
  %5464 = vmatpush2.msra.mxu0 0.0
  %5465 = vmatprep.subr.mxu0 0.0
  %5466 = vmatpush2.msra.mxu0 0.0
  %5467 = vmatprep.subr.mxu0 0.0
  %5468 = vmatpush2.msra.mxu0 0.0
  %5469 = vmatprep.subr.mxu0 0.0
  %5470 = vmatpush2.msra.mxu0 0.0
  %5471 = vmatprep.subr.mxu0 0.0
  %5472 = vmatpush2.msra.mxu0 0.0
  %5473 = vmatprep.subr.mxu0 0.0
  %5474 = vmatpush2.msra.mxu0 0.0
  %5475 = vmatprep.subr.mxu0 0.0
  %5476 = vmatpush2.msra.mxu0 0.0
  %5477 = vmatprep.subr.mxu0 0.0
  %5478 = vmatpush2.msra.mxu0 0.0
  %5479 = vmatprep.mubr.f32.mxu0 0.0
  %5480 = vmatmul.mubr.f32.gmra.mxu0 %v5096
  %v5481 = vpop.f32.mrf.mxu0
  %v5482 = vadd.f32 0.0, %v5481
  %v5483 = vpop.f32.mrf.mxu0
  %5484 = vdwg.mxu0
  %5485 = vmatprep.subr.mxu0 0.0
  %5486 = vmatpush1.msra.mxu0 %v5398
  %5487 = vmatprep.subr.mxu0 0.0
  %5488 = vmatpush1.msra.mxu0 %v5397
  %5489 = vmatprep.subr.mxu0 0.0
  %5490 = vmatpush1.msra.mxu0 %v5396
  %5491 = vmatprep.subr.mxu0 0.0
  %5492 = vmatpush1.msra.mxu0 %v5395
  %5493 = vmatprep.subr.mxu0 0.0
  %5494 = vmatpush1.msra.mxu0 %v5394
  %5495 = vmatprep.subr.mxu0 0.0
  %5496 = vmatpush1.msra.mxu0 %v5393
  %5497 = vmatprep.subr.mxu0 0.0
  %5498 = vmatpush1.msra.mxu0 %v5392
  %5499 = vmatprep.subr.mxu0 0.0
  %5500 = vmatpush1.msra.mxu0 %v5391
  %5501 = vmatprep.subr.mxu0 0.0
  %5502 = vmatpush1.msra.mxu0 %v5390
  %5503 = vmatprep.subr.mxu0 0.0
  %5504 = vmatpush1.msra.mxu0 %v5389
  %5505 = vmatprep.subr.mxu0 0.0
  %5506 = vmatpush1.msra.mxu0 %v5388
  %5507 = vmatprep.subr.mxu0 0.0
  %5508 = vmatpush1.msra.mxu0 %v5387
  %5509 = vmatprep.subr.mxu0 0.0
  %5510 = vmatpush1.msra.mxu0 %v5386
  %5511 = vmatprep.subr.mxu0 0.0
  %5512 = vmatpush1.msra.mxu0 %v5385
  %5513 = vmatprep.subr.mxu0 0.0
  %5514 = vmatpush1.msra.mxu0 %v5384
  %5515 = vmatprep.subr.mxu0 0.0
  %5516 = vmatpush1.msra.mxu0 %v5383
  %5517 = vmatprep.subr.mxu0 0.0
  %5518 = vmatpush2.msra.mxu0 0.0
  %5519 = vmatprep.subr.mxu0 0.0
  %5520 = vmatpush2.msra.mxu0 0.0
  %5521 = vmatprep.subr.mxu0 0.0
  %5522 = vmatpush2.msra.mxu0 0.0
  %5523 = vmatprep.subr.mxu0 0.0
  %5524 = vmatpush2.msra.mxu0 0.0
  %5525 = vmatprep.subr.mxu0 0.0
  %5526 = vmatpush2.msra.mxu0 0.0
  %5527 = vmatprep.subr.mxu0 0.0
  %5528 = vmatpush2.msra.mxu0 0.0
  %5529 = vmatprep.subr.mxu0 0.0
  %5530 = vmatpush2.msra.mxu0 0.0
  %5531 = vmatprep.subr.mxu0 0.0
  %5532 = vmatpush2.msra.mxu0 0.0
  %5533 = vmatprep.subr.mxu0 0.0
  %5534 = vmatpush2.msra.mxu0 0.0
  %5535 = vmatprep.subr.mxu0 0.0
  %5536 = vmatpush2.msra.mxu0 0.0
  %5537 = vmatprep.subr.mxu0 0.0
  %5538 = vmatpush2.msra.mxu0 0.0
  %5539 = vmatprep.subr.mxu0 0.0
  %5540 = vmatpush2.msra.mxu0 0.0
  %5541 = vmatprep.subr.mxu0 0.0
  %5542 = vmatpush2.msra.mxu0 0.0
  %5543 = vmatprep.subr.mxu0 0.0
  %5544 = vmatpush2.msra.mxu0 0.0
  %5545 = vmatprep.subr.mxu0 0.0
  %5546 = vmatpush2.msra.mxu0 0.0
  %5547 = vmatprep.subr.mxu0 0.0
  %5548 = vmatpush2.msra.mxu0 0.0
  %5549 = vmatprep.mubr.f32.mxu0 0.0
  %5550 = vmatmul.mubr.f32.gmra.mxu0 %v4860
  %v5551 = vpop.f32.mrf.mxu0
  %v5552 = vadd.f32 %v5482, %v5551
  %v5553 = vpop.f32.mrf.mxu0
  %5554 = vdwg.mxu0
  %v5555 = vld [vmem:[%s6] sm:$0x1]
  %v5557 = vlaneseq
  %v5558 = vshrl.u32 %v5557, 7
  %v5559 = vsub.s32 0, %v5558
  %v5560 = vrot.slane %v5555, %v5559
  %v5562 = vadd.f32 %v5552, %v5560
  %v5563 = vld [vmem:[%s7] sm:$0xff]
  %v5564 = vld [vmem:[%s7 + $0x8] sm:$0xff]
  %v5565 = vld [vmem:[%s7 + $0x10] sm:$0xff]
  %v5566 = vld [vmem:[%s7 + $0x18] sm:$0xff]
  %v5567 = vld [vmem:[%s7 + $0x20] sm:$0xff]
  %v5568 = vld [vmem:[%s7 + $0x28] sm:$0xff]
  %v5569 = vld [vmem:[%s7 + $0x30] sm:$0xff]
  %v5570 = vld [vmem:[%s7 + $0x38] sm:$0xff]
  %v5571 = vld [vmem:[%s7 + $0x40] sm:$0xff]
  %v5572 = vld [vmem:[%s7 + $0x48] sm:$0xff]
  %v5573 = vld [vmem:[%s7 + $0x50] sm:$0xff]
  %v5574 = vld [vmem:[%s7 + $0x58] sm:$0xff]
  %v5575 = vld [vmem:[%s7 + $0x60] sm:$0xff]
  %v5576 = vld [vmem:[%s7 + $0x68] sm:$0xff]
  %v5577 = vld [vmem:[%s7 + $0x70] sm:$0xff]
  %v5578 = vld [vmem:[%s7 + $0x78] sm:$0xff]
  %v5579 = vld [vmem:[%s8] sm:$0xff]
  %v5580 = vld [vmem:[%s8 + $0x8] sm:$0xff]
  %v5581 = vld [vmem:[%s8 + $0x10] sm:$0xff]
  %v5582 = vld [vmem:[%s8 + $0x18] sm:$0xff]
  %v5583 = vld [vmem:[%s8 + $0x20] sm:$0xff]
  %v5584 = vld [vmem:[%s8 + $0x28] sm:$0xff]
  %v5585 = vld [vmem:[%s8 + $0x30] sm:$0xff]
  %v5586 = vld [vmem:[%s8 + $0x38] sm:$0xff]
  %v5587 = vld [vmem:[%s8 + $0x40] sm:$0xff]
  %v5588 = vld [vmem:[%s8 + $0x48] sm:$0xff]
  %v5589 = vld [vmem:[%s8 + $0x50] sm:$0xff]
  %v5590 = vld [vmem:[%s8 + $0x58] sm:$0xff]
  %v5591 = vld [vmem:[%s8 + $0x60] sm:$0xff]
  %v5592 = vld [vmem:[%s8 + $0x68] sm:$0xff]
  %v5593 = vld [vmem:[%s8 + $0x70] sm:$0xff]
  %v5594 = vld [vmem:[%s8 + $0x78] sm:$0xff]
  %5595 = vmatprep.subr.mxu0 0.0
  %5596 = vmatpush1.msra.mxu0 %v5594
  %5597 = vmatprep.subr.mxu0 0.0
  %5598 = vmatpush1.msra.mxu0 %v5593
  %5599 = vmatprep.subr.mxu0 0.0
  %5600 = vmatpush1.msra.mxu0 %v5592
  %5601 = vmatprep.subr.mxu0 0.0
  %5602 = vmatpush1.msra.mxu0 %v5591
  %5603 = vmatprep.subr.mxu0 0.0
  %5604 = vmatpush1.msra.mxu0 %v5590
  %5605 = vmatprep.subr.mxu0 0.0
  %5606 = vmatpush1.msra.mxu0 %v5589
  %5607 = vmatprep.subr.mxu0 0.0
  %5608 = vmatpush1.msra.mxu0 %v5588
  %5609 = vmatprep.subr.mxu0 0.0
  %5610 = vmatpush1.msra.mxu0 %v5587
  %5611 = vmatprep.subr.mxu0 0.0
  %5612 = vmatpush1.msra.mxu0 %v5586
  %5613 = vmatprep.subr.mxu0 0.0
  %5614 = vmatpush1.msra.mxu0 %v5585
  %5615 = vmatprep.subr.mxu0 0.0
  %5616 = vmatpush1.msra.mxu0 %v5584
  %5617 = vmatprep.subr.mxu0 0.0
  %5618 = vmatpush1.msra.mxu0 %v5583
  %5619 = vmatprep.subr.mxu0 0.0
  %5620 = vmatpush1.msra.mxu0 %v5582
  %5621 = vmatprep.subr.mxu0 0.0
  %5622 = vmatpush1.msra.mxu0 %v5581
  %5623 = vmatprep.subr.mxu0 0.0
  %5624 = vmatpush1.msra.mxu0 %v5580
  %5625 = vmatprep.subr.mxu0 0.0
  %5626 = vmatpush1.msra.mxu0 %v5579
  %5627 = vmatprep.subr.mxu0 0.0
  %5628 = vmatpush2.msra.mxu0 0.0
  %5629 = vmatprep.subr.mxu0 0.0
  %5630 = vmatpush2.msra.mxu0 0.0
  %5631 = vmatprep.subr.mxu0 0.0
  %5632 = vmatpush2.msra.mxu0 0.0
  %5633 = vmatprep.subr.mxu0 0.0
  %5634 = vmatpush2.msra.mxu0 0.0
  %5635 = vmatprep.subr.mxu0 0.0
  %5636 = vmatpush2.msra.mxu0 0.0
  %5637 = vmatprep.subr.mxu0 0.0
  %5638 = vmatpush2.msra.mxu0 0.0
  %5639 = vmatprep.subr.mxu0 0.0
  %5640 = vmatpush2.msra.mxu0 0.0
  %5641 = vmatprep.subr.mxu0 0.0
  %5642 = vmatpush2.msra.mxu0 0.0
  %5643 = vmatprep.subr.mxu0 0.0
  %5644 = vmatpush2.msra.mxu0 0.0
  %5645 = vmatprep.subr.mxu0 0.0
  %5646 = vmatpush2.msra.mxu0 0.0
  %5647 = vmatprep.subr.mxu0 0.0
  %5648 = vmatpush2.msra.mxu0 0.0
  %5649 = vmatprep.subr.mxu0 0.0
  %5650 = vmatpush2.msra.mxu0 0.0
  %5651 = vmatprep.subr.mxu0 0.0
  %5652 = vmatpush2.msra.mxu0 0.0
  %5653 = vmatprep.subr.mxu0 0.0
  %5654 = vmatpush2.msra.mxu0 0.0
  %5655 = vmatprep.subr.mxu0 0.0
  %5656 = vmatpush2.msra.mxu0 0.0
  %5657 = vmatprep.subr.mxu0 0.0
  %5658 = vmatpush2.msra.mxu0 0.0
  %5659 = vmatprep.mubr.f32.mxu0 0.0
  %5660 = vmatmul.mubr.f32.gmra.mxu0 %v5310
  %v5661 = vpop.f32.mrf.mxu0
  %v5662 = vadd.f32 0.0, %v5661
  %v5663 = vpop.f32.mrf.mxu0
  %5664 = vdwg.mxu0
  %5665 = vmatprep.subr.mxu0 0.0
  %5666 = vmatpush1.msra.mxu0 %v5578
  %5667 = vmatprep.subr.mxu0 0.0
  %5668 = vmatpush1.msra.mxu0 %v5577
  %5669 = vmatprep.subr.mxu0 0.0
  %5670 = vmatpush1.msra.mxu0 %v5576
  %5671 = vmatprep.subr.mxu0 0.0
  %5672 = vmatpush1.msra.mxu0 %v5575
  %5673 = vmatprep.subr.mxu0 0.0
  %5674 = vmatpush1.msra.mxu0 %v5574
  %5675 = vmatprep.subr.mxu0 0.0
  %5676 = vmatpush1.msra.mxu0 %v5573
  %5677 = vmatprep.subr.mxu0 0.0
  %5678 = vmatpush1.msra.mxu0 %v5572
  %5679 = vmatprep.subr.mxu0 0.0
  %5680 = vmatpush1.msra.mxu0 %v5571
  %5681 = vmatprep.subr.mxu0 0.0
  %5682 = vmatpush1.msra.mxu0 %v5570
  %5683 = vmatprep.subr.mxu0 0.0
  %5684 = vmatpush1.msra.mxu0 %v5569
  %5685 = vmatprep.subr.mxu0 0.0
  %5686 = vmatpush1.msra.mxu0 %v5568
  %5687 = vmatprep.subr.mxu0 0.0
  %5688 = vmatpush1.msra.mxu0 %v5567
  %5689 = vmatprep.subr.mxu0 0.0
  %5690 = vmatpush1.msra.mxu0 %v5566
  %5691 = vmatprep.subr.mxu0 0.0
  %5692 = vmatpush1.msra.mxu0 %v5565
  %5693 = vmatprep.subr.mxu0 0.0
  %5694 = vmatpush1.msra.mxu0 %v5564
  %5695 = vmatprep.subr.mxu0 0.0
  %5696 = vmatpush1.msra.mxu0 %v5563
  %5697 = vmatprep.subr.mxu0 0.0
  %5698 = vmatpush2.msra.mxu0 0.0
  %5699 = vmatprep.subr.mxu0 0.0
  %5700 = vmatpush2.msra.mxu0 0.0
  %5701 = vmatprep.subr.mxu0 0.0
  %5702 = vmatpush2.msra.mxu0 0.0
  %5703 = vmatprep.subr.mxu0 0.0
  %5704 = vmatpush2.msra.mxu0 0.0
  %5705 = vmatprep.subr.mxu0 0.0
  %5706 = vmatpush2.msra.mxu0 0.0
  %5707 = vmatprep.subr.mxu0 0.0
  %5708 = vmatpush2.msra.mxu0 0.0
  %5709 = vmatprep.subr.mxu0 0.0
  %5710 = vmatpush2.msra.mxu0 0.0
  %5711 = vmatprep.subr.mxu0 0.0
  %5712 = vmatpush2.msra.mxu0 0.0
  %5713 = vmatprep.subr.mxu0 0.0
  %5714 = vmatpush2.msra.mxu0 0.0
  %5715 = vmatprep.subr.mxu0 0.0
  %5716 = vmatpush2.msra.mxu0 0.0
  %5717 = vmatprep.subr.mxu0 0.0
  %5718 = vmatpush2.msra.mxu0 0.0
  %5719 = vmatprep.subr.mxu0 0.0
  %5720 = vmatpush2.msra.mxu0 0.0
  %5721 = vmatprep.subr.mxu0 0.0
  %5722 = vmatpush2.msra.mxu0 0.0
  %5723 = vmatprep.subr.mxu0 0.0
  %5724 = vmatpush2.msra.mxu0 0.0
  %5725 = vmatprep.subr.mxu0 0.0
  %5726 = vmatpush2.msra.mxu0 0.0
  %5727 = vmatprep.subr.mxu0 0.0
  %5728 = vmatpush2.msra.mxu0 0.0
  %5729 = vmatprep.mubr.f32.mxu0 0.0
  %5730 = vmatmul.mubr.f32.gmra.mxu0 %v5167
  %v5731 = vpop.f32.mrf.mxu0
  %v5732 = vadd.f32 %v5662, %v5731
  %v5733 = vpop.f32.mrf.mxu0
  %5734 = vdwg.mxu0
  %v5735 = vld [vmem:[%s1178] sm:$0xff]
  %v5736 = vld [vmem:[%s1178 + $0x8] sm:$0xff]
  %v5737 = vld [vmem:[%s1178 + $0x10] sm:$0xff]
  %v5738 = vld [vmem:[%s1178 + $0x18] sm:$0xff]
  %v5739 = vld [vmem:[%s1178 + $0x20] sm:$0xff]
  %v5740 = vld [vmem:[%s1178 + $0x28] sm:$0xff]
  %v5741 = vld [vmem:[%s1178 + $0x30] sm:$0xff]
  %v5742 = vld [vmem:[%s1178 + $0x38] sm:$0xff]
  %v5743 = vld [vmem:[%s1178 + $0x40] sm:$0xff]
  %v5744 = vld [vmem:[%s1178 + $0x48] sm:$0xff]
  %v5745 = vld [vmem:[%s1178 + $0x50] sm:$0xff]
  %v5746 = vld [vmem:[%s1178 + $0x58] sm:$0xff]
  %v5747 = vld [vmem:[%s1178 + $0x60] sm:$0xff]
  %v5748 = vld [vmem:[%s1178 + $0x68] sm:$0xff]
  %v5749 = vld [vmem:[%s1178 + $0x70] sm:$0xff]
  %v5750 = vld [vmem:[%s1178 + $0x78] sm:$0xff]
  %5751 = vmatprep.subr.mxu0 0.0
  %5752 = vmatpush1.msra.mxu0 %v5750
  %5753 = vmatprep.subr.mxu0 0.0
  %5754 = vmatpush1.msra.mxu0 %v5749
  %5755 = vmatprep.subr.mxu0 0.0
  %5756 = vmatpush1.msra.mxu0 %v5748
  %5757 = vmatprep.subr.mxu0 0.0
  %5758 = vmatpush1.msra.mxu0 %v5747
  %5759 = vmatprep.subr.mxu0 0.0
  %5760 = vmatpush1.msra.mxu0 %v5746
  %5761 = vmatprep.subr.mxu0 0.0
  %5762 = vmatpush1.msra.mxu0 %v5745
  %5763 = vmatprep.subr.mxu0 0.0
  %5764 = vmatpush1.msra.mxu0 %v5744
  %5765 = vmatprep.subr.mxu0 0.0
  %5766 = vmatpush1.msra.mxu0 %v5743
  %5767 = vmatprep.subr.mxu0 0.0
  %5768 = vmatpush1.msra.mxu0 %v5742
  %5769 = vmatprep.subr.mxu0 0.0
  %5770 = vmatpush1.msra.mxu0 %v5741
  %5771 = vmatprep.subr.mxu0 0.0
  %5772 = vmatpush1.msra.mxu0 %v5740
  %5773 = vmatprep.subr.mxu0 0.0
  %5774 = vmatpush1.msra.mxu0 %v5739
  %5775 = vmatprep.subr.mxu0 0.0
  %5776 = vmatpush1.msra.mxu0 %v5738
  %5777 = vmatprep.subr.mxu0 0.0
  %5778 = vmatpush1.msra.mxu0 %v5737
  %5779 = vmatprep.subr.mxu0 0.0
  %5780 = vmatpush1.msra.mxu0 %v5736
  %5781 = vmatprep.subr.mxu0 0.0
  %5782 = vmatpush1.msra.mxu0 %v5735
  %5783 = vmatprep.subr.mxu0 0.0
  %5784 = vmatpush2.msra.mxu0 0.0
  %5785 = vmatprep.subr.mxu0 0.0
  %5786 = vmatpush2.msra.mxu0 0.0
  %5787 = vmatprep.subr.mxu0 0.0
  %5788 = vmatpush2.msra.mxu0 0.0
  %5789 = vmatprep.subr.mxu0 0.0
  %5790 = vmatpush2.msra.mxu0 0.0
  %5791 = vmatprep.subr.mxu0 0.0
  %5792 = vmatpush2.msra.mxu0 0.0
  %5793 = vmatprep.subr.mxu0 0.0
  %5794 = vmatpush2.msra.mxu0 0.0
  %5795 = vmatprep.subr.mxu0 0.0
  %5796 = vmatpush2.msra.mxu0 0.0
  %5797 = vmatprep.subr.mxu0 0.0
  %5798 = vmatpush2.msra.mxu0 0.0
  %5799 = vmatprep.subr.mxu0 0.0
  %5800 = vmatpush2.msra.mxu0 0.0
  %5801 = vmatprep.subr.mxu0 0.0
  %5802 = vmatpush2.msra.mxu0 0.0
  %5803 = vmatprep.subr.mxu0 0.0
  %5804 = vmatpush2.msra.mxu0 0.0
  %5805 = vmatprep.subr.mxu0 0.0
  %5806 = vmatpush2.msra.mxu0 0.0
  %5807 = vmatprep.subr.mxu0 0.0
  %5808 = vmatpush2.msra.mxu0 0.0
  %5809 = vmatprep.subr.mxu0 0.0
  %5810 = vmatpush2.msra.mxu0 0.0
  %5811 = vmatprep.subr.mxu0 0.0
  %5812 = vmatpush2.msra.mxu0 0.0
  %5813 = vmatprep.subr.mxu0 0.0
  %5814 = vmatpush2.msra.mxu0 0.0
  %5815 = vmatprep.mubr.f32.mxu0 0.0
  %5816 = vmatmul.mubr.f32.gmra.mxu0 %v4860
  %v5817 = vpop.f32.mrf.mxu0
  %v5818 = vadd.f32 0.0, %v5817
  %v5819 = vpop.f32.mrf.mxu0
  %5820 = vdwg.mxu0
  %v5821 = vadd.f32 %v5732, %v5818
  %v5822 = vld [vmem:[%s1266] sm:$0xff]
  %v5823 = vld [vmem:[%s1266 + $0x8] sm:$0xff]
  %v5824 = vld [vmem:[%s1266 + $0x10] sm:$0xff]
  %v5825 = vld [vmem:[%s1266 + $0x18] sm:$0xff]
  %v5826 = vld [vmem:[%s1266 + $0x20] sm:$0xff]
  %v5827 = vld [vmem:[%s1266 + $0x28] sm:$0xff]
  %v5828 = vld [vmem:[%s1266 + $0x30] sm:$0xff]
  %v5829 = vld [vmem:[%s1266 + $0x38] sm:$0xff]
  %v5830 = vld [vmem:[%s1266 + $0x40] sm:$0xff]
  %v5831 = vld [vmem:[%s1266 + $0x48] sm:$0xff]
  %v5832 = vld [vmem:[%s1266 + $0x50] sm:$0xff]
  %v5833 = vld [vmem:[%s1266 + $0x58] sm:$0xff]
  %v5834 = vld [vmem:[%s1266 + $0x60] sm:$0xff]
  %v5835 = vld [vmem:[%s1266 + $0x68] sm:$0xff]
  %v5836 = vld [vmem:[%s1266 + $0x70] sm:$0xff]
  %v5837 = vld [vmem:[%s1266 + $0x78] sm:$0xff]
  %5838 = vmatprep.subr.mxu0 0.0
  %5839 = vmatpush1.msra.mxu0 %v5837
  %5840 = vmatprep.subr.mxu0 0.0
  %5841 = vmatpush1.msra.mxu0 %v5836
  %5842 = vmatprep.subr.mxu0 0.0
  %5843 = vmatpush1.msra.mxu0 %v5835
  %5844 = vmatprep.subr.mxu0 0.0
  %5845 = vmatpush1.msra.mxu0 %v5834
  %5846 = vmatprep.subr.mxu0 0.0
  %5847 = vmatpush1.msra.mxu0 %v5833
  %5848 = vmatprep.subr.mxu0 0.0
  %5849 = vmatpush1.msra.mxu0 %v5832
  %5850 = vmatprep.subr.mxu0 0.0
  %5851 = vmatpush1.msra.mxu0 %v5831
  %5852 = vmatprep.subr.mxu0 0.0
  %5853 = vmatpush1.msra.mxu0 %v5830
  %5854 = vmatprep.subr.mxu0 0.0
  %5855 = vmatpush1.msra.mxu0 %v5829
  %5856 = vmatprep.subr.mxu0 0.0
  %5857 = vmatpush1.msra.mxu0 %v5828
  %5858 = vmatprep.subr.mxu0 0.0
  %5859 = vmatpush1.msra.mxu0 %v5827
  %5860 = vmatprep.subr.mxu0 0.0
  %5861 = vmatpush1.msra.mxu0 %v5826
  %5862 = vmatprep.subr.mxu0 0.0
  %5863 = vmatpush1.msra.mxu0 %v5825
  %5864 = vmatprep.subr.mxu0 0.0
  %5865 = vmatpush1.msra.mxu0 %v5824
  %5866 = vmatprep.subr.mxu0 0.0
  %5867 = vmatpush1.msra.mxu0 %v5823
  %5868 = vmatprep.subr.mxu0 0.0
  %5869 = vmatpush1.msra.mxu0 %v5822
  %5870 = vmatprep.subr.mxu0 0.0
  %5871 = vmatpush2.msra.mxu0 0.0
  %5872 = vmatprep.subr.mxu0 0.0
  %5873 = vmatpush2.msra.mxu0 0.0
  %5874 = vmatprep.subr.mxu0 0.0
  %5875 = vmatpush2.msra.mxu0 0.0
  %5876 = vmatprep.subr.mxu0 0.0
  %5877 = vmatpush2.msra.mxu0 0.0
  %5878 = vmatprep.subr.mxu0 0.0
  %5879 = vmatpush2.msra.mxu0 0.0
  %5880 = vmatprep.subr.mxu0 0.0
  %5881 = vmatpush2.msra.mxu0 0.0
  %5882 = vmatprep.subr.mxu0 0.0
  %5883 = vmatpush2.msra.mxu0 0.0
  %5884 = vmatprep.subr.mxu0 0.0
  %5885 = vmatpush2.msra.mxu0 0.0
  %5886 = vmatprep.subr.mxu0 0.0
  %5887 = vmatpush2.msra.mxu0 0.0
  %5888 = vmatprep.subr.mxu0 0.0
  %5889 = vmatpush2.msra.mxu0 0.0
  %5890 = vmatprep.subr.mxu0 0.0
  %5891 = vmatpush2.msra.mxu0 0.0
  %5892 = vmatprep.subr.mxu0 0.0
  %5893 = vmatpush2.msra.mxu0 0.0
  %5894 = vmatprep.subr.mxu0 0.0
  %5895 = vmatpush2.msra.mxu0 0.0
  %5896 = vmatprep.subr.mxu0 0.0
  %5897 = vmatpush2.msra.mxu0 0.0
  %5898 = vmatprep.subr.mxu0 0.0
  %5899 = vmatpush2.msra.mxu0 0.0
  %5900 = vmatprep.subr.mxu0 0.0
  %5901 = vmatpush2.msra.mxu0 0.0
  %5902 = vmatprep.mubr.f32.mxu0 0.0
  %5903 = vmatmul.mubr.f32.gmra.mxu0 %v5096
  %v5904 = vpop.f32.mrf.mxu0
  %v5905 = vadd.f32 0.0, %v5904
  %v5906 = vpop.f32.mrf.mxu0
  %5907 = vdwg.mxu0
  %v5908 = vadd.f32 %v5821, %v5905
  %v5909 = vld [vmem:[%s1354] sm:$0xff]
  %v5910 = vld [vmem:[%s1354 + $0x8] sm:$0xff]
  %v5911 = vld [vmem:[%s1354 + $0x10] sm:$0xff]
  %v5912 = vld [vmem:[%s1354 + $0x18] sm:$0xff]
  %v5913 = vld [vmem:[%s1354 + $0x20] sm:$0xff]
  %v5914 = vld [vmem:[%s1354 + $0x28] sm:$0xff]
  %v5915 = vld [vmem:[%s1354 + $0x30] sm:$0xff]
  %v5916 = vld [vmem:[%s1354 + $0x38] sm:$0xff]
  %v5917 = vld [vmem:[%s1354 + $0x40] sm:$0xff]
  %v5918 = vld [vmem:[%s1354 + $0x48] sm:$0xff]
  %v5919 = vld [vmem:[%s1354 + $0x50] sm:$0xff]
  %v5920 = vld [vmem:[%s1354 + $0x58] sm:$0xff]
  %v5921 = vld [vmem:[%s1354 + $0x60] sm:$0xff]
  %v5922 = vld [vmem:[%s1354 + $0x68] sm:$0xff]
  %v5923 = vld [vmem:[%s1354 + $0x70] sm:$0xff]
  %v5924 = vld [vmem:[%s1354 + $0x78] sm:$0xff]
  %5925 = vmatprep.subr.mxu0 0.0
  %5926 = vmatpush1.msra.mxu0 %v5924
  %5927 = vmatprep.subr.mxu0 0.0
  %5928 = vmatpush1.msra.mxu0 %v5923
  %5929 = vmatprep.subr.mxu0 0.0
  %5930 = vmatpush1.msra.mxu0 %v5922
  %5931 = vmatprep.subr.mxu0 0.0
  %5932 = vmatpush1.msra.mxu0 %v5921
  %5933 = vmatprep.subr.mxu0 0.0
  %5934 = vmatpush1.msra.mxu0 %v5920
  %5935 = vmatprep.subr.mxu0 0.0
  %5936 = vmatpush1.msra.mxu0 %v5919
  %5937 = vmatprep.subr.mxu0 0.0
  %5938 = vmatpush1.msra.mxu0 %v5918
  %5939 = vmatprep.subr.mxu0 0.0
  %5940 = vmatpush1.msra.mxu0 %v5917
  %5941 = vmatprep.subr.mxu0 0.0
  %5942 = vmatpush1.msra.mxu0 %v5916
  %5943 = vmatprep.subr.mxu0 0.0
  %5944 = vmatpush1.msra.mxu0 %v5915
  %5945 = vmatprep.subr.mxu0 0.0
  %5946 = vmatpush1.msra.mxu0 %v5914
  %5947 = vmatprep.subr.mxu0 0.0
  %5948 = vmatpush1.msra.mxu0 %v5913
  %5949 = vmatprep.subr.mxu0 0.0
  %5950 = vmatpush1.msra.mxu0 %v5912
  %5951 = vmatprep.subr.mxu0 0.0
  %5952 = vmatpush1.msra.mxu0 %v5911
  %5953 = vmatprep.subr.mxu0 0.0
  %5954 = vmatpush1.msra.mxu0 %v5910
  %5955 = vmatprep.subr.mxu0 0.0
  %5956 = vmatpush1.msra.mxu0 %v5909
  %5957 = vmatprep.subr.mxu0 0.0
  %5958 = vmatpush2.msra.mxu0 0.0
  %5959 = vmatprep.subr.mxu0 0.0
  %5960 = vmatpush2.msra.mxu0 0.0
  %5961 = vmatprep.subr.mxu0 0.0
  %5962 = vmatpush2.msra.mxu0 0.0
  %5963 = vmatprep.subr.mxu0 0.0
  %5964 = vmatpush2.msra.mxu0 0.0
  %5965 = vmatprep.subr.mxu0 0.0
  %5966 = vmatpush2.msra.mxu0 0.0
  %5967 = vmatprep.subr.mxu0 0.0
  %5968 = vmatpush2.msra.mxu0 0.0
  %5969 = vmatprep.subr.mxu0 0.0
  %5970 = vmatpush2.msra.mxu0 0.0
  %5971 = vmatprep.subr.mxu0 0.0
  %5972 = vmatpush2.msra.mxu0 0.0
  %5973 = vmatprep.subr.mxu0 0.0
  %5974 = vmatpush2.msra.mxu0 0.0
  %5975 = vmatprep.subr.mxu0 0.0
  %5976 = vmatpush2.msra.mxu0 0.0
  %5977 = vmatprep.subr.mxu0 0.0
  %5978 = vmatpush2.msra.mxu0 0.0
  %5979 = vmatprep.subr.mxu0 0.0
  %5980 = vmatpush2.msra.mxu0 0.0
  %5981 = vmatprep.subr.mxu0 0.0
  %5982 = vmatpush2.msra.mxu0 0.0
  %5983 = vmatprep.subr.mxu0 0.0
  %5984 = vmatpush2.msra.mxu0 0.0
  %5985 = vmatprep.subr.mxu0 0.0
  %5986 = vmatpush2.msra.mxu0 0.0
  %5987 = vmatprep.subr.mxu0 0.0
  %5988 = vmatpush2.msra.mxu0 0.0
  %5989 = vmatprep.mubr.f32.mxu0 0.0
  %5990 = vmatmul.mubr.f32.gmra.mxu0 %v5237
  %v5991 = vpop.f32.mrf.mxu0
  %v5992 = vadd.f32 0.0, %v5991
  %v5993 = vpop.f32.mrf.mxu0
  %5994 = vdwg.mxu0
  %v5995 = vadd.f32 %v5908, %v5992
  %v5996 = vld [vmem:[%s1442] sm:$0xff]
  %v5997 = vld [vmem:[%s1442 + $0x8] sm:$0xff]
  %v5998 = vld [vmem:[%s1442 + $0x10] sm:$0xff]
  %v5999 = vld [vmem:[%s1442 + $0x18] sm:$0xff]
  %v6000 = vld [vmem:[%s1442 + $0x20] sm:$0xff]
  %v6001 = vld [vmem:[%s1442 + $0x28] sm:$0xff]
  %v6002 = vld [vmem:[%s1442 + $0x30] sm:$0xff]
  %v6003 = vld [vmem:[%s1442 + $0x38] sm:$0xff]
  %v6004 = vld [vmem:[%s1442 + $0x40] sm:$0xff]
  %v6005 = vld [vmem:[%s1442 + $0x48] sm:$0xff]
  %v6006 = vld [vmem:[%s1442 + $0x50] sm:$0xff]
  %v6007 = vld [vmem:[%s1442 + $0x58] sm:$0xff]
  %v6008 = vld [vmem:[%s1442 + $0x60] sm:$0xff]
  %v6009 = vld [vmem:[%s1442 + $0x68] sm:$0xff]
  %v6010 = vld [vmem:[%s1442 + $0x70] sm:$0xff]
  %v6011 = vld [vmem:[%s1442 + $0x78] sm:$0xff]
  %6012 = vmatprep.subr.mxu0 0.0
  %6013 = vmatpush1.msra.mxu0 %v6011
  %6014 = vmatprep.subr.mxu0 0.0
  %6015 = vmatpush1.msra.mxu0 %v6010
  %6016 = vmatprep.subr.mxu0 0.0
  %6017 = vmatpush1.msra.mxu0 %v6009
  %6018 = vmatprep.subr.mxu0 0.0
  %6019 = vmatpush1.msra.mxu0 %v6008
  %6020 = vmatprep.subr.mxu0 0.0
  %6021 = vmatpush1.msra.mxu0 %v6007
  %6022 = vmatprep.subr.mxu0 0.0
  %6023 = vmatpush1.msra.mxu0 %v6006
  %6024 = vmatprep.subr.mxu0 0.0
  %6025 = vmatpush1.msra.mxu0 %v6005
  %6026 = vmatprep.subr.mxu0 0.0
  %6027 = vmatpush1.msra.mxu0 %v6004
  %6028 = vmatprep.subr.mxu0 0.0
  %6029 = vmatpush1.msra.mxu0 %v6003
  %6030 = vmatprep.subr.mxu0 0.0
  %6031 = vmatpush1.msra.mxu0 %v6002
  %6032 = vmatprep.subr.mxu0 0.0
  %6033 = vmatpush1.msra.mxu0 %v6001
  %6034 = vmatprep.subr.mxu0 0.0
  %6035 = vmatpush1.msra.mxu0 %v6000
  %6036 = vmatprep.subr.mxu0 0.0
  %6037 = vmatpush1.msra.mxu0 %v5999
  %6038 = vmatprep.subr.mxu0 0.0
  %6039 = vmatpush1.msra.mxu0 %v5998
  %6040 = vmatprep.subr.mxu0 0.0
  %6041 = vmatpush1.msra.mxu0 %v5997
  %6042 = vmatprep.subr.mxu0 0.0
  %6043 = vmatpush1.msra.mxu0 %v5996
  %6044 = vmatprep.subr.mxu0 0.0
  %6045 = vmatpush2.msra.mxu0 0.0
  %6046 = vmatprep.subr.mxu0 0.0
  %6047 = vmatpush2.msra.mxu0 0.0
  %6048 = vmatprep.subr.mxu0 0.0
  %6049 = vmatpush2.msra.mxu0 0.0
  %6050 = vmatprep.subr.mxu0 0.0
  %6051 = vmatpush2.msra.mxu0 0.0
  %6052 = vmatprep.subr.mxu0 0.0
  %6053 = vmatpush2.msra.mxu0 0.0
  %6054 = vmatprep.subr.mxu0 0.0
  %6055 = vmatpush2.msra.mxu0 0.0
  %6056 = vmatprep.subr.mxu0 0.0
  %6057 = vmatpush2.msra.mxu0 0.0
  %6058 = vmatprep.subr.mxu0 0.0
  %6059 = vmatpush2.msra.mxu0 0.0
  %6060 = vmatprep.subr.mxu0 0.0
  %6061 = vmatpush2.msra.mxu0 0.0
  %6062 = vmatprep.subr.mxu0 0.0
  %6063 = vmatpush2.msra.mxu0 0.0
  %6064 = vmatprep.subr.mxu0 0.0
  %6065 = vmatpush2.msra.mxu0 0.0
  %6066 = vmatprep.subr.mxu0 0.0
  %6067 = vmatpush2.msra.mxu0 0.0
  %6068 = vmatprep.subr.mxu0 0.0
  %6069 = vmatpush2.msra.mxu0 0.0
  %6070 = vmatprep.subr.mxu0 0.0
  %6071 = vmatpush2.msra.mxu0 0.0
  %6072 = vmatprep.subr.mxu0 0.0
  %6073 = vmatpush2.msra.mxu0 0.0
  %6074 = vmatprep.subr.mxu0 0.0
  %6075 = vmatpush2.msra.mxu0 0.0
  %6076 = vmatprep.mubr.f32.mxu0 0.0
  %6077 = vmatmul.mubr.f32.gmra.mxu0 %v5380
  %v6078 = vpop.f32.mrf.mxu0
  %v6079 = vadd.f32 0.0, %v6078
  %v6080 = vpop.f32.mrf.mxu0
  %6081 = vdwg.mxu0
  %v6082 = vadd.f32 %v5995, %v6079
  %v6083 = vld [vmem:[%s9] sm:$0x1]
  %v6085 = vlaneseq
  %v6086 = vshrl.u32 %v6085, 7
  %v6087 = vsub.s32 0, %v6086
  %v6088 = vrot.slane %v6083, %v6087
  %v6090 = vadd.f32 %v6082, %v6088
  %v6091 = vld [vmem:[%s10] sm:$0xff]
  %v6092 = vld [vmem:[%s10 + $0x8] sm:$0xff]
  %v6093 = vld [vmem:[%s10 + $0x10] sm:$0xff]
  %v6094 = vld [vmem:[%s10 + $0x18] sm:$0xff]
  %v6095 = vld [vmem:[%s10 + $0x20] sm:$0xff]
  %v6096 = vld [vmem:[%s10 + $0x28] sm:$0xff]
  %v6097 = vld [vmem:[%s10 + $0x30] sm:$0xff]
  %v6098 = vld [vmem:[%s10 + $0x38] sm:$0xff]
  %v6099 = vld [vmem:[%s10 + $0x40] sm:$0xff]
  %v6100 = vld [vmem:[%s10 + $0x48] sm:$0xff]
  %v6101 = vld [vmem:[%s10 + $0x50] sm:$0xff]
  %v6102 = vld [vmem:[%s10 + $0x58] sm:$0xff]
  %v6103 = vld [vmem:[%s10 + $0x60] sm:$0xff]
  %v6104 = vld [vmem:[%s10 + $0x68] sm:$0xff]
  %v6105 = vld [vmem:[%s10 + $0x70] sm:$0xff]
  %v6106 = vld [vmem:[%s10 + $0x78] sm:$0xff]
  %v6107 = vld [vmem:[%s1554] sm:$0xff]
  %v6108 = vld [vmem:[%s1554 + $0x8] sm:$0xff]
  %v6109 = vld [vmem:[%s1554 + $0x10] sm:$0xff]
  %v6110 = vld [vmem:[%s1554 + $0x18] sm:$0xff]
  %v6111 = vld [vmem:[%s1554 + $0x20] sm:$0xff]
  %v6112 = vld [vmem:[%s1554 + $0x28] sm:$0xff]
  %v6113 = vld [vmem:[%s1554 + $0x30] sm:$0xff]
  %v6114 = vld [vmem:[%s1554 + $0x38] sm:$0xff]
  %v6115 = vld [vmem:[%s1554 + $0x40] sm:$0xff]
  %v6116 = vld [vmem:[%s1554 + $0x48] sm:$0xff]
  %v6117 = vld [vmem:[%s1554 + $0x50] sm:$0xff]
  %v6118 = vld [vmem:[%s1554 + $0x58] sm:$0xff]
  %v6119 = vld [vmem:[%s1554 + $0x60] sm:$0xff]
  %v6120 = vld [vmem:[%s1554 + $0x68] sm:$0xff]
  %v6121 = vld [vmem:[%s1554 + $0x70] sm:$0xff]
  %v6122 = vld [vmem:[%s1554 + $0x78] sm:$0xff]
  %v6124 = vsel %vm1571, %v6090, 0
  %6126 = vmatprep.subr.mxu0 0.0
  %6127 = vmatpush1.msra.mxu0 0.0
  %6128 = vmatprep.subr.mxu0 0.0
  %6129 = vmatpush1.msra.mxu0 0.0
  %6130 = vmatprep.subr.mxu0 0.0
  %6131 = vmatpush1.msra.mxu0 0.0
  %6132 = vmatprep.subr.mxu0 0.0
  %6133 = vmatpush1.msra.mxu0 0.0
  %6134 = vmatprep.subr.mxu0 0.0
  %6135 = vmatpush1.msra.mxu0 0.0
  %6136 = vmatprep.subr.mxu0 0.0
  %6137 = vmatpush1.msra.mxu0 0.0
  %6138 = vmatprep.subr.mxu0 0.0
  %6139 = vmatpush1.msra.mxu0 0.0
  %6140 = vmatprep.subr.mxu0 0.0
  %6141 = vmatpush1.msra.mxu0 0.0
  %6142 = vmatprep.subr.mxu0 %v6122
  %6143 = vmatpush1.msra.mxu0 %v6121
  %6144 = vmatprep.subr.mxu0 %v6120
  %6145 = vmatpush1.msra.mxu0 %v6119
  %6146 = vmatprep.subr.mxu0 %v6118
  %6147 = vmatpush1.msra.mxu0 %v6117
  %6148 = vmatprep.subr.mxu0 %v6116
  %6149 = vmatpush1.msra.mxu0 %v6115
  %6150 = vmatprep.subr.mxu0 %v6114
  %6151 = vmatpush1.msra.mxu0 %v6113
  %6152 = vmatprep.subr.mxu0 %v6112
  %6153 = vmatpush1.msra.mxu0 %v6111
  %6154 = vmatprep.subr.mxu0 %v6110
  %6155 = vmatpush1.msra.mxu0 %v6109
  %6156 = vmatprep.subr.mxu0 %v6108
  %6157 = vmatpush1.msra.mxu0 %v6107
  %6158 = vmatprep.subr.mxu0 0.0
  %6159 = vmatpush2.msra.mxu0 0.0
  %6160 = vmatprep.subr.mxu0 0.0
  %6161 = vmatpush2.msra.mxu0 0.0
  %6162 = vmatprep.subr.mxu0 0.0
  %6163 = vmatpush2.msra.mxu0 0.0
  %6164 = vmatprep.subr.mxu0 0.0
  %6165 = vmatpush2.msra.mxu0 0.0
  %6166 = vmatprep.subr.mxu0 0.0
  %6167 = vmatpush2.msra.mxu0 0.0
  %6168 = vmatprep.subr.mxu0 0.0
  %6169 = vmatpush2.msra.mxu0 0.0
  %6170 = vmatprep.subr.mxu0 0.0
  %6171 = vmatpush2.msra.mxu0 0.0
  %6172 = vmatprep.subr.mxu0 0.0
  %6173 = vmatpush2.msra.mxu0 0.0
  %6174 = vmatprep.subr.mxu0 0.0
  %6175 = vmatpush2.msra.mxu0 0.0
  %6176 = vmatprep.subr.mxu0 0.0
  %6177 = vmatpush2.msra.mxu0 0.0
  %6178 = vmatprep.subr.mxu0 0.0
  %6179 = vmatpush2.msra.mxu0 0.0
  %6180 = vmatprep.subr.mxu0 0.0
  %6181 = vmatpush2.msra.mxu0 0.0
  %6182 = vmatprep.subr.mxu0 0.0
  %6183 = vmatpush2.msra.mxu0 0.0
  %6184 = vmatprep.subr.mxu0 0.0
  %6185 = vmatpush2.msra.mxu0 0.0
  %6186 = vmatprep.subr.mxu0 0.0
  %6187 = vmatpush2.msra.mxu0 0.0
  %6188 = vmatprep.subr.mxu0 0.0
  %6189 = vmatpush2.msra.mxu0 0.0
  %6190 = vmatprep.mubr.f32.mxu0 0.0
  %6191 = vmatmul.mubr.f32.gmra.mxu0 %v6124
  %v6192 = vpop.f32.mrf.mxu0
  %v6193 = vadd.f32 0.0, %v6192
  %v6194 = vpop.f32.mrf.mxu0
  %v6195 = vadd.f32 0.0, %v6194
  %6196 = vdwg.mxu0
  %v6198 = vsel %vm1571, %v5562, 0
  %6200 = vmatprep.subr.mxu0 0.0
  %6201 = vmatpush1.msra.mxu0 0.0
  %6202 = vmatprep.subr.mxu0 0.0
  %6203 = vmatpush1.msra.mxu0 0.0
  %6204 = vmatprep.subr.mxu0 0.0
  %6205 = vmatpush1.msra.mxu0 0.0
  %6206 = vmatprep.subr.mxu0 0.0
  %6207 = vmatpush1.msra.mxu0 0.0
  %6208 = vmatprep.subr.mxu0 0.0
  %6209 = vmatpush1.msra.mxu0 0.0
  %6210 = vmatprep.subr.mxu0 0.0
  %6211 = vmatpush1.msra.mxu0 0.0
  %6212 = vmatprep.subr.mxu0 0.0
  %6213 = vmatpush1.msra.mxu0 0.0
  %6214 = vmatprep.subr.mxu0 0.0
  %6215 = vmatpush1.msra.mxu0 0.0
  %6216 = vmatprep.subr.mxu0 %v6106
  %6217 = vmatpush1.msra.mxu0 %v6105
  %6218 = vmatprep.subr.mxu0 %v6104
  %6219 = vmatpush1.msra.mxu0 %v6103
  %6220 = vmatprep.subr.mxu0 %v6102
  %6221 = vmatpush1.msra.mxu0 %v6101
  %6222 = vmatprep.subr.mxu0 %v6100
  %6223 = vmatpush1.msra.mxu0 %v6099
  %6224 = vmatprep.subr.mxu0 %v6098
  %6225 = vmatpush1.msra.mxu0 %v6097
  %6226 = vmatprep.subr.mxu0 %v6096
  %6227 = vmatpush1.msra.mxu0 %v6095
  %6228 = vmatprep.subr.mxu0 %v6094
  %6229 = vmatpush1.msra.mxu0 %v6093
  %6230 = vmatprep.subr.mxu0 %v6092
  %6231 = vmatpush1.msra.mxu0 %v6091
  %6232 = vmatprep.subr.mxu0 0.0
  %6233 = vmatpush2.msra.mxu0 0.0
  %6234 = vmatprep.subr.mxu0 0.0
  %6235 = vmatpush2.msra.mxu0 0.0
  %6236 = vmatprep.subr.mxu0 0.0
  %6237 = vmatpush2.msra.mxu0 0.0
  %6238 = vmatprep.subr.mxu0 0.0
  %6239 = vmatpush2.msra.mxu0 0.0
  %6240 = vmatprep.subr.mxu0 0.0
  %6241 = vmatpush2.msra.mxu0 0.0
  %6242 = vmatprep.subr.mxu0 0.0
  %6243 = vmatpush2.msra.mxu0 0.0
  %6244 = vmatprep.subr.mxu0 0.0
  %6245 = vmatpush2.msra.mxu0 0.0
  %6246 = vmatprep.subr.mxu0 0.0
  %6247 = vmatpush2.msra.mxu0 0.0
  %6248 = vmatprep.subr.mxu0 0.0
  %6249 = vmatpush2.msra.mxu0 0.0
  %6250 = vmatprep.subr.mxu0 0.0
  %6251 = vmatpush2.msra.mxu0 0.0
  %6252 = vmatprep.subr.mxu0 0.0
  %6253 = vmatpush2.msra.mxu0 0.0
  %6254 = vmatprep.subr.mxu0 0.0
  %6255 = vmatpush2.msra.mxu0 0.0
  %6256 = vmatprep.subr.mxu0 0.0
  %6257 = vmatpush2.msra.mxu0 0.0
  %6258 = vmatprep.subr.mxu0 0.0
  %6259 = vmatpush2.msra.mxu0 0.0
  %6260 = vmatprep.subr.mxu0 0.0
  %6261 = vmatpush2.msra.mxu0 0.0
  %6262 = vmatprep.subr.mxu0 0.0
  %6263 = vmatpush2.msra.mxu0 0.0
  %6264 = vmatprep.mubr.f32.mxu0 0.0
  %6265 = vmatmul.mubr.f32.gmra.mxu0 %v6198
  %v6266 = vpop.f32.mrf.mxu0
  %v6267 = vadd.f32 %v6193, %v6266
  %v6268 = vpop.f32.mrf.mxu0
  %v6269 = vadd.f32 %v6195, %v6268
  %6270 = vdwg.mxu0
  %v6271 = vld [vmem:[%s11] sm:$0xff]
  %v6272 = vld [vmem:[%s11 + $0x8] sm:$0xff]
  %v6273 = vld [vmem:[%s11 + $0x10] sm:$0xff]
  %v6274 = vld [vmem:[%s11 + $0x18] sm:$0xff]
  %v6275 = vld [vmem:[%s11 + $0x20] sm:$0xff]
  %v6276 = vld [vmem:[%s11 + $0x28] sm:$0xff]
  %v6277 = vld [vmem:[%s11 + $0x30] sm:$0xff]
  %v6278 = vld [vmem:[%s11 + $0x38] sm:$0xff]
  %v6279 = vld [vmem:[%s11 + $0x40] sm:$0xff]
  %v6280 = vld [vmem:[%s11 + $0x48] sm:$0xff]
  %v6281 = vld [vmem:[%s11 + $0x50] sm:$0xff]
  %v6282 = vld [vmem:[%s11 + $0x58] sm:$0xff]
  %v6283 = vld [vmem:[%s11 + $0x60] sm:$0xff]
  %v6284 = vld [vmem:[%s11 + $0x68] sm:$0xff]
  %v6285 = vld [vmem:[%s11 + $0x70] sm:$0xff]
  %v6286 = vld [vmem:[%s11 + $0x78] sm:$0xff]
  %6287 = vmatprep.subr.mxu0 0.0
  %6288 = vmatpush1.msra.mxu0 0.0
  %6289 = vmatprep.subr.mxu0 0.0
  %6290 = vmatpush1.msra.mxu0 0.0
  %6291 = vmatprep.subr.mxu0 0.0
  %6292 = vmatpush1.msra.mxu0 0.0
  %6293 = vmatprep.subr.mxu0 0.0
  %6294 = vmatpush1.msra.mxu0 0.0
  %6295 = vmatprep.subr.mxu0 0.0
  %6296 = vmatpush1.msra.mxu0 0.0
  %6297 = vmatprep.subr.mxu0 0.0
  %6298 = vmatpush1.msra.mxu0 0.0
  %6299 = vmatprep.subr.mxu0 0.0
  %6300 = vmatpush1.msra.mxu0 0.0
  %6301 = vmatprep.subr.mxu0 0.0
  %6302 = vmatpush1.msra.mxu0 0.0
  %6303 = vmatprep.subr.mxu0 %v6286
  %6304 = vmatpush1.msra.mxu0 %v6285
  %6305 = vmatprep.subr.mxu0 %v6284
  %6306 = vmatpush1.msra.mxu0 %v6283
  %6307 = vmatprep.subr.mxu0 %v6282
  %6308 = vmatpush1.msra.mxu0 %v6281
  %6309 = vmatprep.subr.mxu0 %v6280
  %6310 = vmatpush1.msra.mxu0 %v6279
  %6311 = vmatprep.subr.mxu0 %v6278
  %6312 = vmatpush1.msra.mxu0 %v6277
  %6313 = vmatprep.subr.mxu0 %v6276
  %6314 = vmatpush1.msra.mxu0 %v6275
  %6315 = vmatprep.subr.mxu0 %v6274
  %6316 = vmatpush1.msra.mxu0 %v6273
  %6317 = vmatprep.subr.mxu0 %v6272
  %6318 = vmatpush1.msra.mxu0 %v6271
  %6319 = vmatprep.subr.mxu0 0.0
  %6320 = vmatpush2.msra.mxu0 0.0
  %6321 = vmatprep.subr.mxu0 0.0
  %6322 = vmatpush2.msra.mxu0 0.0
  %6323 = vmatprep.subr.mxu0 0.0
  %6324 = vmatpush2.msra.mxu0 0.0
  %6325 = vmatprep.subr.mxu0 0.0
  %6326 = vmatpush2.msra.mxu0 0.0
  %6327 = vmatprep.subr.mxu0 0.0
  %6328 = vmatpush2.msra.mxu0 0.0
  %6329 = vmatprep.subr.mxu0 0.0
  %6330 = vmatpush2.msra.mxu0 0.0
  %6331 = vmatprep.subr.mxu0 0.0
  %6332 = vmatpush2.msra.mxu0 0.0
  %6333 = vmatprep.subr.mxu0 0.0
  %6334 = vmatpush2.msra.mxu0 0.0
  %6335 = vmatprep.subr.mxu0 0.0
  %6336 = vmatpush2.msra.mxu0 0.0
  %6337 = vmatprep.subr.mxu0 0.0
  %6338 = vmatpush2.msra.mxu0 0.0
  %6339 = vmatprep.subr.mxu0 0.0
  %6340 = vmatpush2.msra.mxu0 0.0
  %6341 = vmatprep.subr.mxu0 0.0
  %6342 = vmatpush2.msra.mxu0 0.0
  %6343 = vmatprep.subr.mxu0 0.0
  %6344 = vmatpush2.msra.mxu0 0.0
  %6345 = vmatprep.subr.mxu0 0.0
  %6346 = vmatpush2.msra.mxu0 0.0
  %6347 = vmatprep.subr.mxu0 0.0
  %6348 = vmatpush2.msra.mxu0 0.0
  %6349 = vmatprep.subr.mxu0 0.0
  %6350 = vmatpush2.msra.mxu0 0.0
  %6351 = vmatprep.mubr.f32.mxu0 0.0
  %6352 = vmatmul.mubr.f32.gmra.mxu0 %v4137
  %v6353 = vpop.f32.mrf.mxu0
  %v6354 = vadd.f32 0.0, %v6353
  %v6355 = vpop.f32.mrf.mxu0
  %v6356 = vadd.f32 0.0, %v6355
  %6357 = vdwg.mxu0
  %v6358 = vadd.f32 %v6267, %v6354
  %v6359 = vadd.f32 %v6269, %v6356
  %v6360 = vld [vmem:[%s12] sm:$0x3]
  %v6362 = vlaneseq
  %v6363 = vshrl.u32 %v6362, 7
  %v6364 = vsub.s32 0, %v6363
  %v6365 = vrot.slane %v6360, %v6364
  %v6366 = vlaneseq
  %v6367 = vshrl.u32 %v6366, 7
  %v6368 = vsub.s32 1, %v6367
  %v6369 = vrot.slane %v6360, %v6368
  %v6372 = vadd.f32 %v6358, %v6365
  %v6373 = vadd.f32 %v6359, %v6369
  %v6374 = vxor.u32 %v6372, 2147483648
  %v6375 = vmul.f32 %v6374, 1.442695
  %v6376 = vpow.pop %v6375
  %v6377 = vadd.f32 %v6376, 1.0
  %v6378 = vrcp.pop %v6377
  %v6379 = vmul.f32 1.0, %v6378
  %v6380 = vtanh.pop %v6373
  %v6381 = vxor.u32 %v6373, 2147483648
  %v6382 = vmul.f32 %v6381, 1.442695
  %v6383 = vpow.pop %v6382
  %v6384 = vadd.f32 %v6383, 1.0
  %v6385 = vrcp.pop %v6384
  %v6386 = vmul.f32 1.0, %v6385
  %v6387 = vmul.f32 %v6379, %v4122
  %v6388 = vmul.f32 %v6379, %v6380
  %6390 = vrot.lane.b32.xlu0 %v6388, 64
  %v6391 = vpop.permute.xlu0 %6390
  %v6393 = vadd.f32 %v6387, %v6391
  %v6394 = vtanh.pop %v6393
  %v6395 = vmul.f32 %v6386, %v6394
  %v6396 = vld [vmem:[%s14] sm:$0x1]
  %v6397 = vld [vmem:[%s13] sm:$0xff]
  %v6398 = vld [vmem:[%s13 + $0x8] sm:$0xff]
  %v6399 = vld [vmem:[%s13 + $0x10] sm:$0xff]
  %v6400 = vld [vmem:[%s13 + $0x18] sm:$0xff]
  %v6401 = vld [vmem:[%s13 + $0x20] sm:$0xff]
  %v6402 = vld [vmem:[%s13 + $0x28] sm:$0xff]
  %v6403 = vld [vmem:[%s13 + $0x30] sm:$0xff]
  %v6404 = vld [vmem:[%s13 + $0x38] sm:$0xff]
  %6406 = vrot.lane.b32.xlu0 %v6395, 64
  %v6407 = vpop.permute.xlu0 %6406
  %v6408 = vsel %vm1571, %v6407, 0
  %6410 = vmatprep.subr.mxu0 0.0
  %6411 = vmatpush1.msra.mxu0 0.0
  %6412 = vmatprep.subr.mxu0 0.0
  %6413 = vmatpush1.msra.mxu0 0.0
  %6414 = vmatprep.subr.mxu0 0.0
  %6415 = vmatpush1.msra.mxu0 0.0
  %6416 = vmatprep.subr.mxu0 0.0
  %6417 = vmatpush1.msra.mxu0 0.0
  %6418 = vmatprep.subr.mxu0 0.0
  %6419 = vmatpush1.msra.mxu0 0.0
  %6420 = vmatprep.subr.mxu0 0.0
  %6421 = vmatpush1.msra.mxu0 0.0
  %6422 = vmatprep.subr.mxu0 0.0
  %6423 = vmatpush1.msra.mxu0 0.0
  %6424 = vmatprep.subr.mxu0 0.0
  %6425 = vmatpush1.msra.mxu0 0.0
  %6426 = vmatprep.subr.mxu0 0.0
  %6427 = vmatpush1.msra.mxu0 %v6404
  %6428 = vmatprep.subr.mxu0 0.0
  %6429 = vmatpush1.msra.mxu0 %v6403
  %6430 = vmatprep.subr.mxu0 0.0
  %6431 = vmatpush1.msra.mxu0 %v6402
  %6432 = vmatprep.subr.mxu0 0.0
  %6433 = vmatpush1.msra.mxu0 %v6401
  %6434 = vmatprep.subr.mxu0 0.0
  %6435 = vmatpush1.msra.mxu0 %v6400
  %6436 = vmatprep.subr.mxu0 0.0
  %6437 = vmatpush1.msra.mxu0 %v6399
  %6438 = vmatprep.subr.mxu0 0.0
  %6439 = vmatpush1.msra.mxu0 %v6398
  %6440 = vmatprep.subr.mxu0 0.0
  %6441 = vmatpush1.msra.mxu0 %v6397
  %6442 = vmatprep.subr.mxu0 0.0
  %6443 = vmatpush2.msra.mxu0 0.0
  %6444 = vmatprep.subr.mxu0 0.0
  %6445 = vmatpush2.msra.mxu0 0.0
  %6446 = vmatprep.subr.mxu0 0.0
  %6447 = vmatpush2.msra.mxu0 0.0
  %6448 = vmatprep.subr.mxu0 0.0
  %6449 = vmatpush2.msra.mxu0 0.0
  %6450 = vmatprep.subr.mxu0 0.0
  %6451 = vmatpush2.msra.mxu0 0.0
  %6452 = vmatprep.subr.mxu0 0.0
  %6453 = vmatpush2.msra.mxu0 0.0
  %6454 = vmatprep.subr.mxu0 0.0
  %6455 = vmatpush2.msra.mxu0 0.0
  %6456 = vmatprep.subr.mxu0 0.0
  %6457 = vmatpush2.msra.mxu0 0.0
  %6458 = vmatprep.subr.mxu0 0.0
  %6459 = vmatpush2.msra.mxu0 0.0
  %6460 = vmatprep.subr.mxu0 0.0
  %6461 = vmatpush2.msra.mxu0 0.0
  %6462 = vmatprep.subr.mxu0 0.0
  %6463 = vmatpush2.msra.mxu0 0.0
  %6464 = vmatprep.subr.mxu0 0.0
  %6465 = vmatpush2.msra.mxu0 0.0
  %6466 = vmatprep.subr.mxu0 0.0
  %6467 = vmatpush2.msra.mxu0 0.0
  %6468 = vmatprep.subr.mxu0 0.0
  %6469 = vmatpush2.msra.mxu0 0.0
  %6470 = vmatprep.subr.mxu0 0.0
  %6471 = vmatpush2.msra.mxu0 0.0
  %6472 = vmatprep.subr.mxu0 0.0
  %6473 = vmatpush2.msra.mxu0 0.0
  %6474 = vmatprep.mubr.f32.mxu0 0.0
  %6475 = vmatmul.mubr.f32.gmra.mxu0 %v6408
  %v6476 = vpop.f32.mrf.mxu0
  %v6477 = vadd.f32 0.0, %v6476
  %v6478 = vpop.f32.mrf.mxu0
  %6479 = vdwg.mxu0
  %v6480 = vadd.f32 %v6396, %v6477
  %v6481 = vld [vmem:[%s1933] sm:$0xff]
  %v6482 = vld [vmem:[%s1933 + $0x8] sm:$0xff]
  %v6483 = vld [vmem:[%s1933 + $0x10] sm:$0xff]
  %v6484 = vld [vmem:[%s1933 + $0x18] sm:$0xff]
  %v6485 = vld [vmem:[%s1933 + $0x20] sm:$0xff]
  %v6486 = vld [vmem:[%s1933 + $0x28] sm:$0xff]
  %v6487 = vld [vmem:[%s1933 + $0x30] sm:$0xff]
  %v6488 = vld [vmem:[%s1933 + $0x38] sm:$0xff]
  %v6489 = vrot.slane %v6395, 1
  %6490 = vrot.lane.b32.xlu0 %v6489, 64
  %v6491 = vpop.permute.xlu0 %6490
  %v6492 = vsel %vm1571, %v6491, 0
  %6494 = vmatprep.subr.mxu0 0.0
  %6495 = vmatpush1.msra.mxu0 0.0
  %6496 = vmatprep.subr.mxu0 0.0
  %6497 = vmatpush1.msra.mxu0 0.0
  %6498 = vmatprep.subr.mxu0 0.0
  %6499 = vmatpush1.msra.mxu0 0.0
  %6500 = vmatprep.subr.mxu0 0.0
  %6501 = vmatpush1.msra.mxu0 0.0
  %6502 = vmatprep.subr.mxu0 0.0
  %6503 = vmatpush1.msra.mxu0 0.0
  %6504 = vmatprep.subr.mxu0 0.0
  %6505 = vmatpush1.msra.mxu0 0.0
  %6506 = vmatprep.subr.mxu0 0.0
  %6507 = vmatpush1.msra.mxu0 0.0
  %6508 = vmatprep.subr.mxu0 0.0
  %6509 = vmatpush1.msra.mxu0 0.0
  %6510 = vmatprep.subr.mxu0 0.0
  %6511 = vmatpush1.msra.mxu0 %v6488
  %6512 = vmatprep.subr.mxu0 0.0
  %6513 = vmatpush1.msra.mxu0 %v6487
  %6514 = vmatprep.subr.mxu0 0.0
  %6515 = vmatpush1.msra.mxu0 %v6486
  %6516 = vmatprep.subr.mxu0 0.0
  %6517 = vmatpush1.msra.mxu0 %v6485
  %6518 = vmatprep.subr.mxu0 0.0
  %6519 = vmatpush1.msra.mxu0 %v6484
  %6520 = vmatprep.subr.mxu0 0.0
  %6521 = vmatpush1.msra.mxu0 %v6483
  %6522 = vmatprep.subr.mxu0 0.0
  %6523 = vmatpush1.msra.mxu0 %v6482
  %6524 = vmatprep.subr.mxu0 0.0
  %6525 = vmatpush1.msra.mxu0 %v6481
  %6526 = vmatprep.subr.mxu0 0.0
  %6527 = vmatpush2.msra.mxu0 0.0
  %6528 = vmatprep.subr.mxu0 0.0
  %6529 = vmatpush2.msra.mxu0 0.0
  %6530 = vmatprep.subr.mxu0 0.0
  %6531 = vmatpush2.msra.mxu0 0.0
  %6532 = vmatprep.subr.mxu0 0.0
  %6533 = vmatpush2.msra.mxu0 0.0
  %6534 = vmatprep.subr.mxu0 0.0
  %6535 = vmatpush2.msra.mxu0 0.0
  %6536 = vmatprep.subr.mxu0 0.0
  %6537 = vmatpush2.msra.mxu0 0.0
  %6538 = vmatprep.subr.mxu0 0.0
  %6539 = vmatpush2.msra.mxu0 0.0
  %6540 = vmatprep.subr.mxu0 0.0
  %6541 = vmatpush2.msra.mxu0 0.0
  %6542 = vmatprep.subr.mxu0 0.0
  %6543 = vmatpush2.msra.mxu0 0.0
  %6544 = vmatprep.subr.mxu0 0.0
  %6545 = vmatpush2.msra.mxu0 0.0
  %6546 = vmatprep.subr.mxu0 0.0
  %6547 = vmatpush2.msra.mxu0 0.0
  %6548 = vmatprep.subr.mxu0 0.0
  %6549 = vmatpush2.msra.mxu0 0.0
  %6550 = vmatprep.subr.mxu0 0.0
  %6551 = vmatpush2.msra.mxu0 0.0
  %6552 = vmatprep.subr.mxu0 0.0
  %6553 = vmatpush2.msra.mxu0 0.0
  %6554 = vmatprep.subr.mxu0 0.0
  %6555 = vmatpush2.msra.mxu0 0.0
  %6556 = vmatprep.subr.mxu0 0.0
  %6557 = vmatpush2.msra.mxu0 0.0
  %6558 = vmatprep.mubr.f32.mxu0 0.0
  %6559 = vmatmul.mubr.f32.gmra.mxu0 %v6492
  %v6560 = vpop.f32.mrf.mxu0
  %v6561 = vadd.f32 0.0, %v6560
  %v6562 = vpop.f32.mrf.mxu0
  %6563 = vdwg.mxu0
  %v6564 = vadd.f32 %v6480, %v6561
  %v6565 = vld [vmem:[%s2018] sm:$0xff]
  %v6566 = vld [vmem:[%s2018 + $0x8] sm:$0xff]
  %v6567 = vld [vmem:[%s2018 + $0x10] sm:$0xff]
  %v6568 = vld [vmem:[%s2018 + $0x18] sm:$0xff]
  %v6569 = vld [vmem:[%s2018 + $0x20] sm:$0xff]
  %v6570 = vld [vmem:[%s2018 + $0x28] sm:$0xff]
  %v6571 = vld [vmem:[%s2018 + $0x30] sm:$0xff]
  %v6572 = vld [vmem:[%s2018 + $0x38] sm:$0xff]
  %v6573 = vrot.slane %v6395, 2
  %6574 = vrot.lane.b32.xlu0 %v6573, 64
  %v6575 = vpop.permute.xlu0 %6574
  %v6576 = vsel %vm1571, %v6575, 0
  %6578 = vmatprep.subr.mxu0 0.0
  %6579 = vmatpush1.msra.mxu0 0.0
  %6580 = vmatprep.subr.mxu0 0.0
  %6581 = vmatpush1.msra.mxu0 0.0
  %6582 = vmatprep.subr.mxu0 0.0
  %6583 = vmatpush1.msra.mxu0 0.0
  %6584 = vmatprep.subr.mxu0 0.0
  %6585 = vmatpush1.msra.mxu0 0.0
  %6586 = vmatprep.subr.mxu0 0.0
  %6587 = vmatpush1.msra.mxu0 0.0
  %6588 = vmatprep.subr.mxu0 0.0
  %6589 = vmatpush1.msra.mxu0 0.0
  %6590 = vmatprep.subr.mxu0 0.0
  %6591 = vmatpush1.msra.mxu0 0.0
  %6592 = vmatprep.subr.mxu0 0.0
  %6593 = vmatpush1.msra.mxu0 0.0
  %6594 = vmatprep.subr.mxu0 0.0
  %6595 = vmatpush1.msra.mxu0 %v6572
  %6596 = vmatprep.subr.mxu0 0.0
  %6597 = vmatpush1.msra.mxu0 %v6571
  %6598 = vmatprep.subr.mxu0 0.0
  %6599 = vmatpush1.msra.mxu0 %v6570
  %6600 = vmatprep.subr.mxu0 0.0
  %6601 = vmatpush1.msra.mxu0 %v6569
  %6602 = vmatprep.subr.mxu0 0.0
  %6603 = vmatpush1.msra.mxu0 %v6568
  %6604 = vmatprep.subr.mxu0 0.0
  %6605 = vmatpush1.msra.mxu0 %v6567
  %6606 = vmatprep.subr.mxu0 0.0
  %6607 = vmatpush1.msra.mxu0 %v6566
  %6608 = vmatprep.subr.mxu0 0.0
  %6609 = vmatpush1.msra.mxu0 %v6565
  %6610 = vmatprep.subr.mxu0 0.0
  %6611 = vmatpush2.msra.mxu0 0.0
  %6612 = vmatprep.subr.mxu0 0.0
  %6613 = vmatpush2.msra.mxu0 0.0
  %6614 = vmatprep.subr.mxu0 0.0
  %6615 = vmatpush2.msra.mxu0 0.0
  %6616 = vmatprep.subr.mxu0 0.0
  %6617 = vmatpush2.msra.mxu0 0.0
  %6618 = vmatprep.subr.mxu0 0.0
  %6619 = vmatpush2.msra.mxu0 0.0
  %6620 = vmatprep.subr.mxu0 0.0
  %6621 = vmatpush2.msra.mxu0 0.0
  %6622 = vmatprep.subr.mxu0 0.0
  %6623 = vmatpush2.msra.mxu0 0.0
  %6624 = vmatprep.subr.mxu0 0.0
  %6625 = vmatpush2.msra.mxu0 0.0
  %6626 = vmatprep.subr.mxu0 0.0
  %6627 = vmatpush2.msra.mxu0 0.0
  %6628 = vmatprep.subr.mxu0 0.0
  %6629 = vmatpush2.msra.mxu0 0.0
  %6630 = vmatprep.subr.mxu0 0.0
  %6631 = vmatpush2.msra.mxu0 0.0
  %6632 = vmatprep.subr.mxu0 0.0
  %6633 = vmatpush2.msra.mxu0 0.0
  %6634 = vmatprep.subr.mxu0 0.0
  %6635 = vmatpush2.msra.mxu0 0.0
  %6636 = vmatprep.subr.mxu0 0.0
  %6637 = vmatpush2.msra.mxu0 0.0
  %6638 = vmatprep.subr.mxu0 0.0
  %6639 = vmatpush2.msra.mxu0 0.0
  %6640 = vmatprep.subr.mxu0 0.0
  %6641 = vmatpush2.msra.mxu0 0.0
  %6642 = vmatprep.mubr.f32.mxu0 0.0
  %6643 = vmatmul.mubr.f32.gmra.mxu0 %v6576
  %v6644 = vpop.f32.mrf.mxu0
  %v6645 = vadd.f32 0.0, %v6644
  %v6646 = vpop.f32.mrf.mxu0
  %6647 = vdwg.mxu0
  %v6648 = vadd.f32 %v6564, %v6645
  %v6649 = vld [vmem:[%s2103] sm:$0xff]
  %v6650 = vld [vmem:[%s2103 + $0x8] sm:$0xff]
  %v6651 = vld [vmem:[%s2103 + $0x10] sm:$0xff]
  %v6652 = vld [vmem:[%s2103 + $0x18] sm:$0xff]
  %v6653 = vld [vmem:[%s2103 + $0x20] sm:$0xff]
  %v6654 = vld [vmem:[%s2103 + $0x28] sm:$0xff]
  %v6655 = vld [vmem:[%s2103 + $0x30] sm:$0xff]
  %v6656 = vld [vmem:[%s2103 + $0x38] sm:$0xff]
  %v6657 = vrot.slane %v6395, 3
  %6658 = vrot.lane.b32.xlu0 %v6657, 64
  %v6659 = vpop.permute.xlu0 %6658
  %v6660 = vsel %vm1571, %v6659, 0
  %6662 = vmatprep.subr.mxu0 0.0
  %6663 = vmatpush1.msra.mxu0 0.0
  %6664 = vmatprep.subr.mxu0 0.0
  %6665 = vmatpush1.msra.mxu0 0.0
  %6666 = vmatprep.subr.mxu0 0.0
  %6667 = vmatpush1.msra.mxu0 0.0
  %6668 = vmatprep.subr.mxu0 0.0
  %6669 = vmatpush1.msra.mxu0 0.0
  %6670 = vmatprep.subr.mxu0 0.0
  %6671 = vmatpush1.msra.mxu0 0.0
  %6672 = vmatprep.subr.mxu0 0.0
  %6673 = vmatpush1.msra.mxu0 0.0
  %6674 = vmatprep.subr.mxu0 0.0
  %6675 = vmatpush1.msra.mxu0 0.0
  %6676 = vmatprep.subr.mxu0 0.0
  %6677 = vmatpush1.msra.mxu0 0.0
  %6678 = vmatprep.subr.mxu0 0.0
  %6679 = vmatpush1.msra.mxu0 %v6656
  %6680 = vmatprep.subr.mxu0 0.0
  %6681 = vmatpush1.msra.mxu0 %v6655
  %6682 = vmatprep.subr.mxu0 0.0
  %6683 = vmatpush1.msra.mxu0 %v6654
  %6684 = vmatprep.subr.mxu0 0.0
  %6685 = vmatpush1.msra.mxu0 %v6653
  %6686 = vmatprep.subr.mxu0 0.0
  %6687 = vmatpush1.msra.mxu0 %v6652
  %6688 = vmatprep.subr.mxu0 0.0
  %6689 = vmatpush1.msra.mxu0 %v6651
  %6690 = vmatprep.subr.mxu0 0.0
  %6691 = vmatpush1.msra.mxu0 %v6650
  %6692 = vmatprep.subr.mxu0 0.0
  %6693 = vmatpush1.msra.mxu0 %v6649
  %6694 = vmatprep.subr.mxu0 0.0
  %6695 = vmatpush2.msra.mxu0 0.0
  %6696 = vmatprep.subr.mxu0 0.0
  %6697 = vmatpush2.msra.mxu0 0.0
  %6698 = vmatprep.subr.mxu0 0.0
  %6699 = vmatpush2.msra.mxu0 0.0
  %6700 = vmatprep.subr.mxu0 0.0
  %6701 = vmatpush2.msra.mxu0 0.0
  %6702 = vmatprep.subr.mxu0 0.0
  %6703 = vmatpush2.msra.mxu0 0.0
  %6704 = vmatprep.subr.mxu0 0.0
  %6705 = vmatpush2.msra.mxu0 0.0
  %6706 = vmatprep.subr.mxu0 0.0
  %6707 = vmatpush2.msra.mxu0 0.0
  %6708 = vmatprep.subr.mxu0 0.0
  %6709 = vmatpush2.msra.mxu0 0.0
  %6710 = vmatprep.subr.mxu0 0.0
  %6711 = vmatpush2.msra.mxu0 0.0
  %6712 = vmatprep.subr.mxu0 0.0
  %6713 = vmatpush2.msra.mxu0 0.0
  %6714 = vmatprep.subr.mxu0 0.0
  %6715 = vmatpush2.msra.mxu0 0.0
  %6716 = vmatprep.subr.mxu0 0.0
  %6717 = vmatpush2.msra.mxu0 0.0
  %6718 = vmatprep.subr.mxu0 0.0
  %6719 = vmatpush2.msra.mxu0 0.0
  %6720 = vmatprep.subr.mxu0 0.0
  %6721 = vmatpush2.msra.mxu0 0.0
  %6722 = vmatprep.subr.mxu0 0.0
  %6723 = vmatpush2.msra.mxu0 0.0
  %6724 = vmatprep.subr.mxu0 0.0
  %6725 = vmatpush2.msra.mxu0 0.0
  %6726 = vmatprep.mubr.f32.mxu0 0.0
  %6727 = vmatmul.mubr.f32.gmra.mxu0 %v6660
  %v6728 = vpop.f32.mrf.mxu0
  %v6729 = vadd.f32 0.0, %v6728
  %v6730 = vpop.f32.mrf.mxu0
  %6731 = vdwg.mxu0
  %v6732 = vadd.f32 %v6648, %v6729
  %v6733 = vld [vmem:[%s2188] sm:$0xff]
  %v6734 = vld [vmem:[%s2188 + $0x8] sm:$0xff]
  %v6735 = vld [vmem:[%s2188 + $0x10] sm:$0xff]
  %v6736 = vld [vmem:[%s2188 + $0x18] sm:$0xff]
  %v6737 = vld [vmem:[%s2188 + $0x20] sm:$0xff]
  %v6738 = vld [vmem:[%s2188 + $0x28] sm:$0xff]
  %v6739 = vld [vmem:[%s2188 + $0x30] sm:$0xff]
  %v6740 = vld [vmem:[%s2188 + $0x38] sm:$0xff]
  %v6741 = vrot.slane %v6395, 4
  %6742 = vrot.lane.b32.xlu0 %v6741, 64
  %v6743 = vpop.permute.xlu0 %6742
  %v6744 = vsel %vm1571, %v6743, 0
  %6746 = vmatprep.subr.mxu0 0.0
  %6747 = vmatpush1.msra.mxu0 0.0
  %6748 = vmatprep.subr.mxu0 0.0
  %6749 = vmatpush1.msra.mxu0 0.0
  %6750 = vmatprep.subr.mxu0 0.0
  %6751 = vmatpush1.msra.mxu0 0.0
  %6752 = vmatprep.subr.mxu0 0.0
  %6753 = vmatpush1.msra.mxu0 0.0
  %6754 = vmatprep.subr.mxu0 0.0
  %6755 = vmatpush1.msra.mxu0 0.0
  %6756 = vmatprep.subr.mxu0 0.0
  %6757 = vmatpush1.msra.mxu0 0.0
  %6758 = vmatprep.subr.mxu0 0.0
  %6759 = vmatpush1.msra.mxu0 0.0
  %6760 = vmatprep.subr.mxu0 0.0
  %6761 = vmatpush1.msra.mxu0 0.0
  %6762 = vmatprep.subr.mxu0 0.0
  %6763 = vmatpush1.msra.mxu0 %v6740
  %6764 = vmatprep.subr.mxu0 0.0
  %6765 = vmatpush1.msra.mxu0 %v6739
  %6766 = vmatprep.subr.mxu0 0.0
  %6767 = vmatpush1.msra.mxu0 %v6738
  %6768 = vmatprep.subr.mxu0 0.0
  %6769 = vmatpush1.msra.mxu0 %v6737
  %6770 = vmatprep.subr.mxu0 0.0
  %6771 = vmatpush1.msra.mxu0 %v6736
  %6772 = vmatprep.subr.mxu0 0.0
  %6773 = vmatpush1.msra.mxu0 %v6735
  %6774 = vmatprep.subr.mxu0 0.0
  %6775 = vmatpush1.msra.mxu0 %v6734
  %6776 = vmatprep.subr.mxu0 0.0
  %6777 = vmatpush1.msra.mxu0 %v6733
  %6778 = vmatprep.subr.mxu0 0.0
  %6779 = vmatpush2.msra.mxu0 0.0
  %6780 = vmatprep.subr.mxu0 0.0
  %6781 = vmatpush2.msra.mxu0 0.0
  %6782 = vmatprep.subr.mxu0 0.0
  %6783 = vmatpush2.msra.mxu0 0.0
  %6784 = vmatprep.subr.mxu0 0.0
  %6785 = vmatpush2.msra.mxu0 0.0
  %6786 = vmatprep.subr.mxu0 0.0
  %6787 = vmatpush2.msra.mxu0 0.0
  %6788 = vmatprep.subr.mxu0 0.0
  %6789 = vmatpush2.msra.mxu0 0.0
  %6790 = vmatprep.subr.mxu0 0.0
  %6791 = vmatpush2.msra.mxu0 0.0
  %6792 = vmatprep.subr.mxu0 0.0
  %6793 = vmatpush2.msra.mxu0 0.0
  %6794 = vmatprep.subr.mxu0 0.0
  %6795 = vmatpush2.msra.mxu0 0.0
  %6796 = vmatprep.subr.mxu0 0.0
  %6797 = vmatpush2.msra.mxu0 0.0
  %6798 = vmatprep.subr.mxu0 0.0
  %6799 = vmatpush2.msra.mxu0 0.0
  %6800 = vmatprep.subr.mxu0 0.0
  %6801 = vmatpush2.msra.mxu0 0.0
  %6802 = vmatprep.subr.mxu0 0.0
  %6803 = vmatpush2.msra.mxu0 0.0
  %6804 = vmatprep.subr.mxu0 0.0
  %6805 = vmatpush2.msra.mxu0 0.0
  %6806 = vmatprep.subr.mxu0 0.0
  %6807 = vmatpush2.msra.mxu0 0.0
  %6808 = vmatprep.subr.mxu0 0.0
  %6809 = vmatpush2.msra.mxu0 0.0
  %6810 = vmatprep.mubr.f32.mxu0 0.0
  %6811 = vmatmul.mubr.f32.gmra.mxu0 %v6744
  %v6812 = vpop.f32.mrf.mxu0
  %v6813 = vadd.f32 0.0, %v6812
  %v6814 = vpop.f32.mrf.mxu0
  %6815 = vdwg.mxu0
  %v6816 = vadd.f32 %v6732, %v6813
  %v6817 = vld [vmem:[%s15] sm:$0xff]
  %v6818 = vld [vmem:[%s15 + $0x8] sm:$0xff]
  %v6819 = vld [vmem:[%s15 + $0x10] sm:$0xff]
  %v6820 = vld [vmem:[%s15 + $0x18] sm:$0xff]
  %v6821 = vld [vmem:[%s16] sm:$0x1]
  %v6823 = vsel %vm2278, %v6816, 0
  %6825 = vmatprep.subr.mxu0 0.0
  %6826 = vmatpush1.msra.mxu0 0.0
  %6827 = vmatprep.subr.mxu0 0.0
  %6828 = vmatpush1.msra.mxu0 0.0
  %6829 = vmatprep.subr.mxu0 0.0
  %6830 = vmatpush1.msra.mxu0 0.0
  %6831 = vmatprep.subr.mxu0 0.0
  %6832 = vmatpush1.msra.mxu0 0.0
  %6833 = vmatprep.subr.mxu0 0.0
  %6834 = vmatpush1.msra.mxu0 0.0
  %6835 = vmatprep.subr.mxu0 0.0
  %6836 = vmatpush1.msra.mxu0 0.0
  %6837 = vmatprep.subr.mxu0 0.0
  %6838 = vmatpush1.msra.mxu0 0.0
  %6839 = vmatprep.subr.mxu0 0.0
  %6840 = vmatpush1.msra.mxu0 0.0
  %6841 = vmatprep.subr.mxu0 0.0
  %6842 = vmatpush1.msra.mxu0 0.0
  %6843 = vmatprep.subr.mxu0 0.0
  %6844 = vmatpush1.msra.mxu0 0.0
  %6845 = vmatprep.subr.mxu0 0.0
  %6846 = vmatpush1.msra.mxu0 0.0
  %6847 = vmatprep.subr.mxu0 0.0
  %6848 = vmatpush1.msra.mxu0 0.0
  %6849 = vmatprep.subr.mxu0 0.0
  %6850 = vmatpush1.msra.mxu0 %v6820
  %6851 = vmatprep.subr.mxu0 0.0
  %6852 = vmatpush1.msra.mxu0 %v6819
  %6853 = vmatprep.subr.mxu0 0.0
  %6854 = vmatpush1.msra.mxu0 %v6818
  %6855 = vmatprep.subr.mxu0 0.0
  %6856 = vmatpush1.msra.mxu0 %v6817
  %6857 = vmatprep.subr.mxu0 0.0
  %6858 = vmatpush2.msra.mxu0 0.0
  %6859 = vmatprep.subr.mxu0 0.0
  %6860 = vmatpush2.msra.mxu0 0.0
  %6861 = vmatprep.subr.mxu0 0.0
  %6862 = vmatpush2.msra.mxu0 0.0
  %6863 = vmatprep.subr.mxu0 0.0
  %6864 = vmatpush2.msra.mxu0 0.0
  %6865 = vmatprep.subr.mxu0 0.0
  %6866 = vmatpush2.msra.mxu0 0.0
  %6867 = vmatprep.subr.mxu0 0.0
  %6868 = vmatpush2.msra.mxu0 0.0
  %6869 = vmatprep.subr.mxu0 0.0
  %6870 = vmatpush2.msra.mxu0 0.0
  %6871 = vmatprep.subr.mxu0 0.0
  %6872 = vmatpush2.msra.mxu0 0.0
  %6873 = vmatprep.subr.mxu0 0.0
  %6874 = vmatpush2.msra.mxu0 0.0
  %6875 = vmatprep.subr.mxu0 0.0
  %6876 = vmatpush2.msra.mxu0 0.0
  %6877 = vmatprep.subr.mxu0 0.0
  %6878 = vmatpush2.msra.mxu0 0.0
  %6879 = vmatprep.subr.mxu0 0.0
  %6880 = vmatpush2.msra.mxu0 0.0
  %6881 = vmatprep.subr.mxu0 0.0
  %6882 = vmatpush2.msra.mxu0 0.0
  %6883 = vmatprep.subr.mxu0 0.0
  %6884 = vmatpush2.msra.mxu0 0.0
  %6885 = vmatprep.subr.mxu0 0.0
  %6886 = vmatpush2.msra.mxu0 0.0
  %6887 = vmatprep.subr.mxu0 0.0
  %6888 = vmatpush2.msra.mxu0 0.0
  %6889 = vmatprep.mubr.f32.mxu0 0.0
  %6890 = vmatmul.mubr.f32.gmra.mxu0 %v6823
  %v6891 = vpop.f32.mrf.mxu0
  %v6892 = vadd.f32 %v6821, %v6891
  %v6893 = vpop.f32.mrf.mxu0
  %6894 = vdwg.mxu0
  %v6895 = vsel %vm2352, %v6892, -inf
  %6896 = vmax.xlane.f32.xlu0 %v6895
  %v6897 = vpop.xlane.xlu0 %6896
  %v6898 = vsub.f32 %v6892, %v6897
  %v6899 = vmul.f32 %v6898, 1.442695
  %v6900 = vpow.pop %v6899
  %v6901 = vsel %vm2352, %v6900, 0.0
  %6902 = vadd.xlane.f32.xlu0 %v6901
  %v6903 = vpop.xlane.xlu0 %6902
  %v6904 = vrcp.pop %v6903
  %v6905 = vmul.f32 %v6900, %v6904
  %6906 = vst.msk [vmem:[%s17 + $0x2] sm:$0x1] %vm2352, %v6905
  %s6907 = scalar_lea.vmem %s0, 24
  %v6908 = vld [vmem:[%s6907] sm:$0x1f]
  %v6910 = vsel %vm73, %v6908, 0
  %6912 = vmatprep.subr.mxu0 0.0
  %6913 = vmatpush1.msra.mxu0 0.0
  %6914 = vmatprep.subr.mxu0 0.0
  %6915 = vmatpush1.msra.mxu0 0.0
  %6916 = vmatprep.subr.mxu0 0.0
  %6917 = vmatpush1.msra.mxu0 0.0
  %6918 = vmatprep.subr.mxu0 0.0
  %6919 = vmatpush1.msra.mxu0 0.0
  %6920 = vmatprep.subr.mxu0 0.0
  %6921 = vmatpush1.msra.mxu0 0.0
  %6922 = vmatprep.subr.mxu0 0.0
  %6923 = vmatpush1.msra.mxu0 0.0
  %6924 = vmatprep.subr.mxu0 0.0
  %6925 = vmatpush1.msra.mxu0 0.0
  %6926 = vmatprep.subr.mxu0 0.0
  %6927 = vmatpush1.msra.mxu0 0.0
  %6928 = vmatprep.subr.mxu0 0.0
  %6929 = vmatpush1.msra.mxu0 0.0
  %6930 = vmatprep.subr.mxu0 0.0
  %6931 = vmatpush1.msra.mxu0 0.0
  %6932 = vmatprep.subr.mxu0 0.0
  %6933 = vmatpush1.msra.mxu0 0.0
  %6934 = vmatprep.subr.mxu0 0.0
  %6935 = vmatpush1.msra.mxu0 0.0
  %6936 = vmatprep.subr.mxu0 0.0
  %6937 = vmatpush1.msra.mxu0 0.0
  %6938 = vmatprep.subr.mxu0 0.0
  %6939 = vmatpush1.msra.mxu0 0.0
  %6940 = vmatprep.subr.mxu0 0.0
  %6941 = vmatpush1.msra.mxu0 0.0
  %6942 = vmatprep.subr.mxu0 0.0
  %6943 = vmatpush1.msra.mxu0 %v6910
  %6944 = vmatprep.subr.mxu0 0.0
  %6945 = vmatpush2.msra.mxu0 0.0
  %6946 = vmatprep.subr.mxu0 0.0
  %6947 = vmatpush2.msra.mxu0 0.0
  %6948 = vmatprep.subr.mxu0 0.0
  %6949 = vmatpush2.msra.mxu0 0.0
  %6950 = vmatprep.subr.mxu0 0.0
  %6951 = vmatpush2.msra.mxu0 0.0
  %6952 = vmatprep.subr.mxu0 0.0
  %6953 = vmatpush2.msra.mxu0 0.0
  %6954 = vmatprep.subr.mxu0 0.0
  %6955 = vmatpush2.msra.mxu0 0.0
  %6956 = vmatprep.subr.mxu0 0.0
  %6957 = vmatpush2.msra.mxu0 0.0
  %6958 = vmatprep.subr.mxu0 0.0
  %6959 = vmatpush2.msra.mxu0 0.0
  %6960 = vmatprep.subr.mxu0 0.0
  %6961 = vmatpush2.msra.mxu0 0.0
  %6962 = vmatprep.subr.mxu0 0.0
  %6963 = vmatpush2.msra.mxu0 0.0
  %6964 = vmatprep.subr.mxu0 0.0
  %6965 = vmatpush2.msra.mxu0 0.0
  %6966 = vmatprep.subr.mxu0 0.0
  %6967 = vmatpush2.msra.mxu0 0.0
  %6968 = vmatprep.subr.mxu0 0.0
  %6969 = vmatpush2.msra.mxu0 0.0
  %6970 = vmatprep.subr.mxu0 0.0
  %6971 = vmatpush2.msra.mxu0 0.0
  %6972 = vmatprep.subr.mxu0 0.0
  %6973 = vmatpush2.msra.mxu0 0.0
  %6974 = vmatprep.subr.mxu0 0.0
  %6975 = vmatpush2.msra.mxu0 0.0
  %6976 = vmatprep.mubr.f32.mxu0 0.0
  %6977 = vmatmul.mubr.f32.gmra.mxu0 %v71
  %v6978 = vpop.f32.mrf.mxu0
  %v6979 = vadd.f32 0.0, %v6978
  %v6980 = vpop.f32.mrf.mxu0
  %6981 = vdwg.mxu0
  %6982 = vmatprep.subr.mxu0 0.0
  %6983 = vmatpush1.msra.mxu0 0.0
  %6984 = vmatprep.subr.mxu0 0.0
  %6985 = vmatpush1.msra.mxu0 0.0
  %6986 = vmatprep.subr.mxu0 0.0
  %6987 = vmatpush1.msra.mxu0 0.0
  %6988 = vmatprep.subr.mxu0 0.0
  %6989 = vmatpush1.msra.mxu0 0.0
  %6990 = vmatprep.subr.mxu0 0.0
  %6991 = vmatpush1.msra.mxu0 0.0
  %6992 = vmatprep.subr.mxu0 0.0
  %6993 = vmatpush1.msra.mxu0 0.0
  %6994 = vmatprep.subr.mxu0 0.0
  %6995 = vmatpush1.msra.mxu0 0.0
  %6996 = vmatprep.subr.mxu0 0.0
  %6997 = vmatpush1.msra.mxu0 0.0
  %6998 = vmatprep.subr.mxu0 0.0
  %6999 = vmatpush1.msra.mxu0 0.0
  %7000 = vmatprep.subr.mxu0 0.0
  %7001 = vmatpush1.msra.mxu0 0.0
  %7002 = vmatprep.subr.mxu0 0.0
  %7003 = vmatpush1.msra.mxu0 0.0
  %7004 = vmatprep.subr.mxu0 0.0
  %7005 = vmatpush1.msra.mxu0 0.0
  %7006 = vmatprep.subr.mxu0 0.0
  %7007 = vmatpush1.msra.mxu0 0.0
  %7008 = vmatprep.subr.mxu0 0.0
  %7009 = vmatpush1.msra.mxu0 0.0
  %7010 = vmatprep.subr.mxu0 0.0
  %7011 = vmatpush1.msra.mxu0 0.0
  %7012 = vmatprep.subr.mxu0 0.0
  %7013 = vmatpush1.msra.mxu0 %v6910
  %7014 = vmatprep.subr.mxu0 0.0
  %7015 = vmatpush2.msra.mxu0 0.0
  %7016 = vmatprep.subr.mxu0 0.0
  %7017 = vmatpush2.msra.mxu0 0.0
  %7018 = vmatprep.subr.mxu0 0.0
  %7019 = vmatpush2.msra.mxu0 0.0
  %7020 = vmatprep.subr.mxu0 0.0
  %7021 = vmatpush2.msra.mxu0 0.0
  %7022 = vmatprep.subr.mxu0 0.0
  %7023 = vmatpush2.msra.mxu0 0.0
  %7024 = vmatprep.subr.mxu0 0.0
  %7025 = vmatpush2.msra.mxu0 0.0
  %7026 = vmatprep.subr.mxu0 0.0
  %7027 = vmatpush2.msra.mxu0 0.0
  %7028 = vmatprep.subr.mxu0 0.0
  %7029 = vmatpush2.msra.mxu0 0.0
  %7030 = vmatprep.subr.mxu0 0.0
  %7031 = vmatpush2.msra.mxu0 0.0
  %7032 = vmatprep.subr.mxu0 0.0
  %7033 = vmatpush2.msra.mxu0 0.0
  %7034 = vmatprep.subr.mxu0 0.0
  %7035 = vmatpush2.msra.mxu0 0.0
  %7036 = vmatprep.subr.mxu0 0.0
  %7037 = vmatpush2.msra.mxu0 0.0
  %7038 = vmatprep.subr.mxu0 0.0
  %7039 = vmatpush2.msra.mxu0 0.0
  %7040 = vmatprep.subr.mxu0 0.0
  %7041 = vmatpush2.msra.mxu0 0.0
  %7042 = vmatprep.subr.mxu0 0.0
  %7043 = vmatpush2.msra.mxu0 0.0
  %7044 = vmatprep.subr.mxu0 0.0
  %7045 = vmatpush2.msra.mxu0 0.0
  %7046 = vmatprep.mubr.f32.mxu0 0.0
  %7047 = vmatmul.mubr.f32.gmra.mxu0 %v148
  %v7048 = vpop.f32.mrf.mxu0
  %v7049 = vadd.f32 0.0, %v7048
  %v7050 = vpop.f32.mrf.mxu0
  %7051 = vdwg.mxu0
  %v7052 = vld [vmem:[%s1] sm:$0xff]
  %v7053 = vld [vmem:[%s1 + $0x8] sm:$0xff]
  %v7054 = vld [vmem:[%s1 + $0x10] sm:$0xff]
  %v7055 = vld [vmem:[%s2] sm:$0x1]
  %v7057 = vlaneseq
  %v7058 = vshrl.u32 %v7057, 7
  %v7059 = vsub.s32 0, %v7058
  %v7060 = vrot.slane %v7055, %v7059
  %v7062 = vsel %vm230, %v6908, 0
  %7064 = vmatprep.subr.mxu0 0.0
  %7065 = vmatpush1.msra.mxu0 0.0
  %7066 = vmatprep.subr.mxu0 0.0
  %7067 = vmatpush1.msra.mxu0 0.0
  %7068 = vmatprep.subr.mxu0 0.0
  %7069 = vmatpush1.msra.mxu0 0.0
  %7070 = vmatprep.subr.mxu0 0.0
  %7071 = vmatpush1.msra.mxu0 0.0
  %7072 = vmatprep.subr.mxu0 0.0
  %7073 = vmatpush1.msra.mxu0 0.0
  %7074 = vmatprep.subr.mxu0 0.0
  %7075 = vmatpush1.msra.mxu0 0.0
  %7076 = vmatprep.subr.mxu0 0.0
  %7077 = vmatpush1.msra.mxu0 0.0
  %7078 = vmatprep.subr.mxu0 0.0
  %7079 = vmatpush1.msra.mxu0 0.0
  %7080 = vmatprep.subr.mxu0 0.0
  %7081 = vmatpush1.msra.mxu0 0.0
  %7082 = vmatprep.subr.mxu0 0.0
  %7083 = vmatpush1.msra.mxu0 0.0
  %7084 = vmatprep.subr.mxu0 0.0
  %7085 = vmatpush1.msra.mxu0 0.0
  %7086 = vmatprep.subr.mxu0 0.0
  %7087 = vmatpush1.msra.mxu0 0.0
  %7088 = vmatprep.subr.mxu0 0.0
  %7089 = vmatpush1.msra.mxu0 0.0
  %7090 = vmatprep.subr.mxu0 0.0
  %7091 = vmatpush1.msra.mxu0 %v7054
  %7092 = vmatprep.subr.mxu0 0.0
  %7093 = vmatpush1.msra.mxu0 %v7053
  %7094 = vmatprep.subr.mxu0 0.0
  %7095 = vmatpush1.msra.mxu0 %v7052
  %7096 = vmatprep.subr.mxu0 0.0
  %7097 = vmatpush2.msra.mxu0 0.0
  %7098 = vmatprep.subr.mxu0 0.0
  %7099 = vmatpush2.msra.mxu0 0.0
  %7100 = vmatprep.subr.mxu0 0.0
  %7101 = vmatpush2.msra.mxu0 0.0
  %7102 = vmatprep.subr.mxu0 0.0
  %7103 = vmatpush2.msra.mxu0 0.0
  %7104 = vmatprep.subr.mxu0 0.0
  %7105 = vmatpush2.msra.mxu0 0.0
  %7106 = vmatprep.subr.mxu0 0.0
  %7107 = vmatpush2.msra.mxu0 0.0
  %7108 = vmatprep.subr.mxu0 0.0
  %7109 = vmatpush2.msra.mxu0 0.0
  %7110 = vmatprep.subr.mxu0 0.0
  %7111 = vmatpush2.msra.mxu0 0.0
  %7112 = vmatprep.subr.mxu0 0.0
  %7113 = vmatpush2.msra.mxu0 0.0
  %7114 = vmatprep.subr.mxu0 0.0
  %7115 = vmatpush2.msra.mxu0 0.0
  %7116 = vmatprep.subr.mxu0 0.0
  %7117 = vmatpush2.msra.mxu0 0.0
  %7118 = vmatprep.subr.mxu0 0.0
  %7119 = vmatpush2.msra.mxu0 0.0
  %7120 = vmatprep.subr.mxu0 0.0
  %7121 = vmatpush2.msra.mxu0 0.0
  %7122 = vmatprep.subr.mxu0 0.0
  %7123 = vmatpush2.msra.mxu0 0.0
  %7124 = vmatprep.subr.mxu0 0.0
  %7125 = vmatpush2.msra.mxu0 0.0
  %7126 = vmatprep.subr.mxu0 0.0
  %7127 = vmatpush2.msra.mxu0 0.0
  %7128 = vmatprep.mubr.f32.mxu0 0.0
  %7129 = vmatmul.mubr.f32.gmra.mxu0 %v7062
  %v7130 = vpop.f32.mrf.mxu0
  %v7131 = vadd.f32 %v7060, %v7130
  %v7132 = vpop.f32.mrf.mxu0
  %7133 = vdwg.mxu0
  %v7134 = vld [vmem:[%s3] sm:$0xff]
  %v7135 = vld [vmem:[%s3 + $0x8] sm:$0xff]
  %v7136 = vld [vmem:[%s3 + $0x10] sm:$0xff]
  %v7137 = vld [vmem:[%s306] sm:$0xff]
  %v7138 = vld [vmem:[%s306 + $0x8] sm:$0xff]
  %v7139 = vld [vmem:[%s306 + $0x10] sm:$0xff]
  %7140 = vmatprep.subr.mxu0 0.0
  %7141 = vmatpush1.msra.mxu0 0.0
  %7142 = vmatprep.subr.mxu0 0.0
  %7143 = vmatpush1.msra.mxu0 0.0
  %7144 = vmatprep.subr.mxu0 0.0
  %7145 = vmatpush1.msra.mxu0 0.0
  %7146 = vmatprep.subr.mxu0 0.0
  %7147 = vmatpush1.msra.mxu0 0.0
  %7148 = vmatprep.subr.mxu0 0.0
  %7149 = vmatpush1.msra.mxu0 0.0
  %7150 = vmatprep.subr.mxu0 0.0
  %7151 = vmatpush1.msra.mxu0 0.0
  %7152 = vmatprep.subr.mxu0 0.0
  %7153 = vmatpush1.msra.mxu0 0.0
  %7154 = vmatprep.subr.mxu0 0.0
  %7155 = vmatpush1.msra.mxu0 0.0
  %7156 = vmatprep.subr.mxu0 0.0
  %7157 = vmatpush1.msra.mxu0 0.0
  %7158 = vmatprep.subr.mxu0 0.0
  %7159 = vmatpush1.msra.mxu0 0.0
  %7160 = vmatprep.subr.mxu0 0.0
  %7161 = vmatpush1.msra.mxu0 0.0
  %7162 = vmatprep.subr.mxu0 0.0
  %7163 = vmatpush1.msra.mxu0 0.0
  %7164 = vmatprep.subr.mxu0 0.0
  %7165 = vmatpush1.msra.mxu0 0.0
  %7166 = vmatprep.subr.mxu0 0.0
  %7167 = vmatpush1.msra.mxu0 %v7139
  %7168 = vmatprep.subr.mxu0 0.0
  %7169 = vmatpush1.msra.mxu0 %v7138
  %7170 = vmatprep.subr.mxu0 0.0
  %7171 = vmatpush1.msra.mxu0 %v7137
  %7172 = vmatprep.subr.mxu0 0.0
  %7173 = vmatpush2.msra.mxu0 0.0
  %7174 = vmatprep.subr.mxu0 0.0
  %7175 = vmatpush2.msra.mxu0 0.0
  %7176 = vmatprep.subr.mxu0 0.0
  %7177 = vmatpush2.msra.mxu0 0.0
  %7178 = vmatprep.subr.mxu0 0.0
  %7179 = vmatpush2.msra.mxu0 0.0
  %7180 = vmatprep.subr.mxu0 0.0
  %7181 = vmatpush2.msra.mxu0 0.0
  %7182 = vmatprep.subr.mxu0 0.0
  %7183 = vmatpush2.msra.mxu0 0.0
  %7184 = vmatprep.subr.mxu0 0.0
  %7185 = vmatpush2.msra.mxu0 0.0
  %7186 = vmatprep.subr.mxu0 0.0
  %7187 = vmatpush2.msra.mxu0 0.0
  %7188 = vmatprep.subr.mxu0 0.0
  %7189 = vmatpush2.msra.mxu0 0.0
  %7190 = vmatprep.subr.mxu0 0.0
  %7191 = vmatpush2.msra.mxu0 0.0
  %7192 = vmatprep.subr.mxu0 0.0
  %7193 = vmatpush2.msra.mxu0 0.0
  %7194 = vmatprep.subr.mxu0 0.0
  %7195 = vmatpush2.msra.mxu0 0.0
  %7196 = vmatprep.subr.mxu0 0.0
  %7197 = vmatpush2.msra.mxu0 0.0
  %7198 = vmatprep.subr.mxu0 0.0
  %7199 = vmatpush2.msra.mxu0 0.0
  %7200 = vmatprep.subr.mxu0 0.0
  %7201 = vmatpush2.msra.mxu0 0.0
  %7202 = vmatprep.subr.mxu0 0.0
  %7203 = vmatpush2.msra.mxu0 0.0
  %7204 = vmatprep.mubr.f32.mxu0 0.0
  %7205 = vmatmul.mubr.f32.gmra.mxu0 %v7062
  %v7206 = vpop.f32.mrf.mxu0
  %v7207 = vadd.f32 0.0, %v7206
  %v7208 = vpop.f32.mrf.mxu0
  %7209 = vdwg.mxu0
  %v7211 = vsel %vm230, %v6979, 0
  %7213 = vmatprep.subr.mxu0 0.0
  %7214 = vmatpush1.msra.mxu0 0.0
  %7215 = vmatprep.subr.mxu0 0.0
  %7216 = vmatpush1.msra.mxu0 0.0
  %7217 = vmatprep.subr.mxu0 0.0
  %7218 = vmatpush1.msra.mxu0 0.0
  %7219 = vmatprep.subr.mxu0 0.0
  %7220 = vmatpush1.msra.mxu0 0.0
  %7221 = vmatprep.subr.mxu0 0.0
  %7222 = vmatpush1.msra.mxu0 0.0
  %7223 = vmatprep.subr.mxu0 0.0
  %7224 = vmatpush1.msra.mxu0 0.0
  %7225 = vmatprep.subr.mxu0 0.0
  %7226 = vmatpush1.msra.mxu0 0.0
  %7227 = vmatprep.subr.mxu0 0.0
  %7228 = vmatpush1.msra.mxu0 0.0
  %7229 = vmatprep.subr.mxu0 0.0
  %7230 = vmatpush1.msra.mxu0 0.0
  %7231 = vmatprep.subr.mxu0 0.0
  %7232 = vmatpush1.msra.mxu0 0.0
  %7233 = vmatprep.subr.mxu0 0.0
  %7234 = vmatpush1.msra.mxu0 0.0
  %7235 = vmatprep.subr.mxu0 0.0
  %7236 = vmatpush1.msra.mxu0 0.0
  %7237 = vmatprep.subr.mxu0 0.0
  %7238 = vmatpush1.msra.mxu0 0.0
  %7239 = vmatprep.subr.mxu0 0.0
  %7240 = vmatpush1.msra.mxu0 %v7136
  %7241 = vmatprep.subr.mxu0 0.0
  %7242 = vmatpush1.msra.mxu0 %v7135
  %7243 = vmatprep.subr.mxu0 0.0
  %7244 = vmatpush1.msra.mxu0 %v7134
  %7245 = vmatprep.subr.mxu0 0.0
  %7246 = vmatpush2.msra.mxu0 0.0
  %7247 = vmatprep.subr.mxu0 0.0
  %7248 = vmatpush2.msra.mxu0 0.0
  %7249 = vmatprep.subr.mxu0 0.0
  %7250 = vmatpush2.msra.mxu0 0.0
  %7251 = vmatprep.subr.mxu0 0.0
  %7252 = vmatpush2.msra.mxu0 0.0
  %7253 = vmatprep.subr.mxu0 0.0
  %7254 = vmatpush2.msra.mxu0 0.0
  %7255 = vmatprep.subr.mxu0 0.0
  %7256 = vmatpush2.msra.mxu0 0.0
  %7257 = vmatprep.subr.mxu0 0.0
  %7258 = vmatpush2.msra.mxu0 0.0
  %7259 = vmatprep.subr.mxu0 0.0
  %7260 = vmatpush2.msra.mxu0 0.0
  %7261 = vmatprep.subr.mxu0 0.0
  %7262 = vmatpush2.msra.mxu0 0.0
  %7263 = vmatprep.subr.mxu0 0.0
  %7264 = vmatpush2.msra.mxu0 0.0
  %7265 = vmatprep.subr.mxu0 0.0
  %7266 = vmatpush2.msra.mxu0 0.0
  %7267 = vmatprep.subr.mxu0 0.0
  %7268 = vmatpush2.msra.mxu0 0.0
  %7269 = vmatprep.subr.mxu0 0.0
  %7270 = vmatpush2.msra.mxu0 0.0
  %7271 = vmatprep.subr.mxu0 0.0
  %7272 = vmatpush2.msra.mxu0 0.0
  %7273 = vmatprep.subr.mxu0 0.0
  %7274 = vmatpush2.msra.mxu0 0.0
  %7275 = vmatprep.subr.mxu0 0.0
  %7276 = vmatpush2.msra.mxu0 0.0
  %7277 = vmatprep.mubr.f32.mxu0 0.0
  %7278 = vmatmul.mubr.f32.gmra.mxu0 %v7211
  %v7279 = vpop.f32.mrf.mxu0
  %v7280 = vadd.f32 %v7207, %v7279
  %v7281 = vpop.f32.mrf.mxu0
  %7282 = vdwg.mxu0
  %v7283 = vld [vmem:[%s453] sm:$0xff]
  %v7284 = vld [vmem:[%s453 + $0x8] sm:$0xff]
  %v7285 = vld [vmem:[%s453 + $0x10] sm:$0xff]
  %v7287 = vsel %vm230, %v7049, 0
  %7289 = vmatprep.subr.mxu0 0.0
  %7290 = vmatpush1.msra.mxu0 0.0
  %7291 = vmatprep.subr.mxu0 0.0
  %7292 = vmatpush1.msra.mxu0 0.0
  %7293 = vmatprep.subr.mxu0 0.0
  %7294 = vmatpush1.msra.mxu0 0.0
  %7295 = vmatprep.subr.mxu0 0.0
  %7296 = vmatpush1.msra.mxu0 0.0
  %7297 = vmatprep.subr.mxu0 0.0
  %7298 = vmatpush1.msra.mxu0 0.0
  %7299 = vmatprep.subr.mxu0 0.0
  %7300 = vmatpush1.msra.mxu0 0.0
  %7301 = vmatprep.subr.mxu0 0.0
  %7302 = vmatpush1.msra.mxu0 0.0
  %7303 = vmatprep.subr.mxu0 0.0
  %7304 = vmatpush1.msra.mxu0 0.0
  %7305 = vmatprep.subr.mxu0 0.0
  %7306 = vmatpush1.msra.mxu0 0.0
  %7307 = vmatprep.subr.mxu0 0.0
  %7308 = vmatpush1.msra.mxu0 0.0
  %7309 = vmatprep.subr.mxu0 0.0
  %7310 = vmatpush1.msra.mxu0 0.0
  %7311 = vmatprep.subr.mxu0 0.0
  %7312 = vmatpush1.msra.mxu0 0.0
  %7313 = vmatprep.subr.mxu0 0.0
  %7314 = vmatpush1.msra.mxu0 0.0
  %7315 = vmatprep.subr.mxu0 0.0
  %7316 = vmatpush1.msra.mxu0 %v7285
  %7317 = vmatprep.subr.mxu0 0.0
  %7318 = vmatpush1.msra.mxu0 %v7284
  %7319 = vmatprep.subr.mxu0 0.0
  %7320 = vmatpush1.msra.mxu0 %v7283
  %7321 = vmatprep.subr.mxu0 0.0
  %7322 = vmatpush2.msra.mxu0 0.0
  %7323 = vmatprep.subr.mxu0 0.0
  %7324 = vmatpush2.msra.mxu0 0.0
  %7325 = vmatprep.subr.mxu0 0.0
  %7326 = vmatpush2.msra.mxu0 0.0
  %7327 = vmatprep.subr.mxu0 0.0
  %7328 = vmatpush2.msra.mxu0 0.0
  %7329 = vmatprep.subr.mxu0 0.0
  %7330 = vmatpush2.msra.mxu0 0.0
  %7331 = vmatprep.subr.mxu0 0.0
  %7332 = vmatpush2.msra.mxu0 0.0
  %7333 = vmatprep.subr.mxu0 0.0
  %7334 = vmatpush2.msra.mxu0 0.0
  %7335 = vmatprep.subr.mxu0 0.0
  %7336 = vmatpush2.msra.mxu0 0.0
  %7337 = vmatprep.subr.mxu0 0.0
  %7338 = vmatpush2.msra.mxu0 0.0
  %7339 = vmatprep.subr.mxu0 0.0
  %7340 = vmatpush2.msra.mxu0 0.0
  %7341 = vmatprep.subr.mxu0 0.0
  %7342 = vmatpush2.msra.mxu0 0.0
  %7343 = vmatprep.subr.mxu0 0.0
  %7344 = vmatpush2.msra.mxu0 0.0
  %7345 = vmatprep.subr.mxu0 0.0
  %7346 = vmatpush2.msra.mxu0 0.0
  %7347 = vmatprep.subr.mxu0 0.0
  %7348 = vmatpush2.msra.mxu0 0.0
  %7349 = vmatprep.subr.mxu0 0.0
  %7350 = vmatpush2.msra.mxu0 0.0
  %7351 = vmatprep.subr.mxu0 0.0
  %7352 = vmatpush2.msra.mxu0 0.0
  %7353 = vmatprep.mubr.f32.mxu0 0.0
  %7354 = vmatmul.mubr.f32.gmra.mxu0 %v7287
  %v7355 = vpop.f32.mrf.mxu0
  %v7356 = vadd.f32 0.0, %v7355
  %v7357 = vpop.f32.mrf.mxu0
  %7358 = vdwg.mxu0
  %v7359 = vadd.f32 %v7280, %v7356
  %v7360 = vld [vmem:[%s4] sm:$0x1]
  %v7362 = vlaneseq
  %v7363 = vshrl.u32 %v7362, 7
  %v7364 = vsub.s32 0, %v7363
  %v7365 = vrot.slane %v7360, %v7364
  %v7367 = vadd.f32 %v7359, %v7365
  %v7369 = vsel %vm73, %v7131, 0
  %7371 = vmatprep.subr.mxu0 0.0
  %7372 = vmatpush1.msra.mxu0 0.0
  %7373 = vmatprep.subr.mxu0 0.0
  %7374 = vmatpush1.msra.mxu0 0.0
  %7375 = vmatprep.subr.mxu0 0.0
  %7376 = vmatpush1.msra.mxu0 0.0
  %7377 = vmatprep.subr.mxu0 0.0
  %7378 = vmatpush1.msra.mxu0 0.0
  %7379 = vmatprep.subr.mxu0 0.0
  %7380 = vmatpush1.msra.mxu0 0.0
  %7381 = vmatprep.subr.mxu0 0.0
  %7382 = vmatpush1.msra.mxu0 0.0
  %7383 = vmatprep.subr.mxu0 0.0
  %7384 = vmatpush1.msra.mxu0 0.0
  %7385 = vmatprep.subr.mxu0 0.0
  %7386 = vmatpush1.msra.mxu0 0.0
  %7387 = vmatprep.subr.mxu0 0.0
  %7388 = vmatpush1.msra.mxu0 0.0
  %7389 = vmatprep.subr.mxu0 0.0
  %7390 = vmatpush1.msra.mxu0 0.0
  %7391 = vmatprep.subr.mxu0 0.0
  %7392 = vmatpush1.msra.mxu0 0.0
  %7393 = vmatprep.subr.mxu0 0.0
  %7394 = vmatpush1.msra.mxu0 0.0
  %7395 = vmatprep.subr.mxu0 0.0
  %7396 = vmatpush1.msra.mxu0 0.0
  %7397 = vmatprep.subr.mxu0 0.0
  %7398 = vmatpush1.msra.mxu0 0.0
  %7399 = vmatprep.subr.mxu0 0.0
  %7400 = vmatpush1.msra.mxu0 0.0
  %7401 = vmatprep.subr.mxu0 0.0
  %7402 = vmatpush1.msra.mxu0 %v7369
  %7403 = vmatprep.subr.mxu0 0.0
  %7404 = vmatpush2.msra.mxu0 0.0
  %7405 = vmatprep.subr.mxu0 0.0
  %7406 = vmatpush2.msra.mxu0 0.0
  %7407 = vmatprep.subr.mxu0 0.0
  %7408 = vmatpush2.msra.mxu0 0.0
  %7409 = vmatprep.subr.mxu0 0.0
  %7410 = vmatpush2.msra.mxu0 0.0
  %7411 = vmatprep.subr.mxu0 0.0
  %7412 = vmatpush2.msra.mxu0 0.0
  %7413 = vmatprep.subr.mxu0 0.0
  %7414 = vmatpush2.msra.mxu0 0.0
  %7415 = vmatprep.subr.mxu0 0.0
  %7416 = vmatpush2.msra.mxu0 0.0
  %7417 = vmatprep.subr.mxu0 0.0
  %7418 = vmatpush2.msra.mxu0 0.0
  %7419 = vmatprep.subr.mxu0 0.0
  %7420 = vmatpush2.msra.mxu0 0.0
  %7421 = vmatprep.subr.mxu0 0.0
  %7422 = vmatpush2.msra.mxu0 0.0
  %7423 = vmatprep.subr.mxu0 0.0
  %7424 = vmatpush2.msra.mxu0 0.0
  %7425 = vmatprep.subr.mxu0 0.0
  %7426 = vmatpush2.msra.mxu0 0.0
  %7427 = vmatprep.subr.mxu0 0.0
  %7428 = vmatpush2.msra.mxu0 0.0
  %7429 = vmatprep.subr.mxu0 0.0
  %7430 = vmatpush2.msra.mxu0 0.0
  %7431 = vmatprep.subr.mxu0 0.0
  %7432 = vmatpush2.msra.mxu0 0.0
  %7433 = vmatprep.subr.mxu0 0.0
  %7434 = vmatpush2.msra.mxu0 0.0
  %7435 = vmatprep.mubr.f32.mxu0 0.0
  %7436 = vmatmul.mubr.f32.gmra.mxu0 %v71
  %v7437 = vpop.f32.mrf.mxu0
  %v7438 = vadd.f32 0.0, %v7437
  %v7439 = vpop.f32.mrf.mxu0
  %7440 = vdwg.mxu0
  %7441 = vmatprep.subr.mxu0 0.0
  %7442 = vmatpush1.msra.mxu0 0.0
  %7443 = vmatprep.subr.mxu0 0.0
  %7444 = vmatpush1.msra.mxu0 0.0
  %7445 = vmatprep.subr.mxu0 0.0
  %7446 = vmatpush1.msra.mxu0 0.0
  %7447 = vmatprep.subr.mxu0 0.0
  %7448 = vmatpush1.msra.mxu0 0.0
  %7449 = vmatprep.subr.mxu0 0.0
  %7450 = vmatpush1.msra.mxu0 0.0
  %7451 = vmatprep.subr.mxu0 0.0
  %7452 = vmatpush1.msra.mxu0 0.0
  %7453 = vmatprep.subr.mxu0 0.0
  %7454 = vmatpush1.msra.mxu0 0.0
  %7455 = vmatprep.subr.mxu0 0.0
  %7456 = vmatpush1.msra.mxu0 0.0
  %7457 = vmatprep.subr.mxu0 0.0
  %7458 = vmatpush1.msra.mxu0 0.0
  %7459 = vmatprep.subr.mxu0 0.0
  %7460 = vmatpush1.msra.mxu0 0.0
  %7461 = vmatprep.subr.mxu0 0.0
  %7462 = vmatpush1.msra.mxu0 0.0
  %7463 = vmatprep.subr.mxu0 0.0
  %7464 = vmatpush1.msra.mxu0 0.0
  %7465 = vmatprep.subr.mxu0 0.0
  %7466 = vmatpush1.msra.mxu0 0.0
  %7467 = vmatprep.subr.mxu0 0.0
  %7468 = vmatpush1.msra.mxu0 0.0
  %7469 = vmatprep.subr.mxu0 0.0
  %7470 = vmatpush1.msra.mxu0 0.0
  %7471 = vmatprep.subr.mxu0 0.0
  %7472 = vmatpush1.msra.mxu0 %v7369
  %7473 = vmatprep.subr.mxu0 0.0
  %7474 = vmatpush2.msra.mxu0 0.0
  %7475 = vmatprep.subr.mxu0 0.0
  %7476 = vmatpush2.msra.mxu0 0.0
  %7477 = vmatprep.subr.mxu0 0.0
  %7478 = vmatpush2.msra.mxu0 0.0
  %7479 = vmatprep.subr.mxu0 0.0
  %7480 = vmatpush2.msra.mxu0 0.0
  %7481 = vmatprep.subr.mxu0 0.0
  %7482 = vmatpush2.msra.mxu0 0.0
  %7483 = vmatprep.subr.mxu0 0.0
  %7484 = vmatpush2.msra.mxu0 0.0
  %7485 = vmatprep.subr.mxu0 0.0
  %7486 = vmatpush2.msra.mxu0 0.0
  %7487 = vmatprep.subr.mxu0 0.0
  %7488 = vmatpush2.msra.mxu0 0.0
  %7489 = vmatprep.subr.mxu0 0.0
  %7490 = vmatpush2.msra.mxu0 0.0
  %7491 = vmatprep.subr.mxu0 0.0
  %7492 = vmatpush2.msra.mxu0 0.0
  %7493 = vmatprep.subr.mxu0 0.0
  %7494 = vmatpush2.msra.mxu0 0.0
  %7495 = vmatprep.subr.mxu0 0.0
  %7496 = vmatpush2.msra.mxu0 0.0
  %7497 = vmatprep.subr.mxu0 0.0
  %7498 = vmatpush2.msra.mxu0 0.0
  %7499 = vmatprep.subr.mxu0 0.0
  %7500 = vmatpush2.msra.mxu0 0.0
  %7501 = vmatprep.subr.mxu0 0.0
  %7502 = vmatpush2.msra.mxu0 0.0
  %7503 = vmatprep.subr.mxu0 0.0
  %7504 = vmatpush2.msra.mxu0 0.0
  %7505 = vmatprep.mubr.f32.mxu0 0.0
  %7506 = vmatmul.mubr.f32.gmra.mxu0 %v148
  %v7507 = vpop.f32.mrf.mxu0
  %v7508 = vadd.f32 0.0, %v7507
  %v7509 = vpop.f32.mrf.mxu0
  %7510 = vdwg.mxu0
  %v7512 = vsel %vm73, %v7367, 0
  %7514 = vmatprep.subr.mxu0 0.0
  %7515 = vmatpush1.msra.mxu0 0.0
  %7516 = vmatprep.subr.mxu0 0.0
  %7517 = vmatpush1.msra.mxu0 0.0
  %7518 = vmatprep.subr.mxu0 0.0
  %7519 = vmatpush1.msra.mxu0 0.0
  %7520 = vmatprep.subr.mxu0 0.0
  %7521 = vmatpush1.msra.mxu0 0.0
  %7522 = vmatprep.subr.mxu0 0.0
  %7523 = vmatpush1.msra.mxu0 0.0
  %7524 = vmatprep.subr.mxu0 0.0
  %7525 = vmatpush1.msra.mxu0 0.0
  %7526 = vmatprep.subr.mxu0 0.0
  %7527 = vmatpush1.msra.mxu0 0.0
  %7528 = vmatprep.subr.mxu0 0.0
  %7529 = vmatpush1.msra.mxu0 0.0
  %7530 = vmatprep.subr.mxu0 0.0
  %7531 = vmatpush1.msra.mxu0 0.0
  %7532 = vmatprep.subr.mxu0 0.0
  %7533 = vmatpush1.msra.mxu0 0.0
  %7534 = vmatprep.subr.mxu0 0.0
  %7535 = vmatpush1.msra.mxu0 0.0
  %7536 = vmatprep.subr.mxu0 0.0
  %7537 = vmatpush1.msra.mxu0 0.0
  %7538 = vmatprep.subr.mxu0 0.0
  %7539 = vmatpush1.msra.mxu0 0.0
  %7540 = vmatprep.subr.mxu0 0.0
  %7541 = vmatpush1.msra.mxu0 0.0
  %7542 = vmatprep.subr.mxu0 0.0
  %7543 = vmatpush1.msra.mxu0 0.0
  %7544 = vmatprep.subr.mxu0 0.0
  %7545 = vmatpush1.msra.mxu0 %v7512
  %7546 = vmatprep.subr.mxu0 0.0
  %7547 = vmatpush2.msra.mxu0 0.0
  %7548 = vmatprep.subr.mxu0 0.0
  %7549 = vmatpush2.msra.mxu0 0.0
  %7550 = vmatprep.subr.mxu0 0.0
  %7551 = vmatpush2.msra.mxu0 0.0
  %7552 = vmatprep.subr.mxu0 0.0
  %7553 = vmatpush2.msra.mxu0 0.0
  %7554 = vmatprep.subr.mxu0 0.0
  %7555 = vmatpush2.msra.mxu0 0.0
  %7556 = vmatprep.subr.mxu0 0.0
  %7557 = vmatpush2.msra.mxu0 0.0
  %7558 = vmatprep.subr.mxu0 0.0
  %7559 = vmatpush2.msra.mxu0 0.0
  %7560 = vmatprep.subr.mxu0 0.0
  %7561 = vmatpush2.msra.mxu0 0.0
  %7562 = vmatprep.subr.mxu0 0.0
  %7563 = vmatpush2.msra.mxu0 0.0
  %7564 = vmatprep.subr.mxu0 0.0
  %7565 = vmatpush2.msra.mxu0 0.0
  %7566 = vmatprep.subr.mxu0 0.0
  %7567 = vmatpush2.msra.mxu0 0.0
  %7568 = vmatprep.subr.mxu0 0.0
  %7569 = vmatpush2.msra.mxu0 0.0
  %7570 = vmatprep.subr.mxu0 0.0
  %7571 = vmatpush2.msra.mxu0 0.0
  %7572 = vmatprep.subr.mxu0 0.0
  %7573 = vmatpush2.msra.mxu0 0.0
  %7574 = vmatprep.subr.mxu0 0.0
  %7575 = vmatpush2.msra.mxu0 0.0
  %7576 = vmatprep.subr.mxu0 0.0
  %7577 = vmatpush2.msra.mxu0 0.0
  %7578 = vmatprep.mubr.f32.mxu0 0.0
  %7579 = vmatmul.mubr.f32.gmra.mxu0 %v71
  %v7580 = vpop.f32.mrf.mxu0
  %v7581 = vadd.f32 0.0, %v7580
  %v7582 = vpop.f32.mrf.mxu0
  %7583 = vdwg.mxu0
  %7584 = vmatprep.subr.mxu0 0.0
  %7585 = vmatpush1.msra.mxu0 0.0
  %7586 = vmatprep.subr.mxu0 0.0
  %7587 = vmatpush1.msra.mxu0 0.0
  %7588 = vmatprep.subr.mxu0 0.0
  %7589 = vmatpush1.msra.mxu0 0.0
  %7590 = vmatprep.subr.mxu0 0.0
  %7591 = vmatpush1.msra.mxu0 0.0
  %7592 = vmatprep.subr.mxu0 0.0
  %7593 = vmatpush1.msra.mxu0 0.0
  %7594 = vmatprep.subr.mxu0 0.0
  %7595 = vmatpush1.msra.mxu0 0.0
  %7596 = vmatprep.subr.mxu0 0.0
  %7597 = vmatpush1.msra.mxu0 0.0
  %7598 = vmatprep.subr.mxu0 0.0
  %7599 = vmatpush1.msra.mxu0 0.0
  %7600 = vmatprep.subr.mxu0 0.0
  %7601 = vmatpush1.msra.mxu0 0.0
  %7602 = vmatprep.subr.mxu0 0.0
  %7603 = vmatpush1.msra.mxu0 0.0
  %7604 = vmatprep.subr.mxu0 0.0
  %7605 = vmatpush1.msra.mxu0 0.0
  %7606 = vmatprep.subr.mxu0 0.0
  %7607 = vmatpush1.msra.mxu0 0.0
  %7608 = vmatprep.subr.mxu0 0.0
  %7609 = vmatpush1.msra.mxu0 0.0
  %7610 = vmatprep.subr.mxu0 0.0
  %7611 = vmatpush1.msra.mxu0 0.0
  %7612 = vmatprep.subr.mxu0 0.0
  %7613 = vmatpush1.msra.mxu0 0.0
  %7614 = vmatprep.subr.mxu0 0.0
  %7615 = vmatpush1.msra.mxu0 %v7512
  %7616 = vmatprep.subr.mxu0 0.0
  %7617 = vmatpush2.msra.mxu0 0.0
  %7618 = vmatprep.subr.mxu0 0.0
  %7619 = vmatpush2.msra.mxu0 0.0
  %7620 = vmatprep.subr.mxu0 0.0
  %7621 = vmatpush2.msra.mxu0 0.0
  %7622 = vmatprep.subr.mxu0 0.0
  %7623 = vmatpush2.msra.mxu0 0.0
  %7624 = vmatprep.subr.mxu0 0.0
  %7625 = vmatpush2.msra.mxu0 0.0
  %7626 = vmatprep.subr.mxu0 0.0
  %7627 = vmatpush2.msra.mxu0 0.0
  %7628 = vmatprep.subr.mxu0 0.0
  %7629 = vmatpush2.msra.mxu0 0.0
  %7630 = vmatprep.subr.mxu0 0.0
  %7631 = vmatpush2.msra.mxu0 0.0
  %7632 = vmatprep.subr.mxu0 0.0
  %7633 = vmatpush2.msra.mxu0 0.0
  %7634 = vmatprep.subr.mxu0 0.0
  %7635 = vmatpush2.msra.mxu0 0.0
  %7636 = vmatprep.subr.mxu0 0.0
  %7637 = vmatpush2.msra.mxu0 0.0
  %7638 = vmatprep.subr.mxu0 0.0
  %7639 = vmatpush2.msra.mxu0 0.0
  %7640 = vmatprep.subr.mxu0 0.0
  %7641 = vmatpush2.msra.mxu0 0.0
  %7642 = vmatprep.subr.mxu0 0.0
  %7643 = vmatpush2.msra.mxu0 0.0
  %7644 = vmatprep.subr.mxu0 0.0
  %7645 = vmatpush2.msra.mxu0 0.0
  %7646 = vmatprep.subr.mxu0 0.0
  %7647 = vmatpush2.msra.mxu0 0.0
  %7648 = vmatprep.mubr.f32.mxu0 0.0
  %7649 = vmatmul.mubr.f32.gmra.mxu0 %v148
  %v7650 = vpop.f32.mrf.mxu0
  %v7651 = vadd.f32 0.0, %v7650
  %v7652 = vpop.f32.mrf.mxu0
  %7653 = vdwg.mxu0
  %v7654 = vld [vmem:[%s5] sm:$0xff]
  %v7655 = vld [vmem:[%s5 + $0x8] sm:$0xff]
  %v7656 = vld [vmem:[%s5 + $0x10] sm:$0xff]
  %v7657 = vld [vmem:[%s5 + $0x18] sm:$0xff]
  %v7658 = vld [vmem:[%s5 + $0x20] sm:$0xff]
  %v7659 = vld [vmem:[%s5 + $0x28] sm:$0xff]
  %v7660 = vld [vmem:[%s5 + $0x30] sm:$0xff]
  %v7661 = vld [vmem:[%s5 + $0x38] sm:$0xff]
  %v7662 = vld [vmem:[%s5 + $0x40] sm:$0xff]
  %v7663 = vld [vmem:[%s5 + $0x48] sm:$0xff]
  %v7664 = vld [vmem:[%s5 + $0x50] sm:$0xff]
  %v7665 = vld [vmem:[%s5 + $0x58] sm:$0xff]
  %v7666 = vld [vmem:[%s5 + $0x60] sm:$0xff]
  %v7667 = vld [vmem:[%s5 + $0x68] sm:$0xff]
  %v7668 = vld [vmem:[%s5 + $0x70] sm:$0xff]
  %v7669 = vld [vmem:[%s5 + $0x78] sm:$0xff]
  %v7670 = vld [vmem:[%s841] sm:$0xff]
  %v7671 = vld [vmem:[%s841 + $0x8] sm:$0xff]
  %v7672 = vld [vmem:[%s841 + $0x10] sm:$0xff]
  %v7673 = vld [vmem:[%s841 + $0x18] sm:$0xff]
  %v7674 = vld [vmem:[%s841 + $0x20] sm:$0xff]
  %v7675 = vld [vmem:[%s841 + $0x28] sm:$0xff]
  %v7676 = vld [vmem:[%s841 + $0x30] sm:$0xff]
  %v7677 = vld [vmem:[%s841 + $0x38] sm:$0xff]
  %v7678 = vld [vmem:[%s841 + $0x40] sm:$0xff]
  %v7679 = vld [vmem:[%s841 + $0x48] sm:$0xff]
  %v7680 = vld [vmem:[%s841 + $0x50] sm:$0xff]
  %v7681 = vld [vmem:[%s841 + $0x58] sm:$0xff]
  %v7682 = vld [vmem:[%s841 + $0x60] sm:$0xff]
  %v7683 = vld [vmem:[%s841 + $0x68] sm:$0xff]
  %v7684 = vld [vmem:[%s841 + $0x70] sm:$0xff]
  %v7685 = vld [vmem:[%s841 + $0x78] sm:$0xff]
  %7686 = vmatprep.subr.mxu0 0.0
  %7687 = vmatpush1.msra.mxu0 %v7685
  %7688 = vmatprep.subr.mxu0 0.0
  %7689 = vmatpush1.msra.mxu0 %v7684
  %7690 = vmatprep.subr.mxu0 0.0
  %7691 = vmatpush1.msra.mxu0 %v7683
  %7692 = vmatprep.subr.mxu0 0.0
  %7693 = vmatpush1.msra.mxu0 %v7682
  %7694 = vmatprep.subr.mxu0 0.0
  %7695 = vmatpush1.msra.mxu0 %v7681
  %7696 = vmatprep.subr.mxu0 0.0
  %7697 = vmatpush1.msra.mxu0 %v7680
  %7698 = vmatprep.subr.mxu0 0.0
  %7699 = vmatpush1.msra.mxu0 %v7679
  %7700 = vmatprep.subr.mxu0 0.0
  %7701 = vmatpush1.msra.mxu0 %v7678
  %7702 = vmatprep.subr.mxu0 0.0
  %7703 = vmatpush1.msra.mxu0 %v7677
  %7704 = vmatprep.subr.mxu0 0.0
  %7705 = vmatpush1.msra.mxu0 %v7676
  %7706 = vmatprep.subr.mxu0 0.0
  %7707 = vmatpush1.msra.mxu0 %v7675
  %7708 = vmatprep.subr.mxu0 0.0
  %7709 = vmatpush1.msra.mxu0 %v7674
  %7710 = vmatprep.subr.mxu0 0.0
  %7711 = vmatpush1.msra.mxu0 %v7673
  %7712 = vmatprep.subr.mxu0 0.0
  %7713 = vmatpush1.msra.mxu0 %v7672
  %7714 = vmatprep.subr.mxu0 0.0
  %7715 = vmatpush1.msra.mxu0 %v7671
  %7716 = vmatprep.subr.mxu0 0.0
  %7717 = vmatpush1.msra.mxu0 %v7670
  %7718 = vmatprep.subr.mxu0 0.0
  %7719 = vmatpush2.msra.mxu0 0.0
  %7720 = vmatprep.subr.mxu0 0.0
  %7721 = vmatpush2.msra.mxu0 0.0
  %7722 = vmatprep.subr.mxu0 0.0
  %7723 = vmatpush2.msra.mxu0 0.0
  %7724 = vmatprep.subr.mxu0 0.0
  %7725 = vmatpush2.msra.mxu0 0.0
  %7726 = vmatprep.subr.mxu0 0.0
  %7727 = vmatpush2.msra.mxu0 0.0
  %7728 = vmatprep.subr.mxu0 0.0
  %7729 = vmatpush2.msra.mxu0 0.0
  %7730 = vmatprep.subr.mxu0 0.0
  %7731 = vmatpush2.msra.mxu0 0.0
  %7732 = vmatprep.subr.mxu0 0.0
  %7733 = vmatpush2.msra.mxu0 0.0
  %7734 = vmatprep.subr.mxu0 0.0
  %7735 = vmatpush2.msra.mxu0 0.0
  %7736 = vmatprep.subr.mxu0 0.0
  %7737 = vmatpush2.msra.mxu0 0.0
  %7738 = vmatprep.subr.mxu0 0.0
  %7739 = vmatpush2.msra.mxu0 0.0
  %7740 = vmatprep.subr.mxu0 0.0
  %7741 = vmatpush2.msra.mxu0 0.0
  %7742 = vmatprep.subr.mxu0 0.0
  %7743 = vmatpush2.msra.mxu0 0.0
  %7744 = vmatprep.subr.mxu0 0.0
  %7745 = vmatpush2.msra.mxu0 0.0
  %7746 = vmatprep.subr.mxu0 0.0
  %7747 = vmatpush2.msra.mxu0 0.0
  %7748 = vmatprep.subr.mxu0 0.0
  %7749 = vmatpush2.msra.mxu0 0.0
  %7750 = vmatprep.mubr.f32.mxu0 0.0
  %7751 = vmatmul.mubr.f32.gmra.mxu0 %v7367
  %v7752 = vpop.f32.mrf.mxu0
  %v7753 = vadd.f32 0.0, %v7752
  %v7754 = vpop.f32.mrf.mxu0
  %7755 = vdwg.mxu0
  %7756 = vmatprep.subr.mxu0 0.0
  %7757 = vmatpush1.msra.mxu0 %v7669
  %7758 = vmatprep.subr.mxu0 0.0
  %7759 = vmatpush1.msra.mxu0 %v7668
  %7760 = vmatprep.subr.mxu0 0.0
  %7761 = vmatpush1.msra.mxu0 %v7667
  %7762 = vmatprep.subr.mxu0 0.0
  %7763 = vmatpush1.msra.mxu0 %v7666
  %7764 = vmatprep.subr.mxu0 0.0
  %7765 = vmatpush1.msra.mxu0 %v7665
  %7766 = vmatprep.subr.mxu0 0.0
  %7767 = vmatpush1.msra.mxu0 %v7664
  %7768 = vmatprep.subr.mxu0 0.0
  %7769 = vmatpush1.msra.mxu0 %v7663
  %7770 = vmatprep.subr.mxu0 0.0
  %7771 = vmatpush1.msra.mxu0 %v7662
  %7772 = vmatprep.subr.mxu0 0.0
  %7773 = vmatpush1.msra.mxu0 %v7661
  %7774 = vmatprep.subr.mxu0 0.0
  %7775 = vmatpush1.msra.mxu0 %v7660
  %7776 = vmatprep.subr.mxu0 0.0
  %7777 = vmatpush1.msra.mxu0 %v7659
  %7778 = vmatprep.subr.mxu0 0.0
  %7779 = vmatpush1.msra.mxu0 %v7658
  %7780 = vmatprep.subr.mxu0 0.0
  %7781 = vmatpush1.msra.mxu0 %v7657
  %7782 = vmatprep.subr.mxu0 0.0
  %7783 = vmatpush1.msra.mxu0 %v7656
  %7784 = vmatprep.subr.mxu0 0.0
  %7785 = vmatpush1.msra.mxu0 %v7655
  %7786 = vmatprep.subr.mxu0 0.0
  %7787 = vmatpush1.msra.mxu0 %v7654
  %7788 = vmatprep.subr.mxu0 0.0
  %7789 = vmatpush2.msra.mxu0 0.0
  %7790 = vmatprep.subr.mxu0 0.0
  %7791 = vmatpush2.msra.mxu0 0.0
  %7792 = vmatprep.subr.mxu0 0.0
  %7793 = vmatpush2.msra.mxu0 0.0
  %7794 = vmatprep.subr.mxu0 0.0
  %7795 = vmatpush2.msra.mxu0 0.0
  %7796 = vmatprep.subr.mxu0 0.0
  %7797 = vmatpush2.msra.mxu0 0.0
  %7798 = vmatprep.subr.mxu0 0.0
  %7799 = vmatpush2.msra.mxu0 0.0
  %7800 = vmatprep.subr.mxu0 0.0
  %7801 = vmatpush2.msra.mxu0 0.0
  %7802 = vmatprep.subr.mxu0 0.0
  %7803 = vmatpush2.msra.mxu0 0.0
  %7804 = vmatprep.subr.mxu0 0.0
  %7805 = vmatpush2.msra.mxu0 0.0
  %7806 = vmatprep.subr.mxu0 0.0
  %7807 = vmatpush2.msra.mxu0 0.0
  %7808 = vmatprep.subr.mxu0 0.0
  %7809 = vmatpush2.msra.mxu0 0.0
  %7810 = vmatprep.subr.mxu0 0.0
  %7811 = vmatpush2.msra.mxu0 0.0
  %7812 = vmatprep.subr.mxu0 0.0
  %7813 = vmatpush2.msra.mxu0 0.0
  %7814 = vmatprep.subr.mxu0 0.0
  %7815 = vmatpush2.msra.mxu0 0.0
  %7816 = vmatprep.subr.mxu0 0.0
  %7817 = vmatpush2.msra.mxu0 0.0
  %7818 = vmatprep.subr.mxu0 0.0
  %7819 = vmatpush2.msra.mxu0 0.0
  %7820 = vmatprep.mubr.f32.mxu0 0.0
  %7821 = vmatmul.mubr.f32.gmra.mxu0 %v7131
  %v7822 = vpop.f32.mrf.mxu0
  %v7823 = vadd.f32 %v7753, %v7822
  %v7824 = vpop.f32.mrf.mxu0
  %7825 = vdwg.mxu0
  %v7826 = vld [vmem:[%s6] sm:$0x1]
  %v7828 = vlaneseq
  %v7829 = vshrl.u32 %v7828, 7
  %v7830 = vsub.s32 0, %v7829
  %v7831 = vrot.slane %v7826, %v7830
  %v7833 = vadd.f32 %v7823, %v7831
  %v7834 = vld [vmem:[%s7] sm:$0xff]
  %v7835 = vld [vmem:[%s7 + $0x8] sm:$0xff]
  %v7836 = vld [vmem:[%s7 + $0x10] sm:$0xff]
  %v7837 = vld [vmem:[%s7 + $0x18] sm:$0xff]
  %v7838 = vld [vmem:[%s7 + $0x20] sm:$0xff]
  %v7839 = vld [vmem:[%s7 + $0x28] sm:$0xff]
  %v7840 = vld [vmem:[%s7 + $0x30] sm:$0xff]
  %v7841 = vld [vmem:[%s7 + $0x38] sm:$0xff]
  %v7842 = vld [vmem:[%s7 + $0x40] sm:$0xff]
  %v7843 = vld [vmem:[%s7 + $0x48] sm:$0xff]
  %v7844 = vld [vmem:[%s7 + $0x50] sm:$0xff]
  %v7845 = vld [vmem:[%s7 + $0x58] sm:$0xff]
  %v7846 = vld [vmem:[%s7 + $0x60] sm:$0xff]
  %v7847 = vld [vmem:[%s7 + $0x68] sm:$0xff]
  %v7848 = vld [vmem:[%s7 + $0x70] sm:$0xff]
  %v7849 = vld [vmem:[%s7 + $0x78] sm:$0xff]
  %v7850 = vld [vmem:[%s8] sm:$0xff]
  %v7851 = vld [vmem:[%s8 + $0x8] sm:$0xff]
  %v7852 = vld [vmem:[%s8 + $0x10] sm:$0xff]
  %v7853 = vld [vmem:[%s8 + $0x18] sm:$0xff]
  %v7854 = vld [vmem:[%s8 + $0x20] sm:$0xff]
  %v7855 = vld [vmem:[%s8 + $0x28] sm:$0xff]
  %v7856 = vld [vmem:[%s8 + $0x30] sm:$0xff]
  %v7857 = vld [vmem:[%s8 + $0x38] sm:$0xff]
  %v7858 = vld [vmem:[%s8 + $0x40] sm:$0xff]
  %v7859 = vld [vmem:[%s8 + $0x48] sm:$0xff]
  %v7860 = vld [vmem:[%s8 + $0x50] sm:$0xff]
  %v7861 = vld [vmem:[%s8 + $0x58] sm:$0xff]
  %v7862 = vld [vmem:[%s8 + $0x60] sm:$0xff]
  %v7863 = vld [vmem:[%s8 + $0x68] sm:$0xff]
  %v7864 = vld [vmem:[%s8 + $0x70] sm:$0xff]
  %v7865 = vld [vmem:[%s8 + $0x78] sm:$0xff]
  %7866 = vmatprep.subr.mxu0 0.0
  %7867 = vmatpush1.msra.mxu0 %v7865
  %7868 = vmatprep.subr.mxu0 0.0
  %7869 = vmatpush1.msra.mxu0 %v7864
  %7870 = vmatprep.subr.mxu0 0.0
  %7871 = vmatpush1.msra.mxu0 %v7863
  %7872 = vmatprep.subr.mxu0 0.0
  %7873 = vmatpush1.msra.mxu0 %v7862
  %7874 = vmatprep.subr.mxu0 0.0
  %7875 = vmatpush1.msra.mxu0 %v7861
  %7876 = vmatprep.subr.mxu0 0.0
  %7877 = vmatpush1.msra.mxu0 %v7860
  %7878 = vmatprep.subr.mxu0 0.0
  %7879 = vmatpush1.msra.mxu0 %v7859
  %7880 = vmatprep.subr.mxu0 0.0
  %7881 = vmatpush1.msra.mxu0 %v7858
  %7882 = vmatprep.subr.mxu0 0.0
  %7883 = vmatpush1.msra.mxu0 %v7857
  %7884 = vmatprep.subr.mxu0 0.0
  %7885 = vmatpush1.msra.mxu0 %v7856
  %7886 = vmatprep.subr.mxu0 0.0
  %7887 = vmatpush1.msra.mxu0 %v7855
  %7888 = vmatprep.subr.mxu0 0.0
  %7889 = vmatpush1.msra.mxu0 %v7854
  %7890 = vmatprep.subr.mxu0 0.0
  %7891 = vmatpush1.msra.mxu0 %v7853
  %7892 = vmatprep.subr.mxu0 0.0
  %7893 = vmatpush1.msra.mxu0 %v7852
  %7894 = vmatprep.subr.mxu0 0.0
  %7895 = vmatpush1.msra.mxu0 %v7851
  %7896 = vmatprep.subr.mxu0 0.0
  %7897 = vmatpush1.msra.mxu0 %v7850
  %7898 = vmatprep.subr.mxu0 0.0
  %7899 = vmatpush2.msra.mxu0 0.0
  %7900 = vmatprep.subr.mxu0 0.0
  %7901 = vmatpush2.msra.mxu0 0.0
  %7902 = vmatprep.subr.mxu0 0.0
  %7903 = vmatpush2.msra.mxu0 0.0
  %7904 = vmatprep.subr.mxu0 0.0
  %7905 = vmatpush2.msra.mxu0 0.0
  %7906 = vmatprep.subr.mxu0 0.0
  %7907 = vmatpush2.msra.mxu0 0.0
  %7908 = vmatprep.subr.mxu0 0.0
  %7909 = vmatpush2.msra.mxu0 0.0
  %7910 = vmatprep.subr.mxu0 0.0
  %7911 = vmatpush2.msra.mxu0 0.0
  %7912 = vmatprep.subr.mxu0 0.0
  %7913 = vmatpush2.msra.mxu0 0.0
  %7914 = vmatprep.subr.mxu0 0.0
  %7915 = vmatpush2.msra.mxu0 0.0
  %7916 = vmatprep.subr.mxu0 0.0
  %7917 = vmatpush2.msra.mxu0 0.0
  %7918 = vmatprep.subr.mxu0 0.0
  %7919 = vmatpush2.msra.mxu0 0.0
  %7920 = vmatprep.subr.mxu0 0.0
  %7921 = vmatpush2.msra.mxu0 0.0
  %7922 = vmatprep.subr.mxu0 0.0
  %7923 = vmatpush2.msra.mxu0 0.0
  %7924 = vmatprep.subr.mxu0 0.0
  %7925 = vmatpush2.msra.mxu0 0.0
  %7926 = vmatprep.subr.mxu0 0.0
  %7927 = vmatpush2.msra.mxu0 0.0
  %7928 = vmatprep.subr.mxu0 0.0
  %7929 = vmatpush2.msra.mxu0 0.0
  %7930 = vmatprep.mubr.f32.mxu0 0.0
  %7931 = vmatmul.mubr.f32.gmra.mxu0 %v7581
  %v7932 = vpop.f32.mrf.mxu0
  %v7933 = vadd.f32 0.0, %v7932
  %v7934 = vpop.f32.mrf.mxu0
  %7935 = vdwg.mxu0
  %7936 = vmatprep.subr.mxu0 0.0
  %7937 = vmatpush1.msra.mxu0 %v7849
  %7938 = vmatprep.subr.mxu0 0.0
  %7939 = vmatpush1.msra.mxu0 %v7848
  %7940 = vmatprep.subr.mxu0 0.0
  %7941 = vmatpush1.msra.mxu0 %v7847
  %7942 = vmatprep.subr.mxu0 0.0
  %7943 = vmatpush1.msra.mxu0 %v7846
  %7944 = vmatprep.subr.mxu0 0.0
  %7945 = vmatpush1.msra.mxu0 %v7845
  %7946 = vmatprep.subr.mxu0 0.0
  %7947 = vmatpush1.msra.mxu0 %v7844
  %7948 = vmatprep.subr.mxu0 0.0
  %7949 = vmatpush1.msra.mxu0 %v7843
  %7950 = vmatprep.subr.mxu0 0.0
  %7951 = vmatpush1.msra.mxu0 %v7842
  %7952 = vmatprep.subr.mxu0 0.0
  %7953 = vmatpush1.msra.mxu0 %v7841
  %7954 = vmatprep.subr.mxu0 0.0
  %7955 = vmatpush1.msra.mxu0 %v7840
  %7956 = vmatprep.subr.mxu0 0.0
  %7957 = vmatpush1.msra.mxu0 %v7839
  %7958 = vmatprep.subr.mxu0 0.0
  %7959 = vmatpush1.msra.mxu0 %v7838
  %7960 = vmatprep.subr.mxu0 0.0
  %7961 = vmatpush1.msra.mxu0 %v7837
  %7962 = vmatprep.subr.mxu0 0.0
  %7963 = vmatpush1.msra.mxu0 %v7836
  %7964 = vmatprep.subr.mxu0 0.0
  %7965 = vmatpush1.msra.mxu0 %v7835
  %7966 = vmatprep.subr.mxu0 0.0
  %7967 = vmatpush1.msra.mxu0 %v7834
  %7968 = vmatprep.subr.mxu0 0.0
  %7969 = vmatpush2.msra.mxu0 0.0
  %7970 = vmatprep.subr.mxu0 0.0
  %7971 = vmatpush2.msra.mxu0 0.0
  %7972 = vmatprep.subr.mxu0 0.0
  %7973 = vmatpush2.msra.mxu0 0.0
  %7974 = vmatprep.subr.mxu0 0.0
  %7975 = vmatpush2.msra.mxu0 0.0
  %7976 = vmatprep.subr.mxu0 0.0
  %7977 = vmatpush2.msra.mxu0 0.0
  %7978 = vmatprep.subr.mxu0 0.0
  %7979 = vmatpush2.msra.mxu0 0.0
  %7980 = vmatprep.subr.mxu0 0.0
  %7981 = vmatpush2.msra.mxu0 0.0
  %7982 = vmatprep.subr.mxu0 0.0
  %7983 = vmatpush2.msra.mxu0 0.0
  %7984 = vmatprep.subr.mxu0 0.0
  %7985 = vmatpush2.msra.mxu0 0.0
  %7986 = vmatprep.subr.mxu0 0.0
  %7987 = vmatpush2.msra.mxu0 0.0
  %7988 = vmatprep.subr.mxu0 0.0
  %7989 = vmatpush2.msra.mxu0 0.0
  %7990 = vmatprep.subr.mxu0 0.0
  %7991 = vmatpush2.msra.mxu0 0.0
  %7992 = vmatprep.subr.mxu0 0.0
  %7993 = vmatpush2.msra.mxu0 0.0
  %7994 = vmatprep.subr.mxu0 0.0
  %7995 = vmatpush2.msra.mxu0 0.0
  %7996 = vmatprep.subr.mxu0 0.0
  %7997 = vmatpush2.msra.mxu0 0.0
  %7998 = vmatprep.subr.mxu0 0.0
  %7999 = vmatpush2.msra.mxu0 0.0
  %8000 = vmatprep.mubr.f32.mxu0 0.0
  %8001 = vmatmul.mubr.f32.gmra.mxu0 %v7438
  %v8002 = vpop.f32.mrf.mxu0
  %v8003 = vadd.f32 %v7933, %v8002
  %v8004 = vpop.f32.mrf.mxu0
  %8005 = vdwg.mxu0
  %v8006 = vld [vmem:[%s1178] sm:$0xff]
  %v8007 = vld [vmem:[%s1178 + $0x8] sm:$0xff]
  %v8008 = vld [vmem:[%s1178 + $0x10] sm:$0xff]
  %v8009 = vld [vmem:[%s1178 + $0x18] sm:$0xff]
  %v8010 = vld [vmem:[%s1178 + $0x20] sm:$0xff]
  %v8011 = vld [vmem:[%s1178 + $0x28] sm:$0xff]
  %v8012 = vld [vmem:[%s1178 + $0x30] sm:$0xff]
  %v8013 = vld [vmem:[%s1178 + $0x38] sm:$0xff]
  %v8014 = vld [vmem:[%s1178 + $0x40] sm:$0xff]
  %v8015 = vld [vmem:[%s1178 + $0x48] sm:$0xff]
  %v8016 = vld [vmem:[%s1178 + $0x50] sm:$0xff]
  %v8017 = vld [vmem:[%s1178 + $0x58] sm:$0xff]
  %v8018 = vld [vmem:[%s1178 + $0x60] sm:$0xff]
  %v8019 = vld [vmem:[%s1178 + $0x68] sm:$0xff]
  %v8020 = vld [vmem:[%s1178 + $0x70] sm:$0xff]
  %v8021 = vld [vmem:[%s1178 + $0x78] sm:$0xff]
  %8022 = vmatprep.subr.mxu0 0.0
  %8023 = vmatpush1.msra.mxu0 %v8021
  %8024 = vmatprep.subr.mxu0 0.0
  %8025 = vmatpush1.msra.mxu0 %v8020
  %8026 = vmatprep.subr.mxu0 0.0
  %8027 = vmatpush1.msra.mxu0 %v8019
  %8028 = vmatprep.subr.mxu0 0.0
  %8029 = vmatpush1.msra.mxu0 %v8018
  %8030 = vmatprep.subr.mxu0 0.0
  %8031 = vmatpush1.msra.mxu0 %v8017
  %8032 = vmatprep.subr.mxu0 0.0
  %8033 = vmatpush1.msra.mxu0 %v8016
  %8034 = vmatprep.subr.mxu0 0.0
  %8035 = vmatpush1.msra.mxu0 %v8015
  %8036 = vmatprep.subr.mxu0 0.0
  %8037 = vmatpush1.msra.mxu0 %v8014
  %8038 = vmatprep.subr.mxu0 0.0
  %8039 = vmatpush1.msra.mxu0 %v8013
  %8040 = vmatprep.subr.mxu0 0.0
  %8041 = vmatpush1.msra.mxu0 %v8012
  %8042 = vmatprep.subr.mxu0 0.0
  %8043 = vmatpush1.msra.mxu0 %v8011
  %8044 = vmatprep.subr.mxu0 0.0
  %8045 = vmatpush1.msra.mxu0 %v8010
  %8046 = vmatprep.subr.mxu0 0.0
  %8047 = vmatpush1.msra.mxu0 %v8009
  %8048 = vmatprep.subr.mxu0 0.0
  %8049 = vmatpush1.msra.mxu0 %v8008
  %8050 = vmatprep.subr.mxu0 0.0
  %8051 = vmatpush1.msra.mxu0 %v8007
  %8052 = vmatprep.subr.mxu0 0.0
  %8053 = vmatpush1.msra.mxu0 %v8006
  %8054 = vmatprep.subr.mxu0 0.0
  %8055 = vmatpush2.msra.mxu0 0.0
  %8056 = vmatprep.subr.mxu0 0.0
  %8057 = vmatpush2.msra.mxu0 0.0
  %8058 = vmatprep.subr.mxu0 0.0
  %8059 = vmatpush2.msra.mxu0 0.0
  %8060 = vmatprep.subr.mxu0 0.0
  %8061 = vmatpush2.msra.mxu0 0.0
  %8062 = vmatprep.subr.mxu0 0.0
  %8063 = vmatpush2.msra.mxu0 0.0
  %8064 = vmatprep.subr.mxu0 0.0
  %8065 = vmatpush2.msra.mxu0 0.0
  %8066 = vmatprep.subr.mxu0 0.0
  %8067 = vmatpush2.msra.mxu0 0.0
  %8068 = vmatprep.subr.mxu0 0.0
  %8069 = vmatpush2.msra.mxu0 0.0
  %8070 = vmatprep.subr.mxu0 0.0
  %8071 = vmatpush2.msra.mxu0 0.0
  %8072 = vmatprep.subr.mxu0 0.0
  %8073 = vmatpush2.msra.mxu0 0.0
  %8074 = vmatprep.subr.mxu0 0.0
  %8075 = vmatpush2.msra.mxu0 0.0
  %8076 = vmatprep.subr.mxu0 0.0
  %8077 = vmatpush2.msra.mxu0 0.0
  %8078 = vmatprep.subr.mxu0 0.0
  %8079 = vmatpush2.msra.mxu0 0.0
  %8080 = vmatprep.subr.mxu0 0.0
  %8081 = vmatpush2.msra.mxu0 0.0
  %8082 = vmatprep.subr.mxu0 0.0
  %8083 = vmatpush2.msra.mxu0 0.0
  %8084 = vmatprep.subr.mxu0 0.0
  %8085 = vmatpush2.msra.mxu0 0.0
  %8086 = vmatprep.mubr.f32.mxu0 0.0
  %8087 = vmatmul.mubr.f32.gmra.mxu0 %v7131
  %v8088 = vpop.f32.mrf.mxu0
  %v8089 = vadd.f32 0.0, %v8088
  %v8090 = vpop.f32.mrf.mxu0
  %8091 = vdwg.mxu0
  %v8092 = vadd.f32 %v8003, %v8089
  %v8093 = vld [vmem:[%s1266] sm:$0xff]
  %v8094 = vld [vmem:[%s1266 + $0x8] sm:$0xff]
  %v8095 = vld [vmem:[%s1266 + $0x10] sm:$0xff]
  %v8096 = vld [vmem:[%s1266 + $0x18] sm:$0xff]
  %v8097 = vld [vmem:[%s1266 + $0x20] sm:$0xff]
  %v8098 = vld [vmem:[%s1266 + $0x28] sm:$0xff]
  %v8099 = vld [vmem:[%s1266 + $0x30] sm:$0xff]
  %v8100 = vld [vmem:[%s1266 + $0x38] sm:$0xff]
  %v8101 = vld [vmem:[%s1266 + $0x40] sm:$0xff]
  %v8102 = vld [vmem:[%s1266 + $0x48] sm:$0xff]
  %v8103 = vld [vmem:[%s1266 + $0x50] sm:$0xff]
  %v8104 = vld [vmem:[%s1266 + $0x58] sm:$0xff]
  %v8105 = vld [vmem:[%s1266 + $0x60] sm:$0xff]
  %v8106 = vld [vmem:[%s1266 + $0x68] sm:$0xff]
  %v8107 = vld [vmem:[%s1266 + $0x70] sm:$0xff]
  %v8108 = vld [vmem:[%s1266 + $0x78] sm:$0xff]
  %8109 = vmatprep.subr.mxu0 0.0
  %8110 = vmatpush1.msra.mxu0 %v8108
  %8111 = vmatprep.subr.mxu0 0.0
  %8112 = vmatpush1.msra.mxu0 %v8107
  %8113 = vmatprep.subr.mxu0 0.0
  %8114 = vmatpush1.msra.mxu0 %v8106
  %8115 = vmatprep.subr.mxu0 0.0
  %8116 = vmatpush1.msra.mxu0 %v8105
  %8117 = vmatprep.subr.mxu0 0.0
  %8118 = vmatpush1.msra.mxu0 %v8104
  %8119 = vmatprep.subr.mxu0 0.0
  %8120 = vmatpush1.msra.mxu0 %v8103
  %8121 = vmatprep.subr.mxu0 0.0
  %8122 = vmatpush1.msra.mxu0 %v8102
  %8123 = vmatprep.subr.mxu0 0.0
  %8124 = vmatpush1.msra.mxu0 %v8101
  %8125 = vmatprep.subr.mxu0 0.0
  %8126 = vmatpush1.msra.mxu0 %v8100
  %8127 = vmatprep.subr.mxu0 0.0
  %8128 = vmatpush1.msra.mxu0 %v8099
  %8129 = vmatprep.subr.mxu0 0.0
  %8130 = vmatpush1.msra.mxu0 %v8098
  %8131 = vmatprep.subr.mxu0 0.0
  %8132 = vmatpush1.msra.mxu0 %v8097
  %8133 = vmatprep.subr.mxu0 0.0
  %8134 = vmatpush1.msra.mxu0 %v8096
  %8135 = vmatprep.subr.mxu0 0.0
  %8136 = vmatpush1.msra.mxu0 %v8095
  %8137 = vmatprep.subr.mxu0 0.0
  %8138 = vmatpush1.msra.mxu0 %v8094
  %8139 = vmatprep.subr.mxu0 0.0
  %8140 = vmatpush1.msra.mxu0 %v8093
  %8141 = vmatprep.subr.mxu0 0.0
  %8142 = vmatpush2.msra.mxu0 0.0
  %8143 = vmatprep.subr.mxu0 0.0
  %8144 = vmatpush2.msra.mxu0 0.0
  %8145 = vmatprep.subr.mxu0 0.0
  %8146 = vmatpush2.msra.mxu0 0.0
  %8147 = vmatprep.subr.mxu0 0.0
  %8148 = vmatpush2.msra.mxu0 0.0
  %8149 = vmatprep.subr.mxu0 0.0
  %8150 = vmatpush2.msra.mxu0 0.0
  %8151 = vmatprep.subr.mxu0 0.0
  %8152 = vmatpush2.msra.mxu0 0.0
  %8153 = vmatprep.subr.mxu0 0.0
  %8154 = vmatpush2.msra.mxu0 0.0
  %8155 = vmatprep.subr.mxu0 0.0
  %8156 = vmatpush2.msra.mxu0 0.0
  %8157 = vmatprep.subr.mxu0 0.0
  %8158 = vmatpush2.msra.mxu0 0.0
  %8159 = vmatprep.subr.mxu0 0.0
  %8160 = vmatpush2.msra.mxu0 0.0
  %8161 = vmatprep.subr.mxu0 0.0
  %8162 = vmatpush2.msra.mxu0 0.0
  %8163 = vmatprep.subr.mxu0 0.0
  %8164 = vmatpush2.msra.mxu0 0.0
  %8165 = vmatprep.subr.mxu0 0.0
  %8166 = vmatpush2.msra.mxu0 0.0
  %8167 = vmatprep.subr.mxu0 0.0
  %8168 = vmatpush2.msra.mxu0 0.0
  %8169 = vmatprep.subr.mxu0 0.0
  %8170 = vmatpush2.msra.mxu0 0.0
  %8171 = vmatprep.subr.mxu0 0.0
  %8172 = vmatpush2.msra.mxu0 0.0
  %8173 = vmatprep.mubr.f32.mxu0 0.0
  %8174 = vmatmul.mubr.f32.gmra.mxu0 %v7367
  %v8175 = vpop.f32.mrf.mxu0
  %v8176 = vadd.f32 0.0, %v8175
  %v8177 = vpop.f32.mrf.mxu0
  %8178 = vdwg.mxu0
  %v8179 = vadd.f32 %v8092, %v8176
  %v8180 = vld [vmem:[%s1354] sm:$0xff]
  %v8181 = vld [vmem:[%s1354 + $0x8] sm:$0xff]
  %v8182 = vld [vmem:[%s1354 + $0x10] sm:$0xff]
  %v8183 = vld [vmem:[%s1354 + $0x18] sm:$0xff]
  %v8184 = vld [vmem:[%s1354 + $0x20] sm:$0xff]
  %v8185 = vld [vmem:[%s1354 + $0x28] sm:$0xff]
  %v8186 = vld [vmem:[%s1354 + $0x30] sm:$0xff]
  %v8187 = vld [vmem:[%s1354 + $0x38] sm:$0xff]
  %v8188 = vld [vmem:[%s1354 + $0x40] sm:$0xff]
  %v8189 = vld [vmem:[%s1354 + $0x48] sm:$0xff]
  %v8190 = vld [vmem:[%s1354 + $0x50] sm:$0xff]
  %v8191 = vld [vmem:[%s1354 + $0x58] sm:$0xff]
  %v8192 = vld [vmem:[%s1354 + $0x60] sm:$0xff]
  %v8193 = vld [vmem:[%s1354 + $0x68] sm:$0xff]
  %v8194 = vld [vmem:[%s1354 + $0x70] sm:$0xff]
  %v8195 = vld [vmem:[%s1354 + $0x78] sm:$0xff]
  %8196 = vmatprep.subr.mxu0 0.0
  %8197 = vmatpush1.msra.mxu0 %v8195
  %8198 = vmatprep.subr.mxu0 0.0
  %8199 = vmatpush1.msra.mxu0 %v8194
  %8200 = vmatprep.subr.mxu0 0.0
  %8201 = vmatpush1.msra.mxu0 %v8193
  %8202 = vmatprep.subr.mxu0 0.0
  %8203 = vmatpush1.msra.mxu0 %v8192
  %8204 = vmatprep.subr.mxu0 0.0
  %8205 = vmatpush1.msra.mxu0 %v8191
  %8206 = vmatprep.subr.mxu0 0.0
  %8207 = vmatpush1.msra.mxu0 %v8190
  %8208 = vmatprep.subr.mxu0 0.0
  %8209 = vmatpush1.msra.mxu0 %v8189
  %8210 = vmatprep.subr.mxu0 0.0
  %8211 = vmatpush1.msra.mxu0 %v8188
  %8212 = vmatprep.subr.mxu0 0.0
  %8213 = vmatpush1.msra.mxu0 %v8187
  %8214 = vmatprep.subr.mxu0 0.0
  %8215 = vmatpush1.msra.mxu0 %v8186
  %8216 = vmatprep.subr.mxu0 0.0
  %8217 = vmatpush1.msra.mxu0 %v8185
  %8218 = vmatprep.subr.mxu0 0.0
  %8219 = vmatpush1.msra.mxu0 %v8184
  %8220 = vmatprep.subr.mxu0 0.0
  %8221 = vmatpush1.msra.mxu0 %v8183
  %8222 = vmatprep.subr.mxu0 0.0
  %8223 = vmatpush1.msra.mxu0 %v8182
  %8224 = vmatprep.subr.mxu0 0.0
  %8225 = vmatpush1.msra.mxu0 %v8181
  %8226 = vmatprep.subr.mxu0 0.0
  %8227 = vmatpush1.msra.mxu0 %v8180
  %8228 = vmatprep.subr.mxu0 0.0
  %8229 = vmatpush2.msra.mxu0 0.0
  %8230 = vmatprep.subr.mxu0 0.0
  %8231 = vmatpush2.msra.mxu0 0.0
  %8232 = vmatprep.subr.mxu0 0.0
  %8233 = vmatpush2.msra.mxu0 0.0
  %8234 = vmatprep.subr.mxu0 0.0
  %8235 = vmatpush2.msra.mxu0 0.0
  %8236 = vmatprep.subr.mxu0 0.0
  %8237 = vmatpush2.msra.mxu0 0.0
  %8238 = vmatprep.subr.mxu0 0.0
  %8239 = vmatpush2.msra.mxu0 0.0
  %8240 = vmatprep.subr.mxu0 0.0
  %8241 = vmatpush2.msra.mxu0 0.0
  %8242 = vmatprep.subr.mxu0 0.0
  %8243 = vmatpush2.msra.mxu0 0.0
  %8244 = vmatprep.subr.mxu0 0.0
  %8245 = vmatpush2.msra.mxu0 0.0
  %8246 = vmatprep.subr.mxu0 0.0
  %8247 = vmatpush2.msra.mxu0 0.0
  %8248 = vmatprep.subr.mxu0 0.0
  %8249 = vmatpush2.msra.mxu0 0.0
  %8250 = vmatprep.subr.mxu0 0.0
  %8251 = vmatpush2.msra.mxu0 0.0
  %8252 = vmatprep.subr.mxu0 0.0
  %8253 = vmatpush2.msra.mxu0 0.0
  %8254 = vmatprep.subr.mxu0 0.0
  %8255 = vmatpush2.msra.mxu0 0.0
  %8256 = vmatprep.subr.mxu0 0.0
  %8257 = vmatpush2.msra.mxu0 0.0
  %8258 = vmatprep.subr.mxu0 0.0
  %8259 = vmatpush2.msra.mxu0 0.0
  %8260 = vmatprep.mubr.f32.mxu0 0.0
  %8261 = vmatmul.mubr.f32.gmra.mxu0 %v7508
  %v8262 = vpop.f32.mrf.mxu0
  %v8263 = vadd.f32 0.0, %v8262
  %v8264 = vpop.f32.mrf.mxu0
  %8265 = vdwg.mxu0
  %v8266 = vadd.f32 %v8179, %v8263
  %v8267 = vld [vmem:[%s1442] sm:$0xff]
  %v8268 = vld [vmem:[%s1442 + $0x8] sm:$0xff]
  %v8269 = vld [vmem:[%s1442 + $0x10] sm:$0xff]
  %v8270 = vld [vmem:[%s1442 + $0x18] sm:$0xff]
  %v8271 = vld [vmem:[%s1442 + $0x20] sm:$0xff]
  %v8272 = vld [vmem:[%s1442 + $0x28] sm:$0xff]
  %v8273 = vld [vmem:[%s1442 + $0x30] sm:$0xff]
  %v8274 = vld [vmem:[%s1442 + $0x38] sm:$0xff]
  %v8275 = vld [vmem:[%s1442 + $0x40] sm:$0xff]
  %v8276 = vld [vmem:[%s1442 + $0x48] sm:$0xff]
  %v8277 = vld [vmem:[%s1442 + $0x50] sm:$0xff]
  %v8278 = vld [vmem:[%s1442 + $0x58] sm:$0xff]
  %v8279 = vld [vmem:[%s1442 + $0x60] sm:$0xff]
  %v8280 = vld [vmem:[%s1442 + $0x68] sm:$0xff]
  %v8281 = vld [vmem:[%s1442 + $0x70] sm:$0xff]
  %v8282 = vld [vmem:[%s1442 + $0x78] sm:$0xff]
  %8283 = vmatprep.subr.mxu0 0.0
  %8284 = vmatpush1.msra.mxu0 %v8282
  %8285 = vmatprep.subr.mxu0 0.0
  %8286 = vmatpush1.msra.mxu0 %v8281
  %8287 = vmatprep.subr.mxu0 0.0
  %8288 = vmatpush1.msra.mxu0 %v8280
  %8289 = vmatprep.subr.mxu0 0.0
  %8290 = vmatpush1.msra.mxu0 %v8279
  %8291 = vmatprep.subr.mxu0 0.0
  %8292 = vmatpush1.msra.mxu0 %v8278
  %8293 = vmatprep.subr.mxu0 0.0
  %8294 = vmatpush1.msra.mxu0 %v8277
  %8295 = vmatprep.subr.mxu0 0.0
  %8296 = vmatpush1.msra.mxu0 %v8276
  %8297 = vmatprep.subr.mxu0 0.0
  %8298 = vmatpush1.msra.mxu0 %v8275
  %8299 = vmatprep.subr.mxu0 0.0
  %8300 = vmatpush1.msra.mxu0 %v8274
  %8301 = vmatprep.subr.mxu0 0.0
  %8302 = vmatpush1.msra.mxu0 %v8273
  %8303 = vmatprep.subr.mxu0 0.0
  %8304 = vmatpush1.msra.mxu0 %v8272
  %8305 = vmatprep.subr.mxu0 0.0
  %8306 = vmatpush1.msra.mxu0 %v8271
  %8307 = vmatprep.subr.mxu0 0.0
  %8308 = vmatpush1.msra.mxu0 %v8270
  %8309 = vmatprep.subr.mxu0 0.0
  %8310 = vmatpush1.msra.mxu0 %v8269
  %8311 = vmatprep.subr.mxu0 0.0
  %8312 = vmatpush1.msra.mxu0 %v8268
  %8313 = vmatprep.subr.mxu0 0.0
  %8314 = vmatpush1.msra.mxu0 %v8267
  %8315 = vmatprep.subr.mxu0 0.0
  %8316 = vmatpush2.msra.mxu0 0.0
  %8317 = vmatprep.subr.mxu0 0.0
  %8318 = vmatpush2.msra.mxu0 0.0
  %8319 = vmatprep.subr.mxu0 0.0
  %8320 = vmatpush2.msra.mxu0 0.0
  %8321 = vmatprep.subr.mxu0 0.0
  %8322 = vmatpush2.msra.mxu0 0.0
  %8323 = vmatprep.subr.mxu0 0.0
  %8324 = vmatpush2.msra.mxu0 0.0
  %8325 = vmatprep.subr.mxu0 0.0
  %8326 = vmatpush2.msra.mxu0 0.0
  %8327 = vmatprep.subr.mxu0 0.0
  %8328 = vmatpush2.msra.mxu0 0.0
  %8329 = vmatprep.subr.mxu0 0.0
  %8330 = vmatpush2.msra.mxu0 0.0
  %8331 = vmatprep.subr.mxu0 0.0
  %8332 = vmatpush2.msra.mxu0 0.0
  %8333 = vmatprep.subr.mxu0 0.0
  %8334 = vmatpush2.msra.mxu0 0.0
  %8335 = vmatprep.subr.mxu0 0.0
  %8336 = vmatpush2.msra.mxu0 0.0
  %8337 = vmatprep.subr.mxu0 0.0
  %8338 = vmatpush2.msra.mxu0 0.0
  %8339 = vmatprep.subr.mxu0 0.0
  %8340 = vmatpush2.msra.mxu0 0.0
  %8341 = vmatprep.subr.mxu0 0.0
  %8342 = vmatpush2.msra.mxu0 0.0
  %8343 = vmatprep.subr.mxu0 0.0
  %8344 = vmatpush2.msra.mxu0 0.0
  %8345 = vmatprep.subr.mxu0 0.0
  %8346 = vmatpush2.msra.mxu0 0.0
  %8347 = vmatprep.mubr.f32.mxu0 0.0
  %8348 = vmatmul.mubr.f32.gmra.mxu0 %v7651
  %v8349 = vpop.f32.mrf.mxu0
  %v8350 = vadd.f32 0.0, %v8349
  %v8351 = vpop.f32.mrf.mxu0
  %8352 = vdwg.mxu0
  %v8353 = vadd.f32 %v8266, %v8350
  %v8354 = vld [vmem:[%s9] sm:$0x1]
  %v8356 = vlaneseq
  %v8357 = vshrl.u32 %v8356, 7
  %v8358 = vsub.s32 0, %v8357
  %v8359 = vrot.slane %v8354, %v8358
  %v8361 = vadd.f32 %v8353, %v8359
  %v8362 = vld [vmem:[%s10] sm:$0xff]
  %v8363 = vld [vmem:[%s10 + $0x8] sm:$0xff]
  %v8364 = vld [vmem:[%s10 + $0x10] sm:$0xff]
  %v8365 = vld [vmem:[%s10 + $0x18] sm:$0xff]
  %v8366 = vld [vmem:[%s10 + $0x20] sm:$0xff]
  %v8367 = vld [vmem:[%s10 + $0x28] sm:$0xff]
  %v8368 = vld [vmem:[%s10 + $0x30] sm:$0xff]
  %v8369 = vld [vmem:[%s10 + $0x38] sm:$0xff]
  %v8370 = vld [vmem:[%s10 + $0x40] sm:$0xff]
  %v8371 = vld [vmem:[%s10 + $0x48] sm:$0xff]
  %v8372 = vld [vmem:[%s10 + $0x50] sm:$0xff]
  %v8373 = vld [vmem:[%s10 + $0x58] sm:$0xff]
  %v8374 = vld [vmem:[%s10 + $0x60] sm:$0xff]
  %v8375 = vld [vmem:[%s10 + $0x68] sm:$0xff]
  %v8376 = vld [vmem:[%s10 + $0x70] sm:$0xff]
  %v8377 = vld [vmem:[%s10 + $0x78] sm:$0xff]
  %v8378 = vld [vmem:[%s1554] sm:$0xff]
  %v8379 = vld [vmem:[%s1554 + $0x8] sm:$0xff]
  %v8380 = vld [vmem:[%s1554 + $0x10] sm:$0xff]
  %v8381 = vld [vmem:[%s1554 + $0x18] sm:$0xff]
  %v8382 = vld [vmem:[%s1554 + $0x20] sm:$0xff]
  %v8383 = vld [vmem:[%s1554 + $0x28] sm:$0xff]
  %v8384 = vld [vmem:[%s1554 + $0x30] sm:$0xff]
  %v8385 = vld [vmem:[%s1554 + $0x38] sm:$0xff]
  %v8386 = vld [vmem:[%s1554 + $0x40] sm:$0xff]
  %v8387 = vld [vmem:[%s1554 + $0x48] sm:$0xff]
  %v8388 = vld [vmem:[%s1554 + $0x50] sm:$0xff]
  %v8389 = vld [vmem:[%s1554 + $0x58] sm:$0xff]
  %v8390 = vld [vmem:[%s1554 + $0x60] sm:$0xff]
  %v8391 = vld [vmem:[%s1554 + $0x68] sm:$0xff]
  %v8392 = vld [vmem:[%s1554 + $0x70] sm:$0xff]
  %v8393 = vld [vmem:[%s1554 + $0x78] sm:$0xff]
  %v8395 = vsel %vm1571, %v8361, 0
  %8397 = vmatprep.subr.mxu0 0.0
  %8398 = vmatpush1.msra.mxu0 0.0
  %8399 = vmatprep.subr.mxu0 0.0
  %8400 = vmatpush1.msra.mxu0 0.0
  %8401 = vmatprep.subr.mxu0 0.0
  %8402 = vmatpush1.msra.mxu0 0.0
  %8403 = vmatprep.subr.mxu0 0.0
  %8404 = vmatpush1.msra.mxu0 0.0
  %8405 = vmatprep.subr.mxu0 0.0
  %8406 = vmatpush1.msra.mxu0 0.0
  %8407 = vmatprep.subr.mxu0 0.0
  %8408 = vmatpush1.msra.mxu0 0.0
  %8409 = vmatprep.subr.mxu0 0.0
  %8410 = vmatpush1.msra.mxu0 0.0
  %8411 = vmatprep.subr.mxu0 0.0
  %8412 = vmatpush1.msra.mxu0 0.0
  %8413 = vmatprep.subr.mxu0 %v8393
  %8414 = vmatpush1.msra.mxu0 %v8392
  %8415 = vmatprep.subr.mxu0 %v8391
  %8416 = vmatpush1.msra.mxu0 %v8390
  %8417 = vmatprep.subr.mxu0 %v8389
  %8418 = vmatpush1.msra.mxu0 %v8388
  %8419 = vmatprep.subr.mxu0 %v8387
  %8420 = vmatpush1.msra.mxu0 %v8386
  %8421 = vmatprep.subr.mxu0 %v8385
  %8422 = vmatpush1.msra.mxu0 %v8384
  %8423 = vmatprep.subr.mxu0 %v8383
  %8424 = vmatpush1.msra.mxu0 %v8382
  %8425 = vmatprep.subr.mxu0 %v8381
  %8426 = vmatpush1.msra.mxu0 %v8380
  %8427 = vmatprep.subr.mxu0 %v8379
  %8428 = vmatpush1.msra.mxu0 %v8378
  %8429 = vmatprep.subr.mxu0 0.0
  %8430 = vmatpush2.msra.mxu0 0.0
  %8431 = vmatprep.subr.mxu0 0.0
  %8432 = vmatpush2.msra.mxu0 0.0
  %8433 = vmatprep.subr.mxu0 0.0
  %8434 = vmatpush2.msra.mxu0 0.0
  %8435 = vmatprep.subr.mxu0 0.0
  %8436 = vmatpush2.msra.mxu0 0.0
  %8437 = vmatprep.subr.mxu0 0.0
  %8438 = vmatpush2.msra.mxu0 0.0
  %8439 = vmatprep.subr.mxu0 0.0
  %8440 = vmatpush2.msra.mxu0 0.0
  %8441 = vmatprep.subr.mxu0 0.0
  %8442 = vmatpush2.msra.mxu0 0.0
  %8443 = vmatprep.subr.mxu0 0.0
  %8444 = vmatpush2.msra.mxu0 0.0
  %8445 = vmatprep.subr.mxu0 0.0
  %8446 = vmatpush2.msra.mxu0 0.0
  %8447 = vmatprep.subr.mxu0 0.0
  %8448 = vmatpush2.msra.mxu0 0.0
  %8449 = vmatprep.subr.mxu0 0.0
  %8450 = vmatpush2.msra.mxu0 0.0
  %8451 = vmatprep.subr.mxu0 0.0
  %8452 = vmatpush2.msra.mxu0 0.0
  %8453 = vmatprep.subr.mxu0 0.0
  %8454 = vmatpush2.msra.mxu0 0.0
  %8455 = vmatprep.subr.mxu0 0.0
  %8456 = vmatpush2.msra.mxu0 0.0
  %8457 = vmatprep.subr.mxu0 0.0
  %8458 = vmatpush2.msra.mxu0 0.0
  %8459 = vmatprep.subr.mxu0 0.0
  %8460 = vmatpush2.msra.mxu0 0.0
  %8461 = vmatprep.mubr.f32.mxu0 0.0
  %8462 = vmatmul.mubr.f32.gmra.mxu0 %v8395
  %v8463 = vpop.f32.mrf.mxu0
  %v8464 = vadd.f32 0.0, %v8463
  %v8465 = vpop.f32.mrf.mxu0
  %v8466 = vadd.f32 0.0, %v8465
  %8467 = vdwg.mxu0
  %v8469 = vsel %vm1571, %v7833, 0
  %8471 = vmatprep.subr.mxu0 0.0
  %8472 = vmatpush1.msra.mxu0 0.0
  %8473 = vmatprep.subr.mxu0 0.0
  %8474 = vmatpush1.msra.mxu0 0.0
  %8475 = vmatprep.subr.mxu0 0.0
  %8476 = vmatpush1.msra.mxu0 0.0
  %8477 = vmatprep.subr.mxu0 0.0
  %8478 = vmatpush1.msra.mxu0 0.0
  %8479 = vmatprep.subr.mxu0 0.0
  %8480 = vmatpush1.msra.mxu0 0.0
  %8481 = vmatprep.subr.mxu0 0.0
  %8482 = vmatpush1.msra.mxu0 0.0
  %8483 = vmatprep.subr.mxu0 0.0
  %8484 = vmatpush1.msra.mxu0 0.0
  %8485 = vmatprep.subr.mxu0 0.0
  %8486 = vmatpush1.msra.mxu0 0.0
  %8487 = vmatprep.subr.mxu0 %v8377
  %8488 = vmatpush1.msra.mxu0 %v8376
  %8489 = vmatprep.subr.mxu0 %v8375
  %8490 = vmatpush1.msra.mxu0 %v8374
  %8491 = vmatprep.subr.mxu0 %v8373
  %8492 = vmatpush1.msra.mxu0 %v8372
  %8493 = vmatprep.subr.mxu0 %v8371
  %8494 = vmatpush1.msra.mxu0 %v8370
  %8495 = vmatprep.subr.mxu0 %v8369
  %8496 = vmatpush1.msra.mxu0 %v8368
  %8497 = vmatprep.subr.mxu0 %v8367
  %8498 = vmatpush1.msra.mxu0 %v8366
  %8499 = vmatprep.subr.mxu0 %v8365
  %8500 = vmatpush1.msra.mxu0 %v8364
  %8501 = vmatprep.subr.mxu0 %v8363
  %8502 = vmatpush1.msra.mxu0 %v8362
  %8503 = vmatprep.subr.mxu0 0.0
  %8504 = vmatpush2.msra.mxu0 0.0
  %8505 = vmatprep.subr.mxu0 0.0
  %8506 = vmatpush2.msra.mxu0 0.0
  %8507 = vmatprep.subr.mxu0 0.0
  %8508 = vmatpush2.msra.mxu0 0.0
  %8509 = vmatprep.subr.mxu0 0.0
  %8510 = vmatpush2.msra.mxu0 0.0
  %8511 = vmatprep.subr.mxu0 0.0
  %8512 = vmatpush2.msra.mxu0 0.0
  %8513 = vmatprep.subr.mxu0 0.0
  %8514 = vmatpush2.msra.mxu0 0.0
  %8515 = vmatprep.subr.mxu0 0.0
  %8516 = vmatpush2.msra.mxu0 0.0
  %8517 = vmatprep.subr.mxu0 0.0
  %8518 = vmatpush2.msra.mxu0 0.0
  %8519 = vmatprep.subr.mxu0 0.0
  %8520 = vmatpush2.msra.mxu0 0.0
  %8521 = vmatprep.subr.mxu0 0.0
  %8522 = vmatpush2.msra.mxu0 0.0
  %8523 = vmatprep.subr.mxu0 0.0
  %8524 = vmatpush2.msra.mxu0 0.0
  %8525 = vmatprep.subr.mxu0 0.0
  %8526 = vmatpush2.msra.mxu0 0.0
  %8527 = vmatprep.subr.mxu0 0.0
  %8528 = vmatpush2.msra.mxu0 0.0
  %8529 = vmatprep.subr.mxu0 0.0
  %8530 = vmatpush2.msra.mxu0 0.0
  %8531 = vmatprep.subr.mxu0 0.0
  %8532 = vmatpush2.msra.mxu0 0.0
  %8533 = vmatprep.subr.mxu0 0.0
  %8534 = vmatpush2.msra.mxu0 0.0
  %8535 = vmatprep.mubr.f32.mxu0 0.0
  %8536 = vmatmul.mubr.f32.gmra.mxu0 %v8469
  %v8537 = vpop.f32.mrf.mxu0
  %v8538 = vadd.f32 %v8464, %v8537
  %v8539 = vpop.f32.mrf.mxu0
  %v8540 = vadd.f32 %v8466, %v8539
  %8541 = vdwg.mxu0
  %v8542 = vld [vmem:[%s11] sm:$0xff]
  %v8543 = vld [vmem:[%s11 + $0x8] sm:$0xff]
  %v8544 = vld [vmem:[%s11 + $0x10] sm:$0xff]
  %v8545 = vld [vmem:[%s11 + $0x18] sm:$0xff]
  %v8546 = vld [vmem:[%s11 + $0x20] sm:$0xff]
  %v8547 = vld [vmem:[%s11 + $0x28] sm:$0xff]
  %v8548 = vld [vmem:[%s11 + $0x30] sm:$0xff]
  %v8549 = vld [vmem:[%s11 + $0x38] sm:$0xff]
  %v8550 = vld [vmem:[%s11 + $0x40] sm:$0xff]
  %v8551 = vld [vmem:[%s11 + $0x48] sm:$0xff]
  %v8552 = vld [vmem:[%s11 + $0x50] sm:$0xff]
  %v8553 = vld [vmem:[%s11 + $0x58] sm:$0xff]
  %v8554 = vld [vmem:[%s11 + $0x60] sm:$0xff]
  %v8555 = vld [vmem:[%s11 + $0x68] sm:$0xff]
  %v8556 = vld [vmem:[%s11 + $0x70] sm:$0xff]
  %v8557 = vld [vmem:[%s11 + $0x78] sm:$0xff]
  %8558 = vmatprep.subr.mxu0 0.0
  %8559 = vmatpush1.msra.mxu0 0.0
  %8560 = vmatprep.subr.mxu0 0.0
  %8561 = vmatpush1.msra.mxu0 0.0
  %8562 = vmatprep.subr.mxu0 0.0
  %8563 = vmatpush1.msra.mxu0 0.0
  %8564 = vmatprep.subr.mxu0 0.0
  %8565 = vmatpush1.msra.mxu0 0.0
  %8566 = vmatprep.subr.mxu0 0.0
  %8567 = vmatpush1.msra.mxu0 0.0
  %8568 = vmatprep.subr.mxu0 0.0
  %8569 = vmatpush1.msra.mxu0 0.0
  %8570 = vmatprep.subr.mxu0 0.0
  %8571 = vmatpush1.msra.mxu0 0.0
  %8572 = vmatprep.subr.mxu0 0.0
  %8573 = vmatpush1.msra.mxu0 0.0
  %8574 = vmatprep.subr.mxu0 %v8557
  %8575 = vmatpush1.msra.mxu0 %v8556
  %8576 = vmatprep.subr.mxu0 %v8555
  %8577 = vmatpush1.msra.mxu0 %v8554
  %8578 = vmatprep.subr.mxu0 %v8553
  %8579 = vmatpush1.msra.mxu0 %v8552
  %8580 = vmatprep.subr.mxu0 %v8551
  %8581 = vmatpush1.msra.mxu0 %v8550
  %8582 = vmatprep.subr.mxu0 %v8549
  %8583 = vmatpush1.msra.mxu0 %v8548
  %8584 = vmatprep.subr.mxu0 %v8547
  %8585 = vmatpush1.msra.mxu0 %v8546
  %8586 = vmatprep.subr.mxu0 %v8545
  %8587 = vmatpush1.msra.mxu0 %v8544
  %8588 = vmatprep.subr.mxu0 %v8543
  %8589 = vmatpush1.msra.mxu0 %v8542
  %8590 = vmatprep.subr.mxu0 0.0
  %8591 = vmatpush2.msra.mxu0 0.0
  %8592 = vmatprep.subr.mxu0 0.0
  %8593 = vmatpush2.msra.mxu0 0.0
  %8594 = vmatprep.subr.mxu0 0.0
  %8595 = vmatpush2.msra.mxu0 0.0
  %8596 = vmatprep.subr.mxu0 0.0
  %8597 = vmatpush2.msra.mxu0 0.0
  %8598 = vmatprep.subr.mxu0 0.0
  %8599 = vmatpush2.msra.mxu0 0.0
  %8600 = vmatprep.subr.mxu0 0.0
  %8601 = vmatpush2.msra.mxu0 0.0
  %8602 = vmatprep.subr.mxu0 0.0
  %8603 = vmatpush2.msra.mxu0 0.0
  %8604 = vmatprep.subr.mxu0 0.0
  %8605 = vmatpush2.msra.mxu0 0.0
  %8606 = vmatprep.subr.mxu0 0.0
  %8607 = vmatpush2.msra.mxu0 0.0
  %8608 = vmatprep.subr.mxu0 0.0
  %8609 = vmatpush2.msra.mxu0 0.0
  %8610 = vmatprep.subr.mxu0 0.0
  %8611 = vmatpush2.msra.mxu0 0.0
  %8612 = vmatprep.subr.mxu0 0.0
  %8613 = vmatpush2.msra.mxu0 0.0
  %8614 = vmatprep.subr.mxu0 0.0
  %8615 = vmatpush2.msra.mxu0 0.0
  %8616 = vmatprep.subr.mxu0 0.0
  %8617 = vmatpush2.msra.mxu0 0.0
  %8618 = vmatprep.subr.mxu0 0.0
  %8619 = vmatpush2.msra.mxu0 0.0
  %8620 = vmatprep.subr.mxu0 0.0
  %8621 = vmatpush2.msra.mxu0 0.0
  %8622 = vmatprep.mubr.f32.mxu0 0.0
  %8623 = vmatmul.mubr.f32.gmra.mxu0 %v6408
  %v8624 = vpop.f32.mrf.mxu0
  %v8625 = vadd.f32 0.0, %v8624
  %v8626 = vpop.f32.mrf.mxu0
  %v8627 = vadd.f32 0.0, %v8626
  %8628 = vdwg.mxu0
  %v8629 = vadd.f32 %v8538, %v8625
  %v8630 = vadd.f32 %v8540, %v8627
  %v8631 = vld [vmem:[%s12] sm:$0x3]
  %v8633 = vlaneseq
  %v8634 = vshrl.u32 %v8633, 7
  %v8635 = vsub.s32 0, %v8634
  %v8636 = vrot.slane %v8631, %v8635
  %v8637 = vlaneseq
  %v8638 = vshrl.u32 %v8637, 7
  %v8639 = vsub.s32 1, %v8638
  %v8640 = vrot.slane %v8631, %v8639
  %v8643 = vadd.f32 %v8629, %v8636
  %v8644 = vadd.f32 %v8630, %v8640
  %v8645 = vxor.u32 %v8643, 2147483648
  %v8646 = vmul.f32 %v8645, 1.442695
  %v8647 = vpow.pop %v8646
  %v8648 = vadd.f32 %v8647, 1.0
  %v8649 = vrcp.pop %v8648
  %v8650 = vmul.f32 1.0, %v8649
  %v8651 = vtanh.pop %v8644
  %v8652 = vxor.u32 %v8644, 2147483648
  %v8653 = vmul.f32 %v8652, 1.442695
  %v8654 = vpow.pop %v8653
  %v8655 = vadd.f32 %v8654, 1.0
  %v8656 = vrcp.pop %v8655
  %v8657 = vmul.f32 1.0, %v8656
  %v8658 = vmul.f32 %v8650, %v6393
  %v8659 = vmul.f32 %v8650, %v8651
  %8661 = vrot.lane.b32.xlu0 %v8659, 64
  %v8662 = vpop.permute.xlu0 %8661
  %v8664 = vadd.f32 %v8658, %v8662
  %v8665 = vtanh.pop %v8664
  %v8666 = vmul.f32 %v8657, %v8665
  %v8667 = vld [vmem:[%s14] sm:$0x1]
  %v8668 = vld [vmem:[%s13] sm:$0xff]
  %v8669 = vld [vmem:[%s13 + $0x8] sm:$0xff]
  %v8670 = vld [vmem:[%s13 + $0x10] sm:$0xff]
  %v8671 = vld [vmem:[%s13 + $0x18] sm:$0xff]
  %v8672 = vld [vmem:[%s13 + $0x20] sm:$0xff]
  %v8673 = vld [vmem:[%s13 + $0x28] sm:$0xff]
  %v8674 = vld [vmem:[%s13 + $0x30] sm:$0xff]
  %v8675 = vld [vmem:[%s13 + $0x38] sm:$0xff]
  %8677 = vrot.lane.b32.xlu0 %v8666, 64
  %v8678 = vpop.permute.xlu0 %8677
  %v8679 = vsel %vm1571, %v8678, 0
  %8681 = vmatprep.subr.mxu0 0.0
  %8682 = vmatpush1.msra.mxu0 0.0
  %8683 = vmatprep.subr.mxu0 0.0
  %8684 = vmatpush1.msra.mxu0 0.0
  %8685 = vmatprep.subr.mxu0 0.0
  %8686 = vmatpush1.msra.mxu0 0.0
  %8687 = vmatprep.subr.mxu0 0.0
  %8688 = vmatpush1.msra.mxu0 0.0
  %8689 = vmatprep.subr.mxu0 0.0
  %8690 = vmatpush1.msra.mxu0 0.0
  %8691 = vmatprep.subr.mxu0 0.0
  %8692 = vmatpush1.msra.mxu0 0.0
  %8693 = vmatprep.subr.mxu0 0.0
  %8694 = vmatpush1.msra.mxu0 0.0
  %8695 = vmatprep.subr.mxu0 0.0
  %8696 = vmatpush1.msra.mxu0 0.0
  %8697 = vmatprep.subr.mxu0 0.0
  %8698 = vmatpush1.msra.mxu0 %v8675
  %8699 = vmatprep.subr.mxu0 0.0
  %8700 = vmatpush1.msra.mxu0 %v8674
  %8701 = vmatprep.subr.mxu0 0.0
  %8702 = vmatpush1.msra.mxu0 %v8673
  %8703 = vmatprep.subr.mxu0 0.0
  %8704 = vmatpush1.msra.mxu0 %v8672
  %8705 = vmatprep.subr.mxu0 0.0
  %8706 = vmatpush1.msra.mxu0 %v8671
  %8707 = vmatprep.subr.mxu0 0.0
  %8708 = vmatpush1.msra.mxu0 %v8670
  %8709 = vmatprep.subr.mxu0 0.0
  %8710 = vmatpush1.msra.mxu0 %v8669
  %8711 = vmatprep.subr.mxu0 0.0
  %8712 = vmatpush1.msra.mxu0 %v8668
  %8713 = vmatprep.subr.mxu0 0.0
  %8714 = vmatpush2.msra.mxu0 0.0
  %8715 = vmatprep.subr.mxu0 0.0
  %8716 = vmatpush2.msra.mxu0 0.0
  %8717 = vmatprep.subr.mxu0 0.0
  %8718 = vmatpush2.msra.mxu0 0.0
  %8719 = vmatprep.subr.mxu0 0.0
  %8720 = vmatpush2.msra.mxu0 0.0
  %8721 = vmatprep.subr.mxu0 0.0
  %8722 = vmatpush2.msra.mxu0 0.0
  %8723 = vmatprep.subr.mxu0 0.0
  %8724 = vmatpush2.msra.mxu0 0.0
  %8725 = vmatprep.subr.mxu0 0.0
  %8726 = vmatpush2.msra.mxu0 0.0
  %8727 = vmatprep.subr.mxu0 0.0
  %8728 = vmatpush2.msra.mxu0 0.0
  %8729 = vmatprep.subr.mxu0 0.0
  %8730 = vmatpush2.msra.mxu0 0.0
  %8731 = vmatprep.subr.mxu0 0.0
  %8732 = vmatpush2.msra.mxu0 0.0
  %8733 = vmatprep.subr.mxu0 0.0
  %8734 = vmatpush2.msra.mxu0 0.0
  %8735 = vmatprep.subr.mxu0 0.0
  %8736 = vmatpush2.msra.mxu0 0.0
  %8737 = vmatprep.subr.mxu0 0.0
  %8738 = vmatpush2.msra.mxu0 0.0
  %8739 = vmatprep.subr.mxu0 0.0
  %8740 = vmatpush2.msra.mxu0 0.0
  %8741 = vmatprep.subr.mxu0 0.0
  %8742 = vmatpush2.msra.mxu0 0.0
  %8743 = vmatprep.subr.mxu0 0.0
  %8744 = vmatpush2.msra.mxu0 0.0
  %8745 = vmatprep.mubr.f32.mxu0 0.0
  %8746 = vmatmul.mubr.f32.gmra.mxu0 %v8679
  %v8747 = vpop.f32.mrf.mxu0
  %v8748 = vadd.f32 0.0, %v8747
  %v8749 = vpop.f32.mrf.mxu0
  %8750 = vdwg.mxu0
  %v8751 = vadd.f32 %v8667, %v8748
  %v8752 = vld [vmem:[%s1933] sm:$0xff]
  %v8753 = vld [vmem:[%s1933 + $0x8] sm:$0xff]
  %v8754 = vld [vmem:[%s1933 + $0x10] sm:$0xff]
  %v8755 = vld [vmem:[%s1933 + $0x18] sm:$0xff]
  %v8756 = vld [vmem:[%s1933 + $0x20] sm:$0xff]
  %v8757 = vld [vmem:[%s1933 + $0x28] sm:$0xff]
  %v8758 = vld [vmem:[%s1933 + $0x30] sm:$0xff]
  %v8759 = vld [vmem:[%s1933 + $0x38] sm:$0xff]
  %v8760 = vrot.slane %v8666, 1
  %8761 = vrot.lane.b32.xlu0 %v8760, 64
  %v8762 = vpop.permute.xlu0 %8761
  %v8763 = vsel %vm1571, %v8762, 0
  %8765 = vmatprep.subr.mxu0 0.0
  %8766 = vmatpush1.msra.mxu0 0.0
  %8767 = vmatprep.subr.mxu0 0.0
  %8768 = vmatpush1.msra.mxu0 0.0
  %8769 = vmatprep.subr.mxu0 0.0
  %8770 = vmatpush1.msra.mxu0 0.0
  %8771 = vmatprep.subr.mxu0 0.0
  %8772 = vmatpush1.msra.mxu0 0.0
  %8773 = vmatprep.subr.mxu0 0.0
  %8774 = vmatpush1.msra.mxu0 0.0
  %8775 = vmatprep.subr.mxu0 0.0
  %8776 = vmatpush1.msra.mxu0 0.0
  %8777 = vmatprep.subr.mxu0 0.0
  %8778 = vmatpush1.msra.mxu0 0.0
  %8779 = vmatprep.subr.mxu0 0.0
  %8780 = vmatpush1.msra.mxu0 0.0
  %8781 = vmatprep.subr.mxu0 0.0
  %8782 = vmatpush1.msra.mxu0 %v8759
  %8783 = vmatprep.subr.mxu0 0.0
  %8784 = vmatpush1.msra.mxu0 %v8758
  %8785 = vmatprep.subr.mxu0 0.0
  %8786 = vmatpush1.msra.mxu0 %v8757
  %8787 = vmatprep.subr.mxu0 0.0
  %8788 = vmatpush1.msra.mxu0 %v8756
  %8789 = vmatprep.subr.mxu0 0.0
  %8790 = vmatpush1.msra.mxu0 %v8755
  %8791 = vmatprep.subr.mxu0 0.0
  %8792 = vmatpush1.msra.mxu0 %v8754
  %8793 = vmatprep.subr.mxu0 0.0
  %8794 = vmatpush1.msra.mxu0 %v8753
  %8795 = vmatprep.subr.mxu0 0.0
  %8796 = vmatpush1.msra.mxu0 %v8752
  %8797 = vmatprep.subr.mxu0 0.0
  %8798 = vmatpush2.msra.mxu0 0.0
  %8799 = vmatprep.subr.mxu0 0.0
  %8800 = vmatpush2.msra.mxu0 0.0
  %8801 = vmatprep.subr.mxu0 0.0
  %8802 = vmatpush2.msra.mxu0 0.0
  %8803 = vmatprep.subr.mxu0 0.0
  %8804 = vmatpush2.msra.mxu0 0.0
  %8805 = vmatprep.subr.mxu0 0.0
  %8806 = vmatpush2.msra.mxu0 0.0
  %8807 = vmatprep.subr.mxu0 0.0
  %8808 = vmatpush2.msra.mxu0 0.0
  %8809 = vmatprep.subr.mxu0 0.0
  %8810 = vmatpush2.msra.mxu0 0.0
  %8811 = vmatprep.subr.mxu0 0.0
  %8812 = vmatpush2.msra.mxu0 0.0
  %8813 = vmatprep.subr.mxu0 0.0
  %8814 = vmatpush2.msra.mxu0 0.0
  %8815 = vmatprep.subr.mxu0 0.0
  %8816 = vmatpush2.msra.mxu0 0.0
  %8817 = vmatprep.subr.mxu0 0.0
  %8818 = vmatpush2.msra.mxu0 0.0
  %8819 = vmatprep.subr.mxu0 0.0
  %8820 = vmatpush2.msra.mxu0 0.0
  %8821 = vmatprep.subr.mxu0 0.0
  %8822 = vmatpush2.msra.mxu0 0.0
  %8823 = vmatprep.subr.mxu0 0.0
  %8824 = vmatpush2.msra.mxu0 0.0
  %8825 = vmatprep.subr.mxu0 0.0
  %8826 = vmatpush2.msra.mxu0 0.0
  %8827 = vmatprep.subr.mxu0 0.0
  %8828 = vmatpush2.msra.mxu0 0.0
  %8829 = vmatprep.mubr.f32.mxu0 0.0
  %8830 = vmatmul.mubr.f32.gmra.mxu0 %v8763
  %v8831 = vpop.f32.mrf.mxu0
  %v8832 = vadd.f32 0.0, %v8831
  %v8833 = vpop.f32.mrf.mxu0
  %8834 = vdwg.mxu0
  %v8835 = vadd.f32 %v8751, %v8832
  %v8836 = vld [vmem:[%s2018] sm:$0xff]
  %v8837 = vld [vmem:[%s2018 + $0x8] sm:$0xff]
  %v8838 = vld [vmem:[%s2018 + $0x10] sm:$0xff]
  %v8839 = vld [vmem:[%s2018 + $0x18] sm:$0xff]
  %v8840 = vld [vmem:[%s2018 + $0x20] sm:$0xff]
  %v8841 = vld [vmem:[%s2018 + $0x28] sm:$0xff]
  %v8842 = vld [vmem:[%s2018 + $0x30] sm:$0xff]
  %v8843 = vld [vmem:[%s2018 + $0x38] sm:$0xff]
  %v8844 = vrot.slane %v8666, 2
  %8845 = vrot.lane.b32.xlu0 %v8844, 64
  %v8846 = vpop.permute.xlu0 %8845
  %v8847 = vsel %vm1571, %v8846, 0
  %8849 = vmatprep.subr.mxu0 0.0
  %8850 = vmatpush1.msra.mxu0 0.0
  %8851 = vmatprep.subr.mxu0 0.0
  %8852 = vmatpush1.msra.mxu0 0.0
  %8853 = vmatprep.subr.mxu0 0.0
  %8854 = vmatpush1.msra.mxu0 0.0
  %8855 = vmatprep.subr.mxu0 0.0
  %8856 = vmatpush1.msra.mxu0 0.0
  %8857 = vmatprep.subr.mxu0 0.0
  %8858 = vmatpush1.msra.mxu0 0.0
  %8859 = vmatprep.subr.mxu0 0.0
  %8860 = vmatpush1.msra.mxu0 0.0
  %8861 = vmatprep.subr.mxu0 0.0
  %8862 = vmatpush1.msra.mxu0 0.0
  %8863 = vmatprep.subr.mxu0 0.0
  %8864 = vmatpush1.msra.mxu0 0.0
  %8865 = vmatprep.subr.mxu0 0.0
  %8866 = vmatpush1.msra.mxu0 %v8843
  %8867 = vmatprep.subr.mxu0 0.0
  %8868 = vmatpush1.msra.mxu0 %v8842
  %8869 = vmatprep.subr.mxu0 0.0
  %8870 = vmatpush1.msra.mxu0 %v8841
  %8871 = vmatprep.subr.mxu0 0.0
  %8872 = vmatpush1.msra.mxu0 %v8840
  %8873 = vmatprep.subr.mxu0 0.0
  %8874 = vmatpush1.msra.mxu0 %v8839
  %8875 = vmatprep.subr.mxu0 0.0
  %8876 = vmatpush1.msra.mxu0 %v8838
  %8877 = vmatprep.subr.mxu0 0.0
  %8878 = vmatpush1.msra.mxu0 %v8837
  %8879 = vmatprep.subr.mxu0 0.0
  %8880 = vmatpush1.msra.mxu0 %v8836
  %8881 = vmatprep.subr.mxu0 0.0
  %8882 = vmatpush2.msra.mxu0 0.0
  %8883 = vmatprep.subr.mxu0 0.0
  %8884 = vmatpush2.msra.mxu0 0.0
  %8885 = vmatprep.subr.mxu0 0.0
  %8886 = vmatpush2.msra.mxu0 0.0
  %8887 = vmatprep.subr.mxu0 0.0
  %8888 = vmatpush2.msra.mxu0 0.0
  %8889 = vmatprep.subr.mxu0 0.0
  %8890 = vmatpush2.msra.mxu0 0.0
  %8891 = vmatprep.subr.mxu0 0.0
  %8892 = vmatpush2.msra.mxu0 0.0
  %8893 = vmatprep.subr.mxu0 0.0
  %8894 = vmatpush2.msra.mxu0 0.0
  %8895 = vmatprep.subr.mxu0 0.0
  %8896 = vmatpush2.msra.mxu0 0.0
  %8897 = vmatprep.subr.mxu0 0.0
  %8898 = vmatpush2.msra.mxu0 0.0
  %8899 = vmatprep.subr.mxu0 0.0
  %8900 = vmatpush2.msra.mxu0 0.0
  %8901 = vmatprep.subr.mxu0 0.0
  %8902 = vmatpush2.msra.mxu0 0.0
  %8903 = vmatprep.subr.mxu0 0.0
  %8904 = vmatpush2.msra.mxu0 0.0
  %8905 = vmatprep.subr.mxu0 0.0
  %8906 = vmatpush2.msra.mxu0 0.0
  %8907 = vmatprep.subr.mxu0 0.0
  %8908 = vmatpush2.msra.mxu0 0.0
  %8909 = vmatprep.subr.mxu0 0.0
  %8910 = vmatpush2.msra.mxu0 0.0
  %8911 = vmatprep.subr.mxu0 0.0
  %8912 = vmatpush2.msra.mxu0 0.0
  %8913 = vmatprep.mubr.f32.mxu0 0.0
  %8914 = vmatmul.mubr.f32.gmra.mxu0 %v8847
  %v8915 = vpop.f32.mrf.mxu0
  %v8916 = vadd.f32 0.0, %v8915
  %v8917 = vpop.f32.mrf.mxu0
  %8918 = vdwg.mxu0
  %v8919 = vadd.f32 %v8835, %v8916
  %v8920 = vld [vmem:[%s2103] sm:$0xff]
  %v8921 = vld [vmem:[%s2103 + $0x8] sm:$0xff]
  %v8922 = vld [vmem:[%s2103 + $0x10] sm:$0xff]
  %v8923 = vld [vmem:[%s2103 + $0x18] sm:$0xff]
  %v8924 = vld [vmem:[%s2103 + $0x20] sm:$0xff]
  %v8925 = vld [vmem:[%s2103 + $0x28] sm:$0xff]
  %v8926 = vld [vmem:[%s2103 + $0x30] sm:$0xff]
  %v8927 = vld [vmem:[%s2103 + $0x38] sm:$0xff]
  %v8928 = vrot.slane %v8666, 3
  %8929 = vrot.lane.b32.xlu0 %v8928, 64
  %v8930 = vpop.permute.xlu0 %8929
  %v8931 = vsel %vm1571, %v8930, 0
  %8933 = vmatprep.subr.mxu0 0.0
  %8934 = vmatpush1.msra.mxu0 0.0
  %8935 = vmatprep.subr.mxu0 0.0
  %8936 = vmatpush1.msra.mxu0 0.0
  %8937 = vmatprep.subr.mxu0 0.0
  %8938 = vmatpush1.msra.mxu0 0.0
  %8939 = vmatprep.subr.mxu0 0.0
  %8940 = vmatpush1.msra.mxu0 0.0
  %8941 = vmatprep.subr.mxu0 0.0
  %8942 = vmatpush1.msra.mxu0 0.0
  %8943 = vmatprep.subr.mxu0 0.0
  %8944 = vmatpush1.msra.mxu0 0.0
  %8945 = vmatprep.subr.mxu0 0.0
  %8946 = vmatpush1.msra.mxu0 0.0
  %8947 = vmatprep.subr.mxu0 0.0
  %8948 = vmatpush1.msra.mxu0 0.0
  %8949 = vmatprep.subr.mxu0 0.0
  %8950 = vmatpush1.msra.mxu0 %v8927
  %8951 = vmatprep.subr.mxu0 0.0
  %8952 = vmatpush1.msra.mxu0 %v8926
  %8953 = vmatprep.subr.mxu0 0.0
  %8954 = vmatpush1.msra.mxu0 %v8925
  %8955 = vmatprep.subr.mxu0 0.0
  %8956 = vmatpush1.msra.mxu0 %v8924
  %8957 = vmatprep.subr.mxu0 0.0
  %8958 = vmatpush1.msra.mxu0 %v8923
  %8959 = vmatprep.subr.mxu0 0.0
  %8960 = vmatpush1.msra.mxu0 %v8922
  %8961 = vmatprep.subr.mxu0 0.0
  %8962 = vmatpush1.msra.mxu0 %v8921
  %8963 = vmatprep.subr.mxu0 0.0
  %8964 = vmatpush1.msra.mxu0 %v8920
  %8965 = vmatprep.subr.mxu0 0.0
  %8966 = vmatpush2.msra.mxu0 0.0
  %8967 = vmatprep.subr.mxu0 0.0
  %8968 = vmatpush2.msra.mxu0 0.0
  %8969 = vmatprep.subr.mxu0 0.0
  %8970 = vmatpush2.msra.mxu0 0.0
  %8971 = vmatprep.subr.mxu0 0.0
  %8972 = vmatpush2.msra.mxu0 0.0
  %8973 = vmatprep.subr.mxu0 0.0
  %8974 = vmatpush2.msra.mxu0 0.0
  %8975 = vmatprep.subr.mxu0 0.0
  %8976 = vmatpush2.msra.mxu0 0.0
  %8977 = vmatprep.subr.mxu0 0.0
  %8978 = vmatpush2.msra.mxu0 0.0
  %8979 = vmatprep.subr.mxu0 0.0
  %8980 = vmatpush2.msra.mxu0 0.0
  %8981 = vmatprep.subr.mxu0 0.0
  %8982 = vmatpush2.msra.mxu0 0.0
  %8983 = vmatprep.subr.mxu0 0.0
  %8984 = vmatpush2.msra.mxu0 0.0
  %8985 = vmatprep.subr.mxu0 0.0
  %8986 = vmatpush2.msra.mxu0 0.0
  %8987 = vmatprep.subr.mxu0 0.0
  %8988 = vmatpush2.msra.mxu0 0.0
  %8989 = vmatprep.subr.mxu0 0.0
  %8990 = vmatpush2.msra.mxu0 0.0
  %8991 = vmatprep.subr.mxu0 0.0
  %8992 = vmatpush2.msra.mxu0 0.0
  %8993 = vmatprep.subr.mxu0 0.0
  %8994 = vmatpush2.msra.mxu0 0.0
  %8995 = vmatprep.subr.mxu0 0.0
  %8996 = vmatpush2.msra.mxu0 0.0
  %8997 = vmatprep.mubr.f32.mxu0 0.0
  %8998 = vmatmul.mubr.f32.gmra.mxu0 %v8931
  %v8999 = vpop.f32.mrf.mxu0
  %v9000 = vadd.f32 0.0, %v8999
  %v9001 = vpop.f32.mrf.mxu0
  %9002 = vdwg.mxu0
  %v9003 = vadd.f32 %v8919, %v9000
  %v9004 = vld [vmem:[%s2188] sm:$0xff]
  %v9005 = vld [vmem:[%s2188 + $0x8] sm:$0xff]
  %v9006 = vld [vmem:[%s2188 + $0x10] sm:$0xff]
  %v9007 = vld [vmem:[%s2188 + $0x18] sm:$0xff]
  %v9008 = vld [vmem:[%s2188 + $0x20] sm:$0xff]
  %v9009 = vld [vmem:[%s2188 + $0x28] sm:$0xff]
  %v9010 = vld [vmem:[%s2188 + $0x30] sm:$0xff]
  %v9011 = vld [vmem:[%s2188 + $0x38] sm:$0xff]
  %v9012 = vrot.slane %v8666, 4
  %9013 = vrot.lane.b32.xlu0 %v9012, 64
  %v9014 = vpop.permute.xlu0 %9013
  %v9015 = vsel %vm1571, %v9014, 0
  %9017 = vmatprep.subr.mxu0 0.0
  %9018 = vmatpush1.msra.mxu0 0.0
  %9019 = vmatprep.subr.mxu0 0.0
  %9020 = vmatpush1.msra.mxu0 0.0
  %9021 = vmatprep.subr.mxu0 0.0
  %9022 = vmatpush1.msra.mxu0 0.0
  %9023 = vmatprep.subr.mxu0 0.0
  %9024 = vmatpush1.msra.mxu0 0.0
  %9025 = vmatprep.subr.mxu0 0.0
  %9026 = vmatpush1.msra.mxu0 0.0
  %9027 = vmatprep.subr.mxu0 0.0
  %9028 = vmatpush1.msra.mxu0 0.0
  %9029 = vmatprep.subr.mxu0 0.0
  %9030 = vmatpush1.msra.mxu0 0.0
  %9031 = vmatprep.subr.mxu0 0.0
  %9032 = vmatpush1.msra.mxu0 0.0
  %9033 = vmatprep.subr.mxu0 0.0
  %9034 = vmatpush1.msra.mxu0 %v9011
  %9035 = vmatprep.subr.mxu0 0.0
  %9036 = vmatpush1.msra.mxu0 %v9010
  %9037 = vmatprep.subr.mxu0 0.0
  %9038 = vmatpush1.msra.mxu0 %v9009
  %9039 = vmatprep.subr.mxu0 0.0
  %9040 = vmatpush1.msra.mxu0 %v9008
  %9041 = vmatprep.subr.mxu0 0.0
  %9042 = vmatpush1.msra.mxu0 %v9007
  %9043 = vmatprep.subr.mxu0 0.0
  %9044 = vmatpush1.msra.mxu0 %v9006
  %9045 = vmatprep.subr.mxu0 0.0
  %9046 = vmatpush1.msra.mxu0 %v9005
  %9047 = vmatprep.subr.mxu0 0.0
  %9048 = vmatpush1.msra.mxu0 %v9004
  %9049 = vmatprep.subr.mxu0 0.0
  %9050 = vmatpush2.msra.mxu0 0.0
  %9051 = vmatprep.subr.mxu0 0.0
  %9052 = vmatpush2.msra.mxu0 0.0
  %9053 = vmatprep.subr.mxu0 0.0
  %9054 = vmatpush2.msra.mxu0 0.0
  %9055 = vmatprep.subr.mxu0 0.0
  %9056 = vmatpush2.msra.mxu0 0.0
  %9057 = vmatprep.subr.mxu0 0.0
  %9058 = vmatpush2.msra.mxu0 0.0
  %9059 = vmatprep.subr.mxu0 0.0
  %9060 = vmatpush2.msra.mxu0 0.0
  %9061 = vmatprep.subr.mxu0 0.0
  %9062 = vmatpush2.msra.mxu0 0.0
  %9063 = vmatprep.subr.mxu0 0.0
  %9064 = vmatpush2.msra.mxu0 0.0
  %9065 = vmatprep.subr.mxu0 0.0
  %9066 = vmatpush2.msra.mxu0 0.0
  %9067 = vmatprep.subr.mxu0 0.0
  %9068 = vmatpush2.msra.mxu0 0.0
  %9069 = vmatprep.subr.mxu0 0.0
  %9070 = vmatpush2.msra.mxu0 0.0
  %9071 = vmatprep.subr.mxu0 0.0
  %9072 = vmatpush2.msra.mxu0 0.0
  %9073 = vmatprep.subr.mxu0 0.0
  %9074 = vmatpush2.msra.mxu0 0.0
  %9075 = vmatprep.subr.mxu0 0.0
  %9076 = vmatpush2.msra.mxu0 0.0
  %9077 = vmatprep.subr.mxu0 0.0
  %9078 = vmatpush2.msra.mxu0 0.0
  %9079 = vmatprep.subr.mxu0 0.0
  %9080 = vmatpush2.msra.mxu0 0.0
  %9081 = vmatprep.mubr.f32.mxu0 0.0
  %9082 = vmatmul.mubr.f32.gmra.mxu0 %v9015
  %v9083 = vpop.f32.mrf.mxu0
  %v9084 = vadd.f32 0.0, %v9083
  %v9085 = vpop.f32.mrf.mxu0
  %9086 = vdwg.mxu0
  %v9087 = vadd.f32 %v9003, %v9084
  %v9088 = vld [vmem:[%s15] sm:$0xff]
  %v9089 = vld [vmem:[%s15 + $0x8] sm:$0xff]
  %v9090 = vld [vmem:[%s15 + $0x10] sm:$0xff]
  %v9091 = vld [vmem:[%s15 + $0x18] sm:$0xff]
  %v9092 = vld [vmem:[%s16] sm:$0x1]
  %v9094 = vsel %vm2278, %v9087, 0
  %9096 = vmatprep.subr.mxu0 0.0
  %9097 = vmatpush1.msra.mxu0 0.0
  %9098 = vmatprep.subr.mxu0 0.0
  %9099 = vmatpush1.msra.mxu0 0.0
  %9100 = vmatprep.subr.mxu0 0.0
  %9101 = vmatpush1.msra.mxu0 0.0
  %9102 = vmatprep.subr.mxu0 0.0
  %9103 = vmatpush1.msra.mxu0 0.0
  %9104 = vmatprep.subr.mxu0 0.0
  %9105 = vmatpush1.msra.mxu0 0.0
  %9106 = vmatprep.subr.mxu0 0.0
  %9107 = vmatpush1.msra.mxu0 0.0
  %9108 = vmatprep.subr.mxu0 0.0
  %9109 = vmatpush1.msra.mxu0 0.0
  %9110 = vmatprep.subr.mxu0 0.0
  %9111 = vmatpush1.msra.mxu0 0.0
  %9112 = vmatprep.subr.mxu0 0.0
  %9113 = vmatpush1.msra.mxu0 0.0
  %9114 = vmatprep.subr.mxu0 0.0
  %9115 = vmatpush1.msra.mxu0 0.0
  %9116 = vmatprep.subr.mxu0 0.0
  %9117 = vmatpush1.msra.mxu0 0.0
  %9118 = vmatprep.subr.mxu0 0.0
  %9119 = vmatpush1.msra.mxu0 0.0
  %9120 = vmatprep.subr.mxu0 0.0
  %9121 = vmatpush1.msra.mxu0 %v9091
  %9122 = vmatprep.subr.mxu0 0.0
  %9123 = vmatpush1.msra.mxu0 %v9090
  %9124 = vmatprep.subr.mxu0 0.0
  %9125 = vmatpush1.msra.mxu0 %v9089
  %9126 = vmatprep.subr.mxu0 0.0
  %9127 = vmatpush1.msra.mxu0 %v9088
  %9128 = vmatprep.subr.mxu0 0.0
  %9129 = vmatpush2.msra.mxu0 0.0
  %9130 = vmatprep.subr.mxu0 0.0
  %9131 = vmatpush2.msra.mxu0 0.0
  %9132 = vmatprep.subr.mxu0 0.0
  %9133 = vmatpush2.msra.mxu0 0.0
  %9134 = vmatprep.subr.mxu0 0.0
  %9135 = vmatpush2.msra.mxu0 0.0
  %9136 = vmatprep.subr.mxu0 0.0
  %9137 = vmatpush2.msra.mxu0 0.0
  %9138 = vmatprep.subr.mxu0 0.0
  %9139 = vmatpush2.msra.mxu0 0.0
  %9140 = vmatprep.subr.mxu0 0.0
  %9141 = vmatpush2.msra.mxu0 0.0
  %9142 = vmatprep.subr.mxu0 0.0
  %9143 = vmatpush2.msra.mxu0 0.0
  %9144 = vmatprep.subr.mxu0 0.0
  %9145 = vmatpush2.msra.mxu0 0.0
  %9146 = vmatprep.subr.mxu0 0.0
  %9147 = vmatpush2.msra.mxu0 0.0
  %9148 = vmatprep.subr.mxu0 0.0
  %9149 = vmatpush2.msra.mxu0 0.0
  %9150 = vmatprep.subr.mxu0 0.0
  %9151 = vmatpush2.msra.mxu0 0.0
  %9152 = vmatprep.subr.mxu0 0.0
  %9153 = vmatpush2.msra.mxu0 0.0
  %9154 = vmatprep.subr.mxu0 0.0
  %9155 = vmatpush2.msra.mxu0 0.0
  %9156 = vmatprep.subr.mxu0 0.0
  %9157 = vmatpush2.msra.mxu0 0.0
  %9158 = vmatprep.subr.mxu0 0.0
  %9159 = vmatpush2.msra.mxu0 0.0
  %9160 = vmatprep.mubr.f32.mxu0 0.0
  %9161 = vmatmul.mubr.f32.gmra.mxu0 %v9094
  %v9162 = vpop.f32.mrf.mxu0
  %v9163 = vadd.f32 %v9092, %v9162
  %v9164 = vpop.f32.mrf.mxu0
  %9165 = vdwg.mxu0
  %v9166 = vsel %vm2352, %v9163, -inf
  %9167 = vmax.xlane.f32.xlu0 %v9166
  %v9168 = vpop.xlane.xlu0 %9167
  %v9169 = vsub.f32 %v9163, %v9168
  %v9170 = vmul.f32 %v9169, 1.442695
  %v9171 = vpow.pop %v9170
  %v9172 = vsel %vm2352, %v9171, 0.0
  %9173 = vadd.xlane.f32.xlu0 %v9172
  %v9174 = vpop.xlane.xlu0 %9173
  %v9175 = vrcp.pop %v9174
  %v9176 = vmul.f32 %v9171, %v9175
  %9177 = vst.msk [vmem:[%s17 + $0x3] sm:$0x1] %vm2352, %v9176
  // Predicated region
  $region70: #{forward_pallas.1} parent=0 // pred_check
    _
  $region71: #{forward_pallas.1} parent=0 // pred_check_branch
    %9179 = sbr.rel (0) target = $region73
  $region72: #{forward_pallas.1} parent=0 // pred_region
    _
  $region73: #{forward_pallas.1} parent=0 // pred_fallthru
    _
  // Predicated region
  $region74: #{forward_pallas.1} parent=0 // pred_check
    _
  $region75: #{forward_pallas.1} parent=0 // pred_check_branch
    %9181 = sbr.rel (0) target = $region77
  $region76: #{forward_pallas.1} parent=0 // pred_region
    _
  $region77: #{forward_pallas.1} parent=0 // pred_fallthru
    _

</llo_original>
